<compile_context>
chip_gen: v5e
topology: v5e:2x2
jax: 0.10.0
libtpu: 0.0.40
codegen_flags: <defaults>
</compile_context>

<pallas_src>
import numpy as np
import jax
import jax.numpy as jnp
from jax.experimental import pallas as pl
from jax.experimental.pallas import tpu as pltpu

BN_EPS = 1e-5
NEG_SLOPE = 0.2
K_PAD = 64       # 49 conv taps padded to 64 (MXU contraction dim)
TAP_CHUNK = 16   # bf16 sublane tile: 16 tap rows per aligned scratch store
SLOT = 128       # lanes per (pool-window-position, batch) slot


def my_model_forward(x_nchw, w_oihw, b_unused, gamma, beta):
    """feature[:4] forward.  Conv bias accepted for interface parity but unused: under
    training-mode BatchNorm a per-channel bias is cancelled exactly by the batch mean."""
    del b_unused
    n, cin, h, w_in = x_nchw.shape
    cout, cin_w, kh, kw = w_oihw.shape
    assert cin == 1 and cin_w == 1 and kh == 7 and kw == 7
    pad = 1
    ho = h + 2 * pad - kh + 1                     # conv output spatial size (stride 1)
    wo = w_in + 2 * pad - kw + 1
    assert ho % 2 == 0 and wo % 2 == 0
    assert (h + 2 * pad) % 2 == 0 and (w_in + 2 * pad) % 2 == 0
    hp, wp = ho // 2, wo // 2                     # pooled output spatial size
    hpl, wpl = (h + 2 * pad) // 2, (w_in + 2 * pad) // 2   # parity-plane spatial size

    assert hp * wpl <= SLOT                       # one pooled block fits a 128-lane slot
    blk_g = n * SLOT                              # lanes per pooling-window-position group
    lanes = 4 * blk_g
    n_valid = n * ho * wo                         # BN reduction count per channel
    max_off = (kh // 2) * wpl + (kw // 2)         # largest in-plane tap offset
    flat_w = -(-(max_off + SLOT) // 128) * 128    # padded flattened parity-plane width
    assert hpl * wpl <= flat_w
    n_chunks = K_PAD // TAP_CHUNK

    def kernel(x_ref, w_ref, gamma_ref, beta_ref, mask_ref, out_ref, pt_ref, y_ref):
        # ---------- in-kernel im2col into bf16 scratch, aligned 128-lane slots ----------
        zrow = jnp.zeros((1, SLOT), jnp.bfloat16)
        for g in range(4):                        # pooling-window position (dy, dx)
            dy, dx = g // 2, g % 2
            for c in range(n_chunks):             # 16 tap rows per aligned store
                k0 = c * TAP_CHUNK
                taps = []                         # (N, SLOT) bf16 per tap (None = pad row)
                for k in range(k0, k0 + TAP_CHUNK):
                    if k < kh * kw:
                        i, j = k // kw, k % kw
                        sy, sx = dy + i, dx + j
                        plane = (sy % 2) * 2 + (sx % 2)
                        off = (sy // 2) * wpl + (sx // 2)
                        r0 = plane * n
                        taps.append(x_ref[r0:r0 + n, off:off + SLOT].astype(jnp.bfloat16))
                    else:
                        taps.append(None)         # K-padding rows folded into last chunk
                for nb in range(n):
                    rows = [zrow if t is None else t[nb:nb + 1, :] for t in taps]
                    s = g * n + nb                # destination slot, 128-lane aligned
                    pt_ref[k0:k0 + TAP_CHUNK, s * SLOT:(s + 1) * SLOT] = (
                        jnp.concatenate(rows, axis=0))

        # ---------- conv (fused MXU matmul) + masked BN batch statistics, chunked ----------
        s_acc = jnp.zeros((cout, 1), jnp.float32)
        q_acc = jnp.zeros((cout, 1), jnp.float32)
        for c in range(lanes // SLOT):            # 128-lane chunks keep live set in vregs
            c0, c1 = c * SLOT, (c + 1) * SLOT
            yc = jnp.dot(w_ref[...], pt_ref[:, c0:c1],
                         preferred_element_type=jnp.float32)     # (Cout, 128) f32
            y_ref[:, c0:c1] = yc
            ym = yc * mask_ref[:, c0:c1]
            s_acc = s_acc + jnp.sum(ym, axis=1, keepdims=True)
            q_acc = q_acc + jnp.sum(yc * ym, axis=1, keepdims=True)

        inv_cnt = 1.0 / float(n_valid)
        mean = s_acc * inv_cnt
        var = q_acc * inv_cnt - mean * mean        # biased (training-mode) variance
        inv = jax.lax.rsqrt(var + BN_EPS)
        g_inv = gamma_ref[...] * inv
        scale = jnp.broadcast_to(g_inv, (cout, SLOT))                     # hoisted broadcasts
        shift = jnp.broadcast_to(beta_ref[...] - mean * g_inv, (cout, SLOT))

        # ---------- BN affine + LeakyReLU(0.2) + MaxPool2d(2,2), 128-lane output chunks ----------
        for c in range(blk_g // SLOT):
            lo = c * SLOT
            zs = []
            for g in range(4):
                yc = y_ref[:, g * blk_g + lo:g * blk_g + lo + SLOT]
                z = yc * scale + shift
                zs.append(jnp.where(z > 0, z, NEG_SLOPE * z))
            out_ref[:, lo:lo + SLOT] = jnp.maximum(jnp.maximum(zs[0], zs[1]),
                                                   jnp.maximum(zs[2], zs[3]))

    # ---------- tiny wrapper-side prep (KB scale; no patch expansion) ----------
    xs = x_nchw.reshape(n, h, w_in)
    xpad = jnp.pad(xs, ((0, 0), (pad, pad), (pad, pad)))              # (N, H+2, W+2)
    planes = [xpad[:, a::2, b::2] for a in (0, 1) for b in (0, 1)]    # 4 x (N, hpl, wpl)
    x2d = jnp.stack(planes, axis=0).reshape(4 * n, hpl * wpl)
    x2d = jnp.pad(x2d, ((0, 0), (0, flat_w - hpl * wpl)))             # (4N, flat_w) f32

    # conv weight (Cout,1,7,7) -> (Cout, K_PAD) bf16, tap order k = i*kw + j
    w_mat = jnp.pad(w_oihw.reshape(cout, kh * kw),
                    ((0, 0), (0, K_PAD - kh * kw))).astype(jnp.bfloat16)

    # validity mask over the 128-lane slot layout: lane = hp_idx*wpl + wp_idx,
    # valid iff hp_idx < hp and wp_idx < wp (identical for every slot)
    l = np.arange(SLOT)
    valid = ((l < hp * wpl) & (l % wpl < wp)).astype(np.float32)
    mask = jnp.asarray(np.tile(valid, 4 * n).reshape(1, lanes))

    out = pl.pallas_call(
        kernel,
        out_shape=jax.ShapeDtypeStruct((cout, blk_g), jnp.float32),
        in_specs=[pl.BlockSpec(memory_space=pltpu.MemorySpace.VMEM)] * 5,
        out_specs=pl.BlockSpec(memory_space=pltpu.MemorySpace.VMEM),
        scratch_shapes=[pltpu.VMEM((K_PAD, lanes), jnp.bfloat16),     # patch matrix P^T
                        pltpu.VMEM((cout, lanes), jnp.float32)],      # conv output y
    )(x2d, w_mat, gamma.reshape(cout, 1), beta.reshape(cout, 1), mask)

    # (Cout, N*128) -> drop pad lanes -> NCHW (N, Cout, Hp, Wp)
    out = out.reshape(cout, n, SLOT)[:, :, :hp * wpl]
    out = out.reshape(cout, n, hp, wpl)[:, :, :, :wp]
    return jnp.transpose(out, (1, 0, 2, 3))


def reference_forward(x, w, b, gamma, beta):
    """Pure-XLA f32 reference of feature[:4] (training-mode BN, bias included)."""
    y = jax.lax.conv_general_dilated(
        x, w, window_strides=(1, 1), padding=((1, 1), (1, 1)),
        dimension_numbers=("NCHW", "OIHW", "NCHW"))
    y = y + b.reshape(1, -1, 1, 1)
    mean = jnp.mean(y, axis=(0, 2, 3), keepdims=True)
    var = jnp.mean(jnp.square(y - mean), axis=(0, 2, 3), keepdims=True)
    z = (y - mean) * jax.lax.rsqrt(var + BN_EPS)
    z = z * gamma.reshape(1, -1, 1, 1) + beta.reshape(1, -1, 1, 1)
    z = jnp.where(z > 0, z, NEG_SLOPE * z)
    nb, cb, hb, wb = z.shape
    return z.reshape(nb, cb, hb // 2, 2, wb // 2, 2).max(axis=(3, 5))


if __name__ == "__main__":
    key = jax.random.PRNGKey(0)
    k1, k2, k3, k4, k5 = jax.random.split(key, 5)

    # MNIST-style single-channel input, small spatial size.
    N, Cin, H, W = 2, 1, 16, 16
    Cout, KH, KW = 64, 7, 7

    x = jax.random.normal(k1, (N, Cin, H, W), jnp.float32)
    conv_w = 0.1 * jax.random.normal(k2, (Cout, Cin, KH, KW), jnp.float32)
    conv_b = 0.1 * jax.random.normal(k3, (Cout,), jnp.float32)   # cancelled by training-mode BN
    bn_gamma = 1.0 + 0.1 * jax.random.normal(k4, (Cout,), jnp.float32)
    bn_beta = 0.1 * jax.random.normal(k5, (Cout,), jnp.float32)

    fwd = jax.jit(my_model_forward)
    y = fwd(x, conv_w, conv_b, bn_gamma, bn_beta)
    jax.block_until_ready(y)

    Hp = (H + 2 - KH + 1) // 2
    Wp = (W + 2 - KW + 1) // 2
    assert y.shape == (N, Cout, Hp, Wp), y.shape
    assert y.dtype == jnp.float32
    assert bool(jnp.all(jnp.isfinite(y)))

    # numerical check vs f32 XLA reference (kernel conv runs in bf16 -> loose tolerance)
    y_ref = reference_forward(x, conv_w, conv_b, bn_gamma, bn_beta)
    max_err = float(jnp.max(jnp.abs(y - y_ref)))
    assert max_err < 1e-1, f"max abs error vs reference: {max_err}"

    print("KERNEL_OK")
</pallas_src>

<mosaic_0001>
module attributes {stable_mosaic.version = 11 : i64} {
  func.func @kernel(%arg0: memref<8x256xf32, #tpu.memory_space<vmem>>, %arg1: memref<64x64xbf16, #tpu.memory_space<vmem>>, %arg2: memref<64x1xf32, #tpu.memory_space<vmem>>, %arg3: memref<64x1xf32, #tpu.memory_space<vmem>>, %arg4: memref<1x1024xf32, #tpu.memory_space<vmem>>, %arg5: memref<64x256xf32, #tpu.memory_space<vmem>>, %arg6: memref<64x1024xbf16, #tpu.memory_space<vmem>>, %arg7: memref<64x1024xf32, #tpu.memory_space<vmem>>) attributes {dimension_semantics = [], scalar_prefetch = 0 : i64, scratch_operands = 2 : i64, tpu.core_type = #tpu.core_type<tc>} {
    %cst = arith.constant 0.000000e+00 : bf16
    %0 = vector.broadcast %cst : bf16 to vector<1x128xbf16>
    %c0 = arith.constant 0 : index
    %c0_0 = arith.constant 0 : index
    %1 = vector.load %arg0[%c0, %c0_0] : memref<8x256xf32, #tpu.memory_space<vmem>>, vector<2x128xf32>
    %2 = arith.truncf %1 : vector<2x128xf32> to vector<2x128xbf16>
    %c2 = arith.constant 2 : index
    %c0_1 = arith.constant 0 : index
    %3 = vector.load %arg0[%c2, %c0_1] : memref<8x256xf32, #tpu.memory_space<vmem>>, vector<2x128xf32>
    %4 = arith.truncf %3 : vector<2x128xf32> to vector<2x128xbf16>
    %c0_2 = arith.constant 0 : index
    %c1 = arith.constant 1 : index
    %5 = vector.load %arg0[%c0_2, %c1] : memref<8x256xf32, #tpu.memory_space<vmem>>, vector<2x128xf32>
    %6 = arith.truncf %5 : vector<2x128xf32> to vector<2x128xbf16>
    %c2_3 = arith.constant 2 : index
    %c1_4 = arith.constant 1 : index
    %7 = vector.load %arg0[%c2_3, %c1_4] : memref<8x256xf32, #tpu.memory_space<vmem>>, vector<2x128xf32>
    %8 = arith.truncf %7 : vector<2x128xf32> to vector<2x128xbf16>
    %c0_5 = arith.constant 0 : index
    %c2_6 = arith.constant 2 : index
    %9 = vector.load %arg0[%c0_5, %c2_6] : memref<8x256xf32, #tpu.memory_space<vmem>>, vector<2x128xf32>
    %10 = arith.truncf %9 : vector<2x128xf32> to vector<2x128xbf16>
    %c2_7 = arith.constant 2 : index
    %c2_8 = arith.constant 2 : index
    %11 = vector.load %arg0[%c2_7, %c2_8] : memref<8x256xf32, #tpu.memory_space<vmem>>, vector<2x128xf32>
    %12 = arith.truncf %11 : vector<2x128xf32> to vector<2x128xbf16>
    %c0_9 = arith.constant 0 : index
    %c3 = arith.constant 3 : index
    %13 = vector.load %arg0[%c0_9, %c3] : memref<8x256xf32, #tpu.memory_space<vmem>>, vector<2x128xf32>
    %14 = arith.truncf %13 : vector<2x128xf32> to vector<2x128xbf16>
    %c4 = arith.constant 4 : index
    %c0_10 = arith.constant 0 : index
    %15 = vector.load %arg0[%c4, %c0_10] : memref<8x256xf32, #tpu.memory_space<vmem>>, vector<2x128xf32>
    %16 = arith.truncf %15 : vector<2x128xf32> to vector<2x128xbf16>
    %c6 = arith.constant 6 : index
    %c0_11 = arith.constant 0 : index
    %17 = vector.load %arg0[%c6, %c0_11] : memref<8x256xf32, #tpu.memory_space<vmem>>, vector<2x128xf32>
    %18 = arith.truncf %17 : vector<2x128xf32> to vector<2x128xbf16>
    %c4_12 = arith.constant 4 : index
    %c1_13 = arith.constant 1 : index
    %19 = vector.load %arg0[%c4_12, %c1_13] : memref<8x256xf32, #tpu.memory_space<vmem>>, vector<2x128xf32>
    %20 = arith.truncf %19 : vector<2x128xf32> to vector<2x128xbf16>
    %c6_14 = arith.constant 6 : index
    %c1_15 = arith.constant 1 : index
    %21 = vector.load %arg0[%c6_14, %c1_15] : memref<8x256xf32, #tpu.memory_space<vmem>>, vector<2x128xf32>
    %22 = arith.truncf %21 : vector<2x128xf32> to vector<2x128xbf16>
    %c4_16 = arith.constant 4 : index
    %c2_17 = arith.constant 2 : index
    %23 = vector.load %arg0[%c4_16, %c2_17] : memref<8x256xf32, #tpu.memory_space<vmem>>, vector<2x128xf32>
    %24 = arith.truncf %23 : vector<2x128xf32> to vector<2x128xbf16>
    %c6_18 = arith.constant 6 : index
    %c2_19 = arith.constant 2 : index
    %25 = vector.load %arg0[%c6_18, %c2_19] : memref<8x256xf32, #tpu.memory_space<vmem>>, vector<2x128xf32>
    %26 = arith.truncf %25 : vector<2x128xf32> to vector<2x128xbf16>
    %c4_20 = arith.constant 4 : index
    %c3_21 = arith.constant 3 : index
    %27 = vector.load %arg0[%c4_20, %c3_21] : memref<8x256xf32, #tpu.memory_space<vmem>>, vector<2x128xf32>
    %28 = arith.truncf %27 : vector<2x128xf32> to vector<2x128xbf16>
    %c0_22 = arith.constant 0 : index
    %c9 = arith.constant 9 : index
    %29 = vector.load %arg0[%c0_22, %c9] : memref<8x256xf32, #tpu.memory_space<vmem>>, vector<2x128xf32>
    %30 = arith.truncf %29 : vector<2x128xf32> to vector<2x128xbf16>
    %c2_23 = arith.constant 2 : index
    %c9_24 = arith.constant 9 : index
    %31 = vector.load %arg0[%c2_23, %c9_24] : memref<8x256xf32, #tpu.memory_space<vmem>>, vector<2x128xf32>
    %32 = arith.truncf %31 : vector<2x128xf32> to vector<2x128xbf16>
    %33 = vector.extract_strided_slice %2 {offsets = [0, 0], sizes = [1, 128], strides = [1, 1]} : vector<2x128xbf16> to vector<1x128xbf16>
    %34 = vector.extract_strided_slice %4 {offsets = [0, 0], sizes = [1, 128], strides = [1, 1]} : vector<2x128xbf16> to vector<1x128xbf16>
    %35 = vector.extract_strided_slice %6 {offsets = [0, 0], sizes = [1, 128], strides = [1, 1]} : vector<2x128xbf16> to vector<1x128xbf16>
    %36 = vector.extract_strided_slice %8 {offsets = [0, 0], sizes = [1, 128], strides = [1, 1]} : vector<2x128xbf16> to vector<1x128xbf16>
    %37 = vector.extract_strided_slice %10 {offsets = [0, 0], sizes = [1, 128], strides = [1, 1]} : vector<2x128xbf16> to vector<1x128xbf16>
    %38 = vector.extract_strided_slice %12 {offsets = [0, 0], sizes = [1, 128], strides = [1, 1]} : vector<2x128xbf16> to vector<1x128xbf16>
    %39 = vector.extract_strided_slice %14 {offsets = [0, 0], sizes = [1, 128], strides = [1, 1]} : vector<2x128xbf16> to vector<1x128xbf16>
    %40 = vector.extract_strided_slice %16 {offsets = [0, 0], sizes = [1, 128], strides = [1, 1]} : vector<2x128xbf16> to vector<1x128xbf16>
    %41 = vector.extract_strided_slice %18 {offsets = [0, 0], sizes = [1, 128], strides = [1, 1]} : vector<2x128xbf16> to vector<1x128xbf16>
    %42 = vector.extract_strided_slice %20 {offsets = [0, 0], sizes = [1, 128], strides = [1, 1]} : vector<2x128xbf16> to vector<1x128xbf16>
    %43 = vector.extract_strided_slice %22 {offsets = [0, 0], sizes = [1, 128], strides = [1, 1]} : vector<2x128xbf16> to vector<1x128xbf16>
    %44 = vector.extract_strided_slice %24 {offsets = [0, 0], sizes = [1, 128], strides = [1, 1]} : vector<2x128xbf16> to vector<1x128xbf16>
    %45 = vector.extract_strided_slice %26 {offsets = [0, 0], sizes = [1, 128], strides = [1, 1]} : vector<2x128xbf16> to vector<1x128xbf16>
    %46 = vector.extract_strided_slice %28 {offsets = [0, 0], sizes = [1, 128], strides = [1, 1]} : vector<2x128xbf16> to vector<1x128xbf16>
    %47 = vector.extract_strided_slice %30 {offsets = [0, 0], sizes = [1, 128], strides = [1, 1]} : vector<2x128xbf16> to vector<1x128xbf16>
    %48 = vector.extract_strided_slice %32 {offsets = [0, 0], sizes = [1, 128], strides = [1, 1]} : vector<2x128xbf16> to vector<1x128xbf16>
    %49 = tpu.concatenate %33, %34, %35, %36, %37, %38, %39, %40, %41, %42, %43, %44, %45, %46, %47, %48 in 0 : vector<1x128xbf16>, vector<1x128xbf16>, vector<1x128xbf16>, vector<1x128xbf16>, vector<1x128xbf16>, vector<1x128xbf16>, vector<1x128xbf16>, vector<1x128xbf16>, vector<1x128xbf16>, vector<1x128xbf16>, vector<1x128xbf16>, vector<1x128xbf16>, vector<1x128xbf16>, vector<1x128xbf16>, vector<1x128xbf16>, vector<1x128xbf16> -> vector<16x128xbf16>
    %c0_25 = arith.constant 0 : index
    %c0_26 = arith.constant 0 : index
    %50 = vector.load %arg6[%c0_25, %c0_26] : memref<64x1024xbf16, #tpu.memory_space<vmem>>, vector<16x128xbf16>
    tpu.vector_store %arg6[%c0_25, %c0_26], %49 {strides = array<i32>} : memref<64x1024xbf16, #tpu.memory_space<vmem>>, vector<16x128xbf16>,
    %51 = vector.extract_strided_slice %2 {offsets = [1, 0], sizes = [1, 128], strides = [1, 1]} : vector<2x128xbf16> to vector<1x128xbf16>
    %52 = vector.extract_strided_slice %4 {offsets = [1, 0], sizes = [1, 128], strides = [1, 1]} : vector<2x128xbf16> to vector<1x128xbf16>
    %53 = vector.extract_strided_slice %6 {offsets = [1, 0], sizes = [1, 128], strides = [1, 1]} : vector<2x128xbf16> to vector<1x128xbf16>
    %54 = vector.extract_strided_slice %8 {offsets = [1, 0], sizes = [1, 128], strides = [1, 1]} : vector<2x128xbf16> to vector<1x128xbf16>
    %55 = vector.extract_strided_slice %10 {offsets = [1, 0], sizes = [1, 128], strides = [1, 1]} : vector<2x128xbf16> to vector<1x128xbf16>
    %56 = vector.extract_strided_slice %12 {offsets = [1, 0], sizes = [1, 128], strides = [1, 1]} : vector<2x128xbf16> to vector<1x128xbf16>
    %57 = vector.extract_strided_slice %14 {offsets = [1, 0], sizes = [1, 128], strides = [1, 1]} : vector<2x128xbf16> to vector<1x128xbf16>
    %58 = vector.extract_strided_slice %16 {offsets = [1, 0], sizes = [1, 128], strides = [1, 1]} : vector<2x128xbf16> to vector<1x128xbf16>
    %59 = vector.extract_strided_slice %18 {offsets = [1, 0], sizes = [1, 128], strides = [1, 1]} : vector<2x128xbf16> to vector<1x128xbf16>
    %60 = vector.extract_strided_slice %20 {offsets = [1, 0], sizes = [1, 128], strides = [1, 1]} : vector<2x128xbf16> to vector<1x128xbf16>
    %61 = vector.extract_strided_slice %22 {offsets = [1, 0], sizes = [1, 128], strides = [1, 1]} : vector<2x128xbf16> to vector<1x128xbf16>
    %62 = vector.extract_strided_slice %24 {offsets = [1, 0], sizes = [1, 128], strides = [1, 1]} : vector<2x128xbf16> to vector<1x128xbf16>
    %63 = vector.extract_strided_slice %26 {offsets = [1, 0], sizes = [1, 128], strides = [1, 1]} : vector<2x128xbf16> to vector<1x128xbf16>
    %64 = vector.extract_strided_slice %28 {offsets = [1, 0], sizes = [1, 128], strides = [1, 1]} : vector<2x128xbf16> to vector<1x128xbf16>
    %65 = vector.extract_strided_slice %30 {offsets = [1, 0], sizes = [1, 128], strides = [1, 1]} : vector<2x128xbf16> to vector<1x128xbf16>
    %66 = vector.extract_strided_slice %32 {offsets = [1, 0], sizes = [1, 128], strides = [1, 1]} : vector<2x128xbf16> to vector<1x128xbf16>
    %67 = tpu.concatenate %51, %52, %53, %54, %55, %56, %57, %58, %59, %60, %61, %62, %63, %64, %65, %66 in 0 : vector<1x128xbf16>, vector<1x128xbf16>, vector<1x128xbf16>, vector<1x128xbf16>, vector<1x128xbf16>, vector<1x128xbf16>, vector<1x128xbf16>, vector<1x128xbf16>, vector<1x128xbf16>, vector<1x128xbf16>, vector<1x128xbf16>, vector<1x128xbf16>, vector<1x128xbf16>, vector<1x128xbf16>, vector<1x128xbf16>, vector<1x128xbf16> -> vector<16x128xbf16>
    %c0_27 = arith.constant 0 : index
    %c128 = arith.constant 128 : index
    %68 = vector.load %arg6[%c0_27, %c128] : memref<64x1024xbf16, #tpu.memory_space<vmem>>, vector<16x128xbf16>
    tpu.vector_store %arg6[%c0_27, %c128], %67 {strides = array<i32>} : memref<64x1024xbf16, #tpu.memory_space<vmem>>, vector<16x128xbf16>,
    %c0_28 = arith.constant 0 : index
    %c10 = arith.constant 10 : index
    %69 = vector.load %arg0[%c0_28, %c10] : memref<8x256xf32, #tpu.memory_space<vmem>>, vector<2x128xf32>
    %70 = arith.truncf %69 : vector<2x128xf32> to vector<2x128xbf16>
    %c2_29 = arith.constant 2 : index
    %c10_30 = arith.constant 10 : index
    %71 = vector.load %arg0[%c2_29, %c10_30] : memref<8x256xf32, #tpu.memory_space<vmem>>, vector<2x128xf32>
    %72 = arith.truncf %71 : vector<2x128xf32> to vector<2x128xbf16>
    %c0_31 = arith.constant 0 : index
    %c11 = arith.constant 11 : index
    %73 = vector.load %arg0[%c0_31, %c11] : memref<8x256xf32, #tpu.memory_space<vmem>>, vector<2x128xf32>
    %74 = arith.truncf %73 : vector<2x128xf32> to vector<2x128xbf16>
    %c2_32 = arith.constant 2 : index
    %c11_33 = arith.constant 11 : index
    %75 = vector.load %arg0[%c2_32, %c11_33] : memref<8x256xf32, #tpu.memory_space<vmem>>, vector<2x128xf32>
    %76 = arith.truncf %75 : vector<2x128xf32> to vector<2x128xbf16>
    %c0_34 = arith.constant 0 : index
    %c12 = arith.constant 12 : index
    %77 = vector.load %arg0[%c0_34, %c12] : memref<8x256xf32, #tpu.memory_space<vmem>>, vector<2x128xf32>
    %78 = arith.truncf %77 : vector<2x128xf32> to vector<2x128xbf16>
    %c4_35 = arith.constant 4 : index
    %c9_36 = arith.constant 9 : index
    %79 = vector.load %arg0[%c4_35, %c9_36] : memref<8x256xf32, #tpu.memory_space<vmem>>, vector<2x128xf32>
    %80 = arith.truncf %79 : vector<2x128xf32> to vector<2x128xbf16>
    %c6_37 = arith.constant 6 : index
    %c9_38 = arith.constant 9 : index
    %81 = vector.load %arg0[%c6_37, %c9_38] : memref<8x256xf32, #tpu.memory_space<vmem>>, vector<2x128xf32>
    %82 = arith.truncf %81 : vector<2x128xf32> to vector<2x128xbf16>
    %c4_39 = arith.constant 4 : index
    %c10_40 = arith.constant 10 : index
    %83 = vector.load %arg0[%c4_39, %c10_40] : memref<8x256xf32, #tpu.memory_space<vmem>>, vector<2x128xf32>
    %84 = arith.truncf %83 : vector<2x128xf32> to vector<2x128xbf16>
    %c6_41 = arith.constant 6 : index
    %c10_42 = arith.constant 10 : index
    %85 = vector.load %arg0[%c6_41, %c10_42] : memref<8x256xf32, #tpu.memory_space<vmem>>, vector<2x128xf32>
    %86 = arith.truncf %85 : vector<2x128xf32> to vector<2x128xbf16>
    %c4_43 = arith.constant 4 : index
    %c11_44 = arith.constant 11 : index
    %87 = vector.load %arg0[%c4_43, %c11_44] : memref<8x256xf32, #tpu.memory_space<vmem>>, vector<2x128xf32>
    %88 = arith.truncf %87 : vector<2x128xf32> to vector<2x128xbf16>
    %c6_45 = arith.constant 6 : index
    %c11_46 = arith.constant 11 : index
    %89 = vector.load %arg0[%c6_45, %c11_46] : memref<8x256xf32, #tpu.memory_space<vmem>>, vector<2x128xf32>
    %90 = arith.truncf %89 : vector<2x128xf32> to vector<2x128xbf16>
    %c4_47 = arith.constant 4 : index
    %c12_48 = arith.constant 12 : index
    %91 = vector.load %arg0[%c4_47, %c12_48] : memref<8x256xf32, #tpu.memory_space<vmem>>, vector<2x128xf32>
    %92 = arith.truncf %91 : vector<2x128xf32> to vector<2x128xbf16>
    %c0_49 = arith.constant 0 : index
    %c18 = arith.constant 18 : index
    %93 = vector.load %arg0[%c0_49, %c18] : memref<8x256xf32, #tpu.memory_space<vmem>>, vector<2x128xf32>
    %94 = arith.truncf %93 : vector<2x128xf32> to vector<2x128xbf16>
    %c2_50 = arith.constant 2 : index
    %c18_51 = arith.constant 18 : index
    %95 = vector.load %arg0[%c2_50, %c18_51] : memref<8x256xf32, #tpu.memory_space<vmem>>, vector<2x128xf32>
    %96 = arith.truncf %95 : vector<2x128xf32> to vector<2x128xbf16>
    %c0_52 = arith.constant 0 : index
    %c19 = arith.constant 19 : index
    %97 = vector.load %arg0[%c0_52, %c19] : memref<8x256xf32, #tpu.memory_space<vmem>>, vector<2x128xf32>
    %98 = arith.truncf %97 : vector<2x128xf32> to vector<2x128xbf16>
    %c2_53 = arith.constant 2 : index
    %c19_54 = arith.constant 19 : index
    %99 = vector.load %arg0[%c2_53, %c19_54] : memref<8x256xf32, #tpu.memory_space<vmem>>, vector<2x128xf32>
    %100 = arith.truncf %99 : vector<2x128xf32> to vector<2x128xbf16>
    %101 = vector.extract_strided_slice %70 {offsets = [0, 0], sizes = [1, 128], strides = [1, 1]} : vector<2x128xbf16> to vector<1x128xbf16>
    %102 = vector.extract_strided_slice %72 {offsets = [0, 0], sizes = [1, 128], strides = [1, 1]} : vector<2x128xbf16> to vector<1x128xbf16>
    %103 = vector.extract_strided_slice %74 {offsets = [0, 0], sizes = [1, 128], strides = [1, 1]} : vector<2x128xbf16> to vector<1x128xbf16>
    %104 = vector.extract_strided_slice %76 {offsets = [0, 0], sizes = [1, 128], strides = [1, 1]} : vector<2x128xbf16> to vector<1x128xbf16>
    %105 = vector.extract_strided_slice %78 {offsets = [0, 0], sizes = [1, 128], strides = [1, 1]} : vector<2x128xbf16> to vector<1x128xbf16>
    %106 = vector.extract_strided_slice %80 {offsets = [0, 0], sizes = [1, 128], strides = [1, 1]} : vector<2x128xbf16> to vector<1x128xbf16>
    %107 = vector.extract_strided_slice %82 {offsets = [0, 0], sizes = [1, 128], strides = [1, 1]} : vector<2x128xbf16> to vector<1x128xbf16>
    %108 = vector.extract_strided_slice %84 {offsets = [0, 0], sizes = [1, 128], strides = [1, 1]} : vector<2x128xbf16> to vector<1x128xbf16>
    %109 = vector.extract_strided_slice %86 {offsets = [0, 0], sizes = [1, 128], strides = [1, 1]} : vector<2x128xbf16> to vector<1x128xbf16>
    %110 = vector.extract_strided_slice %88 {offsets = [0, 0], sizes = [1, 128], strides = [1, 1]} : vector<2x128xbf16> to vector<1x128xbf16>
    %111 = vector.extract_strided_slice %90 {offsets = [0, 0], sizes = [1, 128], strides = [1, 1]} : vector<2x128xbf16> to vector<1x128xbf16>
    %112 = vector.extract_strided_slice %92 {offsets = [0, 0], sizes = [1, 128], strides = [1, 1]} : vector<2x128xbf16> to vector<1x128xbf16>
    %113 = vector.extract_strided_slice %94 {offsets = [0, 0], sizes = [1, 128], strides = [1, 1]} : vector<2x128xbf16> to vector<1x128xbf16>
    %114 = vector.extract_strided_slice %96 {offsets = [0, 0], sizes = [1, 128], strides = [1, 1]} : vector<2x128xbf16> to vector<1x128xbf16>
    %115 = vector.extract_strided_slice %98 {offsets = [0, 0], sizes = [1, 128], strides = [1, 1]} : vector<2x128xbf16> to vector<1x128xbf16>
    %116 = vector.extract_strided_slice %100 {offsets = [0, 0], sizes = [1, 128], strides = [1, 1]} : vector<2x128xbf16> to vector<1x128xbf16>
    %117 = tpu.concatenate %101, %102, %103, %104, %105, %106, %107, %108, %109, %110, %111, %112, %113, %114, %115, %116 in 0 : vector<1x128xbf16>, vector<1x128xbf16>, vector<1x128xbf16>, vector<1x128xbf16>, vector<1x128xbf16>, vector<1x128xbf16>, vector<1x128xbf16>, vector<1x128xbf16>, vector<1x128xbf16>, vector<1x128xbf16>, vector<1x128xbf16>, vector<1x128xbf16>, vector<1x128xbf16>, vector<1x128xbf16>, vector<1x128xbf16>, vector<1x128xbf16> -> vector<16x128xbf16>
    %c16 = arith.constant 16 : index
    %c0_55 = arith.constant 0 : index
    %118 = vector.load %arg6[%c16, %c0_55] : memref<64x1024xbf16, #tpu.memory_space<vmem>>, vector<16x128xbf16>
    tpu.vector_store %arg6[%c16, %c0_55], %117 {strides = array<i32>} : memref<64x1024xbf16, #tpu.memory_space<vmem>>, vector<16x128xbf16>,
    %119 = vector.extract_strided_slice %70 {offsets = [1, 0], sizes = [1, 128], strides = [1, 1]} : vector<2x128xbf16> to vector<1x128xbf16>
    %120 = vector.extract_strided_slice %72 {offsets = [1, 0], sizes = [1, 128], strides = [1, 1]} : vector<2x128xbf16> to vector<1x128xbf16>
    %121 = vector.extract_strided_slice %74 {offsets = [1, 0], sizes = [1, 128], strides = [1, 1]} : vector<2x128xbf16> to vector<1x128xbf16>
    %122 = vector.extract_strided_slice %76 {offsets = [1, 0], sizes = [1, 128], strides = [1, 1]} : vector<2x128xbf16> to vector<1x128xbf16>
    %123 = vector.extract_strided_slice %78 {offsets = [1, 0], sizes = [1, 128], strides = [1, 1]} : vector<2x128xbf16> to vector<1x128xbf16>
    %124 = vector.extract_strided_slice %80 {offsets = [1, 0], sizes = [1, 128], strides = [1, 1]} : vector<2x128xbf16> to vector<1x128xbf16>
    %125 = vector.extract_strided_slice %82 {offsets = [1, 0], sizes = [1, 128], strides = [1, 1]} : vector<2x128xbf16> to vector<1x128xbf16>
    %126 = vector.extract_strided_slice %84 {offsets = [1, 0], sizes = [1, 128], strides = [1, 1]} : vector<2x128xbf16> to vector<1x128xbf16>
    %127 = vector.extract_strided_slice %86 {offsets = [1, 0], sizes = [1, 128], strides = [1, 1]} : vector<2x128xbf16> to vector<1x128xbf16>
    %128 = vector.extract_strided_slice %88 {offsets = [1, 0], sizes = [1, 128], strides = [1, 1]} : vector<2x128xbf16> to vector<1x128xbf16>
    %129 = vector.extract_strided_slice %90 {offsets = [1, 0], sizes = [1, 128], strides = [1, 1]} : vector<2x128xbf16> to vector<1x128xbf16>
    %130 = vector.extract_strided_slice %92 {offsets = [1, 0], sizes = [1, 128], strides = [1, 1]} : vector<2x128xbf16> to vector<1x128xbf16>
    %131 = vector.extract_strided_slice %94 {offsets = [1, 0], sizes = [1, 128], strides = [1, 1]} : vector<2x128xbf16> to vector<1x128xbf16>
    %132 = vector.extract_strided_slice %96 {offsets = [1, 0], sizes = [1, 128], strides = [1, 1]} : vector<2x128xbf16> to vector<1x128xbf16>
    %133 = vector.extract_strided_slice %98 {offsets = [1, 0], sizes = [1, 128], strides = [1, 1]} : vector<2x128xbf16> to vector<1x128xbf16>
    %134 = vector.extract_strided_slice %100 {offsets = [1, 0], sizes = [1, 128], strides = [1, 1]} : vector<2x128xbf16> to vector<1x128xbf16>
    %135 = tpu.concatenate %119, %120, %121, %122, %123, %124, %125, %126, %127, %128, %129, %130, %131, %132, %133, %134 in 0 : vector<1x128xbf16>, vector<1x128xbf16>, vector<1x128xbf16>, vector<1x128xbf16>, vector<1x128xbf16>, vector<1x128xbf16>, vector<1x128xbf16>, vector<1x128xbf16>, vector<1x128xbf16>, vector<1x128xbf16>, vector<1x128xbf16>, vector<1x128xbf16>, vector<1x128xbf16>, vector<1x128xbf16>, vector<1x128xbf16>, vector<1x128xbf16> -> vector<16x128xbf16>
    %c16_56 = arith.constant 16 : index
    %c128_57 = arith.constant 128 : index
    %136 = vector.load %arg6[%c16_56, %c128_57] : memref<64x1024xbf16, #tpu.memory_space<vmem>>, vector<16x128xbf16>
    tpu.vector_store %arg6[%c16_56, %c128_57], %135 {strides = array<i32>} : memref<64x1024xbf16, #tpu.memory_space<vmem>>, vector<16x128xbf16>,
    %c0_58 = arith.constant 0 : index
    %c20 = arith.constant 20 : index
    %137 = vector.load %arg0[%c0_58, %c20] : memref<8x256xf32, #tpu.memory_space<vmem>>, vector<2x128xf32>
    %138 = arith.truncf %137 : vector<2x128xf32> to vector<2x128xbf16>
    %c2_59 = arith.constant 2 : index
    %c20_60 = arith.constant 20 : index
    %139 = vector.load %arg0[%c2_59, %c20_60] : memref<8x256xf32, #tpu.memory_space<vmem>>, vector<2x128xf32>
    %140 = arith.truncf %139 : vector<2x128xf32> to vector<2x128xbf16>
    %c0_61 = arith.constant 0 : index
    %c21 = arith.constant 21 : index
    %141 = vector.load %arg0[%c0_61, %c21] : memref<8x256xf32, #tpu.memory_space<vmem>>, vector<2x128xf32>
    %142 = arith.truncf %141 : vector<2x128xf32> to vector<2x128xbf16>
    %c4_62 = arith.constant 4 : index
    %c18_63 = arith.constant 18 : index
    %143 = vector.load %arg0[%c4_62, %c18_63] : memref<8x256xf32, #tpu.memory_space<vmem>>, vector<2x128xf32>
    %144 = arith.truncf %143 : vector<2x128xf32> to vector<2x128xbf16>
    %c6_64 = arith.constant 6 : index
    %c18_65 = arith.constant 18 : index
    %145 = vector.load %arg0[%c6_64, %c18_65] : memref<8x256xf32, #tpu.memory_space<vmem>>, vector<2x128xf32>
    %146 = arith.truncf %145 : vector<2x128xf32> to vector<2x128xbf16>
    %c4_66 = arith.constant 4 : index
    %c19_67 = arith.constant 19 : index
    %147 = vector.load %arg0[%c4_66, %c19_67] : memref<8x256xf32, #tpu.memory_space<vmem>>, vector<2x128xf32>
    %148 = arith.truncf %147 : vector<2x128xf32> to vector<2x128xbf16>
    %c6_68 = arith.constant 6 : index
    %c19_69 = arith.constant 19 : index
    %149 = vector.load %arg0[%c6_68, %c19_69] : memref<8x256xf32, #tpu.memory_space<vmem>>, vector<2x128xf32>
    %150 = arith.truncf %149 : vector<2x128xf32> to vector<2x128xbf16>
    %c4_70 = arith.constant 4 : index
    %c20_71 = arith.constant 20 : index
    %151 = vector.load %arg0[%c4_70, %c20_71] : memref<8x256xf32, #tpu.memory_space<vmem>>, vector<2x128xf32>
    %152 = arith.truncf %151 : vector<2x128xf32> to vector<2x128xbf16>
    %c6_72 = arith.constant 6 : index
    %c20_73 = arith.constant 20 : index
    %153 = vector.load %arg0[%c6_72, %c20_73] : memref<8x256xf32, #tpu.memory_space<vmem>>, vector<2x128xf32>
    %154 = arith.truncf %153 : vector<2x128xf32> to vector<2x128xbf16>
    %c4_74 = arith.constant 4 : index
    %c21_75 = arith.constant 21 : index
    %155 = vector.load %arg0[%c4_74, %c21_75] : memref<8x256xf32, #tpu.memory_space<vmem>>, vector<2x128xf32>
    %156 = arith.truncf %155 : vector<2x128xf32> to vector<2x128xbf16>
    %c0_76 = arith.constant 0 : index
    %c27 = arith.constant 27 : index
    %157 = vector.load %arg0[%c0_76, %c27] : memref<8x256xf32, #tpu.memory_space<vmem>>, vector<2x128xf32>
    %158 = arith.truncf %157 : vector<2x128xf32> to vector<2x128xbf16>
    %c2_77 = arith.constant 2 : index
    %c27_78 = arith.constant 27 : index
    %159 = vector.load %arg0[%c2_77, %c27_78] : memref<8x256xf32, #tpu.memory_space<vmem>>, vector<2x128xf32>
    %160 = arith.truncf %159 : vector<2x128xf32> to vector<2x128xbf16>
    %c0_79 = arith.constant 0 : index
    %c28 = arith.constant 28 : index
    %161 = vector.load %arg0[%c0_79, %c28] : memref<8x256xf32, #tpu.memory_space<vmem>>, vector<2x128xf32>
    %162 = arith.truncf %161 : vector<2x128xf32> to vector<2x128xbf16>
    %c2_80 = arith.constant 2 : index
    %c28_81 = arith.constant 28 : index
    %163 = vector.load %arg0[%c2_80, %c28_81] : memref<8x256xf32, #tpu.memory_space<vmem>>, vector<2x128xf32>
    %164 = arith.truncf %163 : vector<2x128xf32> to vector<2x128xbf16>
    %c0_82 = arith.constant 0 : index
    %c29 = arith.constant 29 : index
    %165 = vector.load %arg0[%c0_82, %c29] : memref<8x256xf32, #tpu.memory_space<vmem>>, vector<2x128xf32>
    %166 = arith.truncf %165 : vector<2x128xf32> to vector<2x128xbf16>
    %c2_83 = arith.constant 2 : index
    %c29_84 = arith.constant 29 : index
    %167 = vector.load %arg0[%c2_83, %c29_84] : memref<8x256xf32, #tpu.memory_space<vmem>>, vector<2x128xf32>
    %168 = arith.truncf %167 : vector<2x128xf32> to vector<2x128xbf16>
    %169 = vector.extract_strided_slice %138 {offsets = [0, 0], sizes = [1, 128], strides = [1, 1]} : vector<2x128xbf16> to vector<1x128xbf16>
    %170 = vector.extract_strided_slice %140 {offsets = [0, 0], sizes = [1, 128], strides = [1, 1]} : vector<2x128xbf16> to vector<1x128xbf16>
    %171 = vector.extract_strided_slice %142 {offsets = [0, 0], sizes = [1, 128], strides = [1, 1]} : vector<2x128xbf16> to vector<1x128xbf16>
    %172 = vector.extract_strided_slice %144 {offsets = [0, 0], sizes = [1, 128], strides = [1, 1]} : vector<2x128xbf16> to vector<1x128xbf16>
    %173 = vector.extract_strided_slice %146 {offsets = [0, 0], sizes = [1, 128], strides = [1, 1]} : vector<2x128xbf16> to vector<1x128xbf16>
    %174 = vector.extract_strided_slice %148 {offsets = [0, 0], sizes = [1, 128], strides = [1, 1]} : vector<2x128xbf16> to vector<1x128xbf16>
    %175 = vector.extract_strided_slice %150 {offsets = [0, 0], sizes = [1, 128], strides = [1, 1]} : vector<2x128xbf16> to vector<1x128xbf16>
    %176 = vector.extract_strided_slice %152 {offsets = [0, 0], sizes = [1, 128], strides = [1, 1]} : vector<2x128xbf16> to vector<1x128xbf16>
    %177 = vector.extract_strided_slice %154 {offsets = [0, 0], sizes = [1, 128], strides = [1, 1]} : vector<2x128xbf16> to vector<1x128xbf16>
    %178 = vector.extract_strided_slice %156 {offsets = [0, 0], sizes = [1, 128], strides = [1, 1]} : vector<2x128xbf16> to vector<1x128xbf16>
    %179 = vector.extract_strided_slice %158 {offsets = [0, 0], sizes = [1, 128], strides = [1, 1]} : vector<2x128xbf16> to vector<1x128xbf16>
    %180 = vector.extract_strided_slice %160 {offsets = [0, 0], sizes = [1, 128], strides = [1, 1]} : vector<2x128xbf16> to vector<1x128xbf16>
    %181 = vector.extract_strided_slice %162 {offsets = [0, 0], sizes = [1, 128], strides = [1, 1]} : vector<2x128xbf16> to vector<1x128xbf16>
    %182 = vector.extract_strided_slice %164 {offsets = [0, 0], sizes = [1, 128], strides = [1, 1]} : vector<2x128xbf16> to vector<1x128xbf16>
    %183 = vector.extract_strided_slice %166 {offsets = [0, 0], sizes = [1, 128], strides = [1, 1]} : vector<2x128xbf16> to vector<1x128xbf16>
    %184 = vector.extract_strided_slice %168 {offsets = [0, 0], sizes = [1, 128], strides = [1, 1]} : vector<2x128xbf16> to vector<1x128xbf16>
    %185 = tpu.concatenate %169, %170, %171, %172, %173, %174, %175, %176, %177, %178, %179, %180, %181, %182, %183, %184 in 0 : vector<1x128xbf16>, vector<1x128xbf16>, vector<1x128xbf16>, vector<1x128xbf16>, vector<1x128xbf16>, vector<1x128xbf16>, vector<1x128xbf16>, vector<1x128xbf16>, vector<1x128xbf16>, vector<1x128xbf16>, vector<1x128xbf16>, vector<1x128xbf16>, vector<1x128xbf16>, vector<1x128xbf16>, vector<1x128xbf16>, vector<1x128xbf16> -> vector<16x128xbf16>
    %c32 = arith.constant 32 : index
    %c0_85 = arith.constant 0 : index
    %186 = vector.load %arg6[%c32, %c0_85] : memref<64x1024xbf16, #tpu.memory_space<vmem>>, vector<16x128xbf16>
    tpu.vector_store %arg6[%c32, %c0_85], %185 {strides = array<i32>} : memref<64x1024xbf16, #tpu.memory_space<vmem>>, vector<16x128xbf16>,
    %187 = vector.extract_strided_slice %138 {offsets = [1, 0], sizes = [1, 128], strides = [1, 1]} : vector<2x128xbf16> to vector<1x128xbf16>
    %188 = vector.extract_strided_slice %140 {offsets = [1, 0], sizes = [1, 128], strides = [1, 1]} : vector<2x128xbf16> to vector<1x128xbf16>
    %189 = vector.extract_strided_slice %142 {offsets = [1, 0], sizes = [1, 128], strides = [1, 1]} : vector<2x128xbf16> to vector<1x128xbf16>
    %190 = vector.extract_strided_slice %144 {offsets = [1, 0], sizes = [1, 128], strides = [1, 1]} : vector<2x128xbf16> to vector<1x128xbf16>
    %191 = vector.extract_strided_slice %146 {offsets = [1, 0], sizes = [1, 128], strides = [1, 1]} : vector<2x128xbf16> to vector<1x128xbf16>
    %192 = vector.extract_strided_slice %148 {offsets = [1, 0], sizes = [1, 128], strides = [1, 1]} : vector<2x128xbf16> to vector<1x128xbf16>
    %193 = vector.extract_strided_slice %150 {offsets = [1, 0], sizes = [1, 128], strides = [1, 1]} : vector<2x128xbf16> to vector<1x128xbf16>
    %194 = vector.extract_strided_slice %152 {offsets = [1, 0], sizes = [1, 128], strides = [1, 1]} : vector<2x128xbf16> to vector<1x128xbf16>
    %195 = vector.extract_strided_slice %154 {offsets = [1, 0], sizes = [1, 128], strides = [1, 1]} : vector<2x128xbf16> to vector<1x128xbf16>
    %196 = vector.extract_strided_slice %156 {offsets = [1, 0], sizes = [1, 128], strides = [1, 1]} : vector<2x128xbf16> to vector<1x128xbf16>
    %197 = vector.extract_strided_slice %158 {offsets = [1, 0], sizes = [1, 128], strides = [1, 1]} : vector<2x128xbf16> to vector<1x128xbf16>
    %198 = vector.extract_strided_slice %160 {offsets = [1, 0], sizes = [1, 128], strides = [1, 1]} : vector<2x128xbf16> to vector<1x128xbf16>
    %199 = vector.extract_strided_slice %162 {offsets = [1, 0], sizes = [1, 128], strides = [1, 1]} : vector<2x128xbf16> to vector<1x128xbf16>
    %200 = vector.extract_strided_slice %164 {offsets = [1, 0], sizes = [1, 128], strides = [1, 1]} : vector<2x128xbf16> to vector<1x128xbf16>
    %201 = vector.extract_strided_slice %166 {offsets = [1, 0], sizes = [1, 128], strides = [1, 1]} : vector<2x128xbf16> to vector<1x128xbf16>
    %202 = vector.extract_strided_slice %168 {offsets = [1, 0], sizes = [1, 128], strides = [1, 1]} : vector<2x128xbf16> to vector<1x128xbf16>
    %203 = tpu.concatenate %187, %188, %189, %190, %191, %192, %193, %194, %195, %196, %197, %198, %199, %200, %201, %202 in 0 : vector<1x128xbf16>, vector<1x128xbf16>, vector<1x128xbf16>, vector<1x128xbf16>, vector<1x128xbf16>, vector<1x128xbf16>, vector<1x128xbf16>, vector<1x128xbf16>, vector<1x128xbf16>, vector<1x128xbf16>, vector<1x128xbf16>, vector<1x128xbf16>, vector<1x128xbf16>, vector<1x128xbf16>, vector<1x128xbf16>, vector<1x128xbf16> -> vector<16x128xbf16>
    %c32_86 = arith.constant 32 : index
    %c128_87 = arith.constant 128 : index
    %204 = vector.load %arg6[%c32_86, %c128_87] : memref<64x1024xbf16, #tpu.memory_space<vmem>>, vector<16x128xbf16>
    tpu.vector_store %arg6[%c32_86, %c128_87], %203 {strides = array<i32>} : memref<64x1024xbf16, #tpu.memory_space<vmem>>, vector<16x128xbf16>,
    %c0_88 = arith.constant 0 : index
    %c30 = arith.constant 30 : index
    %205 = vector.load %arg0[%c0_88, %c30] : memref<8x256xf32, #tpu.memory_space<vmem>>, vector<2x128xf32>
    %206 = arith.truncf %205 : vector<2x128xf32> to vector<2x128xbf16>
    %207 = vector.extract_strided_slice %206 {offsets = [0, 0], sizes = [1, 128], strides = [1, 1]} : vector<2x128xbf16> to vector<1x128xbf16>
    %208 = tpu.concatenate %207, %0, %0, %0, %0, %0, %0, %0, %0, %0, %0, %0, %0, %0, %0, %0 in 0 : vector<1x128xbf16>, vector<1x128xbf16>, vector<1x128xbf16>, vector<1x128xbf16>, vector<1x128xbf16>, vector<1x128xbf16>, vector<1x128xbf16>, vector<1x128xbf16>, vector<1x128xbf16>, vector<1x128xbf16>, vector<1x128xbf16>, vector<1x128xbf16>, vector<1x128xbf16>, vector<1x128xbf16>, vector<1x128xbf16>, vector<1x128xbf16> -> vector<16x128xbf16>
    %c48 = arith.constant 48 : index
    %c0_89 = arith.constant 0 : index
    %209 = vector.load %arg6[%c48, %c0_89] : memref<64x1024xbf16, #tpu.memory_space<vmem>>, vector<16x128xbf16>
    tpu.vector_store %arg6[%c48, %c0_89], %208 {strides = array<i32>} : memref<64x1024xbf16, #tpu.memory_space<vmem>>, vector<16x128xbf16>,
    %210 = vector.extract_strided_slice %206 {offsets = [1, 0], sizes = [1, 128], strides = [1, 1]} : vector<2x128xbf16> to vector<1x128xbf16>
    %211 = tpu.concatenate %210, %0, %0, %0, %0, %0, %0, %0, %0, %0, %0, %0, %0, %0, %0, %0 in 0 : vector<1x128xbf16>, vector<1x128xbf16>, vector<1x128xbf16>, vector<1x128xbf16>, vector<1x128xbf16>, vector<1x128xbf16>, vector<1x128xbf16>, vector<1x128xbf16>, vector<1x128xbf16>, vector<1x128xbf16>, vector<1x128xbf16>, vector<1x128xbf16>, vector<1x128xbf16>, vector<1x128xbf16>, vector<1x128xbf16>, vector<1x128xbf16> -> vector<16x128xbf16>
    %c48_90 = arith.constant 48 : index
    %c128_91 = arith.constant 128 : index
    %212 = vector.load %arg6[%c48_90, %c128_91] : memref<64x1024xbf16, #tpu.memory_space<vmem>>, vector<16x128xbf16>
    tpu.vector_store %arg6[%c48_90, %c128_91], %211 {strides = array<i32>} : memref<64x1024xbf16, #tpu.memory_space<vmem>>, vector<16x128xbf16>,
    %c2_92 = arith.constant 2 : index
    %c0_93 = arith.constant 0 : index
    %213 = vector.load %arg0[%c2_92, %c0_93] : memref<8x256xf32, #tpu.memory_space<vmem>>, vector<2x128xf32>
    %214 = arith.truncf %213 : vector<2x128xf32> to vector<2x128xbf16>
    %c0_94 = arith.constant 0 : index
    %c1_95 = arith.constant 1 : index
    %215 = vector.load %arg0[%c0_94, %c1_95] : memref<8x256xf32, #tpu.memory_space<vmem>>, vector<2x128xf32>
    %216 = arith.truncf %215 : vector<2x128xf32> to vector<2x128xbf16>
    %c2_96 = arith.constant 2 : index
    %c1_97 = arith.constant 1 : index
    %217 = vector.load %arg0[%c2_96, %c1_97] : memref<8x256xf32, #tpu.memory_space<vmem>>, vector<2x128xf32>
    %218 = arith.truncf %217 : vector<2x128xf32> to vector<2x128xbf16>
    %c0_98 = arith.constant 0 : index
    %c2_99 = arith.constant 2 : index
    %219 = vector.load %arg0[%c0_98, %c2_99] : memref<8x256xf32, #tpu.memory_space<vmem>>, vector<2x128xf32>
    %220 = arith.truncf %219 : vector<2x128xf32> to vector<2x128xbf16>
    %c2_100 = arith.constant 2 : index
    %c2_101 = arith.constant 2 : index
    %221 = vector.load %arg0[%c2_100, %c2_101] : memref<8x256xf32, #tpu.memory_space<vmem>>, vector<2x128xf32>
    %222 = arith.truncf %221 : vector<2x128xf32> to vector<2x128xbf16>
    %c0_102 = arith.constant 0 : index
    %c3_103 = arith.constant 3 : index
    %223 = vector.load %arg0[%c0_102, %c3_103] : memref<8x256xf32, #tpu.memory_space<vmem>>, vector<2x128xf32>
    %224 = arith.truncf %223 : vector<2x128xf32> to vector<2x128xbf16>
    %c2_104 = arith.constant 2 : index
    %c3_105 = arith.constant 3 : index
    %225 = vector.load %arg0[%c2_104, %c3_105] : memref<8x256xf32, #tpu.memory_space<vmem>>, vector<2x128xf32>
    %226 = arith.truncf %225 : vector<2x128xf32> to vector<2x128xbf16>
    %c6_106 = arith.constant 6 : index
    %c0_107 = arith.constant 0 : index
    %227 = vector.load %arg0[%c6_106, %c0_107] : memref<8x256xf32, #tpu.memory_space<vmem>>, vector<2x128xf32>
    %228 = arith.truncf %227 : vector<2x128xf32> to vector<2x128xbf16>
    %c4_108 = arith.constant 4 : index
    %c1_109 = arith.constant 1 : index
    %229 = vector.load %arg0[%c4_108, %c1_109] : memref<8x256xf32, #tpu.memory_space<vmem>>, vector<2x128xf32>
    %230 = arith.truncf %229 : vector<2x128xf32> to vector<2x128xbf16>
    %c6_110 = arith.constant 6 : index
    %c1_111 = arith.constant 1 : index
    %231 = vector.load %arg0[%c6_110, %c1_111] : memref<8x256xf32, #tpu.memory_space<vmem>>, vector<2x128xf32>
    %232 = arith.truncf %231 : vector<2x128xf32> to vector<2x128xbf16>
    %c4_112 = arith.constant 4 : index
    %c2_113 = arith.constant 2 : index
    %233 = vector.load %arg0[%c4_112, %c2_113] : memref<8x256xf32, #tpu.memory_space<vmem>>, vector<2x128xf32>
    %234 = arith.truncf %233 : vector<2x128xf32> to vector<2x128xbf16>
    %c6_114 = arith.constant 6 : index
    %c2_115 = arith.constant 2 : index
    %235 = vector.load %arg0[%c6_114, %c2_115] : memref<8x256xf32, #tpu.memory_space<vmem>>, vector<2x128xf32>
    %236 = arith.truncf %235 : vector<2x128xf32> to vector<2x128xbf16>
    %c4_116 = arith.constant 4 : index
    %c3_117 = arith.constant 3 : index
    %237 = vector.load %arg0[%c4_116, %c3_117] : memref<8x256xf32, #tpu.memory_space<vmem>>, vector<2x128xf32>
    %238 = arith.truncf %237 : vector<2x128xf32> to vector<2x128xbf16>
    %c6_118 = arith.constant 6 : index
    %c3_119 = arith.constant 3 : index
    %239 = vector.load %arg0[%c6_118, %c3_119] : memref<8x256xf32, #tpu.memory_space<vmem>>, vector<2x128xf32>
    %240 = arith.truncf %239 : vector<2x128xf32> to vector<2x128xbf16>
    %c2_120 = arith.constant 2 : index
    %c9_121 = arith.constant 9 : index
    %241 = vector.load %arg0[%c2_120, %c9_121] : memref<8x256xf32, #tpu.memory_space<vmem>>, vector<2x128xf32>
    %242 = arith.truncf %241 : vector<2x128xf32> to vector<2x128xbf16>
    %c0_122 = arith.constant 0 : index
    %c10_123 = arith.constant 10 : index
    %243 = vector.load %arg0[%c0_122, %c10_123] : memref<8x256xf32, #tpu.memory_space<vmem>>, vector<2x128xf32>
    %244 = arith.truncf %243 : vector<2x128xf32> to vector<2x128xbf16>
    %245 = vector.extract_strided_slice %214 {offsets = [0, 0], sizes = [1, 128], strides = [1, 1]} : vector<2x128xbf16> to vector<1x128xbf16>
    %246 = vector.extract_strided_slice %216 {offsets = [0, 0], sizes = [1, 128], strides = [1, 1]} : vector<2x128xbf16> to vector<1x128xbf16>
    %247 = vector.extract_strided_slice %218 {offsets = [0, 0], sizes = [1, 128], strides = [1, 1]} : vector<2x128xbf16> to vector<1x128xbf16>
    %248 = vector.extract_strided_slice %220 {offsets = [0, 0], sizes = [1, 128], strides = [1, 1]} : vector<2x128xbf16> to vector<1x128xbf16>
    %249 = vector.extract_strided_slice %222 {offsets = [0, 0], sizes = [1, 128], strides = [1, 1]} : vector<2x128xbf16> to vector<1x128xbf16>
    %250 = vector.extract_strided_slice %224 {offsets = [0, 0], sizes = [1, 128], strides = [1, 1]} : vector<2x128xbf16> to vector<1x128xbf16>
    %251 = vector.extract_strided_slice %226 {offsets = [0, 0], sizes = [1, 128], strides = [1, 1]} : vector<2x128xbf16> to vector<1x128xbf16>
    %252 = vector.extract_strided_slice %228 {offsets = [0, 0], sizes = [1, 128], strides = [1, 1]} : vector<2x128xbf16> to vector<1x128xbf16>
    %253 = vector.extract_strided_slice %230 {offsets = [0, 0], sizes = [1, 128], strides = [1, 1]} : vector<2x128xbf16> to vector<1x128xbf16>
    %254 = vector.extract_strided_slice %232 {offsets = [0, 0], sizes = [1, 128], strides = [1, 1]} : vector<2x128xbf16> to vector<1x128xbf16>
    %255 = vector.extract_strided_slice %234 {offsets = [0, 0], sizes = [1, 128], strides = [1, 1]} : vector<2x128xbf16> to vector<1x128xbf16>
    %256 = vector.extract_strided_slice %236 {offsets = [0, 0], sizes = [1, 128], strides = [1, 1]} : vector<2x128xbf16> to vector<1x128xbf16>
    %257 = vector.extract_strided_slice %238 {offsets = [0, 0], sizes = [1, 128], strides = [1, 1]} : vector<2x128xbf16> to vector<1x128xbf16>
    %258 = vector.extract_strided_slice %240 {offsets = [0, 0], sizes = [1, 128], strides = [1, 1]} : vector<2x128xbf16> to vector<1x128xbf16>
    %259 = vector.extract_strided_slice %242 {offsets = [0, 0], sizes = [1, 128], strides = [1, 1]} : vector<2x128xbf16> to vector<1x128xbf16>
    %260 = vector.extract_strided_slice %244 {offsets = [0, 0], sizes = [1, 128], strides = [1, 1]} : vector<2x128xbf16> to vector<1x128xbf16>
    %261 = tpu.concatenate %245, %246, %247, %248, %249, %250, %251, %252, %253, %254, %255, %256, %257, %258, %259, %260 in 0 : vector<1x128xbf16>, vector<1x128xbf16>, vector<1x128xbf16>, vector<1x128xbf16>, vector<1x128xbf16>, vector<1x128xbf16>, vector<1x128xbf16>, vector<1x128xbf16>, vector<1x128xbf16>, vector<1x128xbf16>, vector<1x128xbf16>, vector<1x128xbf16>, vector<1x128xbf16>, vector<1x128xbf16>, vector<1x128xbf16>, vector<1x128xbf16> -> vector<16x128xbf16>
    %c0_124 = arith.constant 0 : index
    %c256 = arith.constant 256 : index
    %262 = vector.load %arg6[%c0_124, %c256] : memref<64x1024xbf16, #tpu.memory_space<vmem>>, vector<16x128xbf16>
    tpu.vector_store %arg6[%c0_124, %c256], %261 {strides = array<i32>} : memref<64x1024xbf16, #tpu.memory_space<vmem>>, vector<16x128xbf16>,
    %263 = vector.extract_strided_slice %214 {offsets = [1, 0], sizes = [1, 128], strides = [1, 1]} : vector<2x128xbf16> to vector<1x128xbf16>
    %264 = vector.extract_strided_slice %216 {offsets = [1, 0], sizes = [1, 128], strides = [1, 1]} : vector<2x128xbf16> to vector<1x128xbf16>
    %265 = vector.extract_strided_slice %218 {offsets = [1, 0], sizes = [1, 128], strides = [1, 1]} : vector<2x128xbf16> to vector<1x128xbf16>
    %266 = vector.extract_strided_slice %220 {offsets = [1, 0], sizes = [1, 128], strides = [1, 1]} : vector<2x128xbf16> to vector<1x128xbf16>
    %267 = vector.extract_strided_slice %222 {offsets = [1, 0], sizes = [1, 128], strides = [1, 1]} : vector<2x128xbf16> to vector<1x128xbf16>
    %268 = vector.extract_strided_slice %224 {offsets = [1, 0], sizes = [1, 128], strides = [1, 1]} : vector<2x128xbf16> to vector<1x128xbf16>
    %269 = vector.extract_strided_slice %226 {offsets = [1, 0], sizes = [1, 128], strides = [1, 1]} : vector<2x128xbf16> to vector<1x128xbf16>
    %270 = vector.extract_strided_slice %228 {offsets = [1, 0], sizes = [1, 128], strides = [1, 1]} : vector<2x128xbf16> to vector<1x128xbf16>
    %271 = vector.extract_strided_slice %230 {offsets = [1, 0], sizes = [1, 128], strides = [1, 1]} : vector<2x128xbf16> to vector<1x128xbf16>
    %272 = vector.extract_strided_slice %232 {offsets = [1, 0], sizes = [1, 128], strides = [1, 1]} : vector<2x128xbf16> to vector<1x128xbf16>
    %273 = vector.extract_strided_slice %234 {offsets = [1, 0], sizes = [1, 128], strides = [1, 1]} : vector<2x128xbf16> to vector<1x128xbf16>
    %274 = vector.extract_strided_slice %236 {offsets = [1, 0], sizes = [1, 128], strides = [1, 1]} : vector<2x128xbf16> to vector<1x128xbf16>
    %275 = vector.extract_strided_slice %238 {offsets = [1, 0], sizes = [1, 128], strides = [1, 1]} : vector<2x128xbf16> to vector<1x128xbf16>
    %276 = vector.extract_strided_slice %240 {offsets = [1, 0], sizes = [1, 128], strides = [1, 1]} : vector<2x128xbf16> to vector<1x128xbf16>
    %277 = vector.extract_strided_slice %242 {offsets = [1, 0], sizes = [1, 128], strides = [1, 1]} : vector<2x128xbf16> to vector<1x128xbf16>
    %278 = vector.extract_strided_slice %244 {offsets = [1, 0], sizes = [1, 128], strides = [1, 1]} : vector<2x128xbf16> to vector<1x128xbf16>
    %279 = tpu.concatenate %263, %264, %265, %266, %267, %268, %269, %270, %271, %272, %273, %274, %275, %276, %277, %278 in 0 : vector<1x128xbf16>, vector<1x128xbf16>, vector<1x128xbf16>, vector<1x128xbf16>, vector<1x128xbf16>, vector<1x128xbf16>, vector<1x128xbf16>, vector<1x128xbf16>, vector<1x128xbf16>, vector<1x128xbf16>, vector<1x128xbf16>, vector<1x128xbf16>, vector<1x128xbf16>, vector<1x128xbf16>, vector<1x128xbf16>, vector<1x128xbf16> -> vector<16x128xbf16>
    %c0_125 = arith.constant 0 : index
    %c384 = arith.constant 384 : index
    %280 = vector.load %arg6[%c0_125, %c384] : memref<64x1024xbf16, #tpu.memory_space<vmem>>, vector<16x128xbf16>
    tpu.vector_store %arg6[%c0_125, %c384], %279 {strides = array<i32>} : memref<64x1024xbf16, #tpu.memory_space<vmem>>, vector<16x128xbf16>,
    %c2_126 = arith.constant 2 : index
    %c10_127 = arith.constant 10 : index
    %281 = vector.load %arg0[%c2_126, %c10_127] : memref<8x256xf32, #tpu.memory_space<vmem>>, vector<2x128xf32>
    %282 = arith.truncf %281 : vector<2x128xf32> to vector<2x128xbf16>
    %c0_128 = arith.constant 0 : index
    %c11_129 = arith.constant 11 : index
    %283 = vector.load %arg0[%c0_128, %c11_129] : memref<8x256xf32, #tpu.memory_space<vmem>>, vector<2x128xf32>
    %284 = arith.truncf %283 : vector<2x128xf32> to vector<2x128xbf16>
    %c2_130 = arith.constant 2 : index
    %c11_131 = arith.constant 11 : index
    %285 = vector.load %arg0[%c2_130, %c11_131] : memref<8x256xf32, #tpu.memory_space<vmem>>, vector<2x128xf32>
    %286 = arith.truncf %285 : vector<2x128xf32> to vector<2x128xbf16>
    %c0_132 = arith.constant 0 : index
    %c12_133 = arith.constant 12 : index
    %287 = vector.load %arg0[%c0_132, %c12_133] : memref<8x256xf32, #tpu.memory_space<vmem>>, vector<2x128xf32>
    %288 = arith.truncf %287 : vector<2x128xf32> to vector<2x128xbf16>
    %c2_134 = arith.constant 2 : index
    %c12_135 = arith.constant 12 : index
    %289 = vector.load %arg0[%c2_134, %c12_135] : memref<8x256xf32, #tpu.memory_space<vmem>>, vector<2x128xf32>
    %290 = arith.truncf %289 : vector<2x128xf32> to vector<2x128xbf16>
    %c6_136 = arith.constant 6 : index
    %c9_137 = arith.constant 9 : index
    %291 = vector.load %arg0[%c6_136, %c9_137] : memref<8x256xf32, #tpu.memory_space<vmem>>, vector<2x128xf32>
    %292 = arith.truncf %291 : vector<2x128xf32> to vector<2x128xbf16>
    %c4_138 = arith.constant 4 : index
    %c10_139 = arith.constant 10 : index
    %293 = vector.load %arg0[%c4_138, %c10_139] : memref<8x256xf32, #tpu.memory_space<vmem>>, vector<2x128xf32>
    %294 = arith.truncf %293 : vector<2x128xf32> to vector<2x128xbf16>
    %c6_140 = arith.constant 6 : index
    %c10_141 = arith.constant 10 : index
    %295 = vector.load %arg0[%c6_140, %c10_141] : memref<8x256xf32, #tpu.memory_space<vmem>>, vector<2x128xf32>
    %296 = arith.truncf %295 : vector<2x128xf32> to vector<2x128xbf16>
    %c4_142 = arith.constant 4 : index
    %c11_143 = arith.constant 11 : index
    %297 = vector.load %arg0[%c4_142, %c11_143] : memref<8x256xf32, #tpu.memory_space<vmem>>, vector<2x128xf32>
    %298 = arith.truncf %297 : vector<2x128xf32> to vector<2x128xbf16>
    %c6_144 = arith.constant 6 : index
    %c11_145 = arith.constant 11 : index
    %299 = vector.load %arg0[%c6_144, %c11_145] : memref<8x256xf32, #tpu.memory_space<vmem>>, vector<2x128xf32>
    %300 = arith.truncf %299 : vector<2x128xf32> to vector<2x128xbf16>
    %c4_146 = arith.constant 4 : index
    %c12_147 = arith.constant 12 : index
    %301 = vector.load %arg0[%c4_146, %c12_147] : memref<8x256xf32, #tpu.memory_space<vmem>>, vector<2x128xf32>
    %302 = arith.truncf %301 : vector<2x128xf32> to vector<2x128xbf16>
    %c6_148 = arith.constant 6 : index
    %c12_149 = arith.constant 12 : index
    %303 = vector.load %arg0[%c6_148, %c12_149] : memref<8x256xf32, #tpu.memory_space<vmem>>, vector<2x128xf32>
    %304 = arith.truncf %303 : vector<2x128xf32> to vector<2x128xbf16>
    %c2_150 = arith.constant 2 : index
    %c18_151 = arith.constant 18 : index
    %305 = vector.load %arg0[%c2_150, %c18_151] : memref<8x256xf32, #tpu.memory_space<vmem>>, vector<2x128xf32>
    %306 = arith.truncf %305 : vector<2x128xf32> to vector<2x128xbf16>
    %c0_152 = arith.constant 0 : index
    %c19_153 = arith.constant 19 : index
    %307 = vector.load %arg0[%c0_152, %c19_153] : memref<8x256xf32, #tpu.memory_space<vmem>>, vector<2x128xf32>
    %308 = arith.truncf %307 : vector<2x128xf32> to vector<2x128xbf16>
    %c2_154 = arith.constant 2 : index
    %c19_155 = arith.constant 19 : index
    %309 = vector.load %arg0[%c2_154, %c19_155] : memref<8x256xf32, #tpu.memory_space<vmem>>, vector<2x128xf32>
    %310 = arith.truncf %309 : vector<2x128xf32> to vector<2x128xbf16>
    %c0_156 = arith.constant 0 : index
    %c20_157 = arith.constant 20 : index
    %311 = vector.load %arg0[%c0_156, %c20_157] : memref<8x256xf32, #tpu.memory_space<vmem>>, vector<2x128xf32>
    %312 = arith.truncf %311 : vector<2x128xf32> to vector<2x128xbf16>
    %313 = vector.extract_strided_slice %282 {offsets = [0, 0], sizes = [1, 128], strides = [1, 1]} : vector<2x128xbf16> to vector<1x128xbf16>
    %314 = vector.extract_strided_slice %284 {offsets = [0, 0], sizes = [1, 128], strides = [1, 1]} : vector<2x128xbf16> to vector<1x128xbf16>
    %315 = vector.extract_strided_slice %286 {offsets = [0, 0], sizes = [1, 128], strides = [1, 1]} : vector<2x128xbf16> to vector<1x128xbf16>
    %316 = vector.extract_strided_slice %288 {offsets = [0, 0], sizes = [1, 128], strides = [1, 1]} : vector<2x128xbf16> to vector<1x128xbf16>
    %317 = vector.extract_strided_slice %290 {offsets = [0, 0], sizes = [1, 128], strides = [1, 1]} : vector<2x128xbf16> to vector<1x128xbf16>
    %318 = vector.extract_strided_slice %292 {offsets = [0, 0], sizes = [1, 128], strides = [1, 1]} : vector<2x128xbf16> to vector<1x128xbf16>
    %319 = vector.extract_strided_slice %294 {offsets = [0, 0], sizes = [1, 128], strides = [1, 1]} : vector<2x128xbf16> to vector<1x128xbf16>
    %320 = vector.extract_strided_slice %296 {offsets = [0, 0], sizes = [1, 128], strides = [1, 1]} : vector<2x128xbf16> to vector<1x128xbf16>
    %321 = vector.extract_strided_slice %298 {offsets = [0, 0], sizes = [1, 128], strides = [1, 1]} : vector<2x128xbf16> to vector<1x128xbf16>
    %322 = vector.extract_strided_slice %300 {offsets = [0, 0], sizes = [1, 128], strides = [1, 1]} : vector<2x128xbf16> to vector<1x128xbf16>
    %323 = vector.extract_strided_slice %302 {offsets = [0, 0], sizes = [1, 128], strides = [1, 1]} : vector<2x128xbf16> to vector<1x128xbf16>
    %324 = vector.extract_strided_slice %304 {offsets = [0, 0], sizes = [1, 128], strides = [1, 1]} : vector<2x128xbf16> to vector<1x128xbf16>
    %325 = vector.extract_strided_slice %306 {offsets = [0, 0], sizes = [1, 128], strides = [1, 1]} : vector<2x128xbf16> to vector<1x128xbf16>
    %326 = vector.extract_strided_slice %308 {offsets = [0, 0], sizes = [1, 128], strides = [1, 1]} : vector<2x128xbf16> to vector<1x128xbf16>
    %327 = vector.extract_strided_slice %310 {offsets = [0, 0], sizes = [1, 128], strides = [1, 1]} : vector<2x128xbf16> to vector<1x128xbf16>
    %328 = vector.extract_strided_slice %312 {offsets = [0, 0], sizes = [1, 128], strides = [1, 1]} : vector<2x128xbf16> to vector<1x128xbf16>
    %329 = tpu.concatenate %313, %314, %315, %316, %317, %318, %319, %320, %321, %322, %323, %324, %325, %326, %327, %328 in 0 : vector<1x128xbf16>, vector<1x128xbf16>, vector<1x128xbf16>, vector<1x128xbf16>, vector<1x128xbf16>, vector<1x128xbf16>, vector<1x128xbf16>, vector<1x128xbf16>, vector<1x128xbf16>, vector<1x128xbf16>, vector<1x128xbf16>, vector<1x128xbf16>, vector<1x128xbf16>, vector<1x128xbf16>, vector<1x128xbf16>, vector<1x128xbf16> -> vector<16x128xbf16>
    %c16_158 = arith.constant 16 : index
    %c256_159 = arith.constant 256 : index
    %330 = vector.load %arg6[%c16_158, %c256_159] : memref<64x1024xbf16, #tpu.memory_space<vmem>>, vector<16x128xbf16>
    tpu.vector_store %arg6[%c16_158, %c256_159], %329 {strides = array<i32>} : memref<64x1024xbf16, #tpu.memory_space<vmem>>, vector<16x128xbf16>,
    %331 = vector.extract_strided_slice %282 {offsets = [1, 0], sizes = [1, 128], strides = [1, 1]} : vector<2x128xbf16> to vector<1x128xbf16>
    %332 = vector.extract_strided_slice %284 {offsets = [1, 0], sizes = [1, 128], strides = [1, 1]} : vector<2x128xbf16> to vector<1x128xbf16>
    %333 = vector.extract_strided_slice %286 {offsets = [1, 0], sizes = [1, 128], strides = [1, 1]} : vector<2x128xbf16> to vector<1x128xbf16>
    %334 = vector.extract_strided_slice %288 {offsets = [1, 0], sizes = [1, 128], strides = [1, 1]} : vector<2x128xbf16> to vector<1x128xbf16>
    %335 = vector.extract_strided_slice %290 {offsets = [1, 0], sizes = [1, 128], strides = [1, 1]} : vector<2x128xbf16> to vector<1x128xbf16>
    %336 = vector.extract_strided_slice %292 {offsets = [1, 0], sizes = [1, 128], strides = [1, 1]} : vector<2x128xbf16> to vector<1x128xbf16>
    %337 = vector.extract_strided_slice %294 {offsets = [1, 0], sizes = [1, 128], strides = [1, 1]} : vector<2x128xbf16> to vector<1x128xbf16>
    %338 = vector.extract_strided_slice %296 {offsets = [1, 0], sizes = [1, 128], strides = [1, 1]} : vector<2x128xbf16> to vector<1x128xbf16>
    %339 = vector.extract_strided_slice %298 {offsets = [1, 0], sizes = [1, 128], strides = [1, 1]} : vector<2x128xbf16> to vector<1x128xbf16>
    %340 = vector.extract_strided_slice %300 {offsets = [1, 0], sizes = [1, 128], strides = [1, 1]} : vector<2x128xbf16> to vector<1x128xbf16>
    %341 = vector.extract_strided_slice %302 {offsets = [1, 0], sizes = [1, 128], strides = [1, 1]} : vector<2x128xbf16> to vector<1x128xbf16>
    %342 = vector.extract_strided_slice %304 {offsets = [1, 0], sizes = [1, 128], strides = [1, 1]} : vector<2x128xbf16> to vector<1x128xbf16>
    %343 = vector.extract_strided_slice %306 {offsets = [1, 0], sizes = [1, 128], strides = [1, 1]} : vector<2x128xbf16> to vector<1x128xbf16>
    %344 = vector.extract_strided_slice %308 {offsets = [1, 0], sizes = [1, 128], strides = [1, 1]} : vector<2x128xbf16> to vector<1x128xbf16>
    %345 = vector.extract_strided_slice %310 {offsets = [1, 0], sizes = [1, 128], strides = [1, 1]} : vector<2x128xbf16> to vector<1x128xbf16>
    %346 = vector.extract_strided_slice %312 {offsets = [1, 0], sizes = [1, 128], strides = [1, 1]} : vector<2x128xbf16> to vector<1x128xbf16>
    %347 = tpu.concatenate %331, %332, %333, %334, %335, %336, %337, %338, %339, %340, %341, %342, %343, %344, %345, %346 in 0 : vector<1x128xbf16>, vector<1x128xbf16>, vector<1x128xbf16>, vector<1x128xbf16>, vector<1x128xbf16>, vector<1x128xbf16>, vector<1x128xbf16>, vector<1x128xbf16>, vector<1x128xbf16>, vector<1x128xbf16>, vector<1x128xbf16>, vector<1x128xbf16>, vector<1x128xbf16>, vector<1x128xbf16>, vector<1x128xbf16>, vector<1x128xbf16> -> vector<16x128xbf16>
    %c16_160 = arith.constant 16 : index
    %c384_161 = arith.constant 384 : index
    %348 = vector.load %arg6[%c16_160, %c384_161] : memref<64x1024xbf16, #tpu.memory_space<vmem>>, vector<16x128xbf16>
    tpu.vector_store %arg6[%c16_160, %c384_161], %347 {strides = array<i32>} : memref<64x1024xbf16, #tpu.memory_space<vmem>>, vector<16x128xbf16>,
    %c2_162 = arith.constant 2 : index
    %c20_163 = arith.constant 20 : index
    %349 = vector.load %arg0[%c2_162, %c20_163] : memref<8x256xf32, #tpu.memory_space<vmem>>, vector<2x128xf32>
    %350 = arith.truncf %349 : vector<2x128xf32> to vector<2x128xbf16>
    %c0_164 = arith.constant 0 : index
    %c21_165 = arith.constant 21 : index
    %351 = vector.load %arg0[%c0_164, %c21_165] : memref<8x256xf32, #tpu.memory_space<vmem>>, vector<2x128xf32>
    %352 = arith.truncf %351 : vector<2x128xf32> to vector<2x128xbf16>
    %c2_166 = arith.constant 2 : index
    %c21_167 = arith.constant 21 : index
    %353 = vector.load %arg0[%c2_166, %c21_167] : memref<8x256xf32, #tpu.memory_space<vmem>>, vector<2x128xf32>
    %354 = arith.truncf %353 : vector<2x128xf32> to vector<2x128xbf16>
    %c6_168 = arith.constant 6 : index
    %c18_169 = arith.constant 18 : index
    %355 = vector.load %arg0[%c6_168, %c18_169] : memref<8x256xf32, #tpu.memory_space<vmem>>, vector<2x128xf32>
    %356 = arith.truncf %355 : vector<2x128xf32> to vector<2x128xbf16>
    %c4_170 = arith.constant 4 : index
    %c19_171 = arith.constant 19 : index
    %357 = vector.load %arg0[%c4_170, %c19_171] : memref<8x256xf32, #tpu.memory_space<vmem>>, vector<2x128xf32>
    %358 = arith.truncf %357 : vector<2x128xf32> to vector<2x128xbf16>
    %c6_172 = arith.constant 6 : index
    %c19_173 = arith.constant 19 : index
    %359 = vector.load %arg0[%c6_172, %c19_173] : memref<8x256xf32, #tpu.memory_space<vmem>>, vector<2x128xf32>
    %360 = arith.truncf %359 : vector<2x128xf32> to vector<2x128xbf16>
    %c4_174 = arith.constant 4 : index
    %c20_175 = arith.constant 20 : index
    %361 = vector.load %arg0[%c4_174, %c20_175] : memref<8x256xf32, #tpu.memory_space<vmem>>, vector<2x128xf32>
    %362 = arith.truncf %361 : vector<2x128xf32> to vector<2x128xbf16>
    %c6_176 = arith.constant 6 : index
    %c20_177 = arith.constant 20 : index
    %363 = vector.load %arg0[%c6_176, %c20_177] : memref<8x256xf32, #tpu.memory_space<vmem>>, vector<2x128xf32>
    %364 = arith.truncf %363 : vector<2x128xf32> to vector<2x128xbf16>
    %c4_178 = arith.constant 4 : index
    %c21_179 = arith.constant 21 : index
    %365 = vector.load %arg0[%c4_178, %c21_179] : memref<8x256xf32, #tpu.memory_space<vmem>>, vector<2x128xf32>
    %366 = arith.truncf %365 : vector<2x128xf32> to vector<2x128xbf16>
    %c6_180 = arith.constant 6 : index
    %c21_181 = arith.constant 21 : index
    %367 = vector.load %arg0[%c6_180, %c21_181] : memref<8x256xf32, #tpu.memory_space<vmem>>, vector<2x128xf32>
    %368 = arith.truncf %367 : vector<2x128xf32> to vector<2x128xbf16>
    %c2_182 = arith.constant 2 : index
    %c27_183 = arith.constant 27 : index
    %369 = vector.load %arg0[%c2_182, %c27_183] : memref<8x256xf32, #tpu.memory_space<vmem>>, vector<2x128xf32>
    %370 = arith.truncf %369 : vector<2x128xf32> to vector<2x128xbf16>
    %c0_184 = arith.constant 0 : index
    %c28_185 = arith.constant 28 : index
    %371 = vector.load %arg0[%c0_184, %c28_185] : memref<8x256xf32, #tpu.memory_space<vmem>>, vector<2x128xf32>
    %372 = arith.truncf %371 : vector<2x128xf32> to vector<2x128xbf16>
    %c2_186 = arith.constant 2 : index
    %c28_187 = arith.constant 28 : index
    %373 = vector.load %arg0[%c2_186, %c28_187] : memref<8x256xf32, #tpu.memory_space<vmem>>, vector<2x128xf32>
    %374 = arith.truncf %373 : vector<2x128xf32> to vector<2x128xbf16>
    %c0_188 = arith.constant 0 : index
    %c29_189 = arith.constant 29 : index
    %375 = vector.load %arg0[%c0_188, %c29_189] : memref<8x256xf32, #tpu.memory_space<vmem>>, vector<2x128xf32>
    %376 = arith.truncf %375 : vector<2x128xf32> to vector<2x128xbf16>
    %c2_190 = arith.constant 2 : index
    %c29_191 = arith.constant 29 : index
    %377 = vector.load %arg0[%c2_190, %c29_191] : memref<8x256xf32, #tpu.memory_space<vmem>>, vector<2x128xf32>
    %378 = arith.truncf %377 : vector<2x128xf32> to vector<2x128xbf16>
    %c0_192 = arith.constant 0 : index
    %c30_193 = arith.constant 30 : index
    %379 = vector.load %arg0[%c0_192, %c30_193] : memref<8x256xf32, #tpu.memory_space<vmem>>, vector<2x128xf32>
    %380 = arith.truncf %379 : vector<2x128xf32> to vector<2x128xbf16>
    %381 = vector.extract_strided_slice %350 {offsets = [0, 0], sizes = [1, 128], strides = [1, 1]} : vector<2x128xbf16> to vector<1x128xbf16>
    %382 = vector.extract_strided_slice %352 {offsets = [0, 0], sizes = [1, 128], strides = [1, 1]} : vector<2x128xbf16> to vector<1x128xbf16>
    %383 = vector.extract_strided_slice %354 {offsets = [0, 0], sizes = [1, 128], strides = [1, 1]} : vector<2x128xbf16> to vector<1x128xbf16>
    %384 = vector.extract_strided_slice %356 {offsets = [0, 0], sizes = [1, 128], strides = [1, 1]} : vector<2x128xbf16> to vector<1x128xbf16>
    %385 = vector.extract_strided_slice %358 {offsets = [0, 0], sizes = [1, 128], strides = [1, 1]} : vector<2x128xbf16> to vector<1x128xbf16>
    %386 = vector.extract_strided_slice %360 {offsets = [0, 0], sizes = [1, 128], strides = [1, 1]} : vector<2x128xbf16> to vector<1x128xbf16>
    %387 = vector.extract_strided_slice %362 {offsets = [0, 0], sizes = [1, 128], strides = [1, 1]} : vector<2x128xbf16> to vector<1x128xbf16>
    %388 = vector.extract_strided_slice %364 {offsets = [0, 0], sizes = [1, 128], strides = [1, 1]} : vector<2x128xbf16> to vector<1x128xbf16>
    %389 = vector.extract_strided_slice %366 {offsets = [0, 0], sizes = [1, 128], strides = [1, 1]} : vector<2x128xbf16> to vector<1x128xbf16>
    %390 = vector.extract_strided_slice %368 {offsets = [0, 0], sizes = [1, 128], strides = [1, 1]} : vector<2x128xbf16> to vector<1x128xbf16>
    %391 = vector.extract_strided_slice %370 {offsets = [0, 0], sizes = [1, 128], strides = [1, 1]} : vector<2x128xbf16> to vector<1x128xbf16>
    %392 = vector.extract_strided_slice %372 {offsets = [0, 0], sizes = [1, 128], strides = [1, 1]} : vector<2x128xbf16> to vector<1x128xbf16>
    %393 = vector.extract_strided_slice %374 {offsets = [0, 0], sizes = [1, 128], strides = [1, 1]} : vector<2x128xbf16> to vector<1x128xbf16>
    %394 = vector.extract_strided_slice %376 {offsets = [0, 0], sizes = [1, 128], strides = [1, 1]} : vector<2x128xbf16> to vector<1x128xbf16>
    %395 = vector.extract_strided_slice %378 {offsets = [0, 0], sizes = [1, 128], strides = [1, 1]} : vector<2x128xbf16> to vector<1x128xbf16>
    %396 = vector.extract_strided_slice %380 {offsets = [0, 0], sizes = [1, 128], strides = [1, 1]} : vector<2x128xbf16> to vector<1x128xbf16>
    %397 = tpu.concatenate %381, %382, %383, %384, %385, %386, %387, %388, %389, %390, %391, %392, %393, %394, %395, %396 in 0 : vector<1x128xbf16>, vector<1x128xbf16>, vector<1x128xbf16>, vector<1x128xbf16>, vector<1x128xbf16>, vector<1x128xbf16>, vector<1x128xbf16>, vector<1x128xbf16>, vector<1x128xbf16>, vector<1x128xbf16>, vector<1x128xbf16>, vector<1x128xbf16>, vector<1x128xbf16>, vector<1x128xbf16>, vector<1x128xbf16>, vector<1x128xbf16> -> vector<16x128xbf16>
    %c32_194 = arith.constant 32 : index
    %c256_195 = arith.constant 256 : index
    %398 = vector.load %arg6[%c32_194, %c256_195] : memref<64x1024xbf16, #tpu.memory_space<vmem>>, vector<16x128xbf16>
    tpu.vector_store %arg6[%c32_194, %c256_195], %397 {strides = array<i32>} : memref<64x1024xbf16, #tpu.memory_space<vmem>>, vector<16x128xbf16>,
    %399 = vector.extract_strided_slice %350 {offsets = [1, 0], sizes = [1, 128], strides = [1, 1]} : vector<2x128xbf16> to vector<1x128xbf16>
    %400 = vector.extract_strided_slice %352 {offsets = [1, 0], sizes = [1, 128], strides = [1, 1]} : vector<2x128xbf16> to vector<1x128xbf16>
    %401 = vector.extract_strided_slice %354 {offsets = [1, 0], sizes = [1, 128], strides = [1, 1]} : vector<2x128xbf16> to vector<1x128xbf16>
    %402 = vector.extract_strided_slice %356 {offsets = [1, 0], sizes = [1, 128], strides = [1, 1]} : vector<2x128xbf16> to vector<1x128xbf16>
    %403 = vector.extract_strided_slice %358 {offsets = [1, 0], sizes = [1, 128], strides = [1, 1]} : vector<2x128xbf16> to vector<1x128xbf16>
    %404 = vector.extract_strided_slice %360 {offsets = [1, 0], sizes = [1, 128], strides = [1, 1]} : vector<2x128xbf16> to vector<1x128xbf16>
    %405 = vector.extract_strided_slice %362 {offsets = [1, 0], sizes = [1, 128], strides = [1, 1]} : vector<2x128xbf16> to vector<1x128xbf16>
    %406 = vector.extract_strided_slice %364 {offsets = [1, 0], sizes = [1, 128], strides = [1, 1]} : vector<2x128xbf16> to vector<1x128xbf16>
    %407 = vector.extract_strided_slice %366 {offsets = [1, 0], sizes = [1, 128], strides = [1, 1]} : vector<2x128xbf16> to vector<1x128xbf16>
    %408 = vector.extract_strided_slice %368 {offsets = [1, 0], sizes = [1, 128], strides = [1, 1]} : vector<2x128xbf16> to vector<1x128xbf16>
    %409 = vector.extract_strided_slice %370 {offsets = [1, 0], sizes = [1, 128], strides = [1, 1]} : vector<2x128xbf16> to vector<1x128xbf16>
    %410 = vector.extract_strided_slice %372 {offsets = [1, 0], sizes = [1, 128], strides = [1, 1]} : vector<2x128xbf16> to vector<1x128xbf16>
    %411 = vector.extract_strided_slice %374 {offsets = [1, 0], sizes = [1, 128], strides = [1, 1]} : vector<2x128xbf16> to vector<1x128xbf16>
    %412 = vector.extract_strided_slice %376 {offsets = [1, 0], sizes = [1, 128], strides = [1, 1]} : vector<2x128xbf16> to vector<1x128xbf16>
    %413 = vector.extract_strided_slice %378 {offsets = [1, 0], sizes = [1, 128], strides = [1, 1]} : vector<2x128xbf16> to vector<1x128xbf16>
    %414 = vector.extract_strided_slice %380 {offsets = [1, 0], sizes = [1, 128], strides = [1, 1]} : vector<2x128xbf16> to vector<1x128xbf16>
    %415 = tpu.concatenate %399, %400, %401, %402, %403, %404, %405, %406, %407, %408, %409, %410, %411, %412, %413, %414 in 0 : vector<1x128xbf16>, vector<1x128xbf16>, vector<1x128xbf16>, vector<1x128xbf16>, vector<1x128xbf16>, vector<1x128xbf16>, vector<1x128xbf16>, vector<1x128xbf16>, vector<1x128xbf16>, vector<1x128xbf16>, vector<1x128xbf16>, vector<1x128xbf16>, vector<1x128xbf16>, vector<1x128xbf16>, vector<1x128xbf16>, vector<1x128xbf16> -> vector<16x128xbf16>
    %c32_196 = arith.constant 32 : index
    %c384_197 = arith.constant 384 : index
    %416 = vector.load %arg6[%c32_196, %c384_197] : memref<64x1024xbf16, #tpu.memory_space<vmem>>, vector<16x128xbf16>
    tpu.vector_store %arg6[%c32_196, %c384_197], %415 {strides = array<i32>} : memref<64x1024xbf16, #tpu.memory_space<vmem>>, vector<16x128xbf16>,
    %c2_198 = arith.constant 2 : index
    %c30_199 = arith.constant 30 : index
    %417 = vector.load %arg0[%c2_198, %c30_199] : memref<8x256xf32, #tpu.memory_space<vmem>>, vector<2x128xf32>
    %418 = arith.truncf %417 : vector<2x128xf32> to vector<2x128xbf16>
    %419 = vector.extract_strided_slice %418 {offsets = [0, 0], sizes = [1, 128], strides = [1, 1]} : vector<2x128xbf16> to vector<1x128xbf16>
    %420 = tpu.concatenate %419, %0, %0, %0, %0, %0, %0, %0, %0, %0, %0, %0, %0, %0, %0, %0 in 0 : vector<1x128xbf16>, vector<1x128xbf16>, vector<1x128xbf16>, vector<1x128xbf16>, vector<1x128xbf16>, vector<1x128xbf16>, vector<1x128xbf16>, vector<1x128xbf16>, vector<1x128xbf16>, vector<1x128xbf16>, vector<1x128xbf16>, vector<1x128xbf16>, vector<1x128xbf16>, vector<1x128xbf16>, vector<1x128xbf16>, vector<1x128xbf16> -> vector<16x128xbf16>
    %c48_200 = arith.constant 48 : index
    %c256_201 = arith.constant 256 : index
    %421 = vector.load %arg6[%c48_200, %c256_201] : memref<64x1024xbf16, #tpu.memory_space<vmem>>, vector<16x128xbf16>
    tpu.vector_store %arg6[%c48_200, %c256_201], %420 {strides = array<i32>} : memref<64x1024xbf16, #tpu.memory_space<vmem>>, vector<16x128xbf16>,
    %422 = vector.extract_strided_slice %418 {offsets = [1, 0], sizes = [1, 128], strides = [1, 1]} : vector<2x128xbf16> to vector<1x128xbf16>
    %423 = tpu.concatenate %422, %0, %0, %0, %0, %0, %0, %0, %0, %0, %0, %0, %0, %0, %0, %0 in 0 : vector<1x128xbf16>, vector<1x128xbf16>, vector<1x128xbf16>, vector<1x128xbf16>, vector<1x128xbf16>, vector<1x128xbf16>, vector<1x128xbf16>, vector<1x128xbf16>, vector<1x128xbf16>, vector<1x128xbf16>, vector<1x128xbf16>, vector<1x128xbf16>, vector<1x128xbf16>, vector<1x128xbf16>, vector<1x128xbf16>, vector<1x128xbf16> -> vector<16x128xbf16>
    %c48_202 = arith.constant 48 : index
    %c384_203 = arith.constant 384 : index
    %424 = vector.load %arg6[%c48_202, %c384_203] : memref<64x1024xbf16, #tpu.memory_space<vmem>>, vector<16x128xbf16>
    tpu.vector_store %arg6[%c48_202, %c384_203], %423 {strides = array<i32>} : memref<64x1024xbf16, #tpu.memory_space<vmem>>, vector<16x128xbf16>,
    %c4_204 = arith.constant 4 : index
    %c0_205 = arith.constant 0 : index
    %425 = vector.load %arg0[%c4_204, %c0_205] : memref<8x256xf32, #tpu.memory_space<vmem>>, vector<2x128xf32>
    %426 = arith.truncf %425 : vector<2x128xf32> to vector<2x128xbf16>
    %c6_206 = arith.constant 6 : index
    %c0_207 = arith.constant 0 : index
    %427 = vector.load %arg0[%c6_206, %c0_207] : memref<8x256xf32, #tpu.memory_space<vmem>>, vector<2x128xf32>
    %428 = arith.truncf %427 : vector<2x128xf32> to vector<2x128xbf16>
    %c4_208 = arith.constant 4 : index
    %c1_209 = arith.constant 1 : index
    %429 = vector.load %arg0[%c4_208, %c1_209] : memref<8x256xf32, #tpu.memory_space<vmem>>, vector<2x128xf32>
    %430 = arith.truncf %429 : vector<2x128xf32> to vector<2x128xbf16>
    %c6_210 = arith.constant 6 : index
    %c1_211 = arith.constant 1 : index
    %431 = vector.load %arg0[%c6_210, %c1_211] : memref<8x256xf32, #tpu.memory_space<vmem>>, vector<2x128xf32>
    %432 = arith.truncf %431 : vector<2x128xf32> to vector<2x128xbf16>
    %c4_212 = arith.constant 4 : index
    %c2_213 = arith.constant 2 : index
    %433 = vector.load %arg0[%c4_212, %c2_213] : memref<8x256xf32, #tpu.memory_space<vmem>>, vector<2x128xf32>
    %434 = arith.truncf %433 : vector<2x128xf32> to vector<2x128xbf16>
    %c6_214 = arith.constant 6 : index
    %c2_215 = arith.constant 2 : index
    %435 = vector.load %arg0[%c6_214, %c2_215] : memref<8x256xf32, #tpu.memory_space<vmem>>, vector<2x128xf32>
    %436 = arith.truncf %435 : vector<2x128xf32> to vector<2x128xbf16>
    %c4_216 = arith.constant 4 : index
    %c3_217 = arith.constant 3 : index
    %437 = vector.load %arg0[%c4_216, %c3_217] : memref<8x256xf32, #tpu.memory_space<vmem>>, vector<2x128xf32>
    %438 = arith.truncf %437 : vector<2x128xf32> to vector<2x128xbf16>
    %c0_218 = arith.constant 0 : index
    %c9_219 = arith.constant 9 : index
    %439 = vector.load %arg0[%c0_218, %c9_219] : memref<8x256xf32, #tpu.memory_space<vmem>>, vector<2x128xf32>
    %440 = arith.truncf %439 : vector<2x128xf32> to vector<2x128xbf16>
    %c2_220 = arith.constant 2 : index
    %c9_221 = arith.constant 9 : index
    %441 = vector.load %arg0[%c2_220, %c9_221] : memref<8x256xf32, #tpu.memory_space<vmem>>, vector<2x128xf32>
    %442 = arith.truncf %441 : vector<2x128xf32> to vector<2x128xbf16>
    %c0_222 = arith.constant 0 : index
    %c10_223 = arith.constant 10 : index
    %443 = vector.load %arg0[%c0_222, %c10_223] : memref<8x256xf32, #tpu.memory_space<vmem>>, vector<2x128xf32>
    %444 = arith.truncf %443 : vector<2x128xf32> to vector<2x128xbf16>
    %c2_224 = arith.constant 2 : index
    %c10_225 = arith.constant 10 : index
    %445 = vector.load %arg0[%c2_224, %c10_225] : memref<8x256xf32, #tpu.memory_space<vmem>>, vector<2x128xf32>
    %446 = arith.truncf %445 : vector<2x128xf32> to vector<2x128xbf16>
    %c0_226 = arith.constant 0 : index
    %c11_227 = arith.constant 11 : index
    %447 = vector.load %arg0[%c0_226, %c11_227] : memref<8x256xf32, #tpu.memory_space<vmem>>, vector<2x128xf32>
    %448 = arith.truncf %447 : vector<2x128xf32> to vector<2x128xbf16>
    %c2_228 = arith.constant 2 : index
    %c11_229 = arith.constant 11 : index
    %449 = vector.load %arg0[%c2_228, %c11_229] : memref<8x256xf32, #tpu.memory_space<vmem>>, vector<2x128xf32>
    %450 = arith.truncf %449 : vector<2x128xf32> to vector<2x128xbf16>
    %c0_230 = arith.constant 0 : index
    %c12_231 = arith.constant 12 : index
    %451 = vector.load %arg0[%c0_230, %c12_231] : memref<8x256xf32, #tpu.memory_space<vmem>>, vector<2x128xf32>
    %452 = arith.truncf %451 : vector<2x128xf32> to vector<2x128xbf16>
    %c4_232 = arith.constant 4 : index
    %c9_233 = arith.constant 9 : index
    %453 = vector.load %arg0[%c4_232, %c9_233] : memref<8x256xf32, #tpu.memory_space<vmem>>, vector<2x128xf32>
    %454 = arith.truncf %453 : vector<2x128xf32> to vector<2x128xbf16>
    %c6_234 = arith.constant 6 : index
    %c9_235 = arith.constant 9 : index
    %455 = vector.load %arg0[%c6_234, %c9_235] : memref<8x256xf32, #tpu.memory_space<vmem>>, vector<2x128xf32>
    %456 = arith.truncf %455 : vector<2x128xf32> to vector<2x128xbf16>
    %457 = vector.extract_strided_slice %426 {offsets = [0, 0], sizes = [1, 128], strides = [1, 1]} : vector<2x128xbf16> to vector<1x128xbf16>
    %458 = vector.extract_strided_slice %428 {offsets = [0, 0], sizes = [1, 128], strides = [1, 1]} : vector<2x128xbf16> to vector<1x128xbf16>
    %459 = vector.extract_strided_slice %430 {offsets = [0, 0], sizes = [1, 128], strides = [1, 1]} : vector<2x128xbf16> to vector<1x128xbf16>
    %460 = vector.extract_strided_slice %432 {offsets = [0, 0], sizes = [1, 128], strides = [1, 1]} : vector<2x128xbf16> to vector<1x128xbf16>
    %461 = vector.extract_strided_slice %434 {offsets = [0, 0], sizes = [1, 128], strides = [1, 1]} : vector<2x128xbf16> to vector<1x128xbf16>
    %462 = vector.extract_strided_slice %436 {offsets = [0, 0], sizes = [1, 128], strides = [1, 1]} : vector<2x128xbf16> to vector<1x128xbf16>
    %463 = vector.extract_strided_slice %438 {offsets = [0, 0], sizes = [1, 128], strides = [1, 1]} : vector<2x128xbf16> to vector<1x128xbf16>
    %464 = vector.extract_strided_slice %440 {offsets = [0, 0], sizes = [1, 128], strides = [1, 1]} : vector<2x128xbf16> to vector<1x128xbf16>
    %465 = vector.extract_strided_slice %442 {offsets = [0, 0], sizes = [1, 128], strides = [1, 1]} : vector<2x128xbf16> to vector<1x128xbf16>
    %466 = vector.extract_strided_slice %444 {offsets = [0, 0], sizes = [1, 128], strides = [1, 1]} : vector<2x128xbf16> to vector<1x128xbf16>
    %467 = vector.extract_strided_slice %446 {offsets = [0, 0], sizes = [1, 128], strides = [1, 1]} : vector<2x128xbf16> to vector<1x128xbf16>
    %468 = vector.extract_strided_slice %448 {offsets = [0, 0], sizes = [1, 128], strides = [1, 1]} : vector<2x128xbf16> to vector<1x128xbf16>
    %469 = vector.extract_strided_slice %450 {offsets = [0, 0], sizes = [1, 128], strides = [1, 1]} : vector<2x128xbf16> to vector<1x128xbf16>
    %470 = vector.extract_strided_slice %452 {offsets = [0, 0], sizes = [1, 128], strides = [1, 1]} : vector<2x128xbf16> to vector<1x128xbf16>
    %471 = vector.extract_strided_slice %454 {offsets = [0, 0], sizes = [1, 128], strides = [1, 1]} : vector<2x128xbf16> to vector<1x128xbf16>
    %472 = vector.extract_strided_slice %456 {offsets = [0, 0], sizes = [1, 128], strides = [1, 1]} : vector<2x128xbf16> to vector<1x128xbf16>
    %473 = tpu.concatenate %457, %458, %459, %460, %461, %462, %463, %464, %465, %466, %467, %468, %469, %470, %471, %472 in 0 : vector<1x128xbf16>, vector<1x128xbf16>, vector<1x128xbf16>, vector<1x128xbf16>, vector<1x128xbf16>, vector<1x128xbf16>, vector<1x128xbf16>, vector<1x128xbf16>, vector<1x128xbf16>, vector<1x128xbf16>, vector<1x128xbf16>, vector<1x128xbf16>, vector<1x128xbf16>, vector<1x128xbf16>, vector<1x128xbf16>, vector<1x128xbf16> -> vector<16x128xbf16>
    %c0_236 = arith.constant 0 : index
    %c512 = arith.constant 512 : index
    %474 = vector.load %arg6[%c0_236, %c512] : memref<64x1024xbf16, #tpu.memory_space<vmem>>, vector<16x128xbf16>
    tpu.vector_store %arg6[%c0_236, %c512], %473 {strides = array<i32>} : memref<64x1024xbf16, #tpu.memory_space<vmem>>, vector<16x128xbf16>,
    %475 = vector.extract_strided_slice %426 {offsets = [1, 0], sizes = [1, 128], strides = [1, 1]} : vector<2x128xbf16> to vector<1x128xbf16>
    %476 = vector.extract_strided_slice %428 {offsets = [1, 0], sizes = [1, 128], strides = [1, 1]} : vector<2x128xbf16> to vector<1x128xbf16>
    %477 = vector.extract_strided_slice %430 {offsets = [1, 0], sizes = [1, 128], strides = [1, 1]} : vector<2x128xbf16> to vector<1x128xbf16>
    %478 = vector.extract_strided_slice %432 {offsets = [1, 0], sizes = [1, 128], strides = [1, 1]} : vector<2x128xbf16> to vector<1x128xbf16>
    %479 = vector.extract_strided_slice %434 {offsets = [1, 0], sizes = [1, 128], strides = [1, 1]} : vector<2x128xbf16> to vector<1x128xbf16>
    %480 = vector.extract_strided_slice %436 {offsets = [1, 0], sizes = [1, 128], strides = [1, 1]} : vector<2x128xbf16> to vector<1x128xbf16>
    %481 = vector.extract_strided_slice %438 {offsets = [1, 0], sizes = [1, 128], strides = [1, 1]} : vector<2x128xbf16> to vector<1x128xbf16>
    %482 = vector.extract_strided_slice %440 {offsets = [1, 0], sizes = [1, 128], strides = [1, 1]} : vector<2x128xbf16> to vector<1x128xbf16>
    %483 = vector.extract_strided_slice %442 {offsets = [1, 0], sizes = [1, 128], strides = [1, 1]} : vector<2x128xbf16> to vector<1x128xbf16>
    %484 = vector.extract_strided_slice %444 {offsets = [1, 0], sizes = [1, 128], strides = [1, 1]} : vector<2x128xbf16> to vector<1x128xbf16>
    %485 = vector.extract_strided_slice %446 {offsets = [1, 0], sizes = [1, 128], strides = [1, 1]} : vector<2x128xbf16> to vector<1x128xbf16>
    %486 = vector.extract_strided_slice %448 {offsets = [1, 0], sizes = [1, 128], strides = [1, 1]} : vector<2x128xbf16> to vector<1x128xbf16>
    %487 = vector.extract_strided_slice %450 {offsets = [1, 0], sizes = [1, 128], strides = [1, 1]} : vector<2x128xbf16> to vector<1x128xbf16>
    %488 = vector.extract_strided_slice %452 {offsets = [1, 0], sizes = [1, 128], strides = [1, 1]} : vector<2x128xbf16> to vector<1x128xbf16>
    %489 = vector.extract_strided_slice %454 {offsets = [1, 0], sizes = [1, 128], strides = [1, 1]} : vector<2x128xbf16> to vector<1x128xbf16>
    %490 = vector.extract_strided_slice %456 {offsets = [1, 0], sizes = [1, 128], strides = [1, 1]} : vector<2x128xbf16> to vector<1x128xbf16>
    %491 = tpu.concatenate %475, %476, %477, %478, %479, %480, %481, %482, %483, %484, %485, %486, %487, %488, %489, %490 in 0 : vector<1x128xbf16>, vector<1x128xbf16>, vector<1x128xbf16>, vector<1x128xbf16>, vector<1x128xbf16>, vector<1x128xbf16>, vector<1x128xbf16>, vector<1x128xbf16>, vector<1x128xbf16>, vector<1x128xbf16>, vector<1x128xbf16>, vector<1x128xbf16>, vector<1x128xbf16>, vector<1x128xbf16>, vector<1x128xbf16>, vector<1x128xbf16> -> vector<16x128xbf16>
    %c0_237 = arith.constant 0 : index
    %c640 = arith.constant 640 : index
    %492 = vector.load %arg6[%c0_237, %c640] : memref<64x1024xbf16, #tpu.memory_space<vmem>>, vector<16x128xbf16>
    tpu.vector_store %arg6[%c0_237, %c640], %491 {strides = array<i32>} : memref<64x1024xbf16, #tpu.memory_space<vmem>>, vector<16x128xbf16>,
    %c4_238 = arith.constant 4 : index
    %c10_239 = arith.constant 10 : index
    %493 = vector.load %arg0[%c4_238, %c10_239] : memref<8x256xf32, #tpu.memory_space<vmem>>, vector<2x128xf32>
    %494 = arith.truncf %493 : vector<2x128xf32> to vector<2x128xbf16>
    %c6_240 = arith.constant 6 : index
    %c10_241 = arith.constant 10 : index
    %495 = vector.load %arg0[%c6_240, %c10_241] : memref<8x256xf32, #tpu.memory_space<vmem>>, vector<2x128xf32>
    %496 = arith.truncf %495 : vector<2x128xf32> to vector<2x128xbf16>
    %c4_242 = arith.constant 4 : index
    %c11_243 = arith.constant 11 : index
    %497 = vector.load %arg0[%c4_242, %c11_243] : memref<8x256xf32, #tpu.memory_space<vmem>>, vector<2x128xf32>
    %498 = arith.truncf %497 : vector<2x128xf32> to vector<2x128xbf16>
    %c6_244 = arith.constant 6 : index
    %c11_245 = arith.constant 11 : index
    %499 = vector.load %arg0[%c6_244, %c11_245] : memref<8x256xf32, #tpu.memory_space<vmem>>, vector<2x128xf32>
    %500 = arith.truncf %499 : vector<2x128xf32> to vector<2x128xbf16>
    %c4_246 = arith.constant 4 : index
    %c12_247 = arith.constant 12 : index
    %501 = vector.load %arg0[%c4_246, %c12_247] : memref<8x256xf32, #tpu.memory_space<vmem>>, vector<2x128xf32>
    %502 = arith.truncf %501 : vector<2x128xf32> to vector<2x128xbf16>
    %c0_248 = arith.constant 0 : index
    %c18_249 = arith.constant 18 : index
    %503 = vector.load %arg0[%c0_248, %c18_249] : memref<8x256xf32, #tpu.memory_space<vmem>>, vector<2x128xf32>
    %504 = arith.truncf %503 : vector<2x128xf32> to vector<2x128xbf16>
    %c2_250 = arith.constant 2 : index
    %c18_251 = arith.constant 18 : index
    %505 = vector.load %arg0[%c2_250, %c18_251] : memref<8x256xf32, #tpu.memory_space<vmem>>, vector<2x128xf32>
    %506 = arith.truncf %505 : vector<2x128xf32> to vector<2x128xbf16>
    %c0_252 = arith.constant 0 : index
    %c19_253 = arith.constant 19 : index
    %507 = vector.load %arg0[%c0_252, %c19_253] : memref<8x256xf32, #tpu.memory_space<vmem>>, vector<2x128xf32>
    %508 = arith.truncf %507 : vector<2x128xf32> to vector<2x128xbf16>
    %c2_254 = arith.constant 2 : index
    %c19_255 = arith.constant 19 : index
    %509 = vector.load %arg0[%c2_254, %c19_255] : memref<8x256xf32, #tpu.memory_space<vmem>>, vector<2x128xf32>
    %510 = arith.truncf %509 : vector<2x128xf32> to vector<2x128xbf16>
    %c0_256 = arith.constant 0 : index
    %c20_257 = arith.constant 20 : index
    %511 = vector.load %arg0[%c0_256, %c20_257] : memref<8x256xf32, #tpu.memory_space<vmem>>, vector<2x128xf32>
    %512 = arith.truncf %511 : vector<2x128xf32> to vector<2x128xbf16>
    %c2_258 = arith.constant 2 : index
    %c20_259 = arith.constant 20 : index
    %513 = vector.load %arg0[%c2_258, %c20_259] : memref<8x256xf32, #tpu.memory_space<vmem>>, vector<2x128xf32>
    %514 = arith.truncf %513 : vector<2x128xf32> to vector<2x128xbf16>
    %c0_260 = arith.constant 0 : index
    %c21_261 = arith.constant 21 : index
    %515 = vector.load %arg0[%c0_260, %c21_261] : memref<8x256xf32, #tpu.memory_space<vmem>>, vector<2x128xf32>
    %516 = arith.truncf %515 : vector<2x128xf32> to vector<2x128xbf16>
    %c4_262 = arith.constant 4 : index
    %c18_263 = arith.constant 18 : index
    %517 = vector.load %arg0[%c4_262, %c18_263] : memref<8x256xf32, #tpu.memory_space<vmem>>, vector<2x128xf32>
    %518 = arith.truncf %517 : vector<2x128xf32> to vector<2x128xbf16>
    %c6_264 = arith.constant 6 : index
    %c18_265 = arith.constant 18 : index
    %519 = vector.load %arg0[%c6_264, %c18_265] : memref<8x256xf32, #tpu.memory_space<vmem>>, vector<2x128xf32>
    %520 = arith.truncf %519 : vector<2x128xf32> to vector<2x128xbf16>
    %c4_266 = arith.constant 4 : index
    %c19_267 = arith.constant 19 : index
    %521 = vector.load %arg0[%c4_266, %c19_267] : memref<8x256xf32, #tpu.memory_space<vmem>>, vector<2x128xf32>
    %522 = arith.truncf %521 : vector<2x128xf32> to vector<2x128xbf16>
    %c6_268 = arith.constant 6 : index
    %c19_269 = arith.constant 19 : index
    %523 = vector.load %arg0[%c6_268, %c19_269] : memref<8x256xf32, #tpu.memory_space<vmem>>, vector<2x128xf32>
    %524 = arith.truncf %523 : vector<2x128xf32> to vector<2x128xbf16>
    %525 = vector.extract_strided_slice %494 {offsets = [0, 0], sizes = [1, 128], strides = [1, 1]} : vector<2x128xbf16> to vector<1x128xbf16>
    %526 = vector.extract_strided_slice %496 {offsets = [0, 0], sizes = [1, 128], strides = [1, 1]} : vector<2x128xbf16> to vector<1x128xbf16>
    %527 = vector.extract_strided_slice %498 {offsets = [0, 0], sizes = [1, 128], strides = [1, 1]} : vector<2x128xbf16> to vector<1x128xbf16>
    %528 = vector.extract_strided_slice %500 {offsets = [0, 0], sizes = [1, 128], strides = [1, 1]} : vector<2x128xbf16> to vector<1x128xbf16>
    %529 = vector.extract_strided_slice %502 {offsets = [0, 0], sizes = [1, 128], strides = [1, 1]} : vector<2x128xbf16> to vector<1x128xbf16>
    %530 = vector.extract_strided_slice %504 {offsets = [0, 0], sizes = [1, 128], strides = [1, 1]} : vector<2x128xbf16> to vector<1x128xbf16>
    %531 = vector.extract_strided_slice %506 {offsets = [0, 0], sizes = [1, 128], strides = [1, 1]} : vector<2x128xbf16> to vector<1x128xbf16>
    %532 = vector.extract_strided_slice %508 {offsets = [0, 0], sizes = [1, 128], strides = [1, 1]} : vector<2x128xbf16> to vector<1x128xbf16>
    %533 = vector.extract_strided_slice %510 {offsets = [0, 0], sizes = [1, 128], strides = [1, 1]} : vector<2x128xbf16> to vector<1x128xbf16>
    %534 = vector.extract_strided_slice %512 {offsets = [0, 0], sizes = [1, 128], strides = [1, 1]} : vector<2x128xbf16> to vector<1x128xbf16>
    %535 = vector.extract_strided_slice %514 {offsets = [0, 0], sizes = [1, 128], strides = [1, 1]} : vector<2x128xbf16> to vector<1x128xbf16>
    %536 = vector.extract_strided_slice %516 {offsets = [0, 0], sizes = [1, 128], strides = [1, 1]} : vector<2x128xbf16> to vector<1x128xbf16>
    %537 = vector.extract_strided_slice %518 {offsets = [0, 0], sizes = [1, 128], strides = [1, 1]} : vector<2x128xbf16> to vector<1x128xbf16>
    %538 = vector.extract_strided_slice %520 {offsets = [0, 0], sizes = [1, 128], strides = [1, 1]} : vector<2x128xbf16> to vector<1x128xbf16>
    %539 = vector.extract_strided_slice %522 {offsets = [0, 0], sizes = [1, 128], strides = [1, 1]} : vector<2x128xbf16> to vector<1x128xbf16>
    %540 = vector.extract_strided_slice %524 {offsets = [0, 0], sizes = [1, 128], strides = [1, 1]} : vector<2x128xbf16> to vector<1x128xbf16>
    %541 = tpu.concatenate %525, %526, %527, %528, %529, %530, %531, %532, %533, %534, %535, %536, %537, %538, %539, %540 in 0 : vector<1x128xbf16>, vector<1x128xbf16>, vector<1x128xbf16>, vector<1x128xbf16>, vector<1x128xbf16>, vector<1x128xbf16>, vector<1x128xbf16>, vector<1x128xbf16>, vector<1x128xbf16>, vector<1x128xbf16>, vector<1x128xbf16>, vector<1x128xbf16>, vector<1x128xbf16>, vector<1x128xbf16>, vector<1x128xbf16>, vector<1x128xbf16> -> vector<16x128xbf16>
    %c16_270 = arith.constant 16 : index
    %c512_271 = arith.constant 512 : index
    %542 = vector.load %arg6[%c16_270, %c512_271] : memref<64x1024xbf16, #tpu.memory_space<vmem>>, vector<16x128xbf16>
    tpu.vector_store %arg6[%c16_270, %c512_271], %541 {strides = array<i32>} : memref<64x1024xbf16, #tpu.memory_space<vmem>>, vector<16x128xbf16>,
    %543 = vector.extract_strided_slice %494 {offsets = [1, 0], sizes = [1, 128], strides = [1, 1]} : vector<2x128xbf16> to vector<1x128xbf16>
    %544 = vector.extract_strided_slice %496 {offsets = [1, 0], sizes = [1, 128], strides = [1, 1]} : vector<2x128xbf16> to vector<1x128xbf16>
    %545 = vector.extract_strided_slice %498 {offsets = [1, 0], sizes = [1, 128], strides = [1, 1]} : vector<2x128xbf16> to vector<1x128xbf16>
    %546 = vector.extract_strided_slice %500 {offsets = [1, 0], sizes = [1, 128], strides = [1, 1]} : vector<2x128xbf16> to vector<1x128xbf16>
    %547 = vector.extract_strided_slice %502 {offsets = [1, 0], sizes = [1, 128], strides = [1, 1]} : vector<2x128xbf16> to vector<1x128xbf16>
    %548 = vector.extract_strided_slice %504 {offsets = [1, 0], sizes = [1, 128], strides = [1, 1]} : vector<2x128xbf16> to vector<1x128xbf16>
    %549 = vector.extract_strided_slice %506 {offsets = [1, 0], sizes = [1, 128], strides = [1, 1]} : vector<2x128xbf16> to vector<1x128xbf16>
    %550 = vector.extract_strided_slice %508 {offsets = [1, 0], sizes = [1, 128], strides = [1, 1]} : vector<2x128xbf16> to vector<1x128xbf16>
    %551 = vector.extract_strided_slice %510 {offsets = [1, 0], sizes = [1, 128], strides = [1, 1]} : vector<2x128xbf16> to vector<1x128xbf16>
    %552 = vector.extract_strided_slice %512 {offsets = [1, 0], sizes = [1, 128], strides = [1, 1]} : vector<2x128xbf16> to vector<1x128xbf16>
    %553 = vector.extract_strided_slice %514 {offsets = [1, 0], sizes = [1, 128], strides = [1, 1]} : vector<2x128xbf16> to vector<1x128xbf16>
    %554 = vector.extract_strided_slice %516 {offsets = [1, 0], sizes = [1, 128], strides = [1, 1]} : vector<2x128xbf16> to vector<1x128xbf16>
    %555 = vector.extract_strided_slice %518 {offsets = [1, 0], sizes = [1, 128], strides = [1, 1]} : vector<2x128xbf16> to vector<1x128xbf16>
    %556 = vector.extract_strided_slice %520 {offsets = [1, 0], sizes = [1, 128], strides = [1, 1]} : vector<2x128xbf16> to vector<1x128xbf16>
    %557 = vector.extract_strided_slice %522 {offsets = [1, 0], sizes = [1, 128], strides = [1, 1]} : vector<2x128xbf16> to vector<1x128xbf16>
    %558 = vector.extract_strided_slice %524 {offsets = [1, 0], sizes = [1, 128], strides = [1, 1]} : vector<2x128xbf16> to vector<1x128xbf16>
    %559 = tpu.concatenate %543, %544, %545, %546, %547, %548, %549, %550, %551, %552, %553, %554, %555, %556, %557, %558 in 0 : vector<1x128xbf16>, vector<1x128xbf16>, vector<1x128xbf16>, vector<1x128xbf16>, vector<1x128xbf16>, vector<1x128xbf16>, vector<1x128xbf16>, vector<1x128xbf16>, vector<1x128xbf16>, vector<1x128xbf16>, vector<1x128xbf16>, vector<1x128xbf16>, vector<1x128xbf16>, vector<1x128xbf16>, vector<1x128xbf16>, vector<1x128xbf16> -> vector<16x128xbf16>
    %c16_272 = arith.constant 16 : index
    %c640_273 = arith.constant 640 : index
    %560 = vector.load %arg6[%c16_272, %c640_273] : memref<64x1024xbf16, #tpu.memory_space<vmem>>, vector<16x128xbf16>
    tpu.vector_store %arg6[%c16_272, %c640_273], %559 {strides = array<i32>} : memref<64x1024xbf16, #tpu.memory_space<vmem>>, vector<16x128xbf16>,
    %c4_274 = arith.constant 4 : index
    %c20_275 = arith.constant 20 : index
    %561 = vector.load %arg0[%c4_274, %c20_275] : memref<8x256xf32, #tpu.memory_space<vmem>>, vector<2x128xf32>
    %562 = arith.truncf %561 : vector<2x128xf32> to vector<2x128xbf16>
    %c6_276 = arith.constant 6 : index
    %c20_277 = arith.constant 20 : index
    %563 = vector.load %arg0[%c6_276, %c20_277] : memref<8x256xf32, #tpu.memory_space<vmem>>, vector<2x128xf32>
    %564 = arith.truncf %563 : vector<2x128xf32> to vector<2x128xbf16>
    %c4_278 = arith.constant 4 : index
    %c21_279 = arith.constant 21 : index
    %565 = vector.load %arg0[%c4_278, %c21_279] : memref<8x256xf32, #tpu.memory_space<vmem>>, vector<2x128xf32>
    %566 = arith.truncf %565 : vector<2x128xf32> to vector<2x128xbf16>
    %c0_280 = arith.constant 0 : index
    %c27_281 = arith.constant 27 : index
    %567 = vector.load %arg0[%c0_280, %c27_281] : memref<8x256xf32, #tpu.memory_space<vmem>>, vector<2x128xf32>
    %568 = arith.truncf %567 : vector<2x128xf32> to vector<2x128xbf16>
    %c2_282 = arith.constant 2 : index
    %c27_283 = arith.constant 27 : index
    %569 = vector.load %arg0[%c2_282, %c27_283] : memref<8x256xf32, #tpu.memory_space<vmem>>, vector<2x128xf32>
    %570 = arith.truncf %569 : vector<2x128xf32> to vector<2x128xbf16>
    %c0_284 = arith.constant 0 : index
    %c28_285 = arith.constant 28 : index
    %571 = vector.load %arg0[%c0_284, %c28_285] : memref<8x256xf32, #tpu.memory_space<vmem>>, vector<2x128xf32>
    %572 = arith.truncf %571 : vector<2x128xf32> to vector<2x128xbf16>
    %c2_286 = arith.constant 2 : index
    %c28_287 = arith.constant 28 : index
    %573 = vector.load %arg0[%c2_286, %c28_287] : memref<8x256xf32, #tpu.memory_space<vmem>>, vector<2x128xf32>
    %574 = arith.truncf %573 : vector<2x128xf32> to vector<2x128xbf16>
    %c0_288 = arith.constant 0 : index
    %c29_289 = arith.constant 29 : index
    %575 = vector.load %arg0[%c0_288, %c29_289] : memref<8x256xf32, #tpu.memory_space<vmem>>, vector<2x128xf32>
    %576 = arith.truncf %575 : vector<2x128xf32> to vector<2x128xbf16>
    %c2_290 = arith.constant 2 : index
    %c29_291 = arith.constant 29 : index
    %577 = vector.load %arg0[%c2_290, %c29_291] : memref<8x256xf32, #tpu.memory_space<vmem>>, vector<2x128xf32>
    %578 = arith.truncf %577 : vector<2x128xf32> to vector<2x128xbf16>
    %c0_292 = arith.constant 0 : index
    %c30_293 = arith.constant 30 : index
    %579 = vector.load %arg0[%c0_292, %c30_293] : memref<8x256xf32, #tpu.memory_space<vmem>>, vector<2x128xf32>
    %580 = arith.truncf %579 : vector<2x128xf32> to vector<2x128xbf16>
    %c4_294 = arith.constant 4 : index
    %c27_295 = arith.constant 27 : index
    %581 = vector.load %arg0[%c4_294, %c27_295] : memref<8x256xf32, #tpu.memory_space<vmem>>, vector<2x128xf32>
    %582 = arith.truncf %581 : vector<2x128xf32> to vector<2x128xbf16>
    %c6_296 = arith.constant 6 : index
    %c27_297 = arith.constant 27 : index
    %583 = vector.load %arg0[%c6_296, %c27_297] : memref<8x256xf32, #tpu.memory_space<vmem>>, vector<2x128xf32>
    %584 = arith.truncf %583 : vector<2x128xf32> to vector<2x128xbf16>
    %c4_298 = arith.constant 4 : index
    %c28_299 = arith.constant 28 : index
    %585 = vector.load %arg0[%c4_298, %c28_299] : memref<8x256xf32, #tpu.memory_space<vmem>>, vector<2x128xf32>
    %586 = arith.truncf %585 : vector<2x128xf32> to vector<2x128xbf16>
    %c6_300 = arith.constant 6 : index
    %c28_301 = arith.constant 28 : index
    %587 = vector.load %arg0[%c6_300, %c28_301] : memref<8x256xf32, #tpu.memory_space<vmem>>, vector<2x128xf32>
    %588 = arith.truncf %587 : vector<2x128xf32> to vector<2x128xbf16>
    %c4_302 = arith.constant 4 : index
    %c29_303 = arith.constant 29 : index
    %589 = vector.load %arg0[%c4_302, %c29_303] : memref<8x256xf32, #tpu.memory_space<vmem>>, vector<2x128xf32>
    %590 = arith.truncf %589 : vector<2x128xf32> to vector<2x128xbf16>
    %c6_304 = arith.constant 6 : index
    %c29_305 = arith.constant 29 : index
    %591 = vector.load %arg0[%c6_304, %c29_305] : memref<8x256xf32, #tpu.memory_space<vmem>>, vector<2x128xf32>
    %592 = arith.truncf %591 : vector<2x128xf32> to vector<2x128xbf16>
    %593 = vector.extract_strided_slice %562 {offsets = [0, 0], sizes = [1, 128], strides = [1, 1]} : vector<2x128xbf16> to vector<1x128xbf16>
    %594 = vector.extract_strided_slice %564 {offsets = [0, 0], sizes = [1, 128], strides = [1, 1]} : vector<2x128xbf16> to vector<1x128xbf16>
    %595 = vector.extract_strided_slice %566 {offsets = [0, 0], sizes = [1, 128], strides = [1, 1]} : vector<2x128xbf16> to vector<1x128xbf16>
    %596 = vector.extract_strided_slice %568 {offsets = [0, 0], sizes = [1, 128], strides = [1, 1]} : vector<2x128xbf16> to vector<1x128xbf16>
    %597 = vector.extract_strided_slice %570 {offsets = [0, 0], sizes = [1, 128], strides = [1, 1]} : vector<2x128xbf16> to vector<1x128xbf16>
    %598 = vector.extract_strided_slice %572 {offsets = [0, 0], sizes = [1, 128], strides = [1, 1]} : vector<2x128xbf16> to vector<1x128xbf16>
    %599 = vector.extract_strided_slice %574 {offsets = [0, 0], sizes = [1, 128], strides = [1, 1]} : vector<2x128xbf16> to vector<1x128xbf16>
    %600 = vector.extract_strided_slice %576 {offsets = [0, 0], sizes = [1, 128], strides = [1, 1]} : vector<2x128xbf16> to vector<1x128xbf16>
    %601 = vector.extract_strided_slice %578 {offsets = [0, 0], sizes = [1, 128], strides = [1, 1]} : vector<2x128xbf16> to vector<1x128xbf16>
    %602 = vector.extract_strided_slice %580 {offsets = [0, 0], sizes = [1, 128], strides = [1, 1]} : vector<2x128xbf16> to vector<1x128xbf16>
    %603 = vector.extract_strided_slice %582 {offsets = [0, 0], sizes = [1, 128], strides = [1, 1]} : vector<2x128xbf16> to vector<1x128xbf16>
    %604 = vector.extract_strided_slice %584 {offsets = [0, 0], sizes = [1, 128], strides = [1, 1]} : vector<2x128xbf16> to vector<1x128xbf16>
    %605 = vector.extract_strided_slice %586 {offsets = [0, 0], sizes = [1, 128], strides = [1, 1]} : vector<2x128xbf16> to vector<1x128xbf16>
    %606 = vector.extract_strided_slice %588 {offsets = [0, 0], sizes = [1, 128], strides = [1, 1]} : vector<2x128xbf16> to vector<1x128xbf16>
    %607 = vector.extract_strided_slice %590 {offsets = [0, 0], sizes = [1, 128], strides = [1, 1]} : vector<2x128xbf16> to vector<1x128xbf16>
    %608 = vector.extract_strided_slice %592 {offsets = [0, 0], sizes = [1, 128], strides = [1, 1]} : vector<2x128xbf16> to vector<1x128xbf16>
    %609 = tpu.concatenate %593, %594, %595, %596, %597, %598, %599, %600, %601, %602, %603, %604, %605, %606, %607, %608 in 0 : vector<1x128xbf16>, vector<1x128xbf16>, vector<1x128xbf16>, vector<1x128xbf16>, vector<1x128xbf16>, vector<1x128xbf16>, vector<1x128xbf16>, vector<1x128xbf16>, vector<1x128xbf16>, vector<1x128xbf16>, vector<1x128xbf16>, vector<1x128xbf16>, vector<1x128xbf16>, vector<1x128xbf16>, vector<1x128xbf16>, vector<1x128xbf16> -> vector<16x128xbf16>
    %c32_306 = arith.constant 32 : index
    %c512_307 = arith.constant 512 : index
    %610 = vector.load %arg6[%c32_306, %c512_307] : memref<64x1024xbf16, #tpu.memory_space<vmem>>, vector<16x128xbf16>
    tpu.vector_store %arg6[%c32_306, %c512_307], %609 {strides = array<i32>} : memref<64x1024xbf16, #tpu.memory_space<vmem>>, vector<16x128xbf16>,
    %611 = vector.extract_strided_slice %562 {offsets = [1, 0], sizes = [1, 128], strides = [1, 1]} : vector<2x128xbf16> to vector<1x128xbf16>
    %612 = vector.extract_strided_slice %564 {offsets = [1, 0], sizes = [1, 128], strides = [1, 1]} : vector<2x128xbf16> to vector<1x128xbf16>
    %613 = vector.extract_strided_slice %566 {offsets = [1, 0], sizes = [1, 128], strides = [1, 1]} : vector<2x128xbf16> to vector<1x128xbf16>
    %614 = vector.extract_strided_slice %568 {offsets = [1, 0], sizes = [1, 128], strides = [1, 1]} : vector<2x128xbf16> to vector<1x128xbf16>
    %615 = vector.extract_strided_slice %570 {offsets = [1, 0], sizes = [1, 128], strides = [1, 1]} : vector<2x128xbf16> to vector<1x128xbf16>
    %616 = vector.extract_strided_slice %572 {offsets = [1, 0], sizes = [1, 128], strides = [1, 1]} : vector<2x128xbf16> to vector<1x128xbf16>
    %617 = vector.extract_strided_slice %574 {offsets = [1, 0], sizes = [1, 128], strides = [1, 1]} : vector<2x128xbf16> to vector<1x128xbf16>
    %618 = vector.extract_strided_slice %576 {offsets = [1, 0], sizes = [1, 128], strides = [1, 1]} : vector<2x128xbf16> to vector<1x128xbf16>
    %619 = vector.extract_strided_slice %578 {offsets = [1, 0], sizes = [1, 128], strides = [1, 1]} : vector<2x128xbf16> to vector<1x128xbf16>
    %620 = vector.extract_strided_slice %580 {offsets = [1, 0], sizes = [1, 128], strides = [1, 1]} : vector<2x128xbf16> to vector<1x128xbf16>
    %621 = vector.extract_strided_slice %582 {offsets = [1, 0], sizes = [1, 128], strides = [1, 1]} : vector<2x128xbf16> to vector<1x128xbf16>
    %622 = vector.extract_strided_slice %584 {offsets = [1, 0], sizes = [1, 128], strides = [1, 1]} : vector<2x128xbf16> to vector<1x128xbf16>
    %623 = vector.extract_strided_slice %586 {offsets = [1, 0], sizes = [1, 128], strides = [1, 1]} : vector<2x128xbf16> to vector<1x128xbf16>
    %624 = vector.extract_strided_slice %588 {offsets = [1, 0], sizes = [1, 128], strides = [1, 1]} : vector<2x128xbf16> to vector<1x128xbf16>
    %625 = vector.extract_strided_slice %590 {offsets = [1, 0], sizes = [1, 128], strides = [1, 1]} : vector<2x128xbf16> to vector<1x128xbf16>
    %626 = vector.extract_strided_slice %592 {offsets = [1, 0], sizes = [1, 128], strides = [1, 1]} : vector<2x128xbf16> to vector<1x128xbf16>
    %627 = tpu.concatenate %611, %612, %613, %614, %615, %616, %617, %618, %619, %620, %621, %622, %623, %624, %625, %626 in 0 : vector<1x128xbf16>, vector<1x128xbf16>, vector<1x128xbf16>, vector<1x128xbf16>, vector<1x128xbf16>, vector<1x128xbf16>, vector<1x128xbf16>, vector<1x128xbf16>, vector<1x128xbf16>, vector<1x128xbf16>, vector<1x128xbf16>, vector<1x128xbf16>, vector<1x128xbf16>, vector<1x128xbf16>, vector<1x128xbf16>, vector<1x128xbf16> -> vector<16x128xbf16>
    %c32_308 = arith.constant 32 : index
    %c640_309 = arith.constant 640 : index
    %628 = vector.load %arg6[%c32_308, %c640_309] : memref<64x1024xbf16, #tpu.memory_space<vmem>>, vector<16x128xbf16>
    tpu.vector_store %arg6[%c32_308, %c640_309], %627 {strides = array<i32>} : memref<64x1024xbf16, #tpu.memory_space<vmem>>, vector<16x128xbf16>,
    %c4_310 = arith.constant 4 : index
    %c30_311 = arith.constant 30 : index
    %629 = vector.load %arg0[%c4_310, %c30_311] : memref<8x256xf32, #tpu.memory_space<vmem>>, vector<2x128xf32>
    %630 = arith.truncf %629 : vector<2x128xf32> to vector<2x128xbf16>
    %631 = vector.extract_strided_slice %630 {offsets = [0, 0], sizes = [1, 128], strides = [1, 1]} : vector<2x128xbf16> to vector<1x128xbf16>
    %632 = tpu.concatenate %631, %0, %0, %0, %0, %0, %0, %0, %0, %0, %0, %0, %0, %0, %0, %0 in 0 : vector<1x128xbf16>, vector<1x128xbf16>, vector<1x128xbf16>, vector<1x128xbf16>, vector<1x128xbf16>, vector<1x128xbf16>, vector<1x128xbf16>, vector<1x128xbf16>, vector<1x128xbf16>, vector<1x128xbf16>, vector<1x128xbf16>, vector<1x128xbf16>, vector<1x128xbf16>, vector<1x128xbf16>, vector<1x128xbf16>, vector<1x128xbf16> -> vector<16x128xbf16>
    %c48_312 = arith.constant 48 : index
    %c512_313 = arith.constant 512 : index
    %633 = vector.load %arg6[%c48_312, %c512_313] : memref<64x1024xbf16, #tpu.memory_space<vmem>>, vector<16x128xbf16>
    tpu.vector_store %arg6[%c48_312, %c512_313], %632 {strides = array<i32>} : memref<64x1024xbf16, #tpu.memory_space<vmem>>, vector<16x128xbf16>,
    %634 = vector.extract_strided_slice %630 {offsets = [1, 0], sizes = [1, 128], strides = [1, 1]} : vector<2x128xbf16> to vector<1x128xbf16>
    %635 = tpu.concatenate %634, %0, %0, %0, %0, %0, %0, %0, %0, %0, %0, %0, %0, %0, %0, %0 in 0 : vector<1x128xbf16>, vector<1x128xbf16>, vector<1x128xbf16>, vector<1x128xbf16>, vector<1x128xbf16>, vector<1x128xbf16>, vector<1x128xbf16>, vector<1x128xbf16>, vector<1x128xbf16>, vector<1x128xbf16>, vector<1x128xbf16>, vector<1x128xbf16>, vector<1x128xbf16>, vector<1x128xbf16>, vector<1x128xbf16>, vector<1x128xbf16> -> vector<16x128xbf16>
    %c48_314 = arith.constant 48 : index
    %c640_315 = arith.constant 640 : index
    %636 = vector.load %arg6[%c48_314, %c640_315] : memref<64x1024xbf16, #tpu.memory_space<vmem>>, vector<16x128xbf16>
    tpu.vector_store %arg6[%c48_314, %c640_315], %635 {strides = array<i32>} : memref<64x1024xbf16, #tpu.memory_space<vmem>>, vector<16x128xbf16>,
    %c6_316 = arith.constant 6 : index
    %c0_317 = arith.constant 0 : index
    %637 = vector.load %arg0[%c6_316, %c0_317] : memref<8x256xf32, #tpu.memory_space<vmem>>, vector<2x128xf32>
    %638 = arith.truncf %637 : vector<2x128xf32> to vector<2x128xbf16>
    %c4_318 = arith.constant 4 : index
    %c1_319 = arith.constant 1 : index
    %639 = vector.load %arg0[%c4_318, %c1_319] : memref<8x256xf32, #tpu.memory_space<vmem>>, vector<2x128xf32>
    %640 = arith.truncf %639 : vector<2x128xf32> to vector<2x128xbf16>
    %c6_320 = arith.constant 6 : index
    %c1_321 = arith.constant 1 : index
    %641 = vector.load %arg0[%c6_320, %c1_321] : memref<8x256xf32, #tpu.memory_space<vmem>>, vector<2x128xf32>
    %642 = arith.truncf %641 : vector<2x128xf32> to vector<2x128xbf16>
    %c4_322 = arith.constant 4 : index
    %c2_323 = arith.constant 2 : index
    %643 = vector.load %arg0[%c4_322, %c2_323] : memref<8x256xf32, #tpu.memory_space<vmem>>, vector<2x128xf32>
    %644 = arith.truncf %643 : vector<2x128xf32> to vector<2x128xbf16>
    %c6_324 = arith.constant 6 : index
    %c2_325 = arith.constant 2 : index
    %645 = vector.load %arg0[%c6_324, %c2_325] : memref<8x256xf32, #tpu.memory_space<vmem>>, vector<2x128xf32>
    %646 = arith.truncf %645 : vector<2x128xf32> to vector<2x128xbf16>
    %c4_326 = arith.constant 4 : index
    %c3_327 = arith.constant 3 : index
    %647 = vector.load %arg0[%c4_326, %c3_327] : memref<8x256xf32, #tpu.memory_space<vmem>>, vector<2x128xf32>
    %648 = arith.truncf %647 : vector<2x128xf32> to vector<2x128xbf16>
    %c6_328 = arith.constant 6 : index
    %c3_329 = arith.constant 3 : index
    %649 = vector.load %arg0[%c6_328, %c3_329] : memref<8x256xf32, #tpu.memory_space<vmem>>, vector<2x128xf32>
    %650 = arith.truncf %649 : vector<2x128xf32> to vector<2x128xbf16>
    %c2_330 = arith.constant 2 : index
    %c9_331 = arith.constant 9 : index
    %651 = vector.load %arg0[%c2_330, %c9_331] : memref<8x256xf32, #tpu.memory_space<vmem>>, vector<2x128xf32>
    %652 = arith.truncf %651 : vector<2x128xf32> to vector<2x128xbf16>
    %c0_332 = arith.constant 0 : index
    %c10_333 = arith.constant 10 : index
    %653 = vector.load %arg0[%c0_332, %c10_333] : memref<8x256xf32, #tpu.memory_space<vmem>>, vector<2x128xf32>
    %654 = arith.truncf %653 : vector<2x128xf32> to vector<2x128xbf16>
    %c2_334 = arith.constant 2 : index
    %c10_335 = arith.constant 10 : index
    %655 = vector.load %arg0[%c2_334, %c10_335] : memref<8x256xf32, #tpu.memory_space<vmem>>, vector<2x128xf32>
    %656 = arith.truncf %655 : vector<2x128xf32> to vector<2x128xbf16>
    %c0_336 = arith.constant 0 : index
    %c11_337 = arith.constant 11 : index
    %657 = vector.load %arg0[%c0_336, %c11_337] : memref<8x256xf32, #tpu.memory_space<vmem>>, vector<2x128xf32>
    %658 = arith.truncf %657 : vector<2x128xf32> to vector<2x128xbf16>
    %c2_338 = arith.constant 2 : index
    %c11_339 = arith.constant 11 : index
    %659 = vector.load %arg0[%c2_338, %c11_339] : memref<8x256xf32, #tpu.memory_space<vmem>>, vector<2x128xf32>
    %660 = arith.truncf %659 : vector<2x128xf32> to vector<2x128xbf16>
    %c0_340 = arith.constant 0 : index
    %c12_341 = arith.constant 12 : index
    %661 = vector.load %arg0[%c0_340, %c12_341] : memref<8x256xf32, #tpu.memory_space<vmem>>, vector<2x128xf32>
    %662 = arith.truncf %661 : vector<2x128xf32> to vector<2x128xbf16>
    %c2_342 = arith.constant 2 : index
    %c12_343 = arith.constant 12 : index
    %663 = vector.load %arg0[%c2_342, %c12_343] : memref<8x256xf32, #tpu.memory_space<vmem>>, vector<2x128xf32>
    %664 = arith.truncf %663 : vector<2x128xf32> to vector<2x128xbf16>
    %c6_344 = arith.constant 6 : index
    %c9_345 = arith.constant 9 : index
    %665 = vector.load %arg0[%c6_344, %c9_345] : memref<8x256xf32, #tpu.memory_space<vmem>>, vector<2x128xf32>
    %666 = arith.truncf %665 : vector<2x128xf32> to vector<2x128xbf16>
    %c4_346 = arith.constant 4 : index
    %c10_347 = arith.constant 10 : index
    %667 = vector.load %arg0[%c4_346, %c10_347] : memref<8x256xf32, #tpu.memory_space<vmem>>, vector<2x128xf32>
    %668 = arith.truncf %667 : vector<2x128xf32> to vector<2x128xbf16>
    %669 = vector.extract_strided_slice %638 {offsets = [0, 0], sizes = [1, 128], strides = [1, 1]} : vector<2x128xbf16> to vector<1x128xbf16>
    %670 = vector.extract_strided_slice %640 {offsets = [0, 0], sizes = [1, 128], strides = [1, 1]} : vector<2x128xbf16> to vector<1x128xbf16>
    %671 = vector.extract_strided_slice %642 {offsets = [0, 0], sizes = [1, 128], strides = [1, 1]} : vector<2x128xbf16> to vector<1x128xbf16>
    %672 = vector.extract_strided_slice %644 {offsets = [0, 0], sizes = [1, 128], strides = [1, 1]} : vector<2x128xbf16> to vector<1x128xbf16>
    %673 = vector.extract_strided_slice %646 {offsets = [0, 0], sizes = [1, 128], strides = [1, 1]} : vector<2x128xbf16> to vector<1x128xbf16>
    %674 = vector.extract_strided_slice %648 {offsets = [0, 0], sizes = [1, 128], strides = [1, 1]} : vector<2x128xbf16> to vector<1x128xbf16>
    %675 = vector.extract_strided_slice %650 {offsets = [0, 0], sizes = [1, 128], strides = [1, 1]} : vector<2x128xbf16> to vector<1x128xbf16>
    %676 = vector.extract_strided_slice %652 {offsets = [0, 0], sizes = [1, 128], strides = [1, 1]} : vector<2x128xbf16> to vector<1x128xbf16>
    %677 = vector.extract_strided_slice %654 {offsets = [0, 0], sizes = [1, 128], strides = [1, 1]} : vector<2x128xbf16> to vector<1x128xbf16>
    %678 = vector.extract_strided_slice %656 {offsets = [0, 0], sizes = [1, 128], strides = [1, 1]} : vector<2x128xbf16> to vector<1x128xbf16>
    %679 = vector.extract_strided_slice %658 {offsets = [0, 0], sizes = [1, 128], strides = [1, 1]} : vector<2x128xbf16> to vector<1x128xbf16>
    %680 = vector.extract_strided_slice %660 {offsets = [0, 0], sizes = [1, 128], strides = [1, 1]} : vector<2x128xbf16> to vector<1x128xbf16>
    %681 = vector.extract_strided_slice %662 {offsets = [0, 0], sizes = [1, 128], strides = [1, 1]} : vector<2x128xbf16> to vector<1x128xbf16>
    %682 = vector.extract_strided_slice %664 {offsets = [0, 0], sizes = [1, 128], strides = [1, 1]} : vector<2x128xbf16> to vector<1x128xbf16>
    %683 = vector.extract_strided_slice %666 {offsets = [0, 0], sizes = [1, 128], strides = [1, 1]} : vector<2x128xbf16> to vector<1x128xbf16>
    %684 = vector.extract_strided_slice %668 {offsets = [0, 0], sizes = [1, 128], strides = [1, 1]} : vector<2x128xbf16> to vector<1x128xbf16>
    %685 = tpu.concatenate %669, %670, %671, %672, %673, %674, %675, %676, %677, %678, %679, %680, %681, %682, %683, %684 in 0 : vector<1x128xbf16>, vector<1x128xbf16>, vector<1x128xbf16>, vector<1x128xbf16>, vector<1x128xbf16>, vector<1x128xbf16>, vector<1x128xbf16>, vector<1x128xbf16>, vector<1x128xbf16>, vector<1x128xbf16>, vector<1x128xbf16>, vector<1x128xbf16>, vector<1x128xbf16>, vector<1x128xbf16>, vector<1x128xbf16>, vector<1x128xbf16> -> vector<16x128xbf16>
    %c0_348 = arith.constant 0 : index
    %c768 = arith.constant 768 : index
    %686 = vector.load %arg6[%c0_348, %c768] : memref<64x1024xbf16, #tpu.memory_space<vmem>>, vector<16x128xbf16>
    tpu.vector_store %arg6[%c0_348, %c768], %685 {strides = array<i32>} : memref<64x1024xbf16, #tpu.memory_space<vmem>>, vector<16x128xbf16>,
    %687 = vector.extract_strided_slice %638 {offsets = [1, 0], sizes = [1, 128], strides = [1, 1]} : vector<2x128xbf16> to vector<1x128xbf16>
    %688 = vector.extract_strided_slice %640 {offsets = [1, 0], sizes = [1, 128], strides = [1, 1]} : vector<2x128xbf16> to vector<1x128xbf16>
    %689 = vector.extract_strided_slice %642 {offsets = [1, 0], sizes = [1, 128], strides = [1, 1]} : vector<2x128xbf16> to vector<1x128xbf16>
    %690 = vector.extract_strided_slice %644 {offsets = [1, 0], sizes = [1, 128], strides = [1, 1]} : vector<2x128xbf16> to vector<1x128xbf16>
    %691 = vector.extract_strided_slice %646 {offsets = [1, 0], sizes = [1, 128], strides = [1, 1]} : vector<2x128xbf16> to vector<1x128xbf16>
    %692 = vector.extract_strided_slice %648 {offsets = [1, 0], sizes = [1, 128], strides = [1, 1]} : vector<2x128xbf16> to vector<1x128xbf16>
    %693 = vector.extract_strided_slice %650 {offsets = [1, 0], sizes = [1, 128], strides = [1, 1]} : vector<2x128xbf16> to vector<1x128xbf16>
    %694 = vector.extract_strided_slice %652 {offsets = [1, 0], sizes = [1, 128], strides = [1, 1]} : vector<2x128xbf16> to vector<1x128xbf16>
    %695 = vector.extract_strided_slice %654 {offsets = [1, 0], sizes = [1, 128], strides = [1, 1]} : vector<2x128xbf16> to vector<1x128xbf16>
    %696 = vector.extract_strided_slice %656 {offsets = [1, 0], sizes = [1, 128], strides = [1, 1]} : vector<2x128xbf16> to vector<1x128xbf16>
    %697 = vector.extract_strided_slice %658 {offsets = [1, 0], sizes = [1, 128], strides = [1, 1]} : vector<2x128xbf16> to vector<1x128xbf16>
    %698 = vector.extract_strided_slice %660 {offsets = [1, 0], sizes = [1, 128], strides = [1, 1]} : vector<2x128xbf16> to vector<1x128xbf16>
    %699 = vector.extract_strided_slice %662 {offsets = [1, 0], sizes = [1, 128], strides = [1, 1]} : vector<2x128xbf16> to vector<1x128xbf16>
    %700 = vector.extract_strided_slice %664 {offsets = [1, 0], sizes = [1, 128], strides = [1, 1]} : vector<2x128xbf16> to vector<1x128xbf16>
    %701 = vector.extract_strided_slice %666 {offsets = [1, 0], sizes = [1, 128], strides = [1, 1]} : vector<2x128xbf16> to vector<1x128xbf16>
    %702 = vector.extract_strided_slice %668 {offsets = [1, 0], sizes = [1, 128], strides = [1, 1]} : vector<2x128xbf16> to vector<1x128xbf16>
    %703 = tpu.concatenate %687, %688, %689, %690, %691, %692, %693, %694, %695, %696, %697, %698, %699, %700, %701, %702 in 0 : vector<1x128xbf16>, vector<1x128xbf16>, vector<1x128xbf16>, vector<1x128xbf16>, vector<1x128xbf16>, vector<1x128xbf16>, vector<1x128xbf16>, vector<1x128xbf16>, vector<1x128xbf16>, vector<1x128xbf16>, vector<1x128xbf16>, vector<1x128xbf16>, vector<1x128xbf16>, vector<1x128xbf16>, vector<1x128xbf16>, vector<1x128xbf16> -> vector<16x128xbf16>
    %c0_349 = arith.constant 0 : index
    %c896 = arith.constant 896 : index
    %704 = vector.load %arg6[%c0_349, %c896] : memref<64x1024xbf16, #tpu.memory_space<vmem>>, vector<16x128xbf16>
    tpu.vector_store %arg6[%c0_349, %c896], %703 {strides = array<i32>} : memref<64x1024xbf16, #tpu.memory_space<vmem>>, vector<16x128xbf16>,
    %c6_350 = arith.constant 6 : index
    %c10_351 = arith.constant 10 : index
    %705 = vector.load %arg0[%c6_350, %c10_351] : memref<8x256xf32, #tpu.memory_space<vmem>>, vector<2x128xf32>
    %706 = arith.truncf %705 : vector<2x128xf32> to vector<2x128xbf16>
    %c4_352 = arith.constant 4 : index
    %c11_353 = arith.constant 11 : index
    %707 = vector.load %arg0[%c4_352, %c11_353] : memref<8x256xf32, #tpu.memory_space<vmem>>, vector<2x128xf32>
    %708 = arith.truncf %707 : vector<2x128xf32> to vector<2x128xbf16>
    %c6_354 = arith.constant 6 : index
    %c11_355 = arith.constant 11 : index
    %709 = vector.load %arg0[%c6_354, %c11_355] : memref<8x256xf32, #tpu.memory_space<vmem>>, vector<2x128xf32>
    %710 = arith.truncf %709 : vector<2x128xf32> to vector<2x128xbf16>
    %c4_356 = arith.constant 4 : index
    %c12_357 = arith.constant 12 : index
    %711 = vector.load %arg0[%c4_356, %c12_357] : memref<8x256xf32, #tpu.memory_space<vmem>>, vector<2x128xf32>
    %712 = arith.truncf %711 : vector<2x128xf32> to vector<2x128xbf16>
    %c6_358 = arith.constant 6 : index
    %c12_359 = arith.constant 12 : index
    %713 = vector.load %arg0[%c6_358, %c12_359] : memref<8x256xf32, #tpu.memory_space<vmem>>, vector<2x128xf32>
    %714 = arith.truncf %713 : vector<2x128xf32> to vector<2x128xbf16>
    %c2_360 = arith.constant 2 : index
    %c18_361 = arith.constant 18 : index
    %715 = vector.load %arg0[%c2_360, %c18_361] : memref<8x256xf32, #tpu.memory_space<vmem>>, vector<2x128xf32>
    %716 = arith.truncf %715 : vector<2x128xf32> to vector<2x128xbf16>
    %c0_362 = arith.constant 0 : index
    %c19_363 = arith.constant 19 : index
    %717 = vector.load %arg0[%c0_362, %c19_363] : memref<8x256xf32, #tpu.memory_space<vmem>>, vector<2x128xf32>
    %718 = arith.truncf %717 : vector<2x128xf32> to vector<2x128xbf16>
    %c2_364 = arith.constant 2 : index
    %c19_365 = arith.constant 19 : index
    %719 = vector.load %arg0[%c2_364, %c19_365] : memref<8x256xf32, #tpu.memory_space<vmem>>, vector<2x128xf32>
    %720 = arith.truncf %719 : vector<2x128xf32> to vector<2x128xbf16>
    %c0_366 = arith.constant 0 : index
    %c20_367 = arith.constant 20 : index
    %721 = vector.load %arg0[%c0_366, %c20_367] : memref<8x256xf32, #tpu.memory_space<vmem>>, vector<2x128xf32>
    %722 = arith.truncf %721 : vector<2x128xf32> to vector<2x128xbf16>
    %c2_368 = arith.constant 2 : index
    %c20_369 = arith.constant 20 : index
    %723 = vector.load %arg0[%c2_368, %c20_369] : memref<8x256xf32, #tpu.memory_space<vmem>>, vector<2x128xf32>
    %724 = arith.truncf %723 : vector<2x128xf32> to vector<2x128xbf16>
    %c0_370 = arith.constant 0 : index
    %c21_371 = arith.constant 21 : index
    %725 = vector.load %arg0[%c0_370, %c21_371] : memref<8x256xf32, #tpu.memory_space<vmem>>, vector<2x128xf32>
    %726 = arith.truncf %725 : vector<2x128xf32> to vector<2x128xbf16>
    %c2_372 = arith.constant 2 : index
    %c21_373 = arith.constant 21 : index
    %727 = vector.load %arg0[%c2_372, %c21_373] : memref<8x256xf32, #tpu.memory_space<vmem>>, vector<2x128xf32>
    %728 = arith.truncf %727 : vector<2x128xf32> to vector<2x128xbf16>
    %c6_374 = arith.constant 6 : index
    %c18_375 = arith.constant 18 : index
    %729 = vector.load %arg0[%c6_374, %c18_375] : memref<8x256xf32, #tpu.memory_space<vmem>>, vector<2x128xf32>
    %730 = arith.truncf %729 : vector<2x128xf32> to vector<2x128xbf16>
    %c4_376 = arith.constant 4 : index
    %c19_377 = arith.constant 19 : index
    %731 = vector.load %arg0[%c4_376, %c19_377] : memref<8x256xf32, #tpu.memory_space<vmem>>, vector<2x128xf32>
    %732 = arith.truncf %731 : vector<2x128xf32> to vector<2x128xbf16>
    %c6_378 = arith.constant 6 : index
    %c19_379 = arith.constant 19 : index
    %733 = vector.load %arg0[%c6_378, %c19_379] : memref<8x256xf32, #tpu.memory_space<vmem>>, vector<2x128xf32>
    %734 = arith.truncf %733 : vector<2x128xf32> to vector<2x128xbf16>
    %c4_380 = arith.constant 4 : index
    %c20_381 = arith.constant 20 : index
    %735 = vector.load %arg0[%c4_380, %c20_381] : memref<8x256xf32, #tpu.memory_space<vmem>>, vector<2x128xf32>
    %736 = arith.truncf %735 : vector<2x128xf32> to vector<2x128xbf16>
    %737 = vector.extract_strided_slice %706 {offsets = [0, 0], sizes = [1, 128], strides = [1, 1]} : vector<2x128xbf16> to vector<1x128xbf16>
    %738 = vector.extract_strided_slice %708 {offsets = [0, 0], sizes = [1, 128], strides = [1, 1]} : vector<2x128xbf16> to vector<1x128xbf16>
    %739 = vector.extract_strided_slice %710 {offsets = [0, 0], sizes = [1, 128], strides = [1, 1]} : vector<2x128xbf16> to vector<1x128xbf16>
    %740 = vector.extract_strided_slice %712 {offsets = [0, 0], sizes = [1, 128], strides = [1, 1]} : vector<2x128xbf16> to vector<1x128xbf16>
    %741 = vector.extract_strided_slice %714 {offsets = [0, 0], sizes = [1, 128], strides = [1, 1]} : vector<2x128xbf16> to vector<1x128xbf16>
    %742 = vector.extract_strided_slice %716 {offsets = [0, 0], sizes = [1, 128], strides = [1, 1]} : vector<2x128xbf16> to vector<1x128xbf16>
    %743 = vector.extract_strided_slice %718 {offsets = [0, 0], sizes = [1, 128], strides = [1, 1]} : vector<2x128xbf16> to vector<1x128xbf16>
    %744 = vector.extract_strided_slice %720 {offsets = [0, 0], sizes = [1, 128], strides = [1, 1]} : vector<2x128xbf16> to vector<1x128xbf16>
    %745 = vector.extract_strided_slice %722 {offsets = [0, 0], sizes = [1, 128], strides = [1, 1]} : vector<2x128xbf16> to vector<1x128xbf16>
    %746 = vector.extract_strided_slice %724 {offsets = [0, 0], sizes = [1, 128], strides = [1, 1]} : vector<2x128xbf16> to vector<1x128xbf16>
    %747 = vector.extract_strided_slice %726 {offsets = [0, 0], sizes = [1, 128], strides = [1, 1]} : vector<2x128xbf16> to vector<1x128xbf16>
    %748 = vector.extract_strided_slice %728 {offsets = [0, 0], sizes = [1, 128], strides = [1, 1]} : vector<2x128xbf16> to vector<1x128xbf16>
    %749 = vector.extract_strided_slice %730 {offsets = [0, 0], sizes = [1, 128], strides = [1, 1]} : vector<2x128xbf16> to vector<1x128xbf16>
    %750 = vector.extract_strided_slice %732 {offsets = [0, 0], sizes = [1, 128], strides = [1, 1]} : vector<2x128xbf16> to vector<1x128xbf16>
    %751 = vector.extract_strided_slice %734 {offsets = [0, 0], sizes = [1, 128], strides = [1, 1]} : vector<2x128xbf16> to vector<1x128xbf16>
    %752 = vector.extract_strided_slice %736 {offsets = [0, 0], sizes = [1, 128], strides = [1, 1]} : vector<2x128xbf16> to vector<1x128xbf16>
    %753 = tpu.concatenate %737, %738, %739, %740, %741, %742, %743, %744, %745, %746, %747, %748, %749, %750, %751, %752 in 0 : vector<1x128xbf16>, vector<1x128xbf16>, vector<1x128xbf16>, vector<1x128xbf16>, vector<1x128xbf16>, vector<1x128xbf16>, vector<1x128xbf16>, vector<1x128xbf16>, vector<1x128xbf16>, vector<1x128xbf16>, vector<1x128xbf16>, vector<1x128xbf16>, vector<1x128xbf16>, vector<1x128xbf16>, vector<1x128xbf16>, vector<1x128xbf16> -> vector<16x128xbf16>
    %c16_382 = arith.constant 16 : index
    %c768_383 = arith.constant 768 : index
    %754 = vector.load %arg6[%c16_382, %c768_383] : memref<64x1024xbf16, #tpu.memory_space<vmem>>, vector<16x128xbf16>
    tpu.vector_store %arg6[%c16_382, %c768_383], %753 {strides = array<i32>} : memref<64x1024xbf16, #tpu.memory_space<vmem>>, vector<16x128xbf16>,
    %755 = vector.extract_strided_slice %706 {offsets = [1, 0], sizes = [1, 128], strides = [1, 1]} : vector<2x128xbf16> to vector<1x128xbf16>
    %756 = vector.extract_strided_slice %708 {offsets = [1, 0], sizes = [1, 128], strides = [1, 1]} : vector<2x128xbf16> to vector<1x128xbf16>
    %757 = vector.extract_strided_slice %710 {offsets = [1, 0], sizes = [1, 128], strides = [1, 1]} : vector<2x128xbf16> to vector<1x128xbf16>
    %758 = vector.extract_strided_slice %712 {offsets = [1, 0], sizes = [1, 128], strides = [1, 1]} : vector<2x128xbf16> to vector<1x128xbf16>
    %759 = vector.extract_strided_slice %714 {offsets = [1, 0], sizes = [1, 128], strides = [1, 1]} : vector<2x128xbf16> to vector<1x128xbf16>
    %760 = vector.extract_strided_slice %716 {offsets = [1, 0], sizes = [1, 128], strides = [1, 1]} : vector<2x128xbf16> to vector<1x128xbf16>
    %761 = vector.extract_strided_slice %718 {offsets = [1, 0], sizes = [1, 128], strides = [1, 1]} : vector<2x128xbf16> to vector<1x128xbf16>
    %762 = vector.extract_strided_slice %720 {offsets = [1, 0], sizes = [1, 128], strides = [1, 1]} : vector<2x128xbf16> to vector<1x128xbf16>
    %763 = vector.extract_strided_slice %722 {offsets = [1, 0], sizes = [1, 128], strides = [1, 1]} : vector<2x128xbf16> to vector<1x128xbf16>
    %764 = vector.extract_strided_slice %724 {offsets = [1, 0], sizes = [1, 128], strides = [1, 1]} : vector<2x128xbf16> to vector<1x128xbf16>
    %765 = vector.extract_strided_slice %726 {offsets = [1, 0], sizes = [1, 128], strides = [1, 1]} : vector<2x128xbf16> to vector<1x128xbf16>
    %766 = vector.extract_strided_slice %728 {offsets = [1, 0], sizes = [1, 128], strides = [1, 1]} : vector<2x128xbf16> to vector<1x128xbf16>
    %767 = vector.extract_strided_slice %730 {offsets = [1, 0], sizes = [1, 128], strides = [1, 1]} : vector<2x128xbf16> to vector<1x128xbf16>
    %768 = vector.extract_strided_slice %732 {offsets = [1, 0], sizes = [1, 128], strides = [1, 1]} : vector<2x128xbf16> to vector<1x128xbf16>
    %769 = vector.extract_strided_slice %734 {offsets = [1, 0], sizes = [1, 128], strides = [1, 1]} : vector<2x128xbf16> to vector<1x128xbf16>
    %770 = vector.extract_strided_slice %736 {offsets = [1, 0], sizes = [1, 128], strides = [1, 1]} : vector<2x128xbf16> to vector<1x128xbf16>
    %771 = tpu.concatenate %755, %756, %757, %758, %759, %760, %761, %762, %763, %764, %765, %766, %767, %768, %769, %770 in 0 : vector<1x128xbf16>, vector<1x128xbf16>, vector<1x128xbf16>, vector<1x128xbf16>, vector<1x128xbf16>, vector<1x128xbf16>, vector<1x128xbf16>, vector<1x128xbf16>, vector<1x128xbf16>, vector<1x128xbf16>, vector<1x128xbf16>, vector<1x128xbf16>, vector<1x128xbf16>, vector<1x128xbf16>, vector<1x128xbf16>, vector<1x128xbf16> -> vector<16x128xbf16>
    %c16_384 = arith.constant 16 : index
    %c896_385 = arith.constant 896 : index
    %772 = vector.load %arg6[%c16_384, %c896_385] : memref<64x1024xbf16, #tpu.memory_space<vmem>>, vector<16x128xbf16>
    tpu.vector_store %arg6[%c16_384, %c896_385], %771 {strides = array<i32>} : memref<64x1024xbf16, #tpu.memory_space<vmem>>, vector<16x128xbf16>,
    %c6_386 = arith.constant 6 : index
    %c20_387 = arith.constant 20 : index
    %773 = vector.load %arg0[%c6_386, %c20_387] : memref<8x256xf32, #tpu.memory_space<vmem>>, vector<2x128xf32>
    %774 = arith.truncf %773 : vector<2x128xf32> to vector<2x128xbf16>
    %c4_388 = arith.constant 4 : index
    %c21_389 = arith.constant 21 : index
    %775 = vector.load %arg0[%c4_388, %c21_389] : memref<8x256xf32, #tpu.memory_space<vmem>>, vector<2x128xf32>
    %776 = arith.truncf %775 : vector<2x128xf32> to vector<2x128xbf16>
    %c6_390 = arith.constant 6 : index
    %c21_391 = arith.constant 21 : index
    %777 = vector.load %arg0[%c6_390, %c21_391] : memref<8x256xf32, #tpu.memory_space<vmem>>, vector<2x128xf32>
    %778 = arith.truncf %777 : vector<2x128xf32> to vector<2x128xbf16>
    %c2_392 = arith.constant 2 : index
    %c27_393 = arith.constant 27 : index
    %779 = vector.load %arg0[%c2_392, %c27_393] : memref<8x256xf32, #tpu.memory_space<vmem>>, vector<2x128xf32>
    %780 = arith.truncf %779 : vector<2x128xf32> to vector<2x128xbf16>
    %c0_394 = arith.constant 0 : index
    %c28_395 = arith.constant 28 : index
    %781 = vector.load %arg0[%c0_394, %c28_395] : memref<8x256xf32, #tpu.memory_space<vmem>>, vector<2x128xf32>
    %782 = arith.truncf %781 : vector<2x128xf32> to vector<2x128xbf16>
    %c2_396 = arith.constant 2 : index
    %c28_397 = arith.constant 28 : index
    %783 = vector.load %arg0[%c2_396, %c28_397] : memref<8x256xf32, #tpu.memory_space<vmem>>, vector<2x128xf32>
    %784 = arith.truncf %783 : vector<2x128xf32> to vector<2x128xbf16>
    %c0_398 = arith.constant 0 : index
    %c29_399 = arith.constant 29 : index
    %785 = vector.load %arg0[%c0_398, %c29_399] : memref<8x256xf32, #tpu.memory_space<vmem>>, vector<2x128xf32>
    %786 = arith.truncf %785 : vector<2x128xf32> to vector<2x128xbf16>
    %c2_400 = arith.constant 2 : index
    %c29_401 = arith.constant 29 : index
    %787 = vector.load %arg0[%c2_400, %c29_401] : memref<8x256xf32, #tpu.memory_space<vmem>>, vector<2x128xf32>
    %788 = arith.truncf %787 : vector<2x128xf32> to vector<2x128xbf16>
    %c0_402 = arith.constant 0 : index
    %c30_403 = arith.constant 30 : index
    %789 = vector.load %arg0[%c0_402, %c30_403] : memref<8x256xf32, #tpu.memory_space<vmem>>, vector<2x128xf32>
    %790 = arith.truncf %789 : vector<2x128xf32> to vector<2x128xbf16>
    %c2_404 = arith.constant 2 : index
    %c30_405 = arith.constant 30 : index
    %791 = vector.load %arg0[%c2_404, %c30_405] : memref<8x256xf32, #tpu.memory_space<vmem>>, vector<2x128xf32>
    %792 = arith.truncf %791 : vector<2x128xf32> to vector<2x128xbf16>
    %c6_406 = arith.constant 6 : index
    %c27_407 = arith.constant 27 : index
    %793 = vector.load %arg0[%c6_406, %c27_407] : memref<8x256xf32, #tpu.memory_space<vmem>>, vector<2x128xf32>
    %794 = arith.truncf %793 : vector<2x128xf32> to vector<2x128xbf16>
    %c4_408 = arith.constant 4 : index
    %c28_409 = arith.constant 28 : index
    %795 = vector.load %arg0[%c4_408, %c28_409] : memref<8x256xf32, #tpu.memory_space<vmem>>, vector<2x128xf32>
    %796 = arith.truncf %795 : vector<2x128xf32> to vector<2x128xbf16>
    %c6_410 = arith.constant 6 : index
    %c28_411 = arith.constant 28 : index
    %797 = vector.load %arg0[%c6_410, %c28_411] : memref<8x256xf32, #tpu.memory_space<vmem>>, vector<2x128xf32>
    %798 = arith.truncf %797 : vector<2x128xf32> to vector<2x128xbf16>
    %c4_412 = arith.constant 4 : index
    %c29_413 = arith.constant 29 : index
    %799 = vector.load %arg0[%c4_412, %c29_413] : memref<8x256xf32, #tpu.memory_space<vmem>>, vector<2x128xf32>
    %800 = arith.truncf %799 : vector<2x128xf32> to vector<2x128xbf16>
    %c6_414 = arith.constant 6 : index
    %c29_415 = arith.constant 29 : index
    %801 = vector.load %arg0[%c6_414, %c29_415] : memref<8x256xf32, #tpu.memory_space<vmem>>, vector<2x128xf32>
    %802 = arith.truncf %801 : vector<2x128xf32> to vector<2x128xbf16>
    %c4_416 = arith.constant 4 : index
    %c30_417 = arith.constant 30 : index
    %803 = vector.load %arg0[%c4_416, %c30_417] : memref<8x256xf32, #tpu.memory_space<vmem>>, vector<2x128xf32>
    %804 = arith.truncf %803 : vector<2x128xf32> to vector<2x128xbf16>
    %805 = vector.extract_strided_slice %774 {offsets = [0, 0], sizes = [1, 128], strides = [1, 1]} : vector<2x128xbf16> to vector<1x128xbf16>
    %806 = vector.extract_strided_slice %776 {offsets = [0, 0], sizes = [1, 128], strides = [1, 1]} : vector<2x128xbf16> to vector<1x128xbf16>
    %807 = vector.extract_strided_slice %778 {offsets = [0, 0], sizes = [1, 128], strides = [1, 1]} : vector<2x128xbf16> to vector<1x128xbf16>
    %808 = vector.extract_strided_slice %780 {offsets = [0, 0], sizes = [1, 128], strides = [1, 1]} : vector<2x128xbf16> to vector<1x128xbf16>
    %809 = vector.extract_strided_slice %782 {offsets = [0, 0], sizes = [1, 128], strides = [1, 1]} : vector<2x128xbf16> to vector<1x128xbf16>
    %810 = vector.extract_strided_slice %784 {offsets = [0, 0], sizes = [1, 128], strides = [1, 1]} : vector<2x128xbf16> to vector<1x128xbf16>
    %811 = vector.extract_strided_slice %786 {offsets = [0, 0], sizes = [1, 128], strides = [1, 1]} : vector<2x128xbf16> to vector<1x128xbf16>
    %812 = vector.extract_strided_slice %788 {offsets = [0, 0], sizes = [1, 128], strides = [1, 1]} : vector<2x128xbf16> to vector<1x128xbf16>
    %813 = vector.extract_strided_slice %790 {offsets = [0, 0], sizes = [1, 128], strides = [1, 1]} : vector<2x128xbf16> to vector<1x128xbf16>
    %814 = vector.extract_strided_slice %792 {offsets = [0, 0], sizes = [1, 128], strides = [1, 1]} : vector<2x128xbf16> to vector<1x128xbf16>
    %815 = vector.extract_strided_slice %794 {offsets = [0, 0], sizes = [1, 128], strides = [1, 1]} : vector<2x128xbf16> to vector<1x128xbf16>
    %816 = vector.extract_strided_slice %796 {offsets = [0, 0], sizes = [1, 128], strides = [1, 1]} : vector<2x128xbf16> to vector<1x128xbf16>
    %817 = vector.extract_strided_slice %798 {offsets = [0, 0], sizes = [1, 128], strides = [1, 1]} : vector<2x128xbf16> to vector<1x128xbf16>
    %818 = vector.extract_strided_slice %800 {offsets = [0, 0], sizes = [1, 128], strides = [1, 1]} : vector<2x128xbf16> to vector<1x128xbf16>
    %819 = vector.extract_strided_slice %802 {offsets = [0, 0], sizes = [1, 128], strides = [1, 1]} : vector<2x128xbf16> to vector<1x128xbf16>
    %820 = vector.extract_strided_slice %804 {offsets = [0, 0], sizes = [1, 128], strides = [1, 1]} : vector<2x128xbf16> to vector<1x128xbf16>
    %821 = tpu.concatenate %805, %806, %807, %808, %809, %810, %811, %812, %813, %814, %815, %816, %817, %818, %819, %820 in 0 : vector<1x128xbf16>, vector<1x128xbf16>, vector<1x128xbf16>, vector<1x128xbf16>, vector<1x128xbf16>, vector<1x128xbf16>, vector<1x128xbf16>, vector<1x128xbf16>, vector<1x128xbf16>, vector<1x128xbf16>, vector<1x128xbf16>, vector<1x128xbf16>, vector<1x128xbf16>, vector<1x128xbf16>, vector<1x128xbf16>, vector<1x128xbf16> -> vector<16x128xbf16>
    %c32_418 = arith.constant 32 : index
    %c768_419 = arith.constant 768 : index
    %822 = vector.load %arg6[%c32_418, %c768_419] : memref<64x1024xbf16, #tpu.memory_space<vmem>>, vector<16x128xbf16>
    tpu.vector_store %arg6[%c32_418, %c768_419], %821 {strides = array<i32>} : memref<64x1024xbf16, #tpu.memory_space<vmem>>, vector<16x128xbf16>,
    %823 = vector.extract_strided_slice %774 {offsets = [1, 0], sizes = [1, 128], strides = [1, 1]} : vector<2x128xbf16> to vector<1x128xbf16>
    %824 = vector.extract_strided_slice %776 {offsets = [1, 0], sizes = [1, 128], strides = [1, 1]} : vector<2x128xbf16> to vector<1x128xbf16>
    %825 = vector.extract_strided_slice %778 {offsets = [1, 0], sizes = [1, 128], strides = [1, 1]} : vector<2x128xbf16> to vector<1x128xbf16>
    %826 = vector.extract_strided_slice %780 {offsets = [1, 0], sizes = [1, 128], strides = [1, 1]} : vector<2x128xbf16> to vector<1x128xbf16>
    %827 = vector.extract_strided_slice %782 {offsets = [1, 0], sizes = [1, 128], strides = [1, 1]} : vector<2x128xbf16> to vector<1x128xbf16>
    %828 = vector.extract_strided_slice %784 {offsets = [1, 0], sizes = [1, 128], strides = [1, 1]} : vector<2x128xbf16> to vector<1x128xbf16>
    %829 = vector.extract_strided_slice %786 {offsets = [1, 0], sizes = [1, 128], strides = [1, 1]} : vector<2x128xbf16> to vector<1x128xbf16>
    %830 = vector.extract_strided_slice %788 {offsets = [1, 0], sizes = [1, 128], strides = [1, 1]} : vector<2x128xbf16> to vector<1x128xbf16>
    %831 = vector.extract_strided_slice %790 {offsets = [1, 0], sizes = [1, 128], strides = [1, 1]} : vector<2x128xbf16> to vector<1x128xbf16>
    %832 = vector.extract_strided_slice %792 {offsets = [1, 0], sizes = [1, 128], strides = [1, 1]} : vector<2x128xbf16> to vector<1x128xbf16>
    %833 = vector.extract_strided_slice %794 {offsets = [1, 0], sizes = [1, 128], strides = [1, 1]} : vector<2x128xbf16> to vector<1x128xbf16>
    %834 = vector.extract_strided_slice %796 {offsets = [1, 0], sizes = [1, 128], strides = [1, 1]} : vector<2x128xbf16> to vector<1x128xbf16>
    %835 = vector.extract_strided_slice %798 {offsets = [1, 0], sizes = [1, 128], strides = [1, 1]} : vector<2x128xbf16> to vector<1x128xbf16>
    %836 = vector.extract_strided_slice %800 {offsets = [1, 0], sizes = [1, 128], strides = [1, 1]} : vector<2x128xbf16> to vector<1x128xbf16>
    %837 = vector.extract_strided_slice %802 {offsets = [1, 0], sizes = [1, 128], strides = [1, 1]} : vector<2x128xbf16> to vector<1x128xbf16>
    %838 = vector.extract_strided_slice %804 {offsets = [1, 0], sizes = [1, 128], strides = [1, 1]} : vector<2x128xbf16> to vector<1x128xbf16>
    %839 = tpu.concatenate %823, %824, %825, %826, %827, %828, %829, %830, %831, %832, %833, %834, %835, %836, %837, %838 in 0 : vector<1x128xbf16>, vector<1x128xbf16>, vector<1x128xbf16>, vector<1x128xbf16>, vector<1x128xbf16>, vector<1x128xbf16>, vector<1x128xbf16>, vector<1x128xbf16>, vector<1x128xbf16>, vector<1x128xbf16>, vector<1x128xbf16>, vector<1x128xbf16>, vector<1x128xbf16>, vector<1x128xbf16>, vector<1x128xbf16>, vector<1x128xbf16> -> vector<16x128xbf16>
    %c32_420 = arith.constant 32 : index
    %c896_421 = arith.constant 896 : index
    %840 = vector.load %arg6[%c32_420, %c896_421] : memref<64x1024xbf16, #tpu.memory_space<vmem>>, vector<16x128xbf16>
    tpu.vector_store %arg6[%c32_420, %c896_421], %839 {strides = array<i32>} : memref<64x1024xbf16, #tpu.memory_space<vmem>>, vector<16x128xbf16>,
    %c6_422 = arith.constant 6 : index
    %c30_423 = arith.constant 30 : index
    %841 = vector.load %arg0[%c6_422, %c30_423] : memref<8x256xf32, #tpu.memory_space<vmem>>, vector<2x128xf32>
    %842 = arith.truncf %841 : vector<2x128xf32> to vector<2x128xbf16>
    %843 = vector.extract_strided_slice %842 {offsets = [0, 0], sizes = [1, 128], strides = [1, 1]} : vector<2x128xbf16> to vector<1x128xbf16>
    %844 = tpu.concatenate %843, %0, %0, %0, %0, %0, %0, %0, %0, %0, %0, %0, %0, %0, %0, %0 in 0 : vector<1x128xbf16>, vector<1x128xbf16>, vector<1x128xbf16>, vector<1x128xbf16>, vector<1x128xbf16>, vector<1x128xbf16>, vector<1x128xbf16>, vector<1x128xbf16>, vector<1x128xbf16>, vector<1x128xbf16>, vector<1x128xbf16>, vector<1x128xbf16>, vector<1x128xbf16>, vector<1x128xbf16>, vector<1x128xbf16>, vector<1x128xbf16> -> vector<16x128xbf16>
    %c48_424 = arith.constant 48 : index
    %c768_425 = arith.constant 768 : index
    %845 = vector.load %arg6[%c48_424, %c768_425] : memref<64x1024xbf16, #tpu.memory_space<vmem>>, vector<16x128xbf16>
    tpu.vector_store %arg6[%c48_424, %c768_425], %844 {strides = array<i32>} : memref<64x1024xbf16, #tpu.memory_space<vmem>>, vector<16x128xbf16>,
    %846 = vector.extract_strided_slice %842 {offsets = [1, 0], sizes = [1, 128], strides = [1, 1]} : vector<2x128xbf16> to vector<1x128xbf16>
    %847 = tpu.concatenate %846, %0, %0, %0, %0, %0, %0, %0, %0, %0, %0, %0, %0, %0, %0, %0 in 0 : vector<1x128xbf16>, vector<1x128xbf16>, vector<1x128xbf16>, vector<1x128xbf16>, vector<1x128xbf16>, vector<1x128xbf16>, vector<1x128xbf16>, vector<1x128xbf16>, vector<1x128xbf16>, vector<1x128xbf16>, vector<1x128xbf16>, vector<1x128xbf16>, vector<1x128xbf16>, vector<1x128xbf16>, vector<1x128xbf16>, vector<1x128xbf16> -> vector<16x128xbf16>
    %c48_426 = arith.constant 48 : index
    %c896_427 = arith.constant 896 : index
    %848 = vector.load %arg6[%c48_426, %c896_427] : memref<64x1024xbf16, #tpu.memory_space<vmem>>, vector<16x128xbf16>
    tpu.vector_store %arg6[%c48_426, %c896_427], %847 {strides = array<i32>} : memref<64x1024xbf16, #tpu.memory_space<vmem>>, vector<16x128xbf16>,
    %cst_428 = arith.constant 0.000000e+00 : f32
    %849 = vector.broadcast %cst_428 : f32 to vector<64x1xf32>
    %cst_429 = arith.constant 0.000000e+00 : f32
    %850 = vector.broadcast %cst_429 : f32 to vector<64x1xf32>
    %c0_430 = arith.constant 0 : index
    %c0_431 = arith.constant 0 : index
    %851 = vector.load %arg1[%c0_430, %c0_431] : memref<64x64xbf16, #tpu.memory_space<vmem>>, vector<64x64xbf16>
    %c0_432 = arith.constant 0 : index
    %c0_433 = arith.constant 0 : index
    %852 = vector.load %arg6[%c0_432, %c0_433] : memref<64x1024xbf16, #tpu.memory_space<vmem>>, vector<64x128xbf16>
    %cst_434 = arith.constant dense<0.000000e+00> : vector<64x128xf32>
    %853 = tpu.matmul %851, %852, %cst_434 {dimension_numbers = #tpu.dot_dimension_numbers<[1], [0], [0], [1], [0, 0, 1, 1], [], []>} : vector<64x64xbf16>, vector<64x128xbf16>, vector<64x128xf32> -> vector<64x128xf32>
    %c0_435 = arith.constant 0 : index
    %c0_436 = arith.constant 0 : index
    %854 = vector.load %arg7[%c0_435, %c0_436] : memref<64x1024xf32, #tpu.memory_space<vmem>>, vector<64x128xf32>
    tpu.vector_store %arg7[%c0_435, %c0_436], %853 {strides = array<i32>} : memref<64x1024xf32, #tpu.memory_space<vmem>>, vector<64x128xf32>,
    %c0_437 = arith.constant 0 : index
    %c0_438 = arith.constant 0 : index
    %855 = vector.load %arg4[%c0_437, %c0_438] : memref<1x1024xf32, #tpu.memory_space<vmem>>, vector<1x128xf32>
    %856 = vector.broadcast %855 : vector<1x128xf32> to vector<64x128xf32>
    %857 = arith.mulf %853, %856 : vector<64x128xf32>
    %cst_439 = arith.constant dense<0.000000e+00> : vector<64xf32>
    %858 = vector.multi_reduction <add>, %857, %cst_439 [1] : vector<64x128xf32> to vector<64xf32>
    %859 = vector.shape_cast %858 : vector<64xf32> to vector<64x1xf32>
    %860 = arith.addf %849, %859 : vector<64x1xf32>
    %861 = arith.mulf %853, %857 : vector<64x128xf32>
    %cst_440 = arith.constant dense<0.000000e+00> : vector<64xf32>
    %862 = vector.multi_reduction <add>, %861, %cst_440 [1] : vector<64x128xf32> to vector<64xf32>
    %863 = vector.shape_cast %862 : vector<64xf32> to vector<64x1xf32>
    %864 = arith.addf %850, %863 : vector<64x1xf32>
    %c0_441 = arith.constant 0 : index
    %c0_442 = arith.constant 0 : index
    %865 = vector.load %arg1[%c0_441, %c0_442] : memref<64x64xbf16, #tpu.memory_space<vmem>>, vector<64x64xbf16>
    %c0_443 = arith.constant 0 : index
    %c128_444 = arith.constant 128 : index
    %866 = vector.load %arg6[%c0_443, %c128_444] : memref<64x1024xbf16, #tpu.memory_space<vmem>>, vector<64x128xbf16>
    %cst_445 = arith.constant dense<0.000000e+00> : vector<64x128xf32>
    %867 = tpu.matmul %865, %866, %cst_445 {dimension_numbers = #tpu.dot_dimension_numbers<[1], [0], [0], [1], [0, 0, 1, 1], [], []>} : vector<64x64xbf16>, vector<64x128xbf16>, vector<64x128xf32> -> vector<64x128xf32>
    %c0_446 = arith.constant 0 : index
    %c128_447 = arith.constant 128 : index
    %868 = vector.load %arg7[%c0_446, %c128_447] : memref<64x1024xf32, #tpu.memory_space<vmem>>, vector<64x128xf32>
    tpu.vector_store %arg7[%c0_446, %c128_447], %867 {strides = array<i32>} : memref<64x1024xf32, #tpu.memory_space<vmem>>, vector<64x128xf32>,
    %c0_448 = arith.constant 0 : index
    %c128_449 = arith.constant 128 : index
    %869 = vector.load %arg4[%c0_448, %c128_449] : memref<1x1024xf32, #tpu.memory_space<vmem>>, vector<1x128xf32>
    %870 = vector.broadcast %869 : vector<1x128xf32> to vector<64x128xf32>
    %871 = arith.mulf %867, %870 : vector<64x128xf32>
    %cst_450 = arith.constant dense<0.000000e+00> : vector<64xf32>
    %872 = vector.multi_reduction <add>, %871, %cst_450 [1] : vector<64x128xf32> to vector<64xf32>
    %873 = vector.shape_cast %872 : vector<64xf32> to vector<64x1xf32>
    %874 = arith.addf %860, %873 : vector<64x1xf32>
    %875 = arith.mulf %867, %871 : vector<64x128xf32>
    %cst_451 = arith.constant dense<0.000000e+00> : vector<64xf32>
    %876 = vector.multi_reduction <add>, %875, %cst_451 [1] : vector<64x128xf32> to vector<64xf32>
    %877 = vector.shape_cast %876 : vector<64xf32> to vector<64x1xf32>
    %878 = arith.addf %864, %877 : vector<64x1xf32>
    %c0_452 = arith.constant 0 : index
    %c0_453 = arith.constant 0 : index
    %879 = vector.load %arg1[%c0_452, %c0_453] : memref<64x64xbf16, #tpu.memory_space<vmem>>, vector<64x64xbf16>
    %c0_454 = arith.constant 0 : index
    %c256_455 = arith.constant 256 : index
    %880 = vector.load %arg6[%c0_454, %c256_455] : memref<64x1024xbf16, #tpu.memory_space<vmem>>, vector<64x128xbf16>
    %cst_456 = arith.constant dense<0.000000e+00> : vector<64x128xf32>
    %881 = tpu.matmul %879, %880, %cst_456 {dimension_numbers = #tpu.dot_dimension_numbers<[1], [0], [0], [1], [0, 0, 1, 1], [], []>} : vector<64x64xbf16>, vector<64x128xbf16>, vector<64x128xf32> -> vector<64x128xf32>
    %c0_457 = arith.constant 0 : index
    %c256_458 = arith.constant 256 : index
    %882 = vector.load %arg7[%c0_457, %c256_458] : memref<64x1024xf32, #tpu.memory_space<vmem>>, vector<64x128xf32>
    tpu.vector_store %arg7[%c0_457, %c256_458], %881 {strides = array<i32>} : memref<64x1024xf32, #tpu.memory_space<vmem>>, vector<64x128xf32>,
    %c0_459 = arith.constant 0 : index
    %c256_460 = arith.constant 256 : index
    %883 = vector.load %arg4[%c0_459, %c256_460] : memref<1x1024xf32, #tpu.memory_space<vmem>>, vector<1x128xf32>
    %884 = vector.broadcast %883 : vector<1x128xf32> to vector<64x128xf32>
    %885 = arith.mulf %881, %884 : vector<64x128xf32>
    %cst_461 = arith.constant dense<0.000000e+00> : vector<64xf32>
    %886 = vector.multi_reduction <add>, %885, %cst_461 [1] : vector<64x128xf32> to vector<64xf32>
    %887 = vector.shape_cast %886 : vector<64xf32> to vector<64x1xf32>
    %888 = arith.addf %874, %887 : vector<64x1xf32>
    %889 = arith.mulf %881, %885 : vector<64x128xf32>
    %cst_462 = arith.constant dense<0.000000e+00> : vector<64xf32>
    %890 = vector.multi_reduction <add>, %889, %cst_462 [1] : vector<64x128xf32> to vector<64xf32>
    %891 = vector.shape_cast %890 : vector<64xf32> to vector<64x1xf32>
    %892 = arith.addf %878, %891 : vector<64x1xf32>
    %c0_463 = arith.constant 0 : index
    %c0_464 = arith.constant 0 : index
    %893 = vector.load %arg1[%c0_463, %c0_464] : memref<64x64xbf16, #tpu.memory_space<vmem>>, vector<64x64xbf16>
    %c0_465 = arith.constant 0 : index
    %c384_466 = arith.constant 384 : index
    %894 = vector.load %arg6[%c0_465, %c384_466] : memref<64x1024xbf16, #tpu.memory_space<vmem>>, vector<64x128xbf16>
    %cst_467 = arith.constant dense<0.000000e+00> : vector<64x128xf32>
    %895 = tpu.matmul %893, %894, %cst_467 {dimension_numbers = #tpu.dot_dimension_numbers<[1], [0], [0], [1], [0, 0, 1, 1], [], []>} : vector<64x64xbf16>, vector<64x128xbf16>, vector<64x128xf32> -> vector<64x128xf32>
    %c0_468 = arith.constant 0 : index
    %c384_469 = arith.constant 384 : index
    %896 = vector.load %arg7[%c0_468, %c384_469] : memref<64x1024xf32, #tpu.memory_space<vmem>>, vector<64x128xf32>
    tpu.vector_store %arg7[%c0_468, %c384_469], %895 {strides = array<i32>} : memref<64x1024xf32, #tpu.memory_space<vmem>>, vector<64x128xf32>,
    %c0_470 = arith.constant 0 : index
    %c384_471 = arith.constant 384 : index
    %897 = vector.load %arg4[%c0_470, %c384_471] : memref<1x1024xf32, #tpu.memory_space<vmem>>, vector<1x128xf32>
    %898 = vector.broadcast %897 : vector<1x128xf32> to vector<64x128xf32>
    %899 = arith.mulf %895, %898 : vector<64x128xf32>
    %cst_472 = arith.constant dense<0.000000e+00> : vector<64xf32>
    %900 = vector.multi_reduction <add>, %899, %cst_472 [1] : vector<64x128xf32> to vector<64xf32>
    %901 = vector.shape_cast %900 : vector<64xf32> to vector<64x1xf32>
    %902 = arith.addf %888, %901 : vector<64x1xf32>
    %903 = arith.mulf %895, %899 : vector<64x128xf32>
    %cst_473 = arith.constant dense<0.000000e+00> : vector<64xf32>
    %904 = vector.multi_reduction <add>, %903, %cst_473 [1] : vector<64x128xf32> to vector<64xf32>
    %905 = vector.shape_cast %904 : vector<64xf32> to vector<64x1xf32>
    %906 = arith.addf %892, %905 : vector<64x1xf32>
    %c0_474 = arith.constant 0 : index
    %c0_475 = arith.constant 0 : index
    %907 = vector.load %arg1[%c0_474, %c0_475] : memref<64x64xbf16, #tpu.memory_space<vmem>>, vector<64x64xbf16>
    %c0_476 = arith.constant 0 : index
    %c512_477 = arith.constant 512 : index
    %908 = vector.load %arg6[%c0_476, %c512_477] : memref<64x1024xbf16, #tpu.memory_space<vmem>>, vector<64x128xbf16>
    %cst_478 = arith.constant dense<0.000000e+00> : vector<64x128xf32>
    %909 = tpu.matmul %907, %908, %cst_478 {dimension_numbers = #tpu.dot_dimension_numbers<[1], [0], [0], [1], [0, 0, 1, 1], [], []>} : vector<64x64xbf16>, vector<64x128xbf16>, vector<64x128xf32> -> vector<64x128xf32>
    %c0_479 = arith.constant 0 : index
    %c512_480 = arith.constant 512 : index
    %910 = vector.load %arg7[%c0_479, %c512_480] : memref<64x1024xf32, #tpu.memory_space<vmem>>, vector<64x128xf32>
    tpu.vector_store %arg7[%c0_479, %c512_480], %909 {strides = array<i32>} : memref<64x1024xf32, #tpu.memory_space<vmem>>, vector<64x128xf32>,
    %c0_481 = arith.constant 0 : index
    %c512_482 = arith.constant 512 : index
    %911 = vector.load %arg4[%c0_481, %c512_482] : memref<1x1024xf32, #tpu.memory_space<vmem>>, vector<1x128xf32>
    %912 = vector.broadcast %911 : vector<1x128xf32> to vector<64x128xf32>
    %913 = arith.mulf %909, %912 : vector<64x128xf32>
    %cst_483 = arith.constant dense<0.000000e+00> : vector<64xf32>
    %914 = vector.multi_reduction <add>, %913, %cst_483 [1] : vector<64x128xf32> to vector<64xf32>
    %915 = vector.shape_cast %914 : vector<64xf32> to vector<64x1xf32>
    %916 = arith.addf %902, %915 : vector<64x1xf32>
    %917 = arith.mulf %909, %913 : vector<64x128xf32>
    %cst_484 = arith.constant dense<0.000000e+00> : vector<64xf32>
    %918 = vector.multi_reduction <add>, %917, %cst_484 [1] : vector<64x128xf32> to vector<64xf32>
    %919 = vector.shape_cast %918 : vector<64xf32> to vector<64x1xf32>
    %920 = arith.addf %906, %919 : vector<64x1xf32>
    %c0_485 = arith.constant 0 : index
    %c0_486 = arith.constant 0 : index
    %921 = vector.load %arg1[%c0_485, %c0_486] : memref<64x64xbf16, #tpu.memory_space<vmem>>, vector<64x64xbf16>
    %c0_487 = arith.constant 0 : index
    %c640_488 = arith.constant 640 : index
    %922 = vector.load %arg6[%c0_487, %c640_488] : memref<64x1024xbf16, #tpu.memory_space<vmem>>, vector<64x128xbf16>
    %cst_489 = arith.constant dense<0.000000e+00> : vector<64x128xf32>
    %923 = tpu.matmul %921, %922, %cst_489 {dimension_numbers = #tpu.dot_dimension_numbers<[1], [0], [0], [1], [0, 0, 1, 1], [], []>} : vector<64x64xbf16>, vector<64x128xbf16>, vector<64x128xf32> -> vector<64x128xf32>
    %c0_490 = arith.constant 0 : index
    %c640_491 = arith.constant 640 : index
    %924 = vector.load %arg7[%c0_490, %c640_491] : memref<64x1024xf32, #tpu.memory_space<vmem>>, vector<64x128xf32>
    tpu.vector_store %arg7[%c0_490, %c640_491], %923 {strides = array<i32>} : memref<64x1024xf32, #tpu.memory_space<vmem>>, vector<64x128xf32>,
    %c0_492 = arith.constant 0 : index
    %c640_493 = arith.constant 640 : index
    %925 = vector.load %arg4[%c0_492, %c640_493] : memref<1x1024xf32, #tpu.memory_space<vmem>>, vector<1x128xf32>
    %926 = vector.broadcast %925 : vector<1x128xf32> to vector<64x128xf32>
    %927 = arith.mulf %923, %926 : vector<64x128xf32>
    %cst_494 = arith.constant dense<0.000000e+00> : vector<64xf32>
    %928 = vector.multi_reduction <add>, %927, %cst_494 [1] : vector<64x128xf32> to vector<64xf32>
    %929 = vector.shape_cast %928 : vector<64xf32> to vector<64x1xf32>
    %930 = arith.addf %916, %929 : vector<64x1xf32>
    %931 = arith.mulf %923, %927 : vector<64x128xf32>
    %cst_495 = arith.constant dense<0.000000e+00> : vector<64xf32>
    %932 = vector.multi_reduction <add>, %931, %cst_495 [1] : vector<64x128xf32> to vector<64xf32>
    %933 = vector.shape_cast %932 : vector<64xf32> to vector<64x1xf32>
    %934 = arith.addf %920, %933 : vector<64x1xf32>
    %c0_496 = arith.constant 0 : index
    %c0_497 = arith.constant 0 : index
    %935 = vector.load %arg1[%c0_496, %c0_497] : memref<64x64xbf16, #tpu.memory_space<vmem>>, vector<64x64xbf16>
    %c0_498 = arith.constant 0 : index
    %c768_499 = arith.constant 768 : index
    %936 = vector.load %arg6[%c0_498, %c768_499] : memref<64x1024xbf16, #tpu.memory_space<vmem>>, vector<64x128xbf16>
    %cst_500 = arith.constant dense<0.000000e+00> : vector<64x128xf32>
    %937 = tpu.matmul %935, %936, %cst_500 {dimension_numbers = #tpu.dot_dimension_numbers<[1], [0], [0], [1], [0, 0, 1, 1], [], []>} : vector<64x64xbf16>, vector<64x128xbf16>, vector<64x128xf32> -> vector<64x128xf32>
    %c0_501 = arith.constant 0 : index
    %c768_502 = arith.constant 768 : index
    %938 = vector.load %arg7[%c0_501, %c768_502] : memref<64x1024xf32, #tpu.memory_space<vmem>>, vector<64x128xf32>
    tpu.vector_store %arg7[%c0_501, %c768_502], %937 {strides = array<i32>} : memref<64x1024xf32, #tpu.memory_space<vmem>>, vector<64x128xf32>,
    %c0_503 = arith.constant 0 : index
    %c768_504 = arith.constant 768 : index
    %939 = vector.load %arg4[%c0_503, %c768_504] : memref<1x1024xf32, #tpu.memory_space<vmem>>, vector<1x128xf32>
    %940 = vector.broadcast %939 : vector<1x128xf32> to vector<64x128xf32>
    %941 = arith.mulf %937, %940 : vector<64x128xf32>
    %cst_505 = arith.constant dense<0.000000e+00> : vector<64xf32>
    %942 = vector.multi_reduction <add>, %941, %cst_505 [1] : vector<64x128xf32> to vector<64xf32>
    %943 = vector.shape_cast %942 : vector<64xf32> to vector<64x1xf32>
    %944 = arith.addf %930, %943 : vector<64x1xf32>
    %945 = arith.mulf %937, %941 : vector<64x128xf32>
    %cst_506 = arith.constant dense<0.000000e+00> : vector<64xf32>
    %946 = vector.multi_reduction <add>, %945, %cst_506 [1] : vector<64x128xf32> to vector<64xf32>
    %947 = vector.shape_cast %946 : vector<64xf32> to vector<64x1xf32>
    %948 = arith.addf %934, %947 : vector<64x1xf32>
    %c0_507 = arith.constant 0 : index
    %c0_508 = arith.constant 0 : index
    %949 = vector.load %arg1[%c0_507, %c0_508] : memref<64x64xbf16, #tpu.memory_space<vmem>>, vector<64x64xbf16>
    %c0_509 = arith.constant 0 : index
    %c896_510 = arith.constant 896 : index
    %950 = vector.load %arg6[%c0_509, %c896_510] : memref<64x1024xbf16, #tpu.memory_space<vmem>>, vector<64x128xbf16>
    %cst_511 = arith.constant dense<0.000000e+00> : vector<64x128xf32>
    %951 = tpu.matmul %949, %950, %cst_511 {dimension_numbers = #tpu.dot_dimension_numbers<[1], [0], [0], [1], [0, 0, 1, 1], [], []>} : vector<64x64xbf16>, vector<64x128xbf16>, vector<64x128xf32> -> vector<64x128xf32>
    %c0_512 = arith.constant 0 : index
    %c896_513 = arith.constant 896 : index
    %952 = vector.load %arg7[%c0_512, %c896_513] : memref<64x1024xf32, #tpu.memory_space<vmem>>, vector<64x128xf32>
    tpu.vector_store %arg7[%c0_512, %c896_513], %951 {strides = array<i32>} : memref<64x1024xf32, #tpu.memory_space<vmem>>, vector<64x128xf32>,
    %c0_514 = arith.constant 0 : index
    %c896_515 = arith.constant 896 : index
    %953 = vector.load %arg4[%c0_514, %c896_515] : memref<1x1024xf32, #tpu.memory_space<vmem>>, vector<1x128xf32>
    %954 = vector.broadcast %953 : vector<1x128xf32> to vector<64x128xf32>
    %955 = arith.mulf %951, %954 : vector<64x128xf32>
    %cst_516 = arith.constant dense<0.000000e+00> : vector<64xf32>
    %956 = vector.multi_reduction <add>, %955, %cst_516 [1] : vector<64x128xf32> to vector<64xf32>
    %957 = vector.shape_cast %956 : vector<64xf32> to vector<64x1xf32>
    %958 = arith.addf %944, %957 : vector<64x1xf32>
    %959 = arith.mulf %951, %955 : vector<64x128xf32>
    %cst_517 = arith.constant dense<0.000000e+00> : vector<64xf32>
    %960 = vector.multi_reduction <add>, %959, %cst_517 [1] : vector<64x128xf32> to vector<64xf32>
    %961 = vector.shape_cast %960 : vector<64xf32> to vector<64x1xf32>
    %962 = arith.addf %948, %961 : vector<64x1xf32>
    %cst_518 = arith.constant 0.00347222225 : f32
    %963 = vector.broadcast %cst_518 : f32 to vector<64x1xf32>
    %964 = arith.mulf %958, %963 : vector<64x1xf32>
    %cst_519 = arith.constant 0.00347222225 : f32
    %965 = vector.broadcast %cst_519 : f32 to vector<64x1xf32>
    %966 = arith.mulf %962, %965 : vector<64x1xf32>
    %967 = arith.mulf %964, %964 : vector<64x1xf32>
    %968 = arith.subf %966, %967 : vector<64x1xf32>
    %cst_520 = arith.constant 9.99999974E-6 : f32
    %969 = vector.broadcast %cst_520 : f32 to vector<64x1xf32>
    %970 = arith.addf %968, %969 : vector<64x1xf32>
    %971 = math.rsqrt %970 : vector<64x1xf32>
    %c0_521 = arith.constant 0 : index
    %c0_522 = arith.constant 0 : index
    %972 = vector.load %arg2[%c0_521, %c0_522] : memref<64x1xf32, #tpu.memory_space<vmem>>, vector<64x1xf32>
    %973 = arith.mulf %972, %971 : vector<64x1xf32>
    %974 = vector.shape_cast %973 : vector<64x1xf32> to vector<64x1xf32>
    %975 = vector.broadcast %974 : vector<64x1xf32> to vector<64x128xf32>
    %c0_523 = arith.constant 0 : index
    %c0_524 = arith.constant 0 : index
    %976 = vector.load %arg3[%c0_523, %c0_524] : memref<64x1xf32, #tpu.memory_space<vmem>>, vector<64x1xf32>
    %977 = arith.mulf %964, %973 : vector<64x1xf32>
    %978 = arith.subf %976, %977 : vector<64x1xf32>
    %979 = vector.shape_cast %978 : vector<64x1xf32> to vector<64x1xf32>
    %980 = vector.broadcast %979 : vector<64x1xf32> to vector<64x128xf32>
    %c0_525 = arith.constant 0 : index
    %c0_526 = arith.constant 0 : index
    %981 = vector.load %arg7[%c0_525, %c0_526] : memref<64x1024xf32, #tpu.memory_space<vmem>>, vector<64x128xf32>
    %982 = arith.mulf %981, %975 : vector<64x128xf32>
    %983 = arith.addf %982, %980 : vector<64x128xf32>
    %cst_527 = arith.constant 0.000000e+00 : f32
    %984 = vector.broadcast %cst_527 : f32 to vector<64x128xf32>
    %985 = arith.cmpf ogt, %983, %984 : vector<64x128xf32>
    %cst_528 = arith.constant 2.000000e-01 : f32
    %986 = vector.broadcast %cst_528 : f32 to vector<64x128xf32>
    %987 = arith.mulf %986, %983 : vector<64x128xf32>
    %988 = arith.select %985, %983, %987 : vector<64x128xi1>, vector<64x128xf32>
    %c0_529 = arith.constant 0 : index
    %c256_530 = arith.constant 256 : index
    %989 = vector.load %arg7[%c0_529, %c256_530] : memref<64x1024xf32, #tpu.memory_space<vmem>>, vector<64x128xf32>
    %990 = arith.mulf %989, %975 : vector<64x128xf32>
    %991 = arith.addf %990, %980 : vector<64x128xf32>
    %cst_531 = arith.constant 0.000000e+00 : f32
    %992 = vector.broadcast %cst_531 : f32 to vector<64x128xf32>
    %993 = arith.cmpf ogt, %991, %992 : vector<64x128xf32>
    %cst_532 = arith.constant 2.000000e-01 : f32
    %994 = vector.broadcast %cst_532 : f32 to vector<64x128xf32>
    %995 = arith.mulf %994, %991 : vector<64x128xf32>
    %996 = arith.select %993, %991, %995 : vector<64x128xi1>, vector<64x128xf32>
    %c0_533 = arith.constant 0 : index
    %c512_534 = arith.constant 512 : index
    %997 = vector.load %arg7[%c0_533, %c512_534] : memref<64x1024xf32, #tpu.memory_space<vmem>>, vector<64x128xf32>
    %998 = arith.mulf %997, %975 : vector<64x128xf32>
    %999 = arith.addf %998, %980 : vector<64x128xf32>
    %cst_535 = arith.constant 0.000000e+00 : f32
    %1000 = vector.broadcast %cst_535 : f32 to vector<64x128xf32>
    %1001 = arith.cmpf ogt, %999, %1000 : vector<64x128xf32>
    %cst_536 = arith.constant 2.000000e-01 : f32
    %1002 = vector.broadcast %cst_536 : f32 to vector<64x128xf32>
    %1003 = arith.mulf %1002, %999 : vector<64x128xf32>
    %1004 = arith.select %1001, %999, %1003 : vector<64x128xi1>, vector<64x128xf32>
    %c0_537 = arith.constant 0 : index
    %c768_538 = arith.constant 768 : index
    %1005 = vector.load %arg7[%c0_537, %c768_538] : memref<64x1024xf32, #tpu.memory_space<vmem>>, vector<64x128xf32>
    %1006 = arith.mulf %1005, %975 : vector<64x128xf32>
    %1007 = arith.addf %1006, %980 : vector<64x128xf32>
    %cst_539 = arith.constant 0.000000e+00 : f32
    %1008 = vector.broadcast %cst_539 : f32 to vector<64x128xf32>
    %1009 = arith.cmpf ogt, %1007, %1008 : vector<64x128xf32>
    %cst_540 = arith.constant 2.000000e-01 : f32
    %1010 = vector.broadcast %cst_540 : f32 to vector<64x128xf32>
    %1011 = arith.mulf %1010, %1007 : vector<64x128xf32>
    %1012 = arith.select %1009, %1007, %1011 : vector<64x128xi1>, vector<64x128xf32>
    %1013 = arith.maximumf %988, %996 : vector<64x128xf32>
    %1014 = arith.maximumf %1004, %1012 : vector<64x128xf32>
    %1015 = arith.maximumf %1013, %1014 : vector<64x128xf32>
    %c0_541 = arith.constant 0 : index
    %c0_542 = arith.constant 0 : index
    %1016 = vector.load %arg5[%c0_541, %c0_542] : memref<64x256xf32, #tpu.memory_space<vmem>>, vector<64x128xf32>
    tpu.vector_store %arg5[%c0_541, %c0_542], %1015 {strides = array<i32>} : memref<64x256xf32, #tpu.memory_space<vmem>>, vector<64x128xf32>,
    %c0_543 = arith.constant 0 : index
    %c128_544 = arith.constant 128 : index
    %1017 = vector.load %arg7[%c0_543, %c128_544] : memref<64x1024xf32, #tpu.memory_space<vmem>>, vector<64x128xf32>
    %1018 = arith.mulf %1017, %975 : vector<64x128xf32>
    %1019 = arith.addf %1018, %980 : vector<64x128xf32>
    %cst_545 = arith.constant 0.000000e+00 : f32
    %1020 = vector.broadcast %cst_545 : f32 to vector<64x128xf32>
    %1021 = arith.cmpf ogt, %1019, %1020 : vector<64x128xf32>
    %cst_546 = arith.constant 2.000000e-01 : f32
    %1022 = vector.broadcast %cst_546 : f32 to vector<64x128xf32>
    %1023 = arith.mulf %1022, %1019 : vector<64x128xf32>
    %1024 = arith.select %1021, %1019, %1023 : vector<64x128xi1>, vector<64x128xf32>
    %c0_547 = arith.constant 0 : index
    %c384_548 = arith.constant 384 : index
    %1025 = vector.load %arg7[%c0_547, %c384_548] : memref<64x1024xf32, #tpu.memory_space<vmem>>, vector<64x128xf32>
    %1026 = arith.mulf %1025, %975 : vector<64x128xf32>
    %1027 = arith.addf %1026, %980 : vector<64x128xf32>
    %cst_549 = arith.constant 0.000000e+00 : f32
    %1028 = vector.broadcast %cst_549 : f32 to vector<64x128xf32>
    %1029 = arith.cmpf ogt, %1027, %1028 : vector<64x128xf32>
    %cst_550 = arith.constant 2.000000e-01 : f32
    %1030 = vector.broadcast %cst_550 : f32 to vector<64x128xf32>
    %1031 = arith.mulf %1030, %1027 : vector<64x128xf32>
    %1032 = arith.select %1029, %1027, %1031 : vector<64x128xi1>, vector<64x128xf32>
    %c0_551 = arith.constant 0 : index
    %c640_552 = arith.constant 640 : index
    %1033 = vector.load %arg7[%c0_551, %c640_552] : memref<64x1024xf32, #tpu.memory_space<vmem>>, vector<64x128xf32>
    %1034 = arith.mulf %1033, %975 : vector<64x128xf32>
    %1035 = arith.addf %1034, %980 : vector<64x128xf32>
    %cst_553 = arith.constant 0.000000e+00 : f32
    %1036 = vector.broadcast %cst_553 : f32 to vector<64x128xf32>
    %1037 = arith.cmpf ogt, %1035, %1036 : vector<64x128xf32>
    %cst_554 = arith.constant 2.000000e-01 : f32
    %1038 = vector.broadcast %cst_554 : f32 to vector<64x128xf32>
    %1039 = arith.mulf %1038, %1035 : vector<64x128xf32>
    %1040 = arith.select %1037, %1035, %1039 : vector<64x128xi1>, vector<64x128xf32>
    %c0_555 = arith.constant 0 : index
    %c896_556 = arith.constant 896 : index
    %1041 = vector.load %arg7[%c0_555, %c896_556] : memref<64x1024xf32, #tpu.memory_space<vmem>>, vector<64x128xf32>
    %1042 = arith.mulf %1041, %975 : vector<64x128xf32>
    %1043 = arith.addf %1042, %980 : vector<64x128xf32>
    %cst_557 = arith.constant 0.000000e+00 : f32
    %1044 = vector.broadcast %cst_557 : f32 to vector<64x128xf32>
    %1045 = arith.cmpf ogt, %1043, %1044 : vector<64x128xf32>
    %cst_558 = arith.constant 2.000000e-01 : f32
    %1046 = vector.broadcast %cst_558 : f32 to vector<64x128xf32>
    %1047 = arith.mulf %1046, %1043 : vector<64x128xf32>
    %1048 = arith.select %1045, %1043, %1047 : vector<64x128xi1>, vector<64x128xf32>
    %1049 = arith.maximumf %1024, %1032 : vector<64x128xf32>
    %1050 = arith.maximumf %1040, %1048 : vector<64x128xf32>
    %1051 = arith.maximumf %1049, %1050 : vector<64x128xf32>
    %c0_559 = arith.constant 0 : index
    %c128_560 = arith.constant 128 : index
    %1052 = vector.load %arg5[%c0_559, %c128_560] : memref<64x256xf32, #tpu.memory_space<vmem>>, vector<64x128xf32>
    tpu.vector_store %arg5[%c0_559, %c128_560], %1051 {strides = array<i32>} : memref<64x256xf32, #tpu.memory_space<vmem>>, vector<64x128xf32>,
    return
  }
}

</mosaic_0001>

<llo_original>
// kernel: my_model_forward.1
$region0: #{my_model_forward.1}
  #allocation0 [shape = 'u32[]', space=smem, size = 0x4, offset = 0x4, fixed_abs, tag = 'smem constant byte address 0x4 - core index']
  #allocation1 [shape = 'u32[72,128]{1,0:T(1,128)}', space=vmem, size = 0x9000, scoped, tag = 'internal scratch']
  #allocation2 [shape = 'bf16[64,1024]{1,0:T(8,128)(2,1)}', space=vmem, size = 0x20000, scoped, tag = 'scratch operand']
  #allocation3 [shape = 'f32[64,1024]{1,0:T(8,128)}', space=vmem, size = 0x40000, scoped, tag = 'scratch operand']
  %s0 = inlined_call_operand.vmem [shape: f32[8,256], index: 0, kind: input, shape index: {}]
  %s1 = inlined_call_operand.vmem [shape: bf16[64,64], index: 1, kind: input, shape index: {}]
  %s2 = inlined_call_operand.vmem [shape: f32[64,1], index: 2, kind: input, shape index: {}]
  %s3 = inlined_call_operand.vmem [shape: f32[64,1], index: 3, kind: input, shape index: {}]
  %s4 = inlined_call_operand.vmem [shape: f32[1,1024], index: 4, kind: input, shape index: {}]
  %s5 = inlined_call_operand.vmem [shape: f32[64,256], index: 5, kind: output, shape index: {}]
  %s6 = sld [smem:[#allocation0]]
  $region30: #{my_model_forward.1} parent=0
    _
  %s8 = ssub.s32 1, %s6
  %s9 = scalar_select 0, %s8, %s6
  // Predicated region
  $region2: #{my_model_forward.1} parent=0 // pred_check
    _
  $region3: #{my_model_forward.1} parent=0 // pred_check_branch
    %11 = sbr.rel (0) target = $region5
  $region4: #{my_model_forward.1} parent=0 // pred_region
    _
  $region5: #{my_model_forward.1} parent=0 // pred_fallthru
    _
  // Predicated region
  $region6: #{my_model_forward.1} parent=0 // pred_check
    _
  $region7: #{my_model_forward.1} parent=0 // pred_check_branch
    %13 = sbr.rel (0) target = $region9
  $region8: #{my_model_forward.1} parent=0 // pred_region
    _
  $region9: #{my_model_forward.1} parent=0 // pred_fallthru
    _
  // Predicated region
  $region10: #{my_model_forward.1} parent=0 // pred_check
    _
  $region11: #{my_model_forward.1} parent=0 // pred_check_branch
    %15 = sbr.rel (0) target = $region13
  $region12: #{my_model_forward.1} parent=0 // pred_region
    _
  $region13: #{my_model_forward.1} parent=0 // pred_fallthru
    _
  // Predicated region
  $region14: #{my_model_forward.1} parent=0 // pred_check
    _
  $region15: #{my_model_forward.1} parent=0 // pred_check_branch
    %17 = sbr.rel (0) target = $region17
  $region16: #{my_model_forward.1} parent=0 // pred_region
    _
  $region17: #{my_model_forward.1} parent=0 // pred_fallthru
    _
  // Predicated region
  $region18: #{my_model_forward.1} parent=0 // pred_check
    _
  $region19: #{my_model_forward.1} parent=0 // pred_check_branch
    %19 = sbr.rel (0) target = $region21
  $region20: #{my_model_forward.1} parent=0 // pred_region
    _
  $region21: #{my_model_forward.1} parent=0 // pred_fallthru
    _
  %v21 = vld [vmem:[%s0] sm:$0x3]
  %v22 = vpack.c.bf16 %v21, %v21
  %v23 = vld [vmem:[%s0] sm:$0xc]
  %v24 = vpack.c.bf16 %v23, %v23
  %v25 = vld [vmem:[%s0] sm:$0x3]
  %v26 = vld [vmem:[%s0 + $0x8] sm:$0x3]
  %v27 = vpack.c.bf16 %v26, %v25
  %v28 = vld [vmem:[%s0] sm:$0xc]
  %v29 = vld [vmem:[%s0 + $0x8] sm:$0xc]
  %v30 = vpack.c.bf16 %v29, %v28
  %v31 = vld [vmem:[%s0] sm:$0x30]
  %v32 = vpack.c.bf16 %v31, %v31
  %v33 = vld [vmem:[%s0] sm:$0xc0]
  %v34 = vpack.c.bf16 %v33, %v33
  %v35 = vld [vmem:[%s0] sm:$0x30]
  %v36 = vld [vmem:[%s0 + $0x8] sm:$0x30]
  %v37 = vpack.c.bf16 %v36, %v35
  %v38 = vld [vmem:[%s0] sm:$0xc0]
  %v39 = vld [vmem:[%s0 + $0x8] sm:$0xc0]
  %v40 = vpack.c.bf16 %v39, %v38
  %v42 = vunpack.c.l.b16 %v24
  %v43 = vpack.c.b16 %v42, %v42
  %v45 = vshll.u32 %v43, 16
  %v47 = vrot.slane %v45, 1
  %v50 = vunpack.c.l.b16 %v27
  %v51 = vunpack.c.h.b16 %v27
  %v52 = vpack.c.b16 %v50, %v50
  %v53 = vpack.c.b16 %v51, %v51
  %v54 = vrot.slane %v52, 7
  %v55 = vrot.slane %v53, 7
  %56 = vrot.lane.b32.xlu0 %v54, 127
  %v57 = vpop.permute.xlu0 %56
  %58 = vrot.lane.b32.xlu0 %v55, 127
  %v59 = vpop.permute.xlu0 %58
  %vm60 = vcmask 1039360
  %v61 = vsel %vm60, %v57, %v59
  %v63 = vunpack.c.l.b16 %v30
  %v64 = vunpack.c.h.b16 %v30
  %v65 = vpack.c.b16 %v63, %v63
  %v66 = vpack.c.b16 %v64, %v64
  %v68 = vshll.u32 %v65, 16
  %v71 = vshll.u32 %v66, 16
  %73 = vrot.lane.b32.xlu0 %v68, 127
  %v74 = vpop.permute.xlu0 %73
  %75 = vrot.lane.b32.xlu0 %v71, 127
  %v76 = vpop.permute.xlu0 %75
  %v77 = vsel %vm60, %v74, %v76
  %v79 = vrot.slane %v52, 6
  %v80 = vrot.slane %v53, 6
  %81 = vrot.lane.b32.xlu0 %v79, 126
  %v82 = vpop.permute.xlu0 %81
  %83 = vrot.lane.b32.xlu0 %v80, 126
  %v84 = vpop.permute.xlu0 %83
  %vm85 = vcmask 1031168
  %v86 = vsel %vm85, %v82, %v84
  %v87 = vrot.slane %v68, 7
  %v88 = vrot.slane %v71, 7
  %89 = vrot.lane.b32.xlu0 %v87, 126
  %v90 = vpop.permute.xlu0 %89
  %91 = vrot.lane.b32.xlu0 %v88, 126
  %v92 = vpop.permute.xlu0 %91
  %v93 = vsel %vm85, %v90, %v92
  %v95 = vrot.slane %v52, 5
  %v96 = vrot.slane %v53, 5
  %97 = vrot.lane.b32.xlu0 %v95, 125
  %v98 = vpop.permute.xlu0 %97
  %99 = vrot.lane.b32.xlu0 %v96, 125
  %v100 = vpop.permute.xlu0 %99
  %vm101 = vcmask 1022976
  %v102 = vsel %vm101, %v98, %v100
  %v104 = vunpack.c.l.b16 %v32
  %v105 = vpack.c.b16 %v104, %v104
  %v107 = vshll.u32 %v105, 16
  %v109 = vrot.slane %v107, 7
  %v112 = vunpack.c.l.b16 %v34
  %v113 = vpack.c.b16 %v112, %v112
  %v114 = vrot.slane %v113, 7
  %v116 = vunpack.c.l.b16 %v37
  %v117 = vunpack.c.h.b16 %v37
  %v118 = vpack.c.b16 %v116, %v116
  %v119 = vpack.c.b16 %v117, %v117
  %v121 = vshll.u32 %v118, 16
  %v123 = vrot.slane %v121, 6
  %v125 = vshll.u32 %v119, 16
  %v127 = vrot.slane %v125, 6
  %128 = vrot.lane.b32.xlu0 %v123, 127
  %v129 = vpop.permute.xlu0 %128
  %130 = vrot.lane.b32.xlu0 %v127, 127
  %v131 = vpop.permute.xlu0 %130
  %v132 = vsel %vm60, %v129, %v131
  %v135 = vunpack.c.l.b16 %v40
  %v136 = vunpack.c.h.b16 %v40
  %v137 = vpack.c.b16 %v135, %v135
  %v138 = vpack.c.b16 %v136, %v136
  %v139 = vrot.slane %v137, 6
  %v140 = vrot.slane %v138, 6
  %141 = vrot.lane.b32.xlu0 %v139, 127
  %v142 = vpop.permute.xlu0 %141
  %143 = vrot.lane.b32.xlu0 %v140, 127
  %v144 = vpop.permute.xlu0 %143
  %v145 = vsel %vm60, %v142, %v144
  %v146 = vrot.slane %v121, 5
  %v147 = vrot.slane %v125, 5
  %148 = vrot.lane.b32.xlu0 %v146, 126
  %v149 = vpop.permute.xlu0 %148
  %150 = vrot.lane.b32.xlu0 %v147, 126
  %v151 = vpop.permute.xlu0 %150
  %v152 = vsel %vm85, %v149, %v151
  %v154 = vrot.slane %v137, 5
  %v155 = vrot.slane %v138, 5
  %156 = vrot.lane.b32.xlu0 %v154, 126
  %v157 = vpop.permute.xlu0 %156
  %158 = vrot.lane.b32.xlu0 %v155, 126
  %v159 = vpop.permute.xlu0 %158
  %v160 = vsel %vm85, %v157, %v159
  %v161 = vrot.slane %v121, 4
  %v162 = vrot.slane %v125, 4
  %163 = vrot.lane.b32.xlu0 %v161, 125
  %v164 = vpop.permute.xlu0 %163
  %165 = vrot.lane.b32.xlu0 %v162, 125
  %v166 = vpop.permute.xlu0 %165
  %v167 = vsel %vm101, %v164, %v166
  %v169 = vrot.slane %v52, 1
  %v170 = vrot.slane %v53, 1
  %171 = vrot.lane.b32.xlu0 %v169, 119
  %v172 = vpop.permute.xlu0 %171
  %173 = vrot.lane.b32.xlu0 %v170, 119
  %v174 = vpop.permute.xlu0 %173
  %vm175 = vcmask 973824
  %v176 = vsel %vm175, %v172, %v174
  %v177 = vrot.slane %v68, 2
  %v178 = vrot.slane %v71, 2
  %179 = vrot.lane.b32.xlu0 %v177, 119
  %v180 = vpop.permute.xlu0 %179
  %181 = vrot.lane.b32.xlu0 %v178, 119
  %v182 = vpop.permute.xlu0 %181
  %v183 = vsel %vm175, %v180, %v182
  %vm185 = vcmask 1040384
  %vm186 = vsmask.f32 256
  %vm187 = vmand %vm185, %vm186
  %v188 = vsel %vm187, %v22, %v47
  %vm189 = vcmask 1040384
  %v192 = vsel %vm189, %v188, %v61
  %vm194 = vcmask 1041408
  %vm195 = vsmask.f32 1280
  %vm196 = vmand %vm194, %vm195
  %v197 = vsel %vm196, %v192, %v77
  %vm198 = vcmask 1041408
  %v201 = vsel %vm198, %v197, %v86
  %vm203 = vcmask 1042432
  %vm204 = vsmask.f32 2304
  %vm205 = vmand %vm203, %vm204
  %v206 = vsel %vm205, %v201, %v93
  %vm207 = vcmask 1042432
  %v210 = vsel %vm207, %v206, %v102
  %vm212 = vcmask 1043456
  %vm213 = vsmask.f32 3328
  %vm214 = vmand %vm212, %vm213
  %v215 = vsel %vm214, %v210, %v109
  %vm216 = vcmask 1043456
  %v219 = vsel %vm216, %v215, %v114
  %vm221 = vcmask 1044480
  %vm222 = vsmask.f32 4352
  %vm223 = vmand %vm221, %vm222
  %v224 = vsel %vm223, %v219, %v132
  %vm225 = vcmask 1044480
  %v228 = vsel %vm225, %v224, %v145
  %vm230 = vcmask 1045504
  %vm231 = vsmask.f32 5376
  %vm232 = vmand %vm230, %vm231
  %v233 = vsel %vm232, %v228, %v152
  %vm234 = vcmask 1045504
  %v237 = vsel %vm234, %v233, %v160
  %vm239 = vcmask 1046528
  %vm240 = vsmask.f32 6400
  %vm241 = vmand %vm239, %vm240
  %v242 = vsel %vm241, %v237, %v167
  %vm243 = vcmask 1046528
  %v246 = vsel %vm243, %v242, %v176
  %vm248 = vcmask 1047552
  %vm249 = vsmask.f32 7424
  %vm250 = vmand %vm248, %vm249
  %v251 = vsel %vm250, %v246, %v183
  %v253 = vunpack.c.l.b16 %v251
  %v254 = vunpack.c.h.b16 %v251
  %v255 = vpack.c.b16 %v253, %v253
  %v256 = vpack.c.b16 %v254, %v254
  %259 = vst [vmem:[#allocation2] sm:$0xf] %v255
  %260 = vst [vmem:[#allocation2 + $0x20] sm:$0xf] %v256
  %v262 = vunpack.c.l.b16 %v22
  %v263 = vpack.c.b16 %v262, %v262
  %v265 = vshrl.u32 %v263, 16
  %v268 = vrot.slane %v43, 1
  %v271 = vshrl.u32 %v52, 16
  %v273 = vrot.slane %v271, 7
  %v275 = vshrl.u32 %v53, 16
  %v277 = vrot.slane %v275, 7
  %278 = vrot.lane.b32.xlu0 %v273, 127
  %v279 = vpop.permute.xlu0 %278
  %280 = vrot.lane.b32.xlu0 %v277, 127
  %v281 = vpop.permute.xlu0 %280
  %v282 = vsel %vm60, %v279, %v281
  %283 = vrot.lane.b32.xlu0 %v65, 127
  %v284 = vpop.permute.xlu0 %283
  %285 = vrot.lane.b32.xlu0 %v66, 127
  %v286 = vpop.permute.xlu0 %285
  %v287 = vsel %vm60, %v284, %v286
  %v289 = vrot.slane %v271, 6
  %v290 = vrot.slane %v275, 6
  %291 = vrot.lane.b32.xlu0 %v289, 126
  %v292 = vpop.permute.xlu0 %291
  %293 = vrot.lane.b32.xlu0 %v290, 126
  %v294 = vpop.permute.xlu0 %293
  %v295 = vsel %vm85, %v292, %v294
  %v296 = vrot.slane %v65, 7
  %v297 = vrot.slane %v66, 7
  %298 = vrot.lane.b32.xlu0 %v296, 126
  %v299 = vpop.permute.xlu0 %298
  %300 = vrot.lane.b32.xlu0 %v297, 126
  %v301 = vpop.permute.xlu0 %300
  %v302 = vsel %vm85, %v299, %v301
  %v304 = vrot.slane %v271, 5
  %v305 = vrot.slane %v275, 5
  %306 = vrot.lane.b32.xlu0 %v304, 125
  %v307 = vpop.permute.xlu0 %306
  %308 = vrot.lane.b32.xlu0 %v305, 125
  %v309 = vpop.permute.xlu0 %308
  %v310 = vsel %vm101, %v307, %v309
  %v311 = vrot.slane %v105, 7
  %v314 = vshrl.u32 %v113, 16
  %v316 = vrot.slane %v314, 7
  %v317 = vrot.slane %v118, 6
  %v318 = vrot.slane %v119, 6
  %319 = vrot.lane.b32.xlu0 %v317, 127
  %v320 = vpop.permute.xlu0 %319
  %321 = vrot.lane.b32.xlu0 %v318, 127
  %v322 = vpop.permute.xlu0 %321
  %v323 = vsel %vm60, %v320, %v322
  %v326 = vshrl.u32 %v137, 16
  %v328 = vrot.slane %v326, 6
  %v330 = vshrl.u32 %v138, 16
  %v332 = vrot.slane %v330, 6
  %333 = vrot.lane.b32.xlu0 %v328, 127
  %v334 = vpop.permute.xlu0 %333
  %335 = vrot.lane.b32.xlu0 %v332, 127
  %v336 = vpop.permute.xlu0 %335
  %v337 = vsel %vm60, %v334, %v336
  %v338 = vrot.slane %v118, 5
  %v339 = vrot.slane %v119, 5
  %340 = vrot.lane.b32.xlu0 %v338, 126
  %v341 = vpop.permute.xlu0 %340
  %342 = vrot.lane.b32.xlu0 %v339, 126
  %v343 = vpop.permute.xlu0 %342
  %v344 = vsel %vm85, %v341, %v343
  %v346 = vrot.slane %v326, 5
  %v347 = vrot.slane %v330, 5
  %348 = vrot.lane.b32.xlu0 %v346, 126
  %v349 = vpop.permute.xlu0 %348
  %350 = vrot.lane.b32.xlu0 %v347, 126
  %v351 = vpop.permute.xlu0 %350
  %v352 = vsel %vm85, %v349, %v351
  %353 = vrot.lane.b32.xlu0 %v118, 125
  %v354 = vpop.permute.xlu0 %353
  %355 = vrot.lane.b32.xlu0 %v119, 125
  %v356 = vpop.permute.xlu0 %355
  %v357 = vsel %vm101, %v354, %v356
  %v359 = vrot.slane %v271, 1
  %v360 = vrot.slane %v275, 1
  %361 = vrot.lane.b32.xlu0 %v359, 119
  %v362 = vpop.permute.xlu0 %361
  %363 = vrot.lane.b32.xlu0 %v360, 119
  %v364 = vpop.permute.xlu0 %363
  %v365 = vsel %vm175, %v362, %v364
  %v366 = vrot.slane %v65, 2
  %v367 = vrot.slane %v66, 2
  %368 = vrot.lane.b32.xlu0 %v366, 119
  %v369 = vpop.permute.xlu0 %368
  %370 = vrot.lane.b32.xlu0 %v367, 119
  %v371 = vpop.permute.xlu0 %370
  %v372 = vsel %vm175, %v369, %v371
  %v374 = vsel %vm187, %v265, %v268
  %v377 = vsel %vm189, %v374, %v282
  %v379 = vsel %vm196, %v377, %v287
  %v382 = vsel %vm198, %v379, %v295
  %v384 = vsel %vm205, %v382, %v302
  %v387 = vsel %vm207, %v384, %v310
  %v389 = vsel %vm214, %v387, %v311
  %v392 = vsel %vm216, %v389, %v316
  %v394 = vsel %vm223, %v392, %v323
  %v397 = vsel %vm225, %v394, %v337
  %v399 = vsel %vm232, %v397, %v344
  %v402 = vsel %vm234, %v399, %v352
  %v404 = vsel %vm241, %v402, %v357
  %v407 = vsel %vm243, %v404, %v365
  %v409 = vsel %vm250, %v407, %v372
  %v411 = vunpack.c.l.b16 %v409
  %v412 = vunpack.c.h.b16 %v409
  %v413 = vpack.c.b16 %v411, %v411
  %v414 = vpack.c.b16 %v412, %v412
  %417 = vst [vmem:[#allocation2 + $0x4] sm:$0xf] %v413
  %418 = vst [vmem:[#allocation2 + $0x24] sm:$0xf] %v414
  %v419 = vld [vmem:[%s0] sm:$0x3]
  %v420 = vld [vmem:[%s0 + $0x8] sm:$0x3]
  %v421 = vpack.c.bf16 %v420, %v419
  %v422 = vld [vmem:[%s0] sm:$0xc]
  %v423 = vld [vmem:[%s0 + $0x8] sm:$0xc]
  %v424 = vpack.c.bf16 %v423, %v422
  %v425 = vld [vmem:[%s0] sm:$0x30]
  %v426 = vld [vmem:[%s0 + $0x8] sm:$0x30]
  %v427 = vpack.c.bf16 %v426, %v425
  %v428 = vld [vmem:[%s0] sm:$0xc0]
  %v429 = vld [vmem:[%s0 + $0x8] sm:$0xc0]
  %v430 = vpack.c.bf16 %v429, %v428
  %v432 = vunpack.c.l.b16 %v421
  %v433 = vunpack.c.h.b16 %v421
  %v434 = vpack.c.b16 %v432, %v432
  %v435 = vpack.c.b16 %v433, %v433
  %v439 = vunpack.c.l.b16 %v424
  %v440 = vunpack.c.h.b16 %v424
  %v441 = vpack.c.b16 %v439, %v439
  %v442 = vpack.c.b16 %v440, %v440
  %v444 = vshll.u32 %v441, 16
  %v446 = vrot.slane %v444, 1
  %v448 = vshll.u32 %v442, 16
  %v450 = vrot.slane %v448, 1
  %v453 = vrot.slane %v434, 7
  %v454 = vrot.slane %v435, 7
  %455 = vrot.lane.b32.xlu0 %v453, 127
  %v456 = vpop.permute.xlu0 %455
  %457 = vrot.lane.b32.xlu0 %v454, 127
  %v458 = vpop.permute.xlu0 %457
  %v459 = vsel %vm60, %v456, %v458
  %460 = vrot.lane.b32.xlu0 %v444, 127
  %v461 = vpop.permute.xlu0 %460
  %462 = vrot.lane.b32.xlu0 %v448, 127
  %v463 = vpop.permute.xlu0 %462
  %v464 = vsel %vm60, %v461, %v463
  %v467 = vrot.slane %v434, 6
  %v468 = vrot.slane %v435, 6
  %469 = vrot.lane.b32.xlu0 %v467, 126
  %v470 = vpop.permute.xlu0 %469
  %471 = vrot.lane.b32.xlu0 %v468, 126
  %v472 = vpop.permute.xlu0 %471
  %v473 = vsel %vm85, %v470, %v472
  %v475 = vunpack.c.l.b16 %v427
  %v476 = vunpack.c.h.b16 %v427
  %v477 = vpack.c.b16 %v475, %v475
  %v478 = vpack.c.b16 %v476, %v476
  %v480 = vshll.u32 %v477, 16
  %v483 = vshll.u32 %v478, 16
  %485 = vrot.lane.b32.xlu0 %v480, 1
  %v486 = vpop.permute.xlu0 %485
  %487 = vrot.lane.b32.xlu0 %v483, 1
  %v488 = vpop.permute.xlu0 %487
  %vm489 = vcmask 7168
  %v490 = vsel %vm489, %v486, %v488
  %v494 = vunpack.c.l.b16 %v430
  %v495 = vunpack.c.h.b16 %v430
  %v496 = vpack.c.b16 %v494, %v494
  %v497 = vpack.c.b16 %v495, %v495
  %498 = vrot.lane.b32.xlu0 %v496, 1
  %v499 = vpop.permute.xlu0 %498
  %500 = vrot.lane.b32.xlu0 %v497, 1
  %v501 = vpop.permute.xlu0 %500
  %v502 = vsel %vm489, %v499, %v501
  %v503 = vrot.slane %v480, 7
  %v504 = vrot.slane %v483, 7
  %v507 = vrot.slane %v496, 7
  %v508 = vrot.slane %v497, 7
  %v509 = vrot.slane %v480, 6
  %v510 = vrot.slane %v483, 6
  %511 = vrot.lane.b32.xlu0 %v509, 127
  %v512 = vpop.permute.xlu0 %511
  %513 = vrot.lane.b32.xlu0 %v510, 127
  %v514 = vpop.permute.xlu0 %513
  %v515 = vsel %vm60, %v512, %v514
  %v518 = vrot.slane %v496, 6
  %v519 = vrot.slane %v497, 6
  %520 = vrot.lane.b32.xlu0 %v518, 127
  %v521 = vpop.permute.xlu0 %520
  %522 = vrot.lane.b32.xlu0 %v519, 127
  %v523 = vpop.permute.xlu0 %522
  %v524 = vsel %vm60, %v521, %v523
  %v525 = vrot.slane %v480, 5
  %v526 = vrot.slane %v483, 5
  %527 = vrot.lane.b32.xlu0 %v525, 126
  %v528 = vpop.permute.xlu0 %527
  %529 = vrot.lane.b32.xlu0 %v526, 126
  %v530 = vpop.permute.xlu0 %529
  %v531 = vsel %vm85, %v528, %v530
  %v534 = vrot.slane %v434, 2
  %v535 = vrot.slane %v435, 2
  %536 = vrot.lane.b32.xlu0 %v534, 120
  %v537 = vpop.permute.xlu0 %536
  %538 = vrot.lane.b32.xlu0 %v535, 120
  %v539 = vpop.permute.xlu0 %538
  %vm540 = vcmask 982016
  %v541 = vsel %vm540, %v537, %v539
  %v542 = vrot.slane %v444, 3
  %v543 = vrot.slane %v448, 3
  %544 = vrot.lane.b32.xlu0 %v542, 120
  %v545 = vpop.permute.xlu0 %544
  %546 = vrot.lane.b32.xlu0 %v543, 120
  %v547 = vpop.permute.xlu0 %546
  %v548 = vsel %vm540, %v545, %v547
  %v551 = vrot.slane %v434, 1
  %v552 = vrot.slane %v435, 1
  %553 = vrot.lane.b32.xlu0 %v551, 119
  %v554 = vpop.permute.xlu0 %553
  %555 = vrot.lane.b32.xlu0 %v552, 119
  %v556 = vpop.permute.xlu0 %555
  %v557 = vsel %vm175, %v554, %v556
  %v558 = vrot.slane %v444, 2
  %v559 = vrot.slane %v448, 2
  %560 = vrot.lane.b32.xlu0 %v558, 119
  %v561 = vpop.permute.xlu0 %560
  %562 = vrot.lane.b32.xlu0 %v559, 119
  %v563 = vpop.permute.xlu0 %562
  %v564 = vsel %vm175, %v561, %v563
  %v567 = vsel %vm187, %v434, %v446
  %v568 = vsel %vm187, %v435, %v450
  %v571 = vsel %vm189, %v567, %v459
  %v575 = vsel %vm189, %v568, %v458
  %v577 = vsel %vm196, %v571, %v464
  %v578 = vsel %vm196, %v575, %v463
  %v581 = vsel %vm198, %v577, %v473
  %v585 = vsel %vm198, %v578, %v472
  %v587 = vsel %vm205, %v581, %v486
  %v588 = vsel %vm205, %v585, %v490
  %v591 = vsel %vm207, %v587, %v499
  %v595 = vsel %vm207, %v588, %v502
  %v597 = vsel %vm214, %v591, %v503
  %v598 = vsel %vm214, %v595, %v504
  %v601 = vsel %vm216, %v597, %v507
  %v605 = vsel %vm216, %v598, %v508
  %v607 = vsel %vm223, %v601, %v515
  %v608 = vsel %vm223, %v605, %v514
  %v611 = vsel %vm225, %v607, %v524
  %v615 = vsel %vm225, %v608, %v523
  %v617 = vsel %vm232, %v611, %v531
  %v618 = vsel %vm232, %v615, %v530
  %v621 = vsel %vm234, %v617, %v541
  %v625 = vsel %vm234, %v618, %v539
  %v627 = vsel %vm241, %v621, %v548
  %v628 = vsel %vm241, %v625, %v547
  %v631 = vsel %vm243, %v627, %v557
  %v635 = vsel %vm243, %v628, %v556
  %v637 = vsel %vm250, %v631, %v564
  %v638 = vsel %vm250, %v635, %v563
  %v641 = vunpack.c.l.b16 %v637
  %v642 = vunpack.c.l.b16 %v638
  %v643 = vunpack.c.h.b16 %v637
  %v644 = vunpack.c.h.b16 %v638
  %v645 = vpack.c.b16 %v642, %v641
  %v646 = vpack.c.b16 %v644, %v643
  %647 = vrot.lane.b32.xlu0 %v645, 118
  %v648 = vpop.permute.xlu0 %647
  %649 = vrot.lane.b32.xlu0 %v646, 118
  %v650 = vpop.permute.xlu0 %649
  %v651 = vrot.slane %v648, 4
  %v652 = vrot.slane %v650, 4
  %vm653 = vcmask 965632
  %v654 = vsel %vm653, %v648, %v651
  %v655 = vsel %vm653, %v650, %v652
  %658 = vst [vmem:[#allocation2 + $0x40] sm:$0xf] %v654
  %659 = vst [vmem:[#allocation2 + $0x60] sm:$0xf] %v655
  %v661 = vshrl.u32 %v434, 16
  %v664 = vshrl.u32 %v435, 16
  %v668 = vrot.slane %v441, 1
  %v669 = vrot.slane %v442, 1
  %v672 = vrot.slane %v661, 7
  %v673 = vrot.slane %v664, 7
  %674 = vrot.lane.b32.xlu0 %v672, 127
  %v675 = vpop.permute.xlu0 %674
  %676 = vrot.lane.b32.xlu0 %v673, 127
  %v677 = vpop.permute.xlu0 %676
  %v678 = vsel %vm60, %v675, %v677
  %679 = vrot.lane.b32.xlu0 %v441, 127
  %v680 = vpop.permute.xlu0 %679
  %681 = vrot.lane.b32.xlu0 %v442, 127
  %v682 = vpop.permute.xlu0 %681
  %v683 = vsel %vm60, %v680, %v682
  %v686 = vrot.slane %v661, 6
  %v687 = vrot.slane %v664, 6
  %688 = vrot.lane.b32.xlu0 %v686, 126
  %v689 = vpop.permute.xlu0 %688
  %690 = vrot.lane.b32.xlu0 %v687, 126
  %v691 = vpop.permute.xlu0 %690
  %v692 = vsel %vm85, %v689, %v691
  %693 = vrot.lane.b32.xlu0 %v477, 1
  %v694 = vpop.permute.xlu0 %693
  %695 = vrot.lane.b32.xlu0 %v478, 1
  %v696 = vpop.permute.xlu0 %695
  %v697 = vsel %vm489, %v694, %v696
  %v701 = vshrl.u32 %v496, 16
  %v704 = vshrl.u32 %v497, 16
  %706 = vrot.lane.b32.xlu0 %v701, 1
  %v707 = vpop.permute.xlu0 %706
  %708 = vrot.lane.b32.xlu0 %v704, 1
  %v709 = vpop.permute.xlu0 %708
  %v710 = vsel %vm489, %v707, %v709
  %v711 = vrot.slane %v477, 7
  %v712 = vrot.slane %v478, 7
  %v715 = vrot.slane %v701, 7
  %v716 = vrot.slane %v704, 7
  %v717 = vrot.slane %v477, 6
  %v718 = vrot.slane %v478, 6
  %719 = vrot.lane.b32.xlu0 %v717, 127
  %v720 = vpop.permute.xlu0 %719
  %721 = vrot.lane.b32.xlu0 %v718, 127
  %v722 = vpop.permute.xlu0 %721
  %v723 = vsel %vm60, %v720, %v722
  %v726 = vrot.slane %v701, 6
  %v727 = vrot.slane %v704, 6
  %728 = vrot.lane.b32.xlu0 %v726, 127
  %v729 = vpop.permute.xlu0 %728
  %730 = vrot.lane.b32.xlu0 %v727, 127
  %v731 = vpop.permute.xlu0 %730
  %v732 = vsel %vm60, %v729, %v731
  %v733 = vrot.slane %v477, 5
  %v734 = vrot.slane %v478, 5
  %735 = vrot.lane.b32.xlu0 %v733, 126
  %v736 = vpop.permute.xlu0 %735
  %737 = vrot.lane.b32.xlu0 %v734, 126
  %v738 = vpop.permute.xlu0 %737
  %v739 = vsel %vm85, %v736, %v738
  %v742 = vrot.slane %v661, 2
  %v743 = vrot.slane %v664, 2
  %744 = vrot.lane.b32.xlu0 %v742, 120
  %v745 = vpop.permute.xlu0 %744
  %746 = vrot.lane.b32.xlu0 %v743, 120
  %v747 = vpop.permute.xlu0 %746
  %v748 = vsel %vm540, %v745, %v747
  %v749 = vrot.slane %v441, 3
  %v750 = vrot.slane %v442, 3
  %751 = vrot.lane.b32.xlu0 %v749, 120
  %v752 = vpop.permute.xlu0 %751
  %753 = vrot.lane.b32.xlu0 %v750, 120
  %v754 = vpop.permute.xlu0 %753
  %v755 = vsel %vm540, %v752, %v754
  %v758 = vrot.slane %v661, 1
  %v759 = vrot.slane %v664, 1
  %760 = vrot.lane.b32.xlu0 %v758, 119
  %v761 = vpop.permute.xlu0 %760
  %762 = vrot.lane.b32.xlu0 %v759, 119
  %v763 = vpop.permute.xlu0 %762
  %v764 = vsel %vm175, %v761, %v763
  %v765 = vrot.slane %v441, 2
  %v766 = vrot.slane %v442, 2
  %767 = vrot.lane.b32.xlu0 %v765, 119
  %v768 = vpop.permute.xlu0 %767
  %769 = vrot.lane.b32.xlu0 %v766, 119
  %v770 = vpop.permute.xlu0 %769
  %v771 = vsel %vm175, %v768, %v770
  %v774 = vsel %vm187, %v661, %v668
  %v775 = vsel %vm187, %v664, %v669
  %v778 = vsel %vm189, %v774, %v678
  %v782 = vsel %vm189, %v775, %v677
  %v784 = vsel %vm196, %v778, %v683
  %v785 = vsel %vm196, %v782, %v682
  %v788 = vsel %vm198, %v784, %v692
  %v792 = vsel %vm198, %v785, %v691
  %v794 = vsel %vm205, %v788, %v694
  %v795 = vsel %vm205, %v792, %v697
  %v798 = vsel %vm207, %v794, %v707
  %v802 = vsel %vm207, %v795, %v710
  %v804 = vsel %vm214, %v798, %v711
  %v805 = vsel %vm214, %v802, %v712
  %v808 = vsel %vm216, %v804, %v715
  %v812 = vsel %vm216, %v805, %v716
  %v814 = vsel %vm223, %v808, %v723
  %v815 = vsel %vm223, %v812, %v722
  %v818 = vsel %vm225, %v814, %v732
  %v822 = vsel %vm225, %v815, %v731
  %v824 = vsel %vm232, %v818, %v739
  %v825 = vsel %vm232, %v822, %v738
  %v828 = vsel %vm234, %v824, %v748
  %v832 = vsel %vm234, %v825, %v747
  %v834 = vsel %vm241, %v828, %v755
  %v835 = vsel %vm241, %v832, %v754
  %v838 = vsel %vm243, %v834, %v764
  %v842 = vsel %vm243, %v835, %v763
  %v844 = vsel %vm250, %v838, %v771
  %v845 = vsel %vm250, %v842, %v770
  %v848 = vunpack.c.l.b16 %v844
  %v849 = vunpack.c.l.b16 %v845
  %v850 = vunpack.c.h.b16 %v844
  %v851 = vunpack.c.h.b16 %v845
  %v852 = vpack.c.b16 %v849, %v848
  %v853 = vpack.c.b16 %v851, %v850
  %854 = vrot.lane.b32.xlu0 %v852, 118
  %v855 = vpop.permute.xlu0 %854
  %856 = vrot.lane.b32.xlu0 %v853, 118
  %v857 = vpop.permute.xlu0 %856
  %v858 = vrot.slane %v855, 4
  %v859 = vrot.slane %v857, 4
  %v860 = vsel %vm653, %v855, %v858
  %v861 = vsel %vm653, %v857, %v859
  %864 = vst [vmem:[#allocation2 + $0x44] sm:$0xf] %v860
  %865 = vst [vmem:[#allocation2 + $0x64] sm:$0xf] %v861
  %v866 = vld [vmem:[%s0] sm:$0x3]
  %v867 = vld [vmem:[%s0 + $0x8] sm:$0x3]
  %v868 = vpack.c.bf16 %v867, %v866
  %v869 = vld [vmem:[%s0] sm:$0xc]
  %v870 = vld [vmem:[%s0 + $0x8] sm:$0xc]
  %v871 = vpack.c.bf16 %v870, %v869
  %v872 = vld [vmem:[%s0] sm:$0x30]
  %v873 = vld [vmem:[%s0 + $0x8] sm:$0x30]
  %v874 = vpack.c.bf16 %v873, %v872
  %v875 = vld [vmem:[%s0] sm:$0xc0]
  %v876 = vld [vmem:[%s0 + $0x8] sm:$0xc0]
  %v877 = vpack.c.bf16 %v876, %v875
  %v879 = vunpack.c.l.b16 %v868
  %v880 = vunpack.c.h.b16 %v868
  %v881 = vpack.c.b16 %v879, %v879
  %v882 = vpack.c.b16 %v880, %v880
  %v886 = vunpack.c.l.b16 %v871
  %v887 = vunpack.c.h.b16 %v871
  %v888 = vpack.c.b16 %v886, %v886
  %v889 = vpack.c.b16 %v887, %v887
  %v891 = vshll.u32 %v888, 16
  %v893 = vrot.slane %v891, 1
  %v895 = vshll.u32 %v889, 16
  %v897 = vrot.slane %v895, 1
  %v900 = vrot.slane %v881, 7
  %v901 = vrot.slane %v882, 7
  %902 = vrot.lane.b32.xlu0 %v900, 127
  %v903 = vpop.permute.xlu0 %902
  %904 = vrot.lane.b32.xlu0 %v901, 127
  %v905 = vpop.permute.xlu0 %904
  %v906 = vsel %vm60, %v903, %v905
  %v908 = vunpack.c.l.b16 %v874
  %v909 = vunpack.c.h.b16 %v874
  %v910 = vpack.c.b16 %v908, %v908
  %v911 = vpack.c.b16 %v909, %v909
  %v913 = vshll.u32 %v910, 16
  %v915 = vrot.slane %v913, 1
  %v917 = vshll.u32 %v911, 16
  %v919 = vrot.slane %v917, 1
  %920 = vrot.lane.b32.xlu0 %v915, 2
  %v921 = vpop.permute.xlu0 %920
  %922 = vrot.lane.b32.xlu0 %v919, 2
  %v923 = vpop.permute.xlu0 %922
  %vm924 = vcmask 15360
  %v925 = vsel %vm924, %v921, %v923
  %v929 = vunpack.c.l.b16 %v877
  %v930 = vunpack.c.h.b16 %v877
  %v931 = vpack.c.b16 %v929, %v929
  %v932 = vpack.c.b16 %v930, %v930
  %v933 = vrot.slane %v931, 1
  %v934 = vrot.slane %v932, 1
  %935 = vrot.lane.b32.xlu0 %v933, 2
  %v936 = vpop.permute.xlu0 %935
  %937 = vrot.lane.b32.xlu0 %v934, 2
  %v938 = vpop.permute.xlu0 %937
  %v939 = vsel %vm924, %v936, %v938
  %940 = vrot.lane.b32.xlu0 %v913, 1
  %v941 = vpop.permute.xlu0 %940
  %942 = vrot.lane.b32.xlu0 %v917, 1
  %v943 = vpop.permute.xlu0 %942
  %v944 = vsel %vm489, %v941, %v943
  %947 = vrot.lane.b32.xlu0 %v931, 1
  %v948 = vpop.permute.xlu0 %947
  %949 = vrot.lane.b32.xlu0 %v932, 1
  %v950 = vpop.permute.xlu0 %949
  %v951 = vsel %vm489, %v948, %v950
  %v952 = vrot.slane %v913, 7
  %v953 = vrot.slane %v917, 7
  %v956 = vrot.slane %v931, 7
  %v957 = vrot.slane %v932, 7
  %v958 = vrot.slane %v913, 6
  %v959 = vrot.slane %v917, 6
  %960 = vrot.lane.b32.xlu0 %v958, 127
  %v961 = vpop.permute.xlu0 %960
  %962 = vrot.lane.b32.xlu0 %v959, 127
  %v963 = vpop.permute.xlu0 %962
  %v964 = vsel %vm60, %v961, %v963
  %v967 = vrot.slane %v881, 3
  %v968 = vrot.slane %v882, 3
  %969 = vrot.lane.b32.xlu0 %v967, 121
  %v970 = vpop.permute.xlu0 %969
  %971 = vrot.lane.b32.xlu0 %v968, 121
  %v972 = vpop.permute.xlu0 %971
  %vm973 = vcmask 990208
  %v974 = vsel %vm973, %v970, %v972
  %v975 = vrot.slane %v891, 4
  %v976 = vrot.slane %v895, 4
  %977 = vrot.lane.b32.xlu0 %v975, 121
  %v978 = vpop.permute.xlu0 %977
  %979 = vrot.lane.b32.xlu0 %v976, 121
  %v980 = vpop.permute.xlu0 %979
  %v981 = vsel %vm973, %v978, %v980
  %v984 = vrot.slane %v881, 2
  %v985 = vrot.slane %v882, 2
  %986 = vrot.lane.b32.xlu0 %v984, 120
  %v987 = vpop.permute.xlu0 %986
  %988 = vrot.lane.b32.xlu0 %v985, 120
  %v989 = vpop.permute.xlu0 %988
  %v990 = vsel %vm540, %v987, %v989
  %v991 = vrot.slane %v891, 3
  %v992 = vrot.slane %v895, 3
  %993 = vrot.lane.b32.xlu0 %v991, 120
  %v994 = vpop.permute.xlu0 %993
  %995 = vrot.lane.b32.xlu0 %v992, 120
  %v996 = vpop.permute.xlu0 %995
  %v997 = vsel %vm540, %v994, %v996
  %v1000 = vrot.slane %v881, 1
  %v1001 = vrot.slane %v882, 1
  %1002 = vrot.lane.b32.xlu0 %v1000, 119
  %v1003 = vpop.permute.xlu0 %1002
  %1004 = vrot.lane.b32.xlu0 %v1001, 119
  %v1005 = vpop.permute.xlu0 %1004
  %v1006 = vsel %vm175, %v1003, %v1005
  %v1007 = vrot.slane %v891, 2
  %v1008 = vrot.slane %v895, 2
  %1009 = vrot.lane.b32.xlu0 %v1007, 119
  %v1010 = vpop.permute.xlu0 %1009
  %1011 = vrot.lane.b32.xlu0 %v1008, 119
  %v1012 = vpop.permute.xlu0 %1011
  %v1013 = vsel %vm175, %v1010, %v1012
  %v1016 = vsel %vm187, %v881, %v893
  %v1017 = vsel %vm187, %v882, %v897
  %v1020 = vsel %vm189, %v1016, %v906
  %v1024 = vsel %vm189, %v1017, %v905
  %v1026 = vsel %vm196, %v1020, %v921
  %v1027 = vsel %vm196, %v1024, %v925
  %v1030 = vsel %vm198, %v1026, %v936
  %v1034 = vsel %vm198, %v1027, %v939
  %v1036 = vsel %vm205, %v1030, %v941
  %v1037 = vsel %vm205, %v1034, %v944
  %v1040 = vsel %vm207, %v1036, %v948
  %v1044 = vsel %vm207, %v1037, %v951
  %v1046 = vsel %vm214, %v1040, %v952
  %v1047 = vsel %vm214, %v1044, %v953
  %v1050 = vsel %vm216, %v1046, %v956
  %v1054 = vsel %vm216, %v1047, %v957
  %v1056 = vsel %vm223, %v1050, %v964
  %v1057 = vsel %vm223, %v1054, %v963
  %v1060 = vsel %vm225, %v1056, %v974
  %v1064 = vsel %vm225, %v1057, %v972
  %v1066 = vsel %vm232, %v1060, %v981
  %v1067 = vsel %vm232, %v1064, %v980
  %v1070 = vsel %vm234, %v1066, %v990
  %v1074 = vsel %vm234, %v1067, %v989
  %v1076 = vsel %vm241, %v1070, %v997
  %v1077 = vsel %vm241, %v1074, %v996
  %v1080 = vsel %vm243, %v1076, %v1006
  %v1084 = vsel %vm243, %v1077, %v1005
  %v1086 = vsel %vm250, %v1080, %v1013
  %v1087 = vsel %vm250, %v1084, %v1012
  %v1090 = vunpack.c.l.b16 %v1086
  %v1091 = vunpack.c.l.b16 %v1087
  %v1092 = vunpack.c.h.b16 %v1086
  %v1093 = vunpack.c.h.b16 %v1087
  %v1094 = vpack.c.b16 %v1091, %v1090
  %v1095 = vpack.c.b16 %v1093, %v1092
  %1096 = vrot.lane.b32.xlu0 %v1094, 108
  %v1097 = vpop.permute.xlu0 %1096
  %1098 = vrot.lane.b32.xlu0 %v1095, 108
  %v1099 = vpop.permute.xlu0 %1098
  %v1100 = vrot.slane %v1097, 4
  %v1101 = vrot.slane %v1099, 4
  %vm1102 = vcmask 883712
  %v1103 = vsel %vm1102, %v1097, %v1100
  %v1104 = vsel %vm1102, %v1099, %v1101
  %1107 = vst [vmem:[#allocation2 + $0x80] sm:$0xf] %v1103
  %1108 = vst [vmem:[#allocation2 + $0xa0] sm:$0xf] %v1104
  %v1110 = vshrl.u32 %v881, 16
  %v1113 = vshrl.u32 %v882, 16
  %v1117 = vrot.slane %v888, 1
  %v1118 = vrot.slane %v889, 1
  %v1121 = vrot.slane %v1110, 7
  %v1122 = vrot.slane %v1113, 7
  %1123 = vrot.lane.b32.xlu0 %v1121, 127
  %v1124 = vpop.permute.xlu0 %1123
  %1125 = vrot.lane.b32.xlu0 %v1122, 127
  %v1126 = vpop.permute.xlu0 %1125
  %v1127 = vsel %vm60, %v1124, %v1126
  %v1128 = vrot.slane %v910, 1
  %v1129 = vrot.slane %v911, 1
  %1130 = vrot.lane.b32.xlu0 %v1128, 2
  %v1131 = vpop.permute.xlu0 %1130
  %1132 = vrot.lane.b32.xlu0 %v1129, 2
  %v1133 = vpop.permute.xlu0 %1132
  %v1134 = vsel %vm924, %v1131, %v1133
  %v1138 = vshrl.u32 %v931, 16
  %v1140 = vrot.slane %v1138, 1
  %v1142 = vshrl.u32 %v932, 16
  %v1144 = vrot.slane %v1142, 1
  %1145 = vrot.lane.b32.xlu0 %v1140, 2
  %v1146 = vpop.permute.xlu0 %1145
  %1147 = vrot.lane.b32.xlu0 %v1144, 2
  %v1148 = vpop.permute.xlu0 %1147
  %v1149 = vsel %vm924, %v1146, %v1148
  %1150 = vrot.lane.b32.xlu0 %v910, 1
  %v1151 = vpop.permute.xlu0 %1150
  %1152 = vrot.lane.b32.xlu0 %v911, 1
  %v1153 = vpop.permute.xlu0 %1152
  %v1154 = vsel %vm489, %v1151, %v1153
  %1157 = vrot.lane.b32.xlu0 %v1138, 1
  %v1158 = vpop.permute.xlu0 %1157
  %1159 = vrot.lane.b32.xlu0 %v1142, 1
  %v1160 = vpop.permute.xlu0 %1159
  %v1161 = vsel %vm489, %v1158, %v1160
  %v1162 = vrot.slane %v910, 7
  %v1163 = vrot.slane %v911, 7
  %v1166 = vrot.slane %v1138, 7
  %v1167 = vrot.slane %v1142, 7
  %v1168 = vrot.slane %v910, 6
  %v1169 = vrot.slane %v911, 6
  %1170 = vrot.lane.b32.xlu0 %v1168, 127
  %v1171 = vpop.permute.xlu0 %1170
  %1172 = vrot.lane.b32.xlu0 %v1169, 127
  %v1173 = vpop.permute.xlu0 %1172
  %v1174 = vsel %vm60, %v1171, %v1173
  %v1177 = vrot.slane %v1110, 3
  %v1178 = vrot.slane %v1113, 3
  %1179 = vrot.lane.b32.xlu0 %v1177, 121
  %v1180 = vpop.permute.xlu0 %1179
  %1181 = vrot.lane.b32.xlu0 %v1178, 121
  %v1182 = vpop.permute.xlu0 %1181
  %v1183 = vsel %vm973, %v1180, %v1182
  %1184 = vrot.lane.b32.xlu0 %v888, 121
  %v1185 = vpop.permute.xlu0 %1184
  %1186 = vrot.lane.b32.xlu0 %v889, 121
  %v1187 = vpop.permute.xlu0 %1186
  %v1188 = vsel %vm973, %v1185, %v1187
  %v1191 = vrot.slane %v1110, 2
  %v1192 = vrot.slane %v1113, 2
  %1193 = vrot.lane.b32.xlu0 %v1191, 120
  %v1194 = vpop.permute.xlu0 %1193
  %1195 = vrot.lane.b32.xlu0 %v1192, 120
  %v1196 = vpop.permute.xlu0 %1195
  %v1197 = vsel %vm540, %v1194, %v1196
  %v1198 = vrot.slane %v888, 3
  %v1199 = vrot.slane %v889, 3
  %1200 = vrot.lane.b32.xlu0 %v1198, 120
  %v1201 = vpop.permute.xlu0 %1200
  %1202 = vrot.lane.b32.xlu0 %v1199, 120
  %v1203 = vpop.permute.xlu0 %1202
  %v1204 = vsel %vm540, %v1201, %v1203
  %v1207 = vrot.slane %v1110, 1
  %v1208 = vrot.slane %v1113, 1
  %1209 = vrot.lane.b32.xlu0 %v1207, 119
  %v1210 = vpop.permute.xlu0 %1209
  %1211 = vrot.lane.b32.xlu0 %v1208, 119
  %v1212 = vpop.permute.xlu0 %1211
  %v1213 = vsel %vm175, %v1210, %v1212
  %v1214 = vrot.slane %v888, 2
  %v1215 = vrot.slane %v889, 2
  %1216 = vrot.lane.b32.xlu0 %v1214, 119
  %v1217 = vpop.permute.xlu0 %1216
  %1218 = vrot.lane.b32.xlu0 %v1215, 119
  %v1219 = vpop.permute.xlu0 %1218
  %v1220 = vsel %vm175, %v1217, %v1219
  %v1223 = vsel %vm187, %v1110, %v1117
  %v1224 = vsel %vm187, %v1113, %v1118
  %v1227 = vsel %vm189, %v1223, %v1127
  %v1231 = vsel %vm189, %v1224, %v1126
  %v1233 = vsel %vm196, %v1227, %v1131
  %v1234 = vsel %vm196, %v1231, %v1134
  %v1237 = vsel %vm198, %v1233, %v1146
  %v1241 = vsel %vm198, %v1234, %v1149
  %v1243 = vsel %vm205, %v1237, %v1151
  %v1244 = vsel %vm205, %v1241, %v1154
  %v1247 = vsel %vm207, %v1243, %v1158
  %v1251 = vsel %vm207, %v1244, %v1161
  %v1253 = vsel %vm214, %v1247, %v1162
  %v1254 = vsel %vm214, %v1251, %v1163
  %v1257 = vsel %vm216, %v1253, %v1166
  %v1261 = vsel %vm216, %v1254, %v1167
  %v1263 = vsel %vm223, %v1257, %v1174
  %v1264 = vsel %vm223, %v1261, %v1173
  %v1267 = vsel %vm225, %v1263, %v1183
  %v1271 = vsel %vm225, %v1264, %v1182
  %v1273 = vsel %vm232, %v1267, %v1188
  %v1274 = vsel %vm232, %v1271, %v1187
  %v1277 = vsel %vm234, %v1273, %v1197
  %v1281 = vsel %vm234, %v1274, %v1196
  %v1283 = vsel %vm241, %v1277, %v1204
  %v1284 = vsel %vm241, %v1281, %v1203
  %v1287 = vsel %vm243, %v1283, %v1213
  %v1291 = vsel %vm243, %v1284, %v1212
  %v1293 = vsel %vm250, %v1287, %v1220
  %v1294 = vsel %vm250, %v1291, %v1219
  %v1297 = vunpack.c.l.b16 %v1293
  %v1298 = vunpack.c.l.b16 %v1294
  %v1299 = vunpack.c.h.b16 %v1293
  %v1300 = vunpack.c.h.b16 %v1294
  %v1301 = vpack.c.b16 %v1298, %v1297
  %v1302 = vpack.c.b16 %v1300, %v1299
  %1303 = vrot.lane.b32.xlu0 %v1301, 108
  %v1304 = vpop.permute.xlu0 %1303
  %1305 = vrot.lane.b32.xlu0 %v1302, 108
  %v1306 = vpop.permute.xlu0 %1305
  %v1307 = vrot.slane %v1304, 4
  %v1308 = vrot.slane %v1306, 4
  %v1309 = vsel %vm1102, %v1304, %v1307
  %v1310 = vsel %vm1102, %v1306, %v1308
  %1313 = vst [vmem:[#allocation2 + $0x84] sm:$0xf] %v1309
  %1314 = vst [vmem:[#allocation2 + $0xa4] sm:$0xf] %v1310
  %v1315 = vld [vmem:[%s0] sm:$0x3]
  %v1316 = vld [vmem:[%s0 + $0x8] sm:$0x3]
  %v1317 = vpack.c.bf16 %v1316, %v1315
  %v1319 = vunpack.c.l.b16 %v1317
  %v1320 = vunpack.c.h.b16 %v1317
  %v1321 = vpack.c.b16 %v1319, %v1319
  %v1322 = vpack.c.b16 %v1320, %v1320
  %v1325 = vsel %vm187, %v1321, 0
  %v1326 = vsel %vm187, %v1322, 0
  %v1329 = vsel %vm189, %v1325, 0
  %v1332 = vsel %vm189, %v1326, 0
  %v1334 = vsel %vm196, %v1329, 0
  %v1335 = vsel %vm196, %v1332, 0
  %v1337 = vsel %vm198, %v1334, 0
  %v1340 = vsel %vm198, %v1335, 0
  %v1342 = vsel %vm205, %v1337, 0
  %v1343 = vsel %vm205, %v1340, 0
  %v1345 = vsel %vm207, %v1342, 0
  %v1348 = vsel %vm207, %v1343, 0
  %v1350 = vsel %vm214, %v1345, 0
  %v1351 = vsel %vm214, %v1348, 0
  %v1353 = vsel %vm216, %v1350, 0
  %v1356 = vsel %vm216, %v1351, 0
  %v1358 = vsel %vm223, %v1353, 0
  %v1359 = vsel %vm223, %v1356, 0
  %v1361 = vsel %vm225, %v1358, 0
  %v1364 = vsel %vm225, %v1359, 0
  %v1366 = vsel %vm232, %v1361, 0
  %v1367 = vsel %vm232, %v1364, 0
  %v1369 = vsel %vm234, %v1366, 0
  %v1372 = vsel %vm234, %v1367, 0
  %v1374 = vsel %vm241, %v1369, 0
  %v1375 = vsel %vm241, %v1372, 0
  %v1377 = vsel %vm243, %v1374, 0
  %v1380 = vsel %vm243, %v1375, 0
  %v1382 = vsel %vm250, %v1377, 0
  %v1383 = vsel %vm250, %v1380, 0
  %v1386 = vunpack.c.l.b16 %v1382
  %v1387 = vunpack.c.l.b16 %v1383
  %v1388 = vunpack.c.h.b16 %v1382
  %v1389 = vunpack.c.h.b16 %v1383
  %v1390 = vpack.c.b16 %v1387, %v1386
  %v1391 = vpack.c.b16 %v1389, %v1388
  %1392 = vrot.lane.b32.xlu0 %v1390, 98
  %v1393 = vpop.permute.xlu0 %1392
  %1394 = vrot.lane.b32.xlu0 %v1391, 98
  %v1395 = vpop.permute.xlu0 %1394
  %v1396 = vrot.slane %v1393, 4
  %v1397 = vrot.slane %v1395, 4
  %vm1398 = vcmask 801792
  %v1399 = vsel %vm1398, %v1393, %v1396
  %v1400 = vsel %vm1398, %v1395, %v1397
  %1403 = vst [vmem:[#allocation2 + $0xc0] sm:$0xf] %v1399
  %1404 = vst [vmem:[#allocation2 + $0xe0] sm:$0xf] %v1400
  %v1406 = vshrl.u32 %v1321, 16
  %v1409 = vshrl.u32 %v1322, 16
  %v1413 = vsel %vm187, %v1406, 0
  %v1414 = vsel %vm187, %v1409, 0
  %v1416 = vsel %vm189, %v1413, 0
  %v1419 = vsel %vm189, %v1414, 0
  %v1421 = vsel %vm196, %v1416, 0
  %v1422 = vsel %vm196, %v1419, 0
  %v1424 = vsel %vm198, %v1421, 0
  %v1427 = vsel %vm198, %v1422, 0
  %v1429 = vsel %vm205, %v1424, 0
  %v1430 = vsel %vm205, %v1427, 0
  %v1432 = vsel %vm207, %v1429, 0
  %v1435 = vsel %vm207, %v1430, 0
  %v1437 = vsel %vm214, %v1432, 0
  %v1438 = vsel %vm214, %v1435, 0
  %v1440 = vsel %vm216, %v1437, 0
  %v1443 = vsel %vm216, %v1438, 0
  %v1445 = vsel %vm223, %v1440, 0
  %v1446 = vsel %vm223, %v1443, 0
  %v1448 = vsel %vm225, %v1445, 0
  %v1451 = vsel %vm225, %v1446, 0
  %v1453 = vsel %vm232, %v1448, 0
  %v1454 = vsel %vm232, %v1451, 0
  %v1456 = vsel %vm234, %v1453, 0
  %v1459 = vsel %vm234, %v1454, 0
  %v1461 = vsel %vm241, %v1456, 0
  %v1462 = vsel %vm241, %v1459, 0
  %v1464 = vsel %vm243, %v1461, 0
  %v1467 = vsel %vm243, %v1462, 0
  %v1469 = vsel %vm250, %v1464, 0
  %v1470 = vsel %vm250, %v1467, 0
  %v1473 = vunpack.c.l.b16 %v1469
  %v1474 = vunpack.c.l.b16 %v1470
  %v1475 = vunpack.c.h.b16 %v1469
  %v1476 = vunpack.c.h.b16 %v1470
  %v1477 = vpack.c.b16 %v1474, %v1473
  %v1478 = vpack.c.b16 %v1476, %v1475
  %1479 = vrot.lane.b32.xlu0 %v1477, 98
  %v1480 = vpop.permute.xlu0 %1479
  %1481 = vrot.lane.b32.xlu0 %v1478, 98
  %v1482 = vpop.permute.xlu0 %1481
  %v1483 = vrot.slane %v1480, 4
  %v1484 = vrot.slane %v1482, 4
  %v1485 = vsel %vm1398, %v1480, %v1483
  %v1486 = vsel %vm1398, %v1482, %v1484
  %1489 = vst [vmem:[#allocation2 + $0xc4] sm:$0xf] %v1485
  %1490 = vst [vmem:[#allocation2 + $0xe4] sm:$0xf] %v1486
  %v1491 = vld [vmem:[%s0] sm:$0xc]
  %v1492 = vpack.c.bf16 %v1491, %v1491
  %v1493 = vld [vmem:[%s0] sm:$0x3]
  %v1494 = vld [vmem:[%s0 + $0x8] sm:$0x3]
  %v1495 = vpack.c.bf16 %v1494, %v1493
  %v1496 = vld [vmem:[%s0] sm:$0xc]
  %v1497 = vld [vmem:[%s0 + $0x8] sm:$0xc]
  %v1498 = vpack.c.bf16 %v1497, %v1496
  %v1499 = vld [vmem:[%s0] sm:$0xc0]
  %v1500 = vpack.c.bf16 %v1499, %v1499
  %v1501 = vld [vmem:[%s0] sm:$0x30]
  %v1502 = vld [vmem:[%s0 + $0x8] sm:$0x30]
  %v1503 = vpack.c.bf16 %v1502, %v1501
  %v1504 = vld [vmem:[%s0] sm:$0xc0]
  %v1505 = vld [vmem:[%s0 + $0x8] sm:$0xc0]
  %v1506 = vpack.c.bf16 %v1505, %v1504
  %v1508 = vunpack.c.l.b16 %v1492
  %v1509 = vpack.c.b16 %v1508, %v1508
  %v1510 = vrot.slane %v1509, 1
  %v1513 = vunpack.c.l.b16 %v1495
  %v1514 = vunpack.c.h.b16 %v1495
  %v1515 = vpack.c.b16 %v1513, %v1513
  %v1516 = vpack.c.b16 %v1514, %v1514
  %v1518 = vshll.u32 %v1515, 16
  %v1521 = vshll.u32 %v1516, 16
  %1523 = vrot.lane.b32.xlu0 %v1518, 127
  %v1524 = vpop.permute.xlu0 %1523
  %1525 = vrot.lane.b32.xlu0 %v1521, 127
  %v1526 = vpop.permute.xlu0 %1525
  %v1527 = vsel %vm60, %v1524, %v1526
  %v1530 = vunpack.c.l.b16 %v1498
  %v1531 = vunpack.c.h.b16 %v1498
  %v1532 = vpack.c.b16 %v1530, %v1530
  %v1533 = vpack.c.b16 %v1531, %v1531
  %1534 = vrot.lane.b32.xlu0 %v1532, 127
  %v1535 = vpop.permute.xlu0 %1534
  %1536 = vrot.lane.b32.xlu0 %v1533, 127
  %v1537 = vpop.permute.xlu0 %1536
  %v1538 = vsel %vm60, %v1535, %v1537
  %v1539 = vrot.slane %v1518, 7
  %v1540 = vrot.slane %v1521, 7
  %1541 = vrot.lane.b32.xlu0 %v1539, 126
  %v1542 = vpop.permute.xlu0 %1541
  %1543 = vrot.lane.b32.xlu0 %v1540, 126
  %v1544 = vpop.permute.xlu0 %1543
  %v1545 = vsel %vm85, %v1542, %v1544
  %v1547 = vrot.slane %v1532, 7
  %v1548 = vrot.slane %v1533, 7
  %1549 = vrot.lane.b32.xlu0 %v1547, 126
  %v1550 = vpop.permute.xlu0 %1549
  %1551 = vrot.lane.b32.xlu0 %v1548, 126
  %v1552 = vpop.permute.xlu0 %1551
  %v1553 = vsel %vm85, %v1550, %v1552
  %v1554 = vrot.slane %v1518, 6
  %v1555 = vrot.slane %v1521, 6
  %1556 = vrot.lane.b32.xlu0 %v1554, 125
  %v1557 = vpop.permute.xlu0 %1556
  %1558 = vrot.lane.b32.xlu0 %v1555, 125
  %v1559 = vpop.permute.xlu0 %1558
  %v1560 = vsel %vm101, %v1557, %v1559
  %v1562 = vrot.slane %v1532, 6
  %v1563 = vrot.slane %v1533, 6
  %1564 = vrot.lane.b32.xlu0 %v1562, 125
  %v1565 = vpop.permute.xlu0 %1564
  %1566 = vrot.lane.b32.xlu0 %v1563, 125
  %v1567 = vpop.permute.xlu0 %1566
  %v1568 = vsel %vm101, %v1565, %v1567
  %v1570 = vunpack.c.l.b16 %v1500
  %v1571 = vpack.c.b16 %v1570, %v1570
  %v1573 = vshll.u32 %v1571, 16
  %v1577 = vunpack.c.l.b16 %v1503
  %v1578 = vunpack.c.h.b16 %v1503
  %v1579 = vpack.c.b16 %v1577, %v1577
  %v1580 = vpack.c.b16 %v1578, %v1578
  %v1581 = vrot.slane %v1579, 6
  %v1582 = vrot.slane %v1580, 6
  %1583 = vrot.lane.b32.xlu0 %v1581, 127
  %v1584 = vpop.permute.xlu0 %1583
  %1585 = vrot.lane.b32.xlu0 %v1582, 127
  %v1586 = vpop.permute.xlu0 %1585
  %v1587 = vsel %vm60, %v1584, %v1586
  %v1589 = vunpack.c.l.b16 %v1506
  %v1590 = vunpack.c.h.b16 %v1506
  %v1591 = vpack.c.b16 %v1589, %v1589
  %v1592 = vpack.c.b16 %v1590, %v1590
  %v1594 = vshll.u32 %v1591, 16
  %v1596 = vrot.slane %v1594, 7
  %v1598 = vshll.u32 %v1592, 16
  %v1600 = vrot.slane %v1598, 7
  %1601 = vrot.lane.b32.xlu0 %v1596, 127
  %v1602 = vpop.permute.xlu0 %1601
  %1603 = vrot.lane.b32.xlu0 %v1600, 127
  %v1604 = vpop.permute.xlu0 %1603
  %v1605 = vsel %vm60, %v1602, %v1604
  %v1607 = vrot.slane %v1579, 5
  %v1608 = vrot.slane %v1580, 5
  %1609 = vrot.lane.b32.xlu0 %v1607, 126
  %v1610 = vpop.permute.xlu0 %1609
  %1611 = vrot.lane.b32.xlu0 %v1608, 126
  %v1612 = vpop.permute.xlu0 %1611
  %v1613 = vsel %vm85, %v1610, %v1612
  %v1614 = vrot.slane %v1594, 6
  %v1615 = vrot.slane %v1598, 6
  %1616 = vrot.lane.b32.xlu0 %v1614, 126
  %v1617 = vpop.permute.xlu0 %1616
  %1618 = vrot.lane.b32.xlu0 %v1615, 126
  %v1619 = vpop.permute.xlu0 %1618
  %v1620 = vsel %vm85, %v1617, %v1619
  %1622 = vrot.lane.b32.xlu0 %v1579, 125
  %v1623 = vpop.permute.xlu0 %1622
  %1624 = vrot.lane.b32.xlu0 %v1580, 125
  %v1625 = vpop.permute.xlu0 %1624
  %v1626 = vsel %vm101, %v1623, %v1625
  %v1627 = vrot.slane %v1594, 5
  %v1628 = vrot.slane %v1598, 5
  %1629 = vrot.lane.b32.xlu0 %v1627, 125
  %v1630 = vpop.permute.xlu0 %1629
  %1631 = vrot.lane.b32.xlu0 %v1628, 125
  %v1632 = vpop.permute.xlu0 %1631
  %v1633 = vsel %vm101, %v1630, %v1632
  %v1635 = vrot.slane %v1532, 2
  %v1636 = vrot.slane %v1533, 2
  %1637 = vrot.lane.b32.xlu0 %v1635, 119
  %v1638 = vpop.permute.xlu0 %1637
  %1639 = vrot.lane.b32.xlu0 %v1636, 119
  %v1640 = vpop.permute.xlu0 %1639
  %v1641 = vsel %vm175, %v1638, %v1640
  %v1642 = vrot.slane %v1518, 1
  %v1643 = vrot.slane %v1521, 1
  %1644 = vrot.lane.b32.xlu0 %v1642, 118
  %v1645 = vpop.permute.xlu0 %1644
  %1646 = vrot.lane.b32.xlu0 %v1643, 118
  %v1647 = vpop.permute.xlu0 %1646
  %v1648 = vsel %vm653, %v1645, %v1647
  %v1650 = vsel %vm187, %v1510, %v1527
  %v1653 = vsel %vm189, %v1650, %v1538
  %v1655 = vsel %vm196, %v1653, %v1545
  %v1658 = vsel %vm198, %v1655, %v1553
  %v1660 = vsel %vm205, %v1658, %v1560
  %v1663 = vsel %vm207, %v1660, %v1568
  %v1665 = vsel %vm214, %v1663, %v1573
  %v1668 = vsel %vm216, %v1665, %v1587
  %v1670 = vsel %vm223, %v1668, %v1605
  %v1673 = vsel %vm225, %v1670, %v1613
  %v1675 = vsel %vm232, %v1673, %v1620
  %v1678 = vsel %vm234, %v1675, %v1626
  %v1680 = vsel %vm241, %v1678, %v1633
  %v1683 = vsel %vm243, %v1680, %v1641
  %v1685 = vsel %vm250, %v1683, %v1648
  %v1687 = vunpack.c.l.b16 %v1685
  %v1688 = vunpack.c.h.b16 %v1685
  %v1689 = vpack.c.b16 %v1687, %v1687
  %v1690 = vpack.c.b16 %v1688, %v1688
  %1693 = vst [vmem:[#allocation2 + $0x8] sm:$0xf] %v1689
  %1694 = vst [vmem:[#allocation2 + $0x28] sm:$0xf] %v1690
  %v1696 = vshrl.u32 %v1509, 16
  %v1698 = vrot.slane %v1696, 1
  %1700 = vrot.lane.b32.xlu0 %v1515, 127
  %v1701 = vpop.permute.xlu0 %1700
  %1702 = vrot.lane.b32.xlu0 %v1516, 127
  %v1703 = vpop.permute.xlu0 %1702
  %v1704 = vsel %vm60, %v1701, %v1703
  %v1707 = vshrl.u32 %v1532, 16
  %v1710 = vshrl.u32 %v1533, 16
  %1712 = vrot.lane.b32.xlu0 %v1707, 127
  %v1713 = vpop.permute.xlu0 %1712
  %1714 = vrot.lane.b32.xlu0 %v1710, 127
  %v1715 = vpop.permute.xlu0 %1714
  %v1716 = vsel %vm60, %v1713, %v1715
  %v1717 = vrot.slane %v1515, 7
  %v1718 = vrot.slane %v1516, 7
  %1719 = vrot.lane.b32.xlu0 %v1717, 126
  %v1720 = vpop.permute.xlu0 %1719
  %1721 = vrot.lane.b32.xlu0 %v1718, 126
  %v1722 = vpop.permute.xlu0 %1721
  %v1723 = vsel %vm85, %v1720, %v1722
  %v1725 = vrot.slane %v1707, 7
  %v1726 = vrot.slane %v1710, 7
  %1727 = vrot.lane.b32.xlu0 %v1725, 126
  %v1728 = vpop.permute.xlu0 %1727
  %1729 = vrot.lane.b32.xlu0 %v1726, 126
  %v1730 = vpop.permute.xlu0 %1729
  %v1731 = vsel %vm85, %v1728, %v1730
  %v1732 = vrot.slane %v1515, 6
  %v1733 = vrot.slane %v1516, 6
  %1734 = vrot.lane.b32.xlu0 %v1732, 125
  %v1735 = vpop.permute.xlu0 %1734
  %1736 = vrot.lane.b32.xlu0 %v1733, 125
  %v1737 = vpop.permute.xlu0 %1736
  %v1738 = vsel %vm101, %v1735, %v1737
  %v1740 = vrot.slane %v1707, 6
  %v1741 = vrot.slane %v1710, 6
  %1742 = vrot.lane.b32.xlu0 %v1740, 125
  %v1743 = vpop.permute.xlu0 %1742
  %1744 = vrot.lane.b32.xlu0 %v1741, 125
  %v1745 = vpop.permute.xlu0 %1744
  %v1746 = vsel %vm101, %v1743, %v1745
  %v1748 = vshrl.u32 %v1579, 16
  %v1750 = vrot.slane %v1748, 6
  %v1752 = vshrl.u32 %v1580, 16
  %v1754 = vrot.slane %v1752, 6
  %1755 = vrot.lane.b32.xlu0 %v1750, 127
  %v1756 = vpop.permute.xlu0 %1755
  %1757 = vrot.lane.b32.xlu0 %v1754, 127
  %v1758 = vpop.permute.xlu0 %1757
  %v1759 = vsel %vm60, %v1756, %v1758
  %v1760 = vrot.slane %v1591, 7
  %v1761 = vrot.slane %v1592, 7
  %1762 = vrot.lane.b32.xlu0 %v1760, 127
  %v1763 = vpop.permute.xlu0 %1762
  %1764 = vrot.lane.b32.xlu0 %v1761, 127
  %v1765 = vpop.permute.xlu0 %1764
  %v1766 = vsel %vm60, %v1763, %v1765
  %v1768 = vrot.slane %v1748, 5
  %v1769 = vrot.slane %v1752, 5
  %1770 = vrot.lane.b32.xlu0 %v1768, 126
  %v1771 = vpop.permute.xlu0 %1770
  %1772 = vrot.lane.b32.xlu0 %v1769, 126
  %v1773 = vpop.permute.xlu0 %1772
  %v1774 = vsel %vm85, %v1771, %v1773
  %v1775 = vrot.slane %v1591, 6
  %v1776 = vrot.slane %v1592, 6
  %1777 = vrot.lane.b32.xlu0 %v1775, 126
  %v1778 = vpop.permute.xlu0 %1777
  %1779 = vrot.lane.b32.xlu0 %v1776, 126
  %v1780 = vpop.permute.xlu0 %1779
  %v1781 = vsel %vm85, %v1778, %v1780
  %v1783 = vrot.slane %v1748, 4
  %v1784 = vrot.slane %v1752, 4
  %1785 = vrot.lane.b32.xlu0 %v1783, 125
  %v1786 = vpop.permute.xlu0 %1785
  %1787 = vrot.lane.b32.xlu0 %v1784, 125
  %v1788 = vpop.permute.xlu0 %1787
  %v1789 = vsel %vm101, %v1786, %v1788
  %v1790 = vrot.slane %v1591, 5
  %v1791 = vrot.slane %v1592, 5
  %1792 = vrot.lane.b32.xlu0 %v1790, 125
  %v1793 = vpop.permute.xlu0 %1792
  %1794 = vrot.lane.b32.xlu0 %v1791, 125
  %v1795 = vpop.permute.xlu0 %1794
  %v1796 = vsel %vm101, %v1793, %v1795
  %v1798 = vrot.slane %v1707, 2
  %v1799 = vrot.slane %v1710, 2
  %1800 = vrot.lane.b32.xlu0 %v1798, 119
  %v1801 = vpop.permute.xlu0 %1800
  %1802 = vrot.lane.b32.xlu0 %v1799, 119
  %v1803 = vpop.permute.xlu0 %1802
  %v1804 = vsel %vm175, %v1801, %v1803
  %v1805 = vrot.slane %v1515, 1
  %v1806 = vrot.slane %v1516, 1
  %1807 = vrot.lane.b32.xlu0 %v1805, 118
  %v1808 = vpop.permute.xlu0 %1807
  %1809 = vrot.lane.b32.xlu0 %v1806, 118
  %v1810 = vpop.permute.xlu0 %1809
  %v1811 = vsel %vm653, %v1808, %v1810
  %v1813 = vsel %vm187, %v1698, %v1704
  %v1816 = vsel %vm189, %v1813, %v1716
  %v1818 = vsel %vm196, %v1816, %v1723
  %v1821 = vsel %vm198, %v1818, %v1731
  %v1823 = vsel %vm205, %v1821, %v1738
  %v1826 = vsel %vm207, %v1823, %v1746
  %v1828 = vsel %vm214, %v1826, %v1500
  %v1831 = vsel %vm216, %v1828, %v1759
  %v1833 = vsel %vm223, %v1831, %v1766
  %v1836 = vsel %vm225, %v1833, %v1774
  %v1838 = vsel %vm232, %v1836, %v1781
  %v1841 = vsel %vm234, %v1838, %v1789
  %v1843 = vsel %vm241, %v1841, %v1796
  %v1846 = vsel %vm243, %v1843, %v1804
  %v1848 = vsel %vm250, %v1846, %v1811
  %v1850 = vunpack.c.l.b16 %v1848
  %v1851 = vunpack.c.h.b16 %v1848
  %v1852 = vpack.c.b16 %v1850, %v1850
  %v1853 = vpack.c.b16 %v1851, %v1851
  %1856 = vst [vmem:[#allocation2 + $0xc] sm:$0xf] %v1852
  %1857 = vst [vmem:[#allocation2 + $0x2c] sm:$0xf] %v1853
  %v1858 = vld [vmem:[%s0] sm:$0xc]
  %v1859 = vld [vmem:[%s0 + $0x8] sm:$0xc]
  %v1860 = vpack.c.bf16 %v1859, %v1858
  %v1861 = vld [vmem:[%s0] sm:$0x3]
  %v1862 = vld [vmem:[%s0 + $0x8] sm:$0x3]
  %v1863 = vpack.c.bf16 %v1862, %v1861
  %v1864 = vld [vmem:[%s0] sm:$0xc0]
  %v1865 = vld [vmem:[%s0 + $0x8] sm:$0xc0]
  %v1866 = vpack.c.bf16 %v1865, %v1864
  %v1867 = vld [vmem:[%s0] sm:$0x30]
  %v1868 = vld [vmem:[%s0 + $0x8] sm:$0x30]
  %v1869 = vpack.c.bf16 %v1868, %v1867
  %v1871 = vunpack.c.l.b16 %v1860
  %v1872 = vunpack.c.h.b16 %v1860
  %v1873 = vpack.c.b16 %v1871, %v1871
  %v1874 = vpack.c.b16 %v1872, %v1872
  %v1875 = vrot.slane %v1873, 1
  %v1876 = vrot.slane %v1874, 1
  %v1880 = vunpack.c.l.b16 %v1863
  %v1881 = vunpack.c.h.b16 %v1863
  %v1882 = vpack.c.b16 %v1880, %v1880
  %v1883 = vpack.c.b16 %v1881, %v1881
  %v1885 = vshll.u32 %v1882, 16
  %v1888 = vshll.u32 %v1883, 16
  %1890 = vrot.lane.b32.xlu0 %v1885, 127
  %v1891 = vpop.permute.xlu0 %1890
  %1892 = vrot.lane.b32.xlu0 %v1888, 127
  %v1893 = vpop.permute.xlu0 %1892
  %v1894 = vsel %vm60, %v1891, %v1893
  %1897 = vrot.lane.b32.xlu0 %v1873, 127
  %v1898 = vpop.permute.xlu0 %1897
  %1899 = vrot.lane.b32.xlu0 %v1874, 127
  %v1900 = vpop.permute.xlu0 %1899
  %v1901 = vsel %vm60, %v1898, %v1900
  %v1902 = vrot.slane %v1885, 7
  %v1903 = vrot.slane %v1888, 7
  %1904 = vrot.lane.b32.xlu0 %v1902, 126
  %v1905 = vpop.permute.xlu0 %1904
  %1906 = vrot.lane.b32.xlu0 %v1903, 126
  %v1907 = vpop.permute.xlu0 %1906
  %v1908 = vsel %vm85, %v1905, %v1907
  %v1911 = vrot.slane %v1873, 7
  %v1912 = vrot.slane %v1874, 7
  %1913 = vrot.lane.b32.xlu0 %v1911, 126
  %v1914 = vpop.permute.xlu0 %1913
  %1915 = vrot.lane.b32.xlu0 %v1912, 126
  %v1916 = vpop.permute.xlu0 %1915
  %v1917 = vsel %vm85, %v1914, %v1916
  %v1919 = vunpack.c.l.b16 %v1866
  %v1920 = vunpack.c.h.b16 %v1866
  %v1921 = vpack.c.b16 %v1919, %v1919
  %v1922 = vpack.c.b16 %v1920, %v1920
  %v1924 = vshll.u32 %v1921, 16
  %v1926 = vrot.slane %v1924, 1
  %v1928 = vshll.u32 %v1922, 16
  %v1930 = vrot.slane %v1928, 1
  %1931 = vrot.lane.b32.xlu0 %v1926, 1
  %v1932 = vpop.permute.xlu0 %1931
  %1933 = vrot.lane.b32.xlu0 %v1930, 1
  %v1934 = vpop.permute.xlu0 %1933
  %v1935 = vsel %vm489, %v1932, %v1934
  %v1939 = vunpack.c.l.b16 %v1869
  %v1940 = vunpack.c.h.b16 %v1869
  %v1941 = vpack.c.b16 %v1939, %v1939
  %v1942 = vpack.c.b16 %v1940, %v1940
  %v1943 = vrot.slane %v1941, 7
  %v1944 = vrot.slane %v1942, 7
  %v1947 = vrot.slane %v1941, 6
  %v1948 = vrot.slane %v1942, 6
  %1949 = vrot.lane.b32.xlu0 %v1947, 127
  %v1950 = vpop.permute.xlu0 %1949
  %1951 = vrot.lane.b32.xlu0 %v1948, 127
  %v1952 = vpop.permute.xlu0 %1951
  %v1953 = vsel %vm60, %v1950, %v1952
  %v1954 = vrot.slane %v1924, 7
  %v1955 = vrot.slane %v1928, 7
  %1956 = vrot.lane.b32.xlu0 %v1954, 127
  %v1957 = vpop.permute.xlu0 %1956
  %1958 = vrot.lane.b32.xlu0 %v1955, 127
  %v1959 = vpop.permute.xlu0 %1958
  %v1960 = vsel %vm60, %v1957, %v1959
  %v1963 = vrot.slane %v1941, 5
  %v1964 = vrot.slane %v1942, 5
  %1965 = vrot.lane.b32.xlu0 %v1963, 126
  %v1966 = vpop.permute.xlu0 %1965
  %1967 = vrot.lane.b32.xlu0 %v1964, 126
  %v1968 = vpop.permute.xlu0 %1967
  %v1969 = vsel %vm85, %v1966, %v1968
  %v1970 = vrot.slane %v1924, 6
  %v1971 = vrot.slane %v1928, 6
  %1972 = vrot.lane.b32.xlu0 %v1970, 126
  %v1973 = vpop.permute.xlu0 %1972
  %1974 = vrot.lane.b32.xlu0 %v1971, 126
  %v1975 = vpop.permute.xlu0 %1974
  %v1976 = vsel %vm85, %v1973, %v1975
  %v1979 = vrot.slane %v1873, 3
  %v1980 = vrot.slane %v1874, 3
  %1981 = vrot.lane.b32.xlu0 %v1979, 120
  %v1982 = vpop.permute.xlu0 %1981
  %1983 = vrot.lane.b32.xlu0 %v1980, 120
  %v1984 = vpop.permute.xlu0 %1983
  %v1985 = vsel %vm540, %v1982, %v1984
  %v1986 = vrot.slane %v1885, 2
  %v1987 = vrot.slane %v1888, 2
  %1988 = vrot.lane.b32.xlu0 %v1986, 119
  %v1989 = vpop.permute.xlu0 %1988
  %1990 = vrot.lane.b32.xlu0 %v1987, 119
  %v1991 = vpop.permute.xlu0 %1990
  %v1992 = vsel %vm175, %v1989, %v1991
  %v1995 = vrot.slane %v1873, 2
  %v1996 = vrot.slane %v1874, 2
  %1997 = vrot.lane.b32.xlu0 %v1995, 119
  %v1998 = vpop.permute.xlu0 %1997
  %1999 = vrot.lane.b32.xlu0 %v1996, 119
  %v2000 = vpop.permute.xlu0 %1999
  %v2001 = vsel %vm175, %v1998, %v2000
  %v2002 = vrot.slane %v1885, 1
  %v2003 = vrot.slane %v1888, 1
  %2004 = vrot.lane.b32.xlu0 %v2002, 118
  %v2005 = vpop.permute.xlu0 %2004
  %2006 = vrot.lane.b32.xlu0 %v2003, 118
  %v2007 = vpop.permute.xlu0 %2006
  %v2008 = vsel %vm653, %v2005, %v2007
  %v2011 = vsel %vm187, %v1875, %v1894
  %v2012 = vsel %vm187, %v1876, %v1893
  %v2015 = vsel %vm189, %v2011, %v1901
  %v2019 = vsel %vm189, %v2012, %v1900
  %v2021 = vsel %vm196, %v2015, %v1908
  %v2022 = vsel %vm196, %v2019, %v1907
  %v2025 = vsel %vm198, %v2021, %v1917
  %v2029 = vsel %vm198, %v2022, %v1916
  %v2031 = vsel %vm205, %v2025, %v1932
  %v2032 = vsel %vm205, %v2029, %v1935
  %v2035 = vsel %vm207, %v2031, %v1943
  %v2039 = vsel %vm207, %v2032, %v1944
  %v2041 = vsel %vm214, %v2035, %v1924
  %v2042 = vsel %vm214, %v2039, %v1928
  %v2045 = vsel %vm216, %v2041, %v1953
  %v2049 = vsel %vm216, %v2042, %v1952
  %v2051 = vsel %vm223, %v2045, %v1960
  %v2052 = vsel %vm223, %v2049, %v1959
  %v2055 = vsel %vm225, %v2051, %v1969
  %v2059 = vsel %vm225, %v2052, %v1968
  %v2061 = vsel %vm232, %v2055, %v1976
  %v2062 = vsel %vm232, %v2059, %v1975
  %v2065 = vsel %vm234, %v2061, %v1985
  %v2069 = vsel %vm234, %v2062, %v1984
  %v2071 = vsel %vm241, %v2065, %v1992
  %v2072 = vsel %vm241, %v2069, %v1991
  %v2075 = vsel %vm243, %v2071, %v2001
  %v2079 = vsel %vm243, %v2072, %v2000
  %v2081 = vsel %vm250, %v2075, %v2008
  %v2082 = vsel %vm250, %v2079, %v2007
  %v2085 = vunpack.c.l.b16 %v2081
  %v2086 = vunpack.c.l.b16 %v2082
  %v2087 = vunpack.c.h.b16 %v2081
  %v2088 = vunpack.c.h.b16 %v2082
  %v2089 = vpack.c.b16 %v2086, %v2085
  %v2090 = vpack.c.b16 %v2088, %v2087
  %2091 = vrot.lane.b32.xlu0 %v2089, 118
  %v2092 = vpop.permute.xlu0 %2091
  %2093 = vrot.lane.b32.xlu0 %v2090, 118
  %v2094 = vpop.permute.xlu0 %2093
  %v2095 = vrot.slane %v2092, 4
  %v2096 = vrot.slane %v2094, 4
  %v2097 = vsel %vm653, %v2092, %v2095
  %v2098 = vsel %vm653, %v2094, %v2096
  %2101 = vst [vmem:[#allocation2 + $0x48] sm:$0xf] %v2097
  %2102 = vst [vmem:[#allocation2 + $0x68] sm:$0xf] %v2098
  %v2104 = vshrl.u32 %v1873, 16
  %v2106 = vrot.slane %v2104, 1
  %v2108 = vshrl.u32 %v1874, 16
  %v2110 = vrot.slane %v2108, 1
  %2113 = vrot.lane.b32.xlu0 %v1882, 127
  %v2114 = vpop.permute.xlu0 %2113
  %2115 = vrot.lane.b32.xlu0 %v1883, 127
  %v2116 = vpop.permute.xlu0 %2115
  %v2117 = vsel %vm60, %v2114, %v2116
  %2120 = vrot.lane.b32.xlu0 %v2104, 127
  %v2121 = vpop.permute.xlu0 %2120
  %2122 = vrot.lane.b32.xlu0 %v2108, 127
  %v2123 = vpop.permute.xlu0 %2122
  %v2124 = vsel %vm60, %v2121, %v2123
  %v2125 = vrot.slane %v1882, 7
  %v2126 = vrot.slane %v1883, 7
  %2127 = vrot.lane.b32.xlu0 %v2125, 126
  %v2128 = vpop.permute.xlu0 %2127
  %2129 = vrot.lane.b32.xlu0 %v2126, 126
  %v2130 = vpop.permute.xlu0 %2129
  %v2131 = vsel %vm85, %v2128, %v2130
  %v2134 = vrot.slane %v2104, 7
  %v2135 = vrot.slane %v2108, 7
  %2136 = vrot.lane.b32.xlu0 %v2134, 126
  %v2137 = vpop.permute.xlu0 %2136
  %2138 = vrot.lane.b32.xlu0 %v2135, 126
  %v2139 = vpop.permute.xlu0 %2138
  %v2140 = vsel %vm85, %v2137, %v2139
  %v2141 = vrot.slane %v1921, 1
  %v2142 = vrot.slane %v1922, 1
  %2143 = vrot.lane.b32.xlu0 %v2141, 1
  %v2144 = vpop.permute.xlu0 %2143
  %2145 = vrot.lane.b32.xlu0 %v2142, 1
  %v2146 = vpop.permute.xlu0 %2145
  %v2147 = vsel %vm489, %v2144, %v2146
  %v2151 = vshrl.u32 %v1941, 16
  %v2153 = vrot.slane %v2151, 7
  %v2155 = vshrl.u32 %v1942, 16
  %v2157 = vrot.slane %v2155, 7
  %v2160 = vrot.slane %v2151, 6
  %v2161 = vrot.slane %v2155, 6
  %2162 = vrot.lane.b32.xlu0 %v2160, 127
  %v2163 = vpop.permute.xlu0 %2162
  %2164 = vrot.lane.b32.xlu0 %v2161, 127
  %v2165 = vpop.permute.xlu0 %2164
  %v2166 = vsel %vm60, %v2163, %v2165
  %v2167 = vrot.slane %v1921, 7
  %v2168 = vrot.slane %v1922, 7
  %2169 = vrot.lane.b32.xlu0 %v2167, 127
  %v2170 = vpop.permute.xlu0 %2169
  %2171 = vrot.lane.b32.xlu0 %v2168, 127
  %v2172 = vpop.permute.xlu0 %2171
  %v2173 = vsel %vm60, %v2170, %v2172
  %v2176 = vrot.slane %v2151, 5
  %v2177 = vrot.slane %v2155, 5
  %2178 = vrot.lane.b32.xlu0 %v2176, 126
  %v2179 = vpop.permute.xlu0 %2178
  %2180 = vrot.lane.b32.xlu0 %v2177, 126
  %v2181 = vpop.permute.xlu0 %2180
  %v2182 = vsel %vm85, %v2179, %v2181
  %v2183 = vrot.slane %v1921, 6
  %v2184 = vrot.slane %v1922, 6
  %2185 = vrot.lane.b32.xlu0 %v2183, 126
  %v2186 = vpop.permute.xlu0 %2185
  %2187 = vrot.lane.b32.xlu0 %v2184, 126
  %v2188 = vpop.permute.xlu0 %2187
  %v2189 = vsel %vm85, %v2186, %v2188
  %v2192 = vrot.slane %v2104, 3
  %v2193 = vrot.slane %v2108, 3
  %2194 = vrot.lane.b32.xlu0 %v2192, 120
  %v2195 = vpop.permute.xlu0 %2194
  %2196 = vrot.lane.b32.xlu0 %v2193, 120
  %v2197 = vpop.permute.xlu0 %2196
  %v2198 = vsel %vm540, %v2195, %v2197
  %v2199 = vrot.slane %v1882, 2
  %v2200 = vrot.slane %v1883, 2
  %2201 = vrot.lane.b32.xlu0 %v2199, 119
  %v2202 = vpop.permute.xlu0 %2201
  %2203 = vrot.lane.b32.xlu0 %v2200, 119
  %v2204 = vpop.permute.xlu0 %2203
  %v2205 = vsel %vm175, %v2202, %v2204
  %v2208 = vrot.slane %v2104, 2
  %v2209 = vrot.slane %v2108, 2
  %2210 = vrot.lane.b32.xlu0 %v2208, 119
  %v2211 = vpop.permute.xlu0 %2210
  %2212 = vrot.lane.b32.xlu0 %v2209, 119
  %v2213 = vpop.permute.xlu0 %2212
  %v2214 = vsel %vm175, %v2211, %v2213
  %v2215 = vrot.slane %v1882, 1
  %v2216 = vrot.slane %v1883, 1
  %2217 = vrot.lane.b32.xlu0 %v2215, 118
  %v2218 = vpop.permute.xlu0 %2217
  %2219 = vrot.lane.b32.xlu0 %v2216, 118
  %v2220 = vpop.permute.xlu0 %2219
  %v2221 = vsel %vm653, %v2218, %v2220
  %v2224 = vsel %vm187, %v2106, %v2117
  %v2225 = vsel %vm187, %v2110, %v2116
  %v2228 = vsel %vm189, %v2224, %v2124
  %v2232 = vsel %vm189, %v2225, %v2123
  %v2234 = vsel %vm196, %v2228, %v2131
  %v2235 = vsel %vm196, %v2232, %v2130
  %v2238 = vsel %vm198, %v2234, %v2140
  %v2242 = vsel %vm198, %v2235, %v2139
  %v2244 = vsel %vm205, %v2238, %v2144
  %v2245 = vsel %vm205, %v2242, %v2147
  %v2248 = vsel %vm207, %v2244, %v2153
  %v2252 = vsel %vm207, %v2245, %v2157
  %v2254 = vsel %vm214, %v2248, %v1921
  %v2255 = vsel %vm214, %v2252, %v1922
  %v2258 = vsel %vm216, %v2254, %v2166
  %v2262 = vsel %vm216, %v2255, %v2165
  %v2264 = vsel %vm223, %v2258, %v2173
  %v2265 = vsel %vm223, %v2262, %v2172
  %v2268 = vsel %vm225, %v2264, %v2182
  %v2272 = vsel %vm225, %v2265, %v2181
  %v2274 = vsel %vm232, %v2268, %v2189
  %v2275 = vsel %vm232, %v2272, %v2188
  %v2278 = vsel %vm234, %v2274, %v2198
  %v2282 = vsel %vm234, %v2275, %v2197
  %v2284 = vsel %vm241, %v2278, %v2205
  %v2285 = vsel %vm241, %v2282, %v2204
  %v2288 = vsel %vm243, %v2284, %v2214
  %v2292 = vsel %vm243, %v2285, %v2213
  %v2294 = vsel %vm250, %v2288, %v2221
  %v2295 = vsel %vm250, %v2292, %v2220
  %v2298 = vunpack.c.l.b16 %v2294
  %v2299 = vunpack.c.l.b16 %v2295
  %v2300 = vunpack.c.h.b16 %v2294
  %v2301 = vunpack.c.h.b16 %v2295
  %v2302 = vpack.c.b16 %v2299, %v2298
  %v2303 = vpack.c.b16 %v2301, %v2300
  %2304 = vrot.lane.b32.xlu0 %v2302, 118
  %v2305 = vpop.permute.xlu0 %2304
  %2306 = vrot.lane.b32.xlu0 %v2303, 118
  %v2307 = vpop.permute.xlu0 %2306
  %v2308 = vrot.slane %v2305, 4
  %v2309 = vrot.slane %v2307, 4
  %v2310 = vsel %vm653, %v2305, %v2308
  %v2311 = vsel %vm653, %v2307, %v2309
  %2314 = vst [vmem:[#allocation2 + $0x4c] sm:$0xf] %v2310
  %2315 = vst [vmem:[#allocation2 + $0x6c] sm:$0xf] %v2311
  %v2316 = vld [vmem:[%s0] sm:$0xc]
  %v2317 = vld [vmem:[%s0 + $0x8] sm:$0xc]
  %v2318 = vpack.c.bf16 %v2317, %v2316
  %v2319 = vld [vmem:[%s0] sm:$0x3]
  %v2320 = vld [vmem:[%s0 + $0x8] sm:$0x3]
  %v2321 = vpack.c.bf16 %v2320, %v2319
  %v2322 = vld [vmem:[%s0] sm:$0xc0]
  %v2323 = vld [vmem:[%s0 + $0x8] sm:$0xc0]
  %v2324 = vpack.c.bf16 %v2323, %v2322
  %v2325 = vld [vmem:[%s0] sm:$0x30]
  %v2326 = vld [vmem:[%s0 + $0x8] sm:$0x30]
  %v2327 = vpack.c.bf16 %v2326, %v2325
  %v2329 = vunpack.c.l.b16 %v2318
  %v2330 = vunpack.c.h.b16 %v2318
  %v2331 = vpack.c.b16 %v2329, %v2329
  %v2332 = vpack.c.b16 %v2330, %v2330
  %v2333 = vrot.slane %v2331, 1
  %v2334 = vrot.slane %v2332, 1
  %v2338 = vunpack.c.l.b16 %v2321
  %v2339 = vunpack.c.h.b16 %v2321
  %v2340 = vpack.c.b16 %v2338, %v2338
  %v2341 = vpack.c.b16 %v2339, %v2339
  %v2343 = vshll.u32 %v2340, 16
  %v2346 = vshll.u32 %v2341, 16
  %2348 = vrot.lane.b32.xlu0 %v2343, 127
  %v2349 = vpop.permute.xlu0 %2348
  %2350 = vrot.lane.b32.xlu0 %v2346, 127
  %v2351 = vpop.permute.xlu0 %2350
  %v2352 = vsel %vm60, %v2349, %v2351
  %2355 = vrot.lane.b32.xlu0 %v2331, 127
  %v2356 = vpop.permute.xlu0 %2355
  %2357 = vrot.lane.b32.xlu0 %v2332, 127
  %v2358 = vpop.permute.xlu0 %2357
  %v2359 = vsel %vm60, %v2356, %v2358
  %v2361 = vunpack.c.l.b16 %v2324
  %v2362 = vunpack.c.h.b16 %v2324
  %v2363 = vpack.c.b16 %v2361, %v2361
  %v2364 = vpack.c.b16 %v2362, %v2362
  %v2366 = vshll.u32 %v2363, 16
  %v2368 = vrot.slane %v2366, 2
  %v2370 = vshll.u32 %v2364, 16
  %v2372 = vrot.slane %v2370, 2
  %2373 = vrot.lane.b32.xlu0 %v2368, 2
  %v2374 = vpop.permute.xlu0 %2373
  %2375 = vrot.lane.b32.xlu0 %v2372, 2
  %v2376 = vpop.permute.xlu0 %2375
  %v2377 = vsel %vm924, %v2374, %v2376
  %v2381 = vunpack.c.l.b16 %v2327
  %v2382 = vunpack.c.h.b16 %v2327
  %v2383 = vpack.c.b16 %v2381, %v2381
  %v2384 = vpack.c.b16 %v2382, %v2382
  %2385 = vrot.lane.b32.xlu0 %v2383, 1
  %v2386 = vpop.permute.xlu0 %2385
  %2387 = vrot.lane.b32.xlu0 %v2384, 1
  %v2388 = vpop.permute.xlu0 %2387
  %v2389 = vsel %vm489, %v2386, %v2388
  %v2390 = vrot.slane %v2366, 1
  %v2391 = vrot.slane %v2370, 1
  %2392 = vrot.lane.b32.xlu0 %v2390, 1
  %v2393 = vpop.permute.xlu0 %2392
  %2394 = vrot.lane.b32.xlu0 %v2391, 1
  %v2395 = vpop.permute.xlu0 %2394
  %v2396 = vsel %vm489, %v2393, %v2395
  %v2399 = vrot.slane %v2383, 7
  %v2400 = vrot.slane %v2384, 7
  %v2403 = vrot.slane %v2383, 6
  %v2404 = vrot.slane %v2384, 6
  %2405 = vrot.lane.b32.xlu0 %v2403, 127
  %v2406 = vpop.permute.xlu0 %2405
  %2407 = vrot.lane.b32.xlu0 %v2404, 127
  %v2408 = vpop.permute.xlu0 %2407
  %v2409 = vsel %vm60, %v2406, %v2408
  %v2410 = vrot.slane %v2366, 7
  %v2411 = vrot.slane %v2370, 7
  %2412 = vrot.lane.b32.xlu0 %v2410, 127
  %v2413 = vpop.permute.xlu0 %2412
  %2414 = vrot.lane.b32.xlu0 %v2411, 127
  %v2415 = vpop.permute.xlu0 %2414
  %v2416 = vsel %vm60, %v2413, %v2415
  %2419 = vrot.lane.b32.xlu0 %v2331, 121
  %v2420 = vpop.permute.xlu0 %2419
  %2421 = vrot.lane.b32.xlu0 %v2332, 121
  %v2422 = vpop.permute.xlu0 %2421
  %v2423 = vsel %vm973, %v2420, %v2422
  %v2424 = vrot.slane %v2343, 3
  %v2425 = vrot.slane %v2346, 3
  %2426 = vrot.lane.b32.xlu0 %v2424, 120
  %v2427 = vpop.permute.xlu0 %2426
  %2428 = vrot.lane.b32.xlu0 %v2425, 120
  %v2429 = vpop.permute.xlu0 %2428
  %v2430 = vsel %vm540, %v2427, %v2429
  %v2433 = vrot.slane %v2331, 3
  %v2434 = vrot.slane %v2332, 3
  %2435 = vrot.lane.b32.xlu0 %v2433, 120
  %v2436 = vpop.permute.xlu0 %2435
  %2437 = vrot.lane.b32.xlu0 %v2434, 120
  %v2438 = vpop.permute.xlu0 %2437
  %v2439 = vsel %vm540, %v2436, %v2438
  %v2440 = vrot.slane %v2343, 2
  %v2441 = vrot.slane %v2346, 2
  %2442 = vrot.lane.b32.xlu0 %v2440, 119
  %v2443 = vpop.permute.xlu0 %2442
  %2444 = vrot.lane.b32.xlu0 %v2441, 119
  %v2445 = vpop.permute.xlu0 %2444
  %v2446 = vsel %vm175, %v2443, %v2445
  %v2449 = vrot.slane %v2331, 2
  %v2450 = vrot.slane %v2332, 2
  %2451 = vrot.lane.b32.xlu0 %v2449, 119
  %v2452 = vpop.permute.xlu0 %2451
  %2453 = vrot.lane.b32.xlu0 %v2450, 119
  %v2454 = vpop.permute.xlu0 %2453
  %v2455 = vsel %vm175, %v2452, %v2454
  %v2456 = vrot.slane %v2343, 1
  %v2457 = vrot.slane %v2346, 1
  %2458 = vrot.lane.b32.xlu0 %v2456, 118
  %v2459 = vpop.permute.xlu0 %2458
  %2460 = vrot.lane.b32.xlu0 %v2457, 118
  %v2461 = vpop.permute.xlu0 %2460
  %v2462 = vsel %vm653, %v2459, %v2461
  %v2465 = vsel %vm187, %v2333, %v2352
  %v2466 = vsel %vm187, %v2334, %v2351
  %v2469 = vsel %vm189, %v2465, %v2359
  %v2473 = vsel %vm189, %v2466, %v2358
  %v2475 = vsel %vm196, %v2469, %v2374
  %v2476 = vsel %vm196, %v2473, %v2377
  %v2479 = vsel %vm198, %v2475, %v2386
  %v2483 = vsel %vm198, %v2476, %v2389
  %v2485 = vsel %vm205, %v2479, %v2393
  %v2486 = vsel %vm205, %v2483, %v2396
  %v2489 = vsel %vm207, %v2485, %v2399
  %v2493 = vsel %vm207, %v2486, %v2400
  %v2495 = vsel %vm214, %v2489, %v2366
  %v2496 = vsel %vm214, %v2493, %v2370
  %v2499 = vsel %vm216, %v2495, %v2409
  %v2503 = vsel %vm216, %v2496, %v2408
  %v2505 = vsel %vm223, %v2499, %v2416
  %v2506 = vsel %vm223, %v2503, %v2415
  %v2509 = vsel %vm225, %v2505, %v2423
  %v2513 = vsel %vm225, %v2506, %v2422
  %v2515 = vsel %vm232, %v2509, %v2430
  %v2516 = vsel %vm232, %v2513, %v2429
  %v2519 = vsel %vm234, %v2515, %v2439
  %v2523 = vsel %vm234, %v2516, %v2438
  %v2525 = vsel %vm241, %v2519, %v2446
  %v2526 = vsel %vm241, %v2523, %v2445
  %v2529 = vsel %vm243, %v2525, %v2455
  %v2533 = vsel %vm243, %v2526, %v2454
  %v2535 = vsel %vm250, %v2529, %v2462
  %v2536 = vsel %vm250, %v2533, %v2461
  %v2539 = vunpack.c.l.b16 %v2535
  %v2540 = vunpack.c.l.b16 %v2536
  %v2541 = vunpack.c.h.b16 %v2535
  %v2542 = vunpack.c.h.b16 %v2536
  %v2543 = vpack.c.b16 %v2540, %v2539
  %v2544 = vpack.c.b16 %v2542, %v2541
  %2545 = vrot.lane.b32.xlu0 %v2543, 108
  %v2546 = vpop.permute.xlu0 %2545
  %2547 = vrot.lane.b32.xlu0 %v2544, 108
  %v2548 = vpop.permute.xlu0 %2547
  %v2549 = vrot.slane %v2546, 4
  %v2550 = vrot.slane %v2548, 4
  %v2551 = vsel %vm1102, %v2546, %v2549
  %v2552 = vsel %vm1102, %v2548, %v2550
  %2555 = vst [vmem:[#allocation2 + $0x88] sm:$0xf] %v2551
  %2556 = vst [vmem:[#allocation2 + $0xa8] sm:$0xf] %v2552
  %v2558 = vshrl.u32 %v2331, 16
  %v2560 = vrot.slane %v2558, 1
  %v2562 = vshrl.u32 %v2332, 16
  %v2564 = vrot.slane %v2562, 1
  %2567 = vrot.lane.b32.xlu0 %v2340, 127
  %v2568 = vpop.permute.xlu0 %2567
  %2569 = vrot.lane.b32.xlu0 %v2341, 127
  %v2570 = vpop.permute.xlu0 %2569
  %v2571 = vsel %vm60, %v2568, %v2570
  %2574 = vrot.lane.b32.xlu0 %v2558, 127
  %v2575 = vpop.permute.xlu0 %2574
  %2576 = vrot.lane.b32.xlu0 %v2562, 127
  %v2577 = vpop.permute.xlu0 %2576
  %v2578 = vsel %vm60, %v2575, %v2577
  %v2579 = vrot.slane %v2363, 2
  %v2580 = vrot.slane %v2364, 2
  %2581 = vrot.lane.b32.xlu0 %v2579, 2
  %v2582 = vpop.permute.xlu0 %2581
  %2583 = vrot.lane.b32.xlu0 %v2580, 2
  %v2584 = vpop.permute.xlu0 %2583
  %v2585 = vsel %vm924, %v2582, %v2584
  %v2589 = vshrl.u32 %v2383, 16
  %v2592 = vshrl.u32 %v2384, 16
  %2594 = vrot.lane.b32.xlu0 %v2589, 1
  %v2595 = vpop.permute.xlu0 %2594
  %2596 = vrot.lane.b32.xlu0 %v2592, 1
  %v2597 = vpop.permute.xlu0 %2596
  %v2598 = vsel %vm489, %v2595, %v2597
  %v2599 = vrot.slane %v2363, 1
  %v2600 = vrot.slane %v2364, 1
  %2601 = vrot.lane.b32.xlu0 %v2599, 1
  %v2602 = vpop.permute.xlu0 %2601
  %2603 = vrot.lane.b32.xlu0 %v2600, 1
  %v2604 = vpop.permute.xlu0 %2603
  %v2605 = vsel %vm489, %v2602, %v2604
  %v2608 = vrot.slane %v2589, 7
  %v2609 = vrot.slane %v2592, 7
  %v2612 = vrot.slane %v2589, 6
  %v2613 = vrot.slane %v2592, 6
  %2614 = vrot.lane.b32.xlu0 %v2612, 127
  %v2615 = vpop.permute.xlu0 %2614
  %2616 = vrot.lane.b32.xlu0 %v2613, 127
  %v2617 = vpop.permute.xlu0 %2616
  %v2618 = vsel %vm60, %v2615, %v2617
  %v2619 = vrot.slane %v2363, 7
  %v2620 = vrot.slane %v2364, 7
  %2621 = vrot.lane.b32.xlu0 %v2619, 127
  %v2622 = vpop.permute.xlu0 %2621
  %2623 = vrot.lane.b32.xlu0 %v2620, 127
  %v2624 = vpop.permute.xlu0 %2623
  %v2625 = vsel %vm60, %v2622, %v2624
  %v2628 = vrot.slane %v2558, 4
  %v2629 = vrot.slane %v2562, 4
  %2630 = vrot.lane.b32.xlu0 %v2628, 121
  %v2631 = vpop.permute.xlu0 %2630
  %2632 = vrot.lane.b32.xlu0 %v2629, 121
  %v2633 = vpop.permute.xlu0 %2632
  %v2634 = vsel %vm973, %v2631, %v2633
  %v2635 = vrot.slane %v2340, 3
  %v2636 = vrot.slane %v2341, 3
  %2637 = vrot.lane.b32.xlu0 %v2635, 120
  %v2638 = vpop.permute.xlu0 %2637
  %2639 = vrot.lane.b32.xlu0 %v2636, 120
  %v2640 = vpop.permute.xlu0 %2639
  %v2641 = vsel %vm540, %v2638, %v2640
  %v2644 = vrot.slane %v2558, 3
  %v2645 = vrot.slane %v2562, 3
  %2646 = vrot.lane.b32.xlu0 %v2644, 120
  %v2647 = vpop.permute.xlu0 %2646
  %2648 = vrot.lane.b32.xlu0 %v2645, 120
  %v2649 = vpop.permute.xlu0 %2648
  %v2650 = vsel %vm540, %v2647, %v2649
  %v2651 = vrot.slane %v2340, 2
  %v2652 = vrot.slane %v2341, 2
  %2653 = vrot.lane.b32.xlu0 %v2651, 119
  %v2654 = vpop.permute.xlu0 %2653
  %2655 = vrot.lane.b32.xlu0 %v2652, 119
  %v2656 = vpop.permute.xlu0 %2655
  %v2657 = vsel %vm175, %v2654, %v2656
  %v2660 = vrot.slane %v2558, 2
  %v2661 = vrot.slane %v2562, 2
  %2662 = vrot.lane.b32.xlu0 %v2660, 119
  %v2663 = vpop.permute.xlu0 %2662
  %2664 = vrot.lane.b32.xlu0 %v2661, 119
  %v2665 = vpop.permute.xlu0 %2664
  %v2666 = vsel %vm175, %v2663, %v2665
  %v2667 = vrot.slane %v2340, 1
  %v2668 = vrot.slane %v2341, 1
  %2669 = vrot.lane.b32.xlu0 %v2667, 118
  %v2670 = vpop.permute.xlu0 %2669
  %2671 = vrot.lane.b32.xlu0 %v2668, 118
  %v2672 = vpop.permute.xlu0 %2671
  %v2673 = vsel %vm653, %v2670, %v2672
  %v2676 = vsel %vm187, %v2560, %v2571
  %v2677 = vsel %vm187, %v2564, %v2570
  %v2680 = vsel %vm189, %v2676, %v2578
  %v2684 = vsel %vm189, %v2677, %v2577
  %v2686 = vsel %vm196, %v2680, %v2582
  %v2687 = vsel %vm196, %v2684, %v2585
  %v2690 = vsel %vm198, %v2686, %v2595
  %v2694 = vsel %vm198, %v2687, %v2598
  %v2696 = vsel %vm205, %v2690, %v2602
  %v2697 = vsel %vm205, %v2694, %v2605
  %v2700 = vsel %vm207, %v2696, %v2608
  %v2704 = vsel %vm207, %v2697, %v2609
  %v2706 = vsel %vm214, %v2700, %v2363
  %v2707 = vsel %vm214, %v2704, %v2364
  %v2710 = vsel %vm216, %v2706, %v2618
  %v2714 = vsel %vm216, %v2707, %v2617
  %v2716 = vsel %vm223, %v2710, %v2625
  %v2717 = vsel %vm223, %v2714, %v2624
  %v2720 = vsel %vm225, %v2716, %v2634
  %v2724 = vsel %vm225, %v2717, %v2633
  %v2726 = vsel %vm232, %v2720, %v2641
  %v2727 = vsel %vm232, %v2724, %v2640
  %v2730 = vsel %vm234, %v2726, %v2650
  %v2734 = vsel %vm234, %v2727, %v2649
  %v2736 = vsel %vm241, %v2730, %v2657
  %v2737 = vsel %vm241, %v2734, %v2656
  %v2740 = vsel %vm243, %v2736, %v2666
  %v2744 = vsel %vm243, %v2737, %v2665
  %v2746 = vsel %vm250, %v2740, %v2673
  %v2747 = vsel %vm250, %v2744, %v2672
  %v2750 = vunpack.c.l.b16 %v2746
  %v2751 = vunpack.c.l.b16 %v2747
  %v2752 = vunpack.c.h.b16 %v2746
  %v2753 = vunpack.c.h.b16 %v2747
  %v2754 = vpack.c.b16 %v2751, %v2750
  %v2755 = vpack.c.b16 %v2753, %v2752
  %2756 = vrot.lane.b32.xlu0 %v2754, 108
  %v2757 = vpop.permute.xlu0 %2756
  %2758 = vrot.lane.b32.xlu0 %v2755, 108
  %v2759 = vpop.permute.xlu0 %2758
  %v2760 = vrot.slane %v2757, 4
  %v2761 = vrot.slane %v2759, 4
  %v2762 = vsel %vm1102, %v2757, %v2760
  %v2763 = vsel %vm1102, %v2759, %v2761
  %2766 = vst [vmem:[#allocation2 + $0x8c] sm:$0xf] %v2762
  %2767 = vst [vmem:[#allocation2 + $0xac] sm:$0xf] %v2763
  %v2768 = vld [vmem:[%s0] sm:$0xc]
  %v2769 = vld [vmem:[%s0 + $0x8] sm:$0xc]
  %v2770 = vpack.c.bf16 %v2769, %v2768
  %v2772 = vunpack.c.l.b16 %v2770
  %v2773 = vunpack.c.h.b16 %v2770
  %v2774 = vpack.c.b16 %v2772, %v2772
  %v2775 = vpack.c.b16 %v2773, %v2773
  %v2776 = vrot.slane %v2774, 1
  %v2777 = vrot.slane %v2775, 1
  %v2780 = vsel %vm187, %v2776, 0
  %v2781 = vsel %vm187, %v2777, 0
  %v2783 = vsel %vm189, %v2780, 0
  %v2786 = vsel %vm189, %v2781, 0
  %v2788 = vsel %vm196, %v2783, 0
  %v2789 = vsel %vm196, %v2786, 0
  %v2791 = vsel %vm198, %v2788, 0
  %v2794 = vsel %vm198, %v2789, 0
  %v2796 = vsel %vm205, %v2791, 0
  %v2797 = vsel %vm205, %v2794, 0
  %v2799 = vsel %vm207, %v2796, 0
  %v2802 = vsel %vm207, %v2797, 0
  %v2804 = vsel %vm214, %v2799, 0
  %v2805 = vsel %vm214, %v2802, 0
  %v2807 = vsel %vm216, %v2804, 0
  %v2810 = vsel %vm216, %v2805, 0
  %v2812 = vsel %vm223, %v2807, 0
  %v2813 = vsel %vm223, %v2810, 0
  %v2815 = vsel %vm225, %v2812, 0
  %v2818 = vsel %vm225, %v2813, 0
  %v2820 = vsel %vm232, %v2815, 0
  %v2821 = vsel %vm232, %v2818, 0
  %v2823 = vsel %vm234, %v2820, 0
  %v2826 = vsel %vm234, %v2821, 0
  %v2828 = vsel %vm241, %v2823, 0
  %v2829 = vsel %vm241, %v2826, 0
  %v2831 = vsel %vm243, %v2828, 0
  %v2834 = vsel %vm243, %v2829, 0
  %v2836 = vsel %vm250, %v2831, 0
  %v2837 = vsel %vm250, %v2834, 0
  %v2840 = vunpack.c.l.b16 %v2836
  %v2841 = vunpack.c.l.b16 %v2837
  %v2842 = vunpack.c.h.b16 %v2836
  %v2843 = vunpack.c.h.b16 %v2837
  %v2844 = vpack.c.b16 %v2841, %v2840
  %v2845 = vpack.c.b16 %v2843, %v2842
  %2846 = vrot.lane.b32.xlu0 %v2844, 98
  %v2847 = vpop.permute.xlu0 %2846
  %2848 = vrot.lane.b32.xlu0 %v2845, 98
  %v2849 = vpop.permute.xlu0 %2848
  %v2850 = vrot.slane %v2847, 4
  %v2851 = vrot.slane %v2849, 4
  %v2852 = vsel %vm1398, %v2847, %v2850
  %v2853 = vsel %vm1398, %v2849, %v2851
  %2856 = vst [vmem:[#allocation2 + $0xc8] sm:$0xf] %v2852
  %2857 = vst [vmem:[#allocation2 + $0xe8] sm:$0xf] %v2853
  %v2859 = vshrl.u32 %v2774, 16
  %v2861 = vrot.slane %v2859, 1
  %v2863 = vshrl.u32 %v2775, 16
  %v2865 = vrot.slane %v2863, 1
  %v2868 = vsel %vm187, %v2861, 0
  %v2869 = vsel %vm187, %v2865, 0
  %v2871 = vsel %vm189, %v2868, 0
  %v2874 = vsel %vm189, %v2869, 0
  %v2876 = vsel %vm196, %v2871, 0
  %v2877 = vsel %vm196, %v2874, 0
  %v2879 = vsel %vm198, %v2876, 0
  %v2882 = vsel %vm198, %v2877, 0
  %v2884 = vsel %vm205, %v2879, 0
  %v2885 = vsel %vm205, %v2882, 0
  %v2887 = vsel %vm207, %v2884, 0
  %v2890 = vsel %vm207, %v2885, 0
  %v2892 = vsel %vm214, %v2887, 0
  %v2893 = vsel %vm214, %v2890, 0
  %v2895 = vsel %vm216, %v2892, 0
  %v2898 = vsel %vm216, %v2893, 0
  %v2900 = vsel %vm223, %v2895, 0
  %v2901 = vsel %vm223, %v2898, 0
  %v2903 = vsel %vm225, %v2900, 0
  %v2906 = vsel %vm225, %v2901, 0
  %v2908 = vsel %vm232, %v2903, 0
  %v2909 = vsel %vm232, %v2906, 0
  %v2911 = vsel %vm234, %v2908, 0
  %v2914 = vsel %vm234, %v2909, 0
  %v2916 = vsel %vm241, %v2911, 0
  %v2917 = vsel %vm241, %v2914, 0
  %v2919 = vsel %vm243, %v2916, 0
  %v2922 = vsel %vm243, %v2917, 0
  %v2924 = vsel %vm250, %v2919, 0
  %v2925 = vsel %vm250, %v2922, 0
  %v2928 = vunpack.c.l.b16 %v2924
  %v2929 = vunpack.c.l.b16 %v2925
  %v2930 = vunpack.c.h.b16 %v2924
  %v2931 = vunpack.c.h.b16 %v2925
  %v2932 = vpack.c.b16 %v2929, %v2928
  %v2933 = vpack.c.b16 %v2931, %v2930
  %2934 = vrot.lane.b32.xlu0 %v2932, 98
  %v2935 = vpop.permute.xlu0 %2934
  %2936 = vrot.lane.b32.xlu0 %v2933, 98
  %v2937 = vpop.permute.xlu0 %2936
  %v2938 = vrot.slane %v2935, 4
  %v2939 = vrot.slane %v2937, 4
  %v2940 = vsel %vm1398, %v2935, %v2938
  %v2941 = vsel %vm1398, %v2937, %v2939
  %2944 = vst [vmem:[#allocation2 + $0xcc] sm:$0xf] %v2940
  %2945 = vst [vmem:[#allocation2 + $0xec] sm:$0xf] %v2941
  %v2946 = vld [vmem:[%s0] sm:$0x30]
  %v2947 = vpack.c.bf16 %v2946, %v2946
  %v2948 = vld [vmem:[%s0] sm:$0xc0]
  %v2949 = vpack.c.bf16 %v2948, %v2948
  %v2950 = vld [vmem:[%s0] sm:$0x30]
  %v2951 = vld [vmem:[%s0 + $0x8] sm:$0x30]
  %v2952 = vpack.c.bf16 %v2951, %v2950
  %v2953 = vld [vmem:[%s0] sm:$0xc0]
  %v2954 = vld [vmem:[%s0 + $0x8] sm:$0xc0]
  %v2955 = vpack.c.bf16 %v2954, %v2953
  %v2956 = vld [vmem:[%s0] sm:$0x3]
  %v2957 = vld [vmem:[%s0 + $0x8] sm:$0x3]
  %v2958 = vpack.c.bf16 %v2957, %v2956
  %v2959 = vld [vmem:[%s0] sm:$0xc]
  %v2960 = vld [vmem:[%s0 + $0x8] sm:$0xc]
  %v2961 = vpack.c.bf16 %v2960, %v2959
  %v2963 = vunpack.c.l.b16 %v2947
  %v2964 = vpack.c.b16 %v2963, %v2963
  %v2965 = vrot.slane %v2964, 2
  %v2968 = vunpack.c.l.b16 %v2949
  %v2969 = vpack.c.b16 %v2968, %v2968
  %v2971 = vshll.u32 %v2969, 16
  %v2973 = vrot.slane %v2971, 3
  %v2976 = vunpack.c.l.b16 %v2952
  %v2977 = vunpack.c.h.b16 %v2952
  %v2978 = vpack.c.b16 %v2976, %v2976
  %v2979 = vpack.c.b16 %v2977, %v2977
  %v2980 = vrot.slane %v2978, 1
  %v2981 = vrot.slane %v2979, 1
  %2982 = vrot.lane.b32.xlu0 %v2980, 127
  %v2983 = vpop.permute.xlu0 %2982
  %2984 = vrot.lane.b32.xlu0 %v2981, 127
  %v2985 = vpop.permute.xlu0 %2984
  %v2986 = vsel %vm60, %v2983, %v2985
  %v2988 = vunpack.c.l.b16 %v2955
  %v2989 = vunpack.c.h.b16 %v2955
  %v2990 = vpack.c.b16 %v2988, %v2988
  %v2991 = vpack.c.b16 %v2989, %v2989
  %v2993 = vshll.u32 %v2990, 16
  %v2995 = vrot.slane %v2993, 2
  %v2997 = vshll.u32 %v2991, 16
  %v2999 = vrot.slane %v2997, 2
  %3000 = vrot.lane.b32.xlu0 %v2995, 127
  %v3001 = vpop.permute.xlu0 %3000
  %3002 = vrot.lane.b32.xlu0 %v2999, 127
  %v3003 = vpop.permute.xlu0 %3002
  %v3004 = vsel %vm60, %v3001, %v3003
  %3006 = vrot.lane.b32.xlu0 %v2978, 126
  %v3007 = vpop.permute.xlu0 %3006
  %3008 = vrot.lane.b32.xlu0 %v2979, 126
  %v3009 = vpop.permute.xlu0 %3008
  %v3010 = vsel %vm85, %v3007, %v3009
  %v3011 = vrot.slane %v2993, 1
  %v3012 = vrot.slane %v2997, 1
  %3013 = vrot.lane.b32.xlu0 %v3011, 126
  %v3014 = vpop.permute.xlu0 %3013
  %3015 = vrot.lane.b32.xlu0 %v3012, 126
  %v3016 = vpop.permute.xlu0 %3015
  %v3017 = vsel %vm85, %v3014, %v3016
  %v3019 = vrot.slane %v2978, 7
  %v3020 = vrot.slane %v2979, 7
  %3021 = vrot.lane.b32.xlu0 %v3019, 125
  %v3022 = vpop.permute.xlu0 %3021
  %3023 = vrot.lane.b32.xlu0 %v3020, 125
  %v3024 = vpop.permute.xlu0 %3023
  %v3025 = vsel %vm101, %v3022, %v3024
  %v3027 = vunpack.c.l.b16 %v2958
  %v3028 = vunpack.c.h.b16 %v2958
  %v3029 = vpack.c.b16 %v3027, %v3027
  %v3030 = vpack.c.b16 %v3028, %v3028
  %v3032 = vshll.u32 %v3029, 16
  %v3034 = vrot.slane %v3032, 5
  %v3036 = vshll.u32 %v3030, 16
  %v3038 = vrot.slane %v3036, 5
  %3039 = vrot.lane.b32.xlu0 %v3034, 119
  %v3040 = vpop.permute.xlu0 %3039
  %3041 = vrot.lane.b32.xlu0 %v3038, 119
  %v3042 = vpop.permute.xlu0 %3041
  %v3043 = vsel %vm175, %v3040, %v3042
  %v3046 = vunpack.c.l.b16 %v2961
  %v3047 = vunpack.c.h.b16 %v2961
  %v3048 = vpack.c.b16 %v3046, %v3046
  %v3049 = vpack.c.b16 %v3047, %v3047
  %v3050 = vrot.slane %v3048, 5
  %v3051 = vrot.slane %v3049, 5
  %3052 = vrot.lane.b32.xlu0 %v3050, 119
  %v3053 = vpop.permute.xlu0 %3052
  %3054 = vrot.lane.b32.xlu0 %v3051, 119
  %v3055 = vpop.permute.xlu0 %3054
  %v3056 = vsel %vm175, %v3053, %v3055
  %v3057 = vrot.slane %v3032, 4
  %v3058 = vrot.slane %v3036, 4
  %3059 = vrot.lane.b32.xlu0 %v3057, 118
  %v3060 = vpop.permute.xlu0 %3059
  %3061 = vrot.lane.b32.xlu0 %v3058, 118
  %v3062 = vpop.permute.xlu0 %3061
  %v3063 = vsel %vm653, %v3060, %v3062
  %3065 = vrot.lane.b32.xlu0 %v3048, 118
  %v3066 = vpop.permute.xlu0 %3065
  %3067 = vrot.lane.b32.xlu0 %v3049, 118
  %v3068 = vpop.permute.xlu0 %3067
  %v3069 = vsel %vm653, %v3066, %v3068
  %v3070 = vrot.slane %v3032, 3
  %v3071 = vrot.slane %v3036, 3
  %3072 = vrot.lane.b32.xlu0 %v3070, 117
  %v3073 = vpop.permute.xlu0 %3072
  %3074 = vrot.lane.b32.xlu0 %v3071, 117
  %v3075 = vpop.permute.xlu0 %3074
  %vm3076 = vcmask 957440
  %v3077 = vsel %vm3076, %v3073, %v3075
  %v3079 = vrot.slane %v3048, 3
  %v3080 = vrot.slane %v3049, 3
  %3081 = vrot.lane.b32.xlu0 %v3079, 117
  %v3082 = vpop.permute.xlu0 %3081
  %3083 = vrot.lane.b32.xlu0 %v3080, 117
  %v3084 = vpop.permute.xlu0 %3083
  %v3085 = vsel %vm3076, %v3082, %v3084
  %v3086 = vrot.slane %v3032, 2
  %v3087 = vrot.slane %v3036, 2
  %3088 = vrot.lane.b32.xlu0 %v3086, 116
  %v3089 = vpop.permute.xlu0 %3088
  %3090 = vrot.lane.b32.xlu0 %v3087, 116
  %v3091 = vpop.permute.xlu0 %3090
  %vm3092 = vcmask 949248
  %v3093 = vsel %vm3092, %v3089, %v3091
  %v3095 = vrot.slane %v2978, 3
  %v3096 = vrot.slane %v2979, 3
  %3097 = vrot.lane.b32.xlu0 %v3095, 119
  %v3098 = vpop.permute.xlu0 %3097
  %3099 = vrot.lane.b32.xlu0 %v3096, 119
  %v3100 = vpop.permute.xlu0 %3099
  %v3101 = vsel %vm175, %v3098, %v3100
  %v3102 = vrot.slane %v2993, 4
  %v3103 = vrot.slane %v2997, 4
  %3104 = vrot.lane.b32.xlu0 %v3102, 119
  %v3105 = vpop.permute.xlu0 %3104
  %3106 = vrot.lane.b32.xlu0 %v3103, 119
  %v3107 = vpop.permute.xlu0 %3106
  %v3108 = vsel %vm175, %v3105, %v3107
  %v3110 = vsel %vm187, %v2965, %v2973
  %v3113 = vsel %vm189, %v3110, %v2986
  %v3115 = vsel %vm196, %v3113, %v3004
  %v3118 = vsel %vm198, %v3115, %v3010
  %v3120 = vsel %vm205, %v3118, %v3017
  %v3123 = vsel %vm207, %v3120, %v3025
  %v3125 = vsel %vm214, %v3123, %v3043
  %v3128 = vsel %vm216, %v3125, %v3056
  %v3130 = vsel %vm223, %v3128, %v3063
  %v3133 = vsel %vm225, %v3130, %v3069
  %v3135 = vsel %vm232, %v3133, %v3077
  %v3138 = vsel %vm234, %v3135, %v3085
  %v3140 = vsel %vm241, %v3138, %v3093
  %v3143 = vsel %vm243, %v3140, %v3101
  %v3145 = vsel %vm250, %v3143, %v3108
  %v3147 = vunpack.c.l.b16 %v3145
  %v3148 = vunpack.c.h.b16 %v3145
  %v3149 = vpack.c.b16 %v3147, %v3147
  %v3150 = vpack.c.b16 %v3148, %v3148
  %3153 = vst [vmem:[#allocation2 + $0x10] sm:$0xf] %v3149
  %3154 = vst [vmem:[#allocation2 + $0x30] sm:$0xf] %v3150
  %v3156 = vshrl.u32 %v2964, 16
  %v3158 = vrot.slane %v3156, 2
  %v3160 = vrot.slane %v2969, 3
  %v3163 = vshrl.u32 %v2978, 16
  %v3165 = vrot.slane %v3163, 1
  %v3167 = vshrl.u32 %v2979, 16
  %v3169 = vrot.slane %v3167, 1
  %3170 = vrot.lane.b32.xlu0 %v3165, 127
  %v3171 = vpop.permute.xlu0 %3170
  %3172 = vrot.lane.b32.xlu0 %v3169, 127
  %v3173 = vpop.permute.xlu0 %3172
  %v3174 = vsel %vm60, %v3171, %v3173
  %v3175 = vrot.slane %v2990, 2
  %v3176 = vrot.slane %v2991, 2
  %3177 = vrot.lane.b32.xlu0 %v3175, 127
  %v3178 = vpop.permute.xlu0 %3177
  %3179 = vrot.lane.b32.xlu0 %v3176, 127
  %v3180 = vpop.permute.xlu0 %3179
  %v3181 = vsel %vm60, %v3178, %v3180
  %3183 = vrot.lane.b32.xlu0 %v3163, 126
  %v3184 = vpop.permute.xlu0 %3183
  %3185 = vrot.lane.b32.xlu0 %v3167, 126
  %v3186 = vpop.permute.xlu0 %3185
  %v3187 = vsel %vm85, %v3184, %v3186
  %v3188 = vrot.slane %v2990, 1
  %v3189 = vrot.slane %v2991, 1
  %3190 = vrot.lane.b32.xlu0 %v3188, 126
  %v3191 = vpop.permute.xlu0 %3190
  %3192 = vrot.lane.b32.xlu0 %v3189, 126
  %v3193 = vpop.permute.xlu0 %3192
  %v3194 = vsel %vm85, %v3191, %v3193
  %v3196 = vrot.slane %v3163, 7
  %v3197 = vrot.slane %v3167, 7
  %3198 = vrot.lane.b32.xlu0 %v3196, 125
  %v3199 = vpop.permute.xlu0 %3198
  %3200 = vrot.lane.b32.xlu0 %v3197, 125
  %v3201 = vpop.permute.xlu0 %3200
  %v3202 = vsel %vm101, %v3199, %v3201
  %v3203 = vrot.slane %v3029, 5
  %v3204 = vrot.slane %v3030, 5
  %3205 = vrot.lane.b32.xlu0 %v3203, 119
  %v3206 = vpop.permute.xlu0 %3205
  %3207 = vrot.lane.b32.xlu0 %v3204, 119
  %v3208 = vpop.permute.xlu0 %3207
  %v3209 = vsel %vm175, %v3206, %v3208
  %v3212 = vshrl.u32 %v3048, 16
  %v3214 = vrot.slane %v3212, 5
  %v3216 = vshrl.u32 %v3049, 16
  %v3218 = vrot.slane %v3216, 5
  %3219 = vrot.lane.b32.xlu0 %v3214, 119
  %v3220 = vpop.permute.xlu0 %3219
  %3221 = vrot.lane.b32.xlu0 %v3218, 119
  %v3222 = vpop.permute.xlu0 %3221
  %v3223 = vsel %vm175, %v3220, %v3222
  %3224 = vrot.lane.b32.xlu0 %v3029, 118
  %v3225 = vpop.permute.xlu0 %3224
  %3226 = vrot.lane.b32.xlu0 %v3030, 118
  %v3227 = vpop.permute.xlu0 %3226
  %v3228 = vsel %vm653, %v3225, %v3227
  %v3230 = vrot.slane %v3212, 4
  %v3231 = vrot.slane %v3216, 4
  %3232 = vrot.lane.b32.xlu0 %v3230, 118
  %v3233 = vpop.permute.xlu0 %3232
  %3234 = vrot.lane.b32.xlu0 %v3231, 118
  %v3235 = vpop.permute.xlu0 %3234
  %v3236 = vsel %vm653, %v3233, %v3235
  %v3237 = vrot.slane %v3029, 3
  %v3238 = vrot.slane %v3030, 3
  %3239 = vrot.lane.b32.xlu0 %v3237, 117
  %v3240 = vpop.permute.xlu0 %3239
  %3241 = vrot.lane.b32.xlu0 %v3238, 117
  %v3242 = vpop.permute.xlu0 %3241
  %v3243 = vsel %vm3076, %v3240, %v3242
  %v3245 = vrot.slane %v3212, 3
  %v3246 = vrot.slane %v3216, 3
  %3247 = vrot.lane.b32.xlu0 %v3245, 117
  %v3248 = vpop.permute.xlu0 %3247
  %3249 = vrot.lane.b32.xlu0 %v3246, 117
  %v3250 = vpop.permute.xlu0 %3249
  %v3251 = vsel %vm3076, %v3248, %v3250
  %v3252 = vrot.slane %v3029, 2
  %v3253 = vrot.slane %v3030, 2
  %3254 = vrot.lane.b32.xlu0 %v3252, 116
  %v3255 = vpop.permute.xlu0 %3254
  %3256 = vrot.lane.b32.xlu0 %v3253, 116
  %v3257 = vpop.permute.xlu0 %3256
  %v3258 = vsel %vm3092, %v3255, %v3257
  %v3260 = vrot.slane %v3163, 3
  %v3261 = vrot.slane %v3167, 3
  %3262 = vrot.lane.b32.xlu0 %v3260, 119
  %v3263 = vpop.permute.xlu0 %3262
  %3264 = vrot.lane.b32.xlu0 %v3261, 119
  %v3265 = vpop.permute.xlu0 %3264
  %v3266 = vsel %vm175, %v3263, %v3265
  %3267 = vrot.lane.b32.xlu0 %v2990, 119
  %v3268 = vpop.permute.xlu0 %3267
  %3269 = vrot.lane.b32.xlu0 %v2991, 119
  %v3270 = vpop.permute.xlu0 %3269
  %v3271 = vsel %vm175, %v3268, %v3270
  %v3273 = vsel %vm187, %v3158, %v3160
  %v3276 = vsel %vm189, %v3273, %v3174
  %v3278 = vsel %vm196, %v3276, %v3181
  %v3281 = vsel %vm198, %v3278, %v3187
  %v3283 = vsel %vm205, %v3281, %v3194
  %v3286 = vsel %vm207, %v3283, %v3202
  %v3288 = vsel %vm214, %v3286, %v3209
  %v3291 = vsel %vm216, %v3288, %v3223
  %v3293 = vsel %vm223, %v3291, %v3228
  %v3296 = vsel %vm225, %v3293, %v3236
  %v3298 = vsel %vm232, %v3296, %v3243
  %v3301 = vsel %vm234, %v3298, %v3251
  %v3303 = vsel %vm241, %v3301, %v3258
  %v3306 = vsel %vm243, %v3303, %v3266
  %v3308 = vsel %vm250, %v3306, %v3271
  %v3310 = vunpack.c.l.b16 %v3308
  %v3311 = vunpack.c.h.b16 %v3308
  %v3312 = vpack.c.b16 %v3310, %v3310
  %v3313 = vpack.c.b16 %v3311, %v3311
  %3316 = vst [vmem:[#allocation2 + $0x14] sm:$0xf] %v3312
  %3317 = vst [vmem:[#allocation2 + $0x34] sm:$0xf] %v3313
  %v3318 = vld [vmem:[%s0] sm:$0x30]
  %v3319 = vld [vmem:[%s0 + $0x8] sm:$0x30]
  %v3320 = vpack.c.bf16 %v3319, %v3318
  %v3321 = vld [vmem:[%s0] sm:$0xc0]
  %v3322 = vld [vmem:[%s0 + $0x8] sm:$0xc0]
  %v3323 = vpack.c.bf16 %v3322, %v3321
  %v3324 = vld [vmem:[%s0] sm:$0x3]
  %v3325 = vld [vmem:[%s0 + $0x8] sm:$0x3]
  %v3326 = vpack.c.bf16 %v3325, %v3324
  %v3327 = vld [vmem:[%s0] sm:$0xc]
  %v3328 = vld [vmem:[%s0 + $0x8] sm:$0xc]
  %v3329 = vpack.c.bf16 %v3328, %v3327
  %v3331 = vunpack.c.l.b16 %v3320
  %v3332 = vunpack.c.h.b16 %v3320
  %v3333 = vpack.c.b16 %v3331, %v3331
  %v3334 = vpack.c.b16 %v3332, %v3332
  %v3335 = vrot.slane %v3333, 2
  %v3336 = vrot.slane %v3334, 2
  %v3340 = vunpack.c.l.b16 %v3323
  %v3341 = vunpack.c.h.b16 %v3323
  %v3342 = vpack.c.b16 %v3340, %v3340
  %v3343 = vpack.c.b16 %v3341, %v3341
  %v3345 = vshll.u32 %v3342, 16
  %v3347 = vrot.slane %v3345, 3
  %v3349 = vshll.u32 %v3343, 16
  %v3351 = vrot.slane %v3349, 3
  %v3354 = vrot.slane %v3333, 1
  %v3355 = vrot.slane %v3334, 1
  %3356 = vrot.lane.b32.xlu0 %v3354, 127
  %v3357 = vpop.permute.xlu0 %3356
  %3358 = vrot.lane.b32.xlu0 %v3355, 127
  %v3359 = vpop.permute.xlu0 %3358
  %v3360 = vsel %vm60, %v3357, %v3359
  %v3361 = vrot.slane %v3345, 2
  %v3362 = vrot.slane %v3349, 2
  %3363 = vrot.lane.b32.xlu0 %v3361, 127
  %v3364 = vpop.permute.xlu0 %3363
  %3365 = vrot.lane.b32.xlu0 %v3362, 127
  %v3366 = vpop.permute.xlu0 %3365
  %v3367 = vsel %vm60, %v3364, %v3366
  %3370 = vrot.lane.b32.xlu0 %v3333, 126
  %v3371 = vpop.permute.xlu0 %3370
  %3372 = vrot.lane.b32.xlu0 %v3334, 126
  %v3373 = vpop.permute.xlu0 %3372
  %v3374 = vsel %vm85, %v3371, %v3373
  %v3376 = vunpack.c.l.b16 %v3326
  %v3377 = vunpack.c.h.b16 %v3326
  %v3378 = vpack.c.b16 %v3376, %v3376
  %v3379 = vpack.c.b16 %v3377, %v3377
  %v3381 = vshll.u32 %v3378, 16
  %v3383 = vrot.slane %v3381, 6
  %v3385 = vshll.u32 %v3379, 16
  %v3387 = vrot.slane %v3385, 6
  %3388 = vrot.lane.b32.xlu0 %v3383, 120
  %v3389 = vpop.permute.xlu0 %3388
  %3390 = vrot.lane.b32.xlu0 %v3387, 120
  %v3391 = vpop.permute.xlu0 %3390
  %v3392 = vsel %vm540, %v3389, %v3391
  %v3396 = vunpack.c.l.b16 %v3329
  %v3397 = vunpack.c.h.b16 %v3329
  %v3398 = vpack.c.b16 %v3396, %v3396
  %v3399 = vpack.c.b16 %v3397, %v3397
  %v3400 = vrot.slane %v3398, 6
  %v3401 = vrot.slane %v3399, 6
  %3402 = vrot.lane.b32.xlu0 %v3400, 120
  %v3403 = vpop.permute.xlu0 %3402
  %3404 = vrot.lane.b32.xlu0 %v3401, 120
  %v3405 = vpop.permute.xlu0 %3404
  %v3406 = vsel %vm540, %v3403, %v3405
  %v3407 = vrot.slane %v3381, 5
  %v3408 = vrot.slane %v3385, 5
  %3409 = vrot.lane.b32.xlu0 %v3407, 119
  %v3410 = vpop.permute.xlu0 %3409
  %3411 = vrot.lane.b32.xlu0 %v3408, 119
  %v3412 = vpop.permute.xlu0 %3411
  %v3413 = vsel %vm175, %v3410, %v3412
  %v3416 = vrot.slane %v3398, 5
  %v3417 = vrot.slane %v3399, 5
  %3418 = vrot.lane.b32.xlu0 %v3416, 119
  %v3419 = vpop.permute.xlu0 %3418
  %3420 = vrot.lane.b32.xlu0 %v3417, 119
  %v3421 = vpop.permute.xlu0 %3420
  %v3422 = vsel %vm175, %v3419, %v3421
  %v3423 = vrot.slane %v3381, 4
  %v3424 = vrot.slane %v3385, 4
  %3425 = vrot.lane.b32.xlu0 %v3423, 118
  %v3426 = vpop.permute.xlu0 %3425
  %3427 = vrot.lane.b32.xlu0 %v3424, 118
  %v3428 = vpop.permute.xlu0 %3427
  %v3429 = vsel %vm653, %v3426, %v3428
  %3432 = vrot.lane.b32.xlu0 %v3398, 118
  %v3433 = vpop.permute.xlu0 %3432
  %3434 = vrot.lane.b32.xlu0 %v3399, 118
  %v3435 = vpop.permute.xlu0 %3434
  %v3436 = vsel %vm653, %v3433, %v3435
  %v3437 = vrot.slane %v3381, 3
  %v3438 = vrot.slane %v3385, 3
  %3439 = vrot.lane.b32.xlu0 %v3437, 117
  %v3440 = vpop.permute.xlu0 %3439
  %3441 = vrot.lane.b32.xlu0 %v3438, 117
  %v3442 = vpop.permute.xlu0 %3441
  %v3443 = vsel %vm3076, %v3440, %v3442
  %3446 = vrot.lane.b32.xlu0 %v3333, 120
  %v3447 = vpop.permute.xlu0 %3446
  %3448 = vrot.lane.b32.xlu0 %v3334, 120
  %v3449 = vpop.permute.xlu0 %3448
  %v3450 = vsel %vm540, %v3447, %v3449
  %v3451 = vrot.slane %v3345, 5
  %v3452 = vrot.slane %v3349, 5
  %3453 = vrot.lane.b32.xlu0 %v3451, 120
  %v3454 = vpop.permute.xlu0 %3453
  %3455 = vrot.lane.b32.xlu0 %v3452, 120
  %v3456 = vpop.permute.xlu0 %3455
  %v3457 = vsel %vm540, %v3454, %v3456
  %v3460 = vrot.slane %v3333, 3
  %v3461 = vrot.slane %v3334, 3
  %3462 = vrot.lane.b32.xlu0 %v3460, 119
  %v3463 = vpop.permute.xlu0 %3462
  %3464 = vrot.lane.b32.xlu0 %v3461, 119
  %v3465 = vpop.permute.xlu0 %3464
  %v3466 = vsel %vm175, %v3463, %v3465
  %v3467 = vrot.slane %v3345, 4
  %v3468 = vrot.slane %v3349, 4
  %3469 = vrot.lane.b32.xlu0 %v3467, 119
  %v3470 = vpop.permute.xlu0 %3469
  %3471 = vrot.lane.b32.xlu0 %v3468, 119
  %v3472 = vpop.permute.xlu0 %3471
  %v3473 = vsel %vm175, %v3470, %v3472
  %v3476 = vsel %vm187, %v3335, %v3347
  %v3477 = vsel %vm187, %v3336, %v3351
  %v3480 = vsel %vm189, %v3476, %v3360
  %v3484 = vsel %vm189, %v3477, %v3359
  %v3486 = vsel %vm196, %v3480, %v3367
  %v3487 = vsel %vm196, %v3484, %v3366
  %v3490 = vsel %vm198, %v3486, %v3374
  %v3494 = vsel %vm198, %v3487, %v3373
  %v3496 = vsel %vm205, %v3490, %v3392
  %v3497 = vsel %vm205, %v3494, %v3391
  %v3500 = vsel %vm207, %v3496, %v3406
  %v3504 = vsel %vm207, %v3497, %v3405
  %v3506 = vsel %vm214, %v3500, %v3413
  %v3507 = vsel %vm214, %v3504, %v3412
  %v3510 = vsel %vm216, %v3506, %v3422
  %v3514 = vsel %vm216, %v3507, %v3421
  %v3516 = vsel %vm223, %v3510, %v3429
  %v3517 = vsel %vm223, %v3514, %v3428
  %v3520 = vsel %vm225, %v3516, %v3436
  %v3524 = vsel %vm225, %v3517, %v3435
  %v3526 = vsel %vm232, %v3520, %v3443
  %v3527 = vsel %vm232, %v3524, %v3442
  %v3530 = vsel %vm234, %v3526, %v3450
  %v3534 = vsel %vm234, %v3527, %v3449
  %v3536 = vsel %vm241, %v3530, %v3457
  %v3537 = vsel %vm241, %v3534, %v3456
  %v3540 = vsel %vm243, %v3536, %v3466
  %v3544 = vsel %vm243, %v3537, %v3465
  %v3546 = vsel %vm250, %v3540, %v3473
  %v3547 = vsel %vm250, %v3544, %v3472
  %v3550 = vunpack.c.l.b16 %v3546
  %v3551 = vunpack.c.l.b16 %v3547
  %v3552 = vunpack.c.h.b16 %v3546
  %v3553 = vunpack.c.h.b16 %v3547
  %v3554 = vpack.c.b16 %v3551, %v3550
  %v3555 = vpack.c.b16 %v3553, %v3552
  %3556 = vrot.lane.b32.xlu0 %v3554, 118
  %v3557 = vpop.permute.xlu0 %3556
  %3558 = vrot.lane.b32.xlu0 %v3555, 118
  %v3559 = vpop.permute.xlu0 %3558
  %v3560 = vrot.slane %v3557, 4
  %v3561 = vrot.slane %v3559, 4
  %v3562 = vsel %vm653, %v3557, %v3560
  %v3563 = vsel %vm653, %v3559, %v3561
  %3566 = vst [vmem:[#allocation2 + $0x50] sm:$0xf] %v3562
  %3567 = vst [vmem:[#allocation2 + $0x70] sm:$0xf] %v3563
  %v3569 = vshrl.u32 %v3333, 16
  %v3571 = vrot.slane %v3569, 2
  %v3573 = vshrl.u32 %v3334, 16
  %v3575 = vrot.slane %v3573, 2
  %v3578 = vrot.slane %v3342, 3
  %v3579 = vrot.slane %v3343, 3
  %v3582 = vrot.slane %v3569, 1
  %v3583 = vrot.slane %v3573, 1
  %3584 = vrot.lane.b32.xlu0 %v3582, 127
  %v3585 = vpop.permute.xlu0 %3584
  %3586 = vrot.lane.b32.xlu0 %v3583, 127
  %v3587 = vpop.permute.xlu0 %3586
  %v3588 = vsel %vm60, %v3585, %v3587
  %v3589 = vrot.slane %v3342, 2
  %v3590 = vrot.slane %v3343, 2
  %3591 = vrot.lane.b32.xlu0 %v3589, 127
  %v3592 = vpop.permute.xlu0 %3591
  %3593 = vrot.lane.b32.xlu0 %v3590, 127
  %v3594 = vpop.permute.xlu0 %3593
  %v3595 = vsel %vm60, %v3592, %v3594
  %3598 = vrot.lane.b32.xlu0 %v3569, 126
  %v3599 = vpop.permute.xlu0 %3598
  %3600 = vrot.lane.b32.xlu0 %v3573, 126
  %v3601 = vpop.permute.xlu0 %3600
  %v3602 = vsel %vm85, %v3599, %v3601
  %v3603 = vrot.slane %v3378, 6
  %v3604 = vrot.slane %v3379, 6
  %3605 = vrot.lane.b32.xlu0 %v3603, 120
  %v3606 = vpop.permute.xlu0 %3605
  %3607 = vrot.lane.b32.xlu0 %v3604, 120
  %v3608 = vpop.permute.xlu0 %3607
  %v3609 = vsel %vm540, %v3606, %v3608
  %v3613 = vshrl.u32 %v3398, 16
  %v3615 = vrot.slane %v3613, 6
  %v3617 = vshrl.u32 %v3399, 16
  %v3619 = vrot.slane %v3617, 6
  %3620 = vrot.lane.b32.xlu0 %v3615, 120
  %v3621 = vpop.permute.xlu0 %3620
  %3622 = vrot.lane.b32.xlu0 %v3619, 120
  %v3623 = vpop.permute.xlu0 %3622
  %v3624 = vsel %vm540, %v3621, %v3623
  %v3625 = vrot.slane %v3378, 5
  %v3626 = vrot.slane %v3379, 5
  %3627 = vrot.lane.b32.xlu0 %v3625, 119
  %v3628 = vpop.permute.xlu0 %3627
  %3629 = vrot.lane.b32.xlu0 %v3626, 119
  %v3630 = vpop.permute.xlu0 %3629
  %v3631 = vsel %vm175, %v3628, %v3630
  %v3634 = vrot.slane %v3613, 5
  %v3635 = vrot.slane %v3617, 5
  %3636 = vrot.lane.b32.xlu0 %v3634, 119
  %v3637 = vpop.permute.xlu0 %3636
  %3638 = vrot.lane.b32.xlu0 %v3635, 119
  %v3639 = vpop.permute.xlu0 %3638
  %v3640 = vsel %vm175, %v3637, %v3639
  %3641 = vrot.lane.b32.xlu0 %v3378, 118
  %v3642 = vpop.permute.xlu0 %3641
  %3643 = vrot.lane.b32.xlu0 %v3379, 118
  %v3644 = vpop.permute.xlu0 %3643
  %v3645 = vsel %vm653, %v3642, %v3644
  %v3648 = vrot.slane %v3613, 4
  %v3649 = vrot.slane %v3617, 4
  %3650 = vrot.lane.b32.xlu0 %v3648, 118
  %v3651 = vpop.permute.xlu0 %3650
  %3652 = vrot.lane.b32.xlu0 %v3649, 118
  %v3653 = vpop.permute.xlu0 %3652
  %v3654 = vsel %vm653, %v3651, %v3653
  %v3655 = vrot.slane %v3378, 3
  %v3656 = vrot.slane %v3379, 3
  %3657 = vrot.lane.b32.xlu0 %v3655, 117
  %v3658 = vpop.permute.xlu0 %3657
  %3659 = vrot.lane.b32.xlu0 %v3656, 117
  %v3660 = vpop.permute.xlu0 %3659
  %v3661 = vsel %vm3076, %v3658, %v3660
  %v3664 = vrot.slane %v3569, 4
  %v3665 = vrot.slane %v3573, 4
  %3666 = vrot.lane.b32.xlu0 %v3664, 120
  %v3667 = vpop.permute.xlu0 %3666
  %3668 = vrot.lane.b32.xlu0 %v3665, 120
  %v3669 = vpop.permute.xlu0 %3668
  %v3670 = vsel %vm540, %v3667, %v3669
  %v3671 = vrot.slane %v3342, 5
  %v3672 = vrot.slane %v3343, 5
  %3673 = vrot.lane.b32.xlu0 %v3671, 120
  %v3674 = vpop.permute.xlu0 %3673
  %3675 = vrot.lane.b32.xlu0 %v3672, 120
  %v3676 = vpop.permute.xlu0 %3675
  %v3677 = vsel %vm540, %v3674, %v3676
  %v3680 = vrot.slane %v3569, 3
  %v3681 = vrot.slane %v3573, 3
  %3682 = vrot.lane.b32.xlu0 %v3680, 119
  %v3683 = vpop.permute.xlu0 %3682
  %3684 = vrot.lane.b32.xlu0 %v3681, 119
  %v3685 = vpop.permute.xlu0 %3684
  %v3686 = vsel %vm175, %v3683, %v3685
  %3687 = vrot.lane.b32.xlu0 %v3342, 119
  %v3688 = vpop.permute.xlu0 %3687
  %3689 = vrot.lane.b32.xlu0 %v3343, 119
  %v3690 = vpop.permute.xlu0 %3689
  %v3691 = vsel %vm175, %v3688, %v3690
  %v3694 = vsel %vm187, %v3571, %v3578
  %v3695 = vsel %vm187, %v3575, %v3579
  %v3698 = vsel %vm189, %v3694, %v3588
  %v3702 = vsel %vm189, %v3695, %v3587
  %v3704 = vsel %vm196, %v3698, %v3595
  %v3705 = vsel %vm196, %v3702, %v3594
  %v3708 = vsel %vm198, %v3704, %v3602
  %v3712 = vsel %vm198, %v3705, %v3601
  %v3714 = vsel %vm205, %v3708, %v3609
  %v3715 = vsel %vm205, %v3712, %v3608
  %v3718 = vsel %vm207, %v3714, %v3624
  %v3722 = vsel %vm207, %v3715, %v3623
  %v3724 = vsel %vm214, %v3718, %v3631
  %v3725 = vsel %vm214, %v3722, %v3630
  %v3728 = vsel %vm216, %v3724, %v3640
  %v3732 = vsel %vm216, %v3725, %v3639
  %v3734 = vsel %vm223, %v3728, %v3645
  %v3735 = vsel %vm223, %v3732, %v3644
  %v3738 = vsel %vm225, %v3734, %v3654
  %v3742 = vsel %vm225, %v3735, %v3653
  %v3744 = vsel %vm232, %v3738, %v3661
  %v3745 = vsel %vm232, %v3742, %v3660
  %v3748 = vsel %vm234, %v3744, %v3670
  %v3752 = vsel %vm234, %v3745, %v3669
  %v3754 = vsel %vm241, %v3748, %v3677
  %v3755 = vsel %vm241, %v3752, %v3676
  %v3758 = vsel %vm243, %v3754, %v3686
  %v3762 = vsel %vm243, %v3755, %v3685
  %v3764 = vsel %vm250, %v3758, %v3691
  %v3765 = vsel %vm250, %v3762, %v3690
  %v3768 = vunpack.c.l.b16 %v3764
  %v3769 = vunpack.c.l.b16 %v3765
  %v3770 = vunpack.c.h.b16 %v3764
  %v3771 = vunpack.c.h.b16 %v3765
  %v3772 = vpack.c.b16 %v3769, %v3768
  %v3773 = vpack.c.b16 %v3771, %v3770
  %3774 = vrot.lane.b32.xlu0 %v3772, 118
  %v3775 = vpop.permute.xlu0 %3774
  %3776 = vrot.lane.b32.xlu0 %v3773, 118
  %v3777 = vpop.permute.xlu0 %3776
  %v3778 = vrot.slane %v3775, 4
  %v3779 = vrot.slane %v3777, 4
  %v3780 = vsel %vm653, %v3775, %v3778
  %v3781 = vsel %vm653, %v3777, %v3779
  %3784 = vst [vmem:[#allocation2 + $0x54] sm:$0xf] %v3780
  %3785 = vst [vmem:[#allocation2 + $0x74] sm:$0xf] %v3781
  %v3786 = vld [vmem:[%s0] sm:$0x30]
  %v3787 = vld [vmem:[%s0 + $0x8] sm:$0x30]
  %v3788 = vpack.c.bf16 %v3787, %v3786
  %v3789 = vld [vmem:[%s0] sm:$0xc0]
  %v3790 = vld [vmem:[%s0 + $0x8] sm:$0xc0]
  %v3791 = vpack.c.bf16 %v3790, %v3789
  %v3792 = vld [vmem:[%s0] sm:$0x3]
  %v3793 = vld [vmem:[%s0 + $0x8] sm:$0x3]
  %v3794 = vpack.c.bf16 %v3793, %v3792
  %v3795 = vld [vmem:[%s0] sm:$0xc]
  %v3796 = vld [vmem:[%s0 + $0x8] sm:$0xc]
  %v3797 = vpack.c.bf16 %v3796, %v3795
  %v3799 = vunpack.c.l.b16 %v3788
  %v3800 = vunpack.c.h.b16 %v3788
  %v3801 = vpack.c.b16 %v3799, %v3799
  %v3802 = vpack.c.b16 %v3800, %v3800
  %v3803 = vrot.slane %v3801, 2
  %v3804 = vrot.slane %v3802, 2
  %v3808 = vunpack.c.l.b16 %v3791
  %v3809 = vunpack.c.h.b16 %v3791
  %v3810 = vpack.c.b16 %v3808, %v3808
  %v3811 = vpack.c.b16 %v3809, %v3809
  %v3813 = vshll.u32 %v3810, 16
  %v3815 = vrot.slane %v3813, 3
  %v3817 = vshll.u32 %v3811, 16
  %v3819 = vrot.slane %v3817, 3
  %v3822 = vrot.slane %v3801, 1
  %v3823 = vrot.slane %v3802, 1
  %3824 = vrot.lane.b32.xlu0 %v3822, 127
  %v3825 = vpop.permute.xlu0 %3824
  %3826 = vrot.lane.b32.xlu0 %v3823, 127
  %v3827 = vpop.permute.xlu0 %3826
  %v3828 = vsel %vm60, %v3825, %v3827
  %v3830 = vunpack.c.l.b16 %v3794
  %v3831 = vunpack.c.h.b16 %v3794
  %v3832 = vpack.c.b16 %v3830, %v3830
  %v3833 = vpack.c.b16 %v3831, %v3831
  %v3835 = vshll.u32 %v3832, 16
  %v3837 = vrot.slane %v3835, 7
  %v3839 = vshll.u32 %v3833, 16
  %v3841 = vrot.slane %v3839, 7
  %3842 = vrot.lane.b32.xlu0 %v3837, 121
  %v3843 = vpop.permute.xlu0 %3842
  %3844 = vrot.lane.b32.xlu0 %v3841, 121
  %v3845 = vpop.permute.xlu0 %3844
  %v3846 = vsel %vm973, %v3843, %v3845
  %v3850 = vunpack.c.l.b16 %v3797
  %v3851 = vunpack.c.h.b16 %v3797
  %v3852 = vpack.c.b16 %v3850, %v3850
  %v3853 = vpack.c.b16 %v3851, %v3851
  %v3854 = vrot.slane %v3852, 7
  %v3855 = vrot.slane %v3853, 7
  %3856 = vrot.lane.b32.xlu0 %v3854, 121
  %v3857 = vpop.permute.xlu0 %3856
  %3858 = vrot.lane.b32.xlu0 %v3855, 121
  %v3859 = vpop.permute.xlu0 %3858
  %v3860 = vsel %vm973, %v3857, %v3859
  %v3861 = vrot.slane %v3835, 6
  %v3862 = vrot.slane %v3839, 6
  %3863 = vrot.lane.b32.xlu0 %v3861, 120
  %v3864 = vpop.permute.xlu0 %3863
  %3865 = vrot.lane.b32.xlu0 %v3862, 120
  %v3866 = vpop.permute.xlu0 %3865
  %v3867 = vsel %vm540, %v3864, %v3866
  %v3870 = vrot.slane %v3852, 6
  %v3871 = vrot.slane %v3853, 6
  %3872 = vrot.lane.b32.xlu0 %v3870, 120
  %v3873 = vpop.permute.xlu0 %3872
  %3874 = vrot.lane.b32.xlu0 %v3871, 120
  %v3875 = vpop.permute.xlu0 %3874
  %v3876 = vsel %vm540, %v3873, %v3875
  %v3877 = vrot.slane %v3835, 5
  %v3878 = vrot.slane %v3839, 5
  %3879 = vrot.lane.b32.xlu0 %v3877, 119
  %v3880 = vpop.permute.xlu0 %3879
  %3881 = vrot.lane.b32.xlu0 %v3878, 119
  %v3882 = vpop.permute.xlu0 %3881
  %v3883 = vsel %vm175, %v3880, %v3882
  %v3886 = vrot.slane %v3852, 5
  %v3887 = vrot.slane %v3853, 5
  %3888 = vrot.lane.b32.xlu0 %v3886, 119
  %v3889 = vpop.permute.xlu0 %3888
  %3890 = vrot.lane.b32.xlu0 %v3887, 119
  %v3891 = vpop.permute.xlu0 %3890
  %v3892 = vsel %vm175, %v3889, %v3891
  %v3893 = vrot.slane %v3835, 4
  %v3894 = vrot.slane %v3839, 4
  %3895 = vrot.lane.b32.xlu0 %v3893, 118
  %v3896 = vpop.permute.xlu0 %3895
  %3897 = vrot.lane.b32.xlu0 %v3894, 118
  %v3898 = vpop.permute.xlu0 %3897
  %v3899 = vsel %vm653, %v3896, %v3898
  %v3902 = vrot.slane %v3801, 5
  %v3903 = vrot.slane %v3802, 5
  %3904 = vrot.lane.b32.xlu0 %v3902, 121
  %v3905 = vpop.permute.xlu0 %3904
  %3906 = vrot.lane.b32.xlu0 %v3903, 121
  %v3907 = vpop.permute.xlu0 %3906
  %v3908 = vsel %vm973, %v3905, %v3907
  %v3909 = vrot.slane %v3813, 6
  %v3910 = vrot.slane %v3817, 6
  %3911 = vrot.lane.b32.xlu0 %v3909, 121
  %v3912 = vpop.permute.xlu0 %3911
  %3913 = vrot.lane.b32.xlu0 %v3910, 121
  %v3914 = vpop.permute.xlu0 %3913
  %v3915 = vsel %vm973, %v3912, %v3914
  %3918 = vrot.lane.b32.xlu0 %v3801, 120
  %v3919 = vpop.permute.xlu0 %3918
  %3920 = vrot.lane.b32.xlu0 %v3802, 120
  %v3921 = vpop.permute.xlu0 %3920
  %v3922 = vsel %vm540, %v3919, %v3921
  %v3923 = vrot.slane %v3813, 5
  %v3924 = vrot.slane %v3817, 5
  %3925 = vrot.lane.b32.xlu0 %v3923, 120
  %v3926 = vpop.permute.xlu0 %3925
  %3927 = vrot.lane.b32.xlu0 %v3924, 120
  %v3928 = vpop.permute.xlu0 %3927
  %v3929 = vsel %vm540, %v3926, %v3928
  %v3932 = vrot.slane %v3801, 3
  %v3933 = vrot.slane %v3802, 3
  %3934 = vrot.lane.b32.xlu0 %v3932, 119
  %v3935 = vpop.permute.xlu0 %3934
  %3936 = vrot.lane.b32.xlu0 %v3933, 119
  %v3937 = vpop.permute.xlu0 %3936
  %v3938 = vsel %vm175, %v3935, %v3937
  %v3939 = vrot.slane %v3813, 4
  %v3940 = vrot.slane %v3817, 4
  %3941 = vrot.lane.b32.xlu0 %v3939, 119
  %v3942 = vpop.permute.xlu0 %3941
  %3943 = vrot.lane.b32.xlu0 %v3940, 119
  %v3944 = vpop.permute.xlu0 %3943
  %v3945 = vsel %vm175, %v3942, %v3944
  %v3948 = vsel %vm187, %v3803, %v3815
  %v3949 = vsel %vm187, %v3804, %v3819
  %v3952 = vsel %vm189, %v3948, %v3828
  %v3956 = vsel %vm189, %v3949, %v3827
  %v3958 = vsel %vm196, %v3952, %v3846
  %v3959 = vsel %vm196, %v3956, %v3845
  %v3962 = vsel %vm198, %v3958, %v3860
  %v3966 = vsel %vm198, %v3959, %v3859
  %v3968 = vsel %vm205, %v3962, %v3867
  %v3969 = vsel %vm205, %v3966, %v3866
  %v3972 = vsel %vm207, %v3968, %v3876
  %v3976 = vsel %vm207, %v3969, %v3875
  %v3978 = vsel %vm214, %v3972, %v3883
  %v3979 = vsel %vm214, %v3976, %v3882
  %v3982 = vsel %vm216, %v3978, %v3892
  %v3986 = vsel %vm216, %v3979, %v3891
  %v3988 = vsel %vm223, %v3982, %v3899
  %v3989 = vsel %vm223, %v3986, %v3898
  %v3992 = vsel %vm225, %v3988, %v3908
  %v3996 = vsel %vm225, %v3989, %v3907
  %v3998 = vsel %vm232, %v3992, %v3915
  %v3999 = vsel %vm232, %v3996, %v3914
  %v4002 = vsel %vm234, %v3998, %v3922
  %v4006 = vsel %vm234, %v3999, %v3921
  %v4008 = vsel %vm241, %v4002, %v3929
  %v4009 = vsel %vm241, %v4006, %v3928
  %v4012 = vsel %vm243, %v4008, %v3938
  %v4016 = vsel %vm243, %v4009, %v3937
  %v4018 = vsel %vm250, %v4012, %v3945
  %v4019 = vsel %vm250, %v4016, %v3944
  %v4022 = vunpack.c.l.b16 %v4018
  %v4023 = vunpack.c.l.b16 %v4019
  %v4024 = vunpack.c.h.b16 %v4018
  %v4025 = vunpack.c.h.b16 %v4019
  %v4026 = vpack.c.b16 %v4023, %v4022
  %v4027 = vpack.c.b16 %v4025, %v4024
  %4028 = vrot.lane.b32.xlu0 %v4026, 108
  %v4029 = vpop.permute.xlu0 %4028
  %4030 = vrot.lane.b32.xlu0 %v4027, 108
  %v4031 = vpop.permute.xlu0 %4030
  %v4032 = vrot.slane %v4029, 4
  %v4033 = vrot.slane %v4031, 4
  %v4034 = vsel %vm1102, %v4029, %v4032
  %v4035 = vsel %vm1102, %v4031, %v4033
  %4038 = vst [vmem:[#allocation2 + $0x90] sm:$0xf] %v4034
  %4039 = vst [vmem:[#allocation2 + $0xb0] sm:$0xf] %v4035
  %v4041 = vshrl.u32 %v3801, 16
  %v4043 = vrot.slane %v4041, 2
  %v4045 = vshrl.u32 %v3802, 16
  %v4047 = vrot.slane %v4045, 2
  %v4050 = vrot.slane %v3810, 3
  %v4051 = vrot.slane %v3811, 3
  %v4054 = vrot.slane %v4041, 1
  %v4055 = vrot.slane %v4045, 1
  %4056 = vrot.lane.b32.xlu0 %v4054, 127
  %v4057 = vpop.permute.xlu0 %4056
  %4058 = vrot.lane.b32.xlu0 %v4055, 127
  %v4059 = vpop.permute.xlu0 %4058
  %v4060 = vsel %vm60, %v4057, %v4059
  %v4061 = vrot.slane %v3832, 7
  %v4062 = vrot.slane %v3833, 7
  %4063 = vrot.lane.b32.xlu0 %v4061, 121
  %v4064 = vpop.permute.xlu0 %4063
  %4065 = vrot.lane.b32.xlu0 %v4062, 121
  %v4066 = vpop.permute.xlu0 %4065
  %v4067 = vsel %vm973, %v4064, %v4066
  %v4071 = vshrl.u32 %v3852, 16
  %v4073 = vrot.slane %v4071, 7
  %v4075 = vshrl.u32 %v3853, 16
  %v4077 = vrot.slane %v4075, 7
  %4078 = vrot.lane.b32.xlu0 %v4073, 121
  %v4079 = vpop.permute.xlu0 %4078
  %4080 = vrot.lane.b32.xlu0 %v4077, 121
  %v4081 = vpop.permute.xlu0 %4080
  %v4082 = vsel %vm973, %v4079, %v4081
  %v4083 = vrot.slane %v3832, 6
  %v4084 = vrot.slane %v3833, 6
  %4085 = vrot.lane.b32.xlu0 %v4083, 120
  %v4086 = vpop.permute.xlu0 %4085
  %4087 = vrot.lane.b32.xlu0 %v4084, 120
  %v4088 = vpop.permute.xlu0 %4087
  %v4089 = vsel %vm540, %v4086, %v4088
  %v4092 = vrot.slane %v4071, 6
  %v4093 = vrot.slane %v4075, 6
  %4094 = vrot.lane.b32.xlu0 %v4092, 120
  %v4095 = vpop.permute.xlu0 %4094
  %4096 = vrot.lane.b32.xlu0 %v4093, 120
  %v4097 = vpop.permute.xlu0 %4096
  %v4098 = vsel %vm540, %v4095, %v4097
  %v4099 = vrot.slane %v3832, 5
  %v4100 = vrot.slane %v3833, 5
  %4101 = vrot.lane.b32.xlu0 %v4099, 119
  %v4102 = vpop.permute.xlu0 %4101
  %4103 = vrot.lane.b32.xlu0 %v4100, 119
  %v4104 = vpop.permute.xlu0 %4103
  %v4105 = vsel %vm175, %v4102, %v4104
  %v4108 = vrot.slane %v4071, 5
  %v4109 = vrot.slane %v4075, 5
  %4110 = vrot.lane.b32.xlu0 %v4108, 119
  %v4111 = vpop.permute.xlu0 %4110
  %4112 = vrot.lane.b32.xlu0 %v4109, 119
  %v4113 = vpop.permute.xlu0 %4112
  %v4114 = vsel %vm175, %v4111, %v4113
  %4115 = vrot.lane.b32.xlu0 %v3832, 118
  %v4116 = vpop.permute.xlu0 %4115
  %4117 = vrot.lane.b32.xlu0 %v3833, 118
  %v4118 = vpop.permute.xlu0 %4117
  %v4119 = vsel %vm653, %v4116, %v4118
  %v4122 = vrot.slane %v4041, 5
  %v4123 = vrot.slane %v4045, 5
  %4124 = vrot.lane.b32.xlu0 %v4122, 121
  %v4125 = vpop.permute.xlu0 %4124
  %4126 = vrot.lane.b32.xlu0 %v4123, 121
  %v4127 = vpop.permute.xlu0 %4126
  %v4128 = vsel %vm973, %v4125, %v4127
  %v4129 = vrot.slane %v3810, 6
  %v4130 = vrot.slane %v3811, 6
  %4131 = vrot.lane.b32.xlu0 %v4129, 121
  %v4132 = vpop.permute.xlu0 %4131
  %4133 = vrot.lane.b32.xlu0 %v4130, 121
  %v4134 = vpop.permute.xlu0 %4133
  %v4135 = vsel %vm973, %v4132, %v4134
  %v4138 = vrot.slane %v4041, 4
  %v4139 = vrot.slane %v4045, 4
  %4140 = vrot.lane.b32.xlu0 %v4138, 120
  %v4141 = vpop.permute.xlu0 %4140
  %4142 = vrot.lane.b32.xlu0 %v4139, 120
  %v4143 = vpop.permute.xlu0 %4142
  %v4144 = vsel %vm540, %v4141, %v4143
  %v4145 = vrot.slane %v3810, 5
  %v4146 = vrot.slane %v3811, 5
  %4147 = vrot.lane.b32.xlu0 %v4145, 120
  %v4148 = vpop.permute.xlu0 %4147
  %4149 = vrot.lane.b32.xlu0 %v4146, 120
  %v4150 = vpop.permute.xlu0 %4149
  %v4151 = vsel %vm540, %v4148, %v4150
  %v4154 = vrot.slane %v4041, 3
  %v4155 = vrot.slane %v4045, 3
  %4156 = vrot.lane.b32.xlu0 %v4154, 119
  %v4157 = vpop.permute.xlu0 %4156
  %4158 = vrot.lane.b32.xlu0 %v4155, 119
  %v4159 = vpop.permute.xlu0 %4158
  %v4160 = vsel %vm175, %v4157, %v4159
  %4161 = vrot.lane.b32.xlu0 %v3810, 119
  %v4162 = vpop.permute.xlu0 %4161
  %4163 = vrot.lane.b32.xlu0 %v3811, 119
  %v4164 = vpop.permute.xlu0 %4163
  %v4165 = vsel %vm175, %v4162, %v4164
  %v4168 = vsel %vm187, %v4043, %v4050
  %v4169 = vsel %vm187, %v4047, %v4051
  %v4172 = vsel %vm189, %v4168, %v4060
  %v4176 = vsel %vm189, %v4169, %v4059
  %v4178 = vsel %vm196, %v4172, %v4067
  %v4179 = vsel %vm196, %v4176, %v4066
  %v4182 = vsel %vm198, %v4178, %v4082
  %v4186 = vsel %vm198, %v4179, %v4081
  %v4188 = vsel %vm205, %v4182, %v4089
  %v4189 = vsel %vm205, %v4186, %v4088
  %v4192 = vsel %vm207, %v4188, %v4098
  %v4196 = vsel %vm207, %v4189, %v4097
  %v4198 = vsel %vm214, %v4192, %v4105
  %v4199 = vsel %vm214, %v4196, %v4104
  %v4202 = vsel %vm216, %v4198, %v4114
  %v4206 = vsel %vm216, %v4199, %v4113
  %v4208 = vsel %vm223, %v4202, %v4119
  %v4209 = vsel %vm223, %v4206, %v4118
  %v4212 = vsel %vm225, %v4208, %v4128
  %v4216 = vsel %vm225, %v4209, %v4127
  %v4218 = vsel %vm232, %v4212, %v4135
  %v4219 = vsel %vm232, %v4216, %v4134
  %v4222 = vsel %vm234, %v4218, %v4144
  %v4226 = vsel %vm234, %v4219, %v4143
  %v4228 = vsel %vm241, %v4222, %v4151
  %v4229 = vsel %vm241, %v4226, %v4150
  %v4232 = vsel %vm243, %v4228, %v4160
  %v4236 = vsel %vm243, %v4229, %v4159
  %v4238 = vsel %vm250, %v4232, %v4165
  %v4239 = vsel %vm250, %v4236, %v4164
  %v4242 = vunpack.c.l.b16 %v4238
  %v4243 = vunpack.c.l.b16 %v4239
  %v4244 = vunpack.c.h.b16 %v4238
  %v4245 = vunpack.c.h.b16 %v4239
  %v4246 = vpack.c.b16 %v4243, %v4242
  %v4247 = vpack.c.b16 %v4245, %v4244
  %4248 = vrot.lane.b32.xlu0 %v4246, 108
  %v4249 = vpop.permute.xlu0 %4248
  %4250 = vrot.lane.b32.xlu0 %v4247, 108
  %v4251 = vpop.permute.xlu0 %4250
  %v4252 = vrot.slane %v4249, 4
  %v4253 = vrot.slane %v4251, 4
  %v4254 = vsel %vm1102, %v4249, %v4252
  %v4255 = vsel %vm1102, %v4251, %v4253
  %4258 = vst [vmem:[#allocation2 + $0x94] sm:$0xf] %v4254
  %4259 = vst [vmem:[#allocation2 + $0xb4] sm:$0xf] %v4255
  %v4260 = vld [vmem:[%s0] sm:$0x30]
  %v4261 = vld [vmem:[%s0 + $0x8] sm:$0x30]
  %v4262 = vpack.c.bf16 %v4261, %v4260
  %v4264 = vunpack.c.l.b16 %v4262
  %v4265 = vunpack.c.h.b16 %v4262
  %v4266 = vpack.c.b16 %v4264, %v4264
  %v4267 = vpack.c.b16 %v4265, %v4265
  %v4268 = vrot.slane %v4266, 2
  %v4269 = vrot.slane %v4267, 2
  %v4272 = vsel %vm187, %v4268, 0
  %v4273 = vsel %vm187, %v4269, 0
  %v4275 = vsel %vm189, %v4272, 0
  %v4278 = vsel %vm189, %v4273, 0
  %v4280 = vsel %vm196, %v4275, 0
  %v4281 = vsel %vm196, %v4278, 0
  %v4283 = vsel %vm198, %v4280, 0
  %v4286 = vsel %vm198, %v4281, 0
  %v4288 = vsel %vm205, %v4283, 0
  %v4289 = vsel %vm205, %v4286, 0
  %v4291 = vsel %vm207, %v4288, 0
  %v4294 = vsel %vm207, %v4289, 0
  %v4296 = vsel %vm214, %v4291, 0
  %v4297 = vsel %vm214, %v4294, 0
  %v4299 = vsel %vm216, %v4296, 0
  %v4302 = vsel %vm216, %v4297, 0
  %v4304 = vsel %vm223, %v4299, 0
  %v4305 = vsel %vm223, %v4302, 0
  %v4307 = vsel %vm225, %v4304, 0
  %v4310 = vsel %vm225, %v4305, 0
  %v4312 = vsel %vm232, %v4307, 0
  %v4313 = vsel %vm232, %v4310, 0
  %v4315 = vsel %vm234, %v4312, 0
  %v4318 = vsel %vm234, %v4313, 0
  %v4320 = vsel %vm241, %v4315, 0
  %v4321 = vsel %vm241, %v4318, 0
  %v4323 = vsel %vm243, %v4320, 0
  %v4326 = vsel %vm243, %v4321, 0
  %v4328 = vsel %vm250, %v4323, 0
  %v4329 = vsel %vm250, %v4326, 0
  %v4332 = vunpack.c.l.b16 %v4328
  %v4333 = vunpack.c.l.b16 %v4329
  %v4334 = vunpack.c.h.b16 %v4328
  %v4335 = vunpack.c.h.b16 %v4329
  %v4336 = vpack.c.b16 %v4333, %v4332
  %v4337 = vpack.c.b16 %v4335, %v4334
  %4338 = vrot.lane.b32.xlu0 %v4336, 98
  %v4339 = vpop.permute.xlu0 %4338
  %4340 = vrot.lane.b32.xlu0 %v4337, 98
  %v4341 = vpop.permute.xlu0 %4340
  %v4342 = vrot.slane %v4339, 4
  %v4343 = vrot.slane %v4341, 4
  %v4344 = vsel %vm1398, %v4339, %v4342
  %v4345 = vsel %vm1398, %v4341, %v4343
  %4348 = vst [vmem:[#allocation2 + $0xd0] sm:$0xf] %v4344
  %4349 = vst [vmem:[#allocation2 + $0xf0] sm:$0xf] %v4345
  %v4351 = vshrl.u32 %v4266, 16
  %v4353 = vrot.slane %v4351, 2
  %v4355 = vshrl.u32 %v4267, 16
  %v4357 = vrot.slane %v4355, 2
  %v4360 = vsel %vm187, %v4353, 0
  %v4361 = vsel %vm187, %v4357, 0
  %v4363 = vsel %vm189, %v4360, 0
  %v4366 = vsel %vm189, %v4361, 0
  %v4368 = vsel %vm196, %v4363, 0
  %v4369 = vsel %vm196, %v4366, 0
  %v4371 = vsel %vm198, %v4368, 0
  %v4374 = vsel %vm198, %v4369, 0
  %v4376 = vsel %vm205, %v4371, 0
  %v4377 = vsel %vm205, %v4374, 0
  %v4379 = vsel %vm207, %v4376, 0
  %v4382 = vsel %vm207, %v4377, 0
  %v4384 = vsel %vm214, %v4379, 0
  %v4385 = vsel %vm214, %v4382, 0
  %v4387 = vsel %vm216, %v4384, 0
  %v4390 = vsel %vm216, %v4385, 0
  %v4392 = vsel %vm223, %v4387, 0
  %v4393 = vsel %vm223, %v4390, 0
  %v4395 = vsel %vm225, %v4392, 0
  %v4398 = vsel %vm225, %v4393, 0
  %v4400 = vsel %vm232, %v4395, 0
  %v4401 = vsel %vm232, %v4398, 0
  %v4403 = vsel %vm234, %v4400, 0
  %v4406 = vsel %vm234, %v4401, 0
  %v4408 = vsel %vm241, %v4403, 0
  %v4409 = vsel %vm241, %v4406, 0
  %v4411 = vsel %vm243, %v4408, 0
  %v4414 = vsel %vm243, %v4409, 0
  %v4416 = vsel %vm250, %v4411, 0
  %v4417 = vsel %vm250, %v4414, 0
  %v4420 = vunpack.c.l.b16 %v4416
  %v4421 = vunpack.c.l.b16 %v4417
  %v4422 = vunpack.c.h.b16 %v4416
  %v4423 = vunpack.c.h.b16 %v4417
  %v4424 = vpack.c.b16 %v4421, %v4420
  %v4425 = vpack.c.b16 %v4423, %v4422
  %4426 = vrot.lane.b32.xlu0 %v4424, 98
  %v4427 = vpop.permute.xlu0 %4426
  %4428 = vrot.lane.b32.xlu0 %v4425, 98
  %v4429 = vpop.permute.xlu0 %4428
  %v4430 = vrot.slane %v4427, 4
  %v4431 = vrot.slane %v4429, 4
  %v4432 = vsel %vm1398, %v4427, %v4430
  %v4433 = vsel %vm1398, %v4429, %v4431
  %4436 = vst [vmem:[#allocation2 + $0xd4] sm:$0xf] %v4432
  %4437 = vst [vmem:[#allocation2 + $0xf4] sm:$0xf] %v4433
  %v4438 = vld [vmem:[%s0] sm:$0xc0]
  %v4439 = vpack.c.bf16 %v4438, %v4438
  %v4440 = vld [vmem:[%s0] sm:$0x30]
  %v4441 = vld [vmem:[%s0 + $0x8] sm:$0x30]
  %v4442 = vpack.c.bf16 %v4441, %v4440
  %v4443 = vld [vmem:[%s0] sm:$0xc0]
  %v4444 = vld [vmem:[%s0 + $0x8] sm:$0xc0]
  %v4445 = vpack.c.bf16 %v4444, %v4443
  %v4446 = vld [vmem:[%s0] sm:$0xc]
  %v4447 = vld [vmem:[%s0 + $0x8] sm:$0xc]
  %v4448 = vpack.c.bf16 %v4447, %v4446
  %v4449 = vld [vmem:[%s0] sm:$0x3]
  %v4450 = vld [vmem:[%s0 + $0x8] sm:$0x3]
  %v4451 = vpack.c.bf16 %v4450, %v4449
  %v4453 = vunpack.c.l.b16 %v4439
  %v4454 = vpack.c.b16 %v4453, %v4453
  %v4455 = vrot.slane %v4454, 3
  %v4458 = vunpack.c.l.b16 %v4442
  %v4459 = vunpack.c.h.b16 %v4442
  %v4460 = vpack.c.b16 %v4458, %v4458
  %v4461 = vpack.c.b16 %v4459, %v4459
  %v4463 = vshll.u32 %v4460, 16
  %v4465 = vrot.slane %v4463, 2
  %v4467 = vshll.u32 %v4461, 16
  %v4469 = vrot.slane %v4467, 2
  %4470 = vrot.lane.b32.xlu0 %v4465, 127
  %v4471 = vpop.permute.xlu0 %4470
  %4472 = vrot.lane.b32.xlu0 %v4469, 127
  %v4473 = vpop.permute.xlu0 %4472
  %v4474 = vsel %vm60, %v4471, %v4473
  %v4477 = vunpack.c.l.b16 %v4445
  %v4478 = vunpack.c.h.b16 %v4445
  %v4479 = vpack.c.b16 %v4477, %v4477
  %v4480 = vpack.c.b16 %v4478, %v4478
  %v4481 = vrot.slane %v4479, 2
  %v4482 = vrot.slane %v4480, 2
  %4483 = vrot.lane.b32.xlu0 %v4481, 127
  %v4484 = vpop.permute.xlu0 %4483
  %4485 = vrot.lane.b32.xlu0 %v4482, 127
  %v4486 = vpop.permute.xlu0 %4485
  %v4487 = vsel %vm60, %v4484, %v4486
  %v4488 = vrot.slane %v4463, 1
  %v4489 = vrot.slane %v4467, 1
  %4490 = vrot.lane.b32.xlu0 %v4488, 126
  %v4491 = vpop.permute.xlu0 %4490
  %4492 = vrot.lane.b32.xlu0 %v4489, 126
  %v4493 = vpop.permute.xlu0 %4492
  %v4494 = vsel %vm85, %v4491, %v4493
  %v4496 = vrot.slane %v4479, 1
  %v4497 = vrot.slane %v4480, 1
  %4498 = vrot.lane.b32.xlu0 %v4496, 126
  %v4499 = vpop.permute.xlu0 %4498
  %4500 = vrot.lane.b32.xlu0 %v4497, 126
  %v4501 = vpop.permute.xlu0 %4500
  %v4502 = vsel %vm85, %v4499, %v4501
  %4503 = vrot.lane.b32.xlu0 %v4463, 125
  %v4504 = vpop.permute.xlu0 %4503
  %4505 = vrot.lane.b32.xlu0 %v4467, 125
  %v4506 = vpop.permute.xlu0 %4505
  %v4507 = vsel %vm101, %v4504, %v4506
  %4509 = vrot.lane.b32.xlu0 %v4479, 125
  %v4510 = vpop.permute.xlu0 %4509
  %4511 = vrot.lane.b32.xlu0 %v4480, 125
  %v4512 = vpop.permute.xlu0 %4511
  %v4513 = vsel %vm101, %v4510, %v4512
  %v4515 = vunpack.c.l.b16 %v4448
  %v4516 = vunpack.c.h.b16 %v4448
  %v4517 = vpack.c.b16 %v4515, %v4515
  %v4518 = vpack.c.b16 %v4516, %v4516
  %v4520 = vshll.u32 %v4517, 16
  %v4522 = vrot.slane %v4520, 6
  %v4524 = vshll.u32 %v4518, 16
  %v4526 = vrot.slane %v4524, 6
  %4527 = vrot.lane.b32.xlu0 %v4522, 119
  %v4528 = vpop.permute.xlu0 %4527
  %4529 = vrot.lane.b32.xlu0 %v4526, 119
  %v4530 = vpop.permute.xlu0 %4529
  %v4531 = vsel %vm175, %v4528, %v4530
  %v4534 = vunpack.c.l.b16 %v4451
  %v4535 = vunpack.c.h.b16 %v4451
  %v4536 = vpack.c.b16 %v4534, %v4534
  %v4537 = vpack.c.b16 %v4535, %v4535
  %4538 = vrot.lane.b32.xlu0 %v4536, 118
  %v4539 = vpop.permute.xlu0 %4538
  %4540 = vrot.lane.b32.xlu0 %v4537, 118
  %v4541 = vpop.permute.xlu0 %4540
  %v4542 = vsel %vm653, %v4539, %v4541
  %v4543 = vrot.slane %v4520, 5
  %v4544 = vrot.slane %v4524, 5
  %4545 = vrot.lane.b32.xlu0 %v4543, 118
  %v4546 = vpop.permute.xlu0 %4545
  %4547 = vrot.lane.b32.xlu0 %v4544, 118
  %v4548 = vpop.permute.xlu0 %4547
  %v4549 = vsel %vm653, %v4546, %v4548
  %v4551 = vrot.slane %v4536, 3
  %v4552 = vrot.slane %v4537, 3
  %4553 = vrot.lane.b32.xlu0 %v4551, 117
  %v4554 = vpop.permute.xlu0 %4553
  %4555 = vrot.lane.b32.xlu0 %v4552, 117
  %v4556 = vpop.permute.xlu0 %4555
  %v4557 = vsel %vm3076, %v4554, %v4556
  %v4558 = vrot.slane %v4520, 4
  %v4559 = vrot.slane %v4524, 4
  %4560 = vrot.lane.b32.xlu0 %v4558, 117
  %v4561 = vpop.permute.xlu0 %4560
  %4562 = vrot.lane.b32.xlu0 %v4559, 117
  %v4563 = vpop.permute.xlu0 %4562
  %v4564 = vsel %vm3076, %v4561, %v4563
  %v4566 = vrot.slane %v4536, 2
  %v4567 = vrot.slane %v4537, 2
  %4568 = vrot.lane.b32.xlu0 %v4566, 116
  %v4569 = vpop.permute.xlu0 %4568
  %4570 = vrot.lane.b32.xlu0 %v4567, 116
  %v4571 = vpop.permute.xlu0 %4570
  %v4572 = vsel %vm3092, %v4569, %v4571
  %v4573 = vrot.slane %v4520, 3
  %v4574 = vrot.slane %v4524, 3
  %4575 = vrot.lane.b32.xlu0 %v4573, 116
  %v4576 = vpop.permute.xlu0 %4575
  %4577 = vrot.lane.b32.xlu0 %v4574, 116
  %v4578 = vpop.permute.xlu0 %4577
  %v4579 = vsel %vm3092, %v4576, %v4578
  %4581 = vrot.lane.b32.xlu0 %v4479, 119
  %v4582 = vpop.permute.xlu0 %4581
  %4583 = vrot.lane.b32.xlu0 %v4480, 119
  %v4584 = vpop.permute.xlu0 %4583
  %v4585 = vsel %vm175, %v4582, %v4584
  %v4586 = vrot.slane %v4463, 3
  %v4587 = vrot.slane %v4467, 3
  %4588 = vrot.lane.b32.xlu0 %v4586, 118
  %v4589 = vpop.permute.xlu0 %4588
  %4590 = vrot.lane.b32.xlu0 %v4587, 118
  %v4591 = vpop.permute.xlu0 %4590
  %v4592 = vsel %vm653, %v4589, %v4591
  %v4594 = vsel %vm187, %v4455, %v4474
  %v4597 = vsel %vm189, %v4594, %v4487
  %v4599 = vsel %vm196, %v4597, %v4494
  %v4602 = vsel %vm198, %v4599, %v4502
  %v4604 = vsel %vm205, %v4602, %v4507
  %v4607 = vsel %vm207, %v4604, %v4513
  %v4609 = vsel %vm214, %v4607, %v4531
  %v4612 = vsel %vm216, %v4609, %v4542
  %v4614 = vsel %vm223, %v4612, %v4549
  %v4617 = vsel %vm225, %v4614, %v4557
  %v4619 = vsel %vm232, %v4617, %v4564
  %v4622 = vsel %vm234, %v4619, %v4572
  %v4624 = vsel %vm241, %v4622, %v4579
  %v4627 = vsel %vm243, %v4624, %v4585
  %v4629 = vsel %vm250, %v4627, %v4592
  %v4631 = vunpack.c.l.b16 %v4629
  %v4632 = vunpack.c.h.b16 %v4629
  %v4633 = vpack.c.b16 %v4631, %v4631
  %v4634 = vpack.c.b16 %v4632, %v4632
  %4637 = vst [vmem:[#allocation2 + $0x18] sm:$0xf] %v4633
  %4638 = vst [vmem:[#allocation2 + $0x38] sm:$0xf] %v4634
  %v4640 = vshrl.u32 %v4454, 16
  %v4642 = vrot.slane %v4640, 3
  %v4644 = vrot.slane %v4460, 2
  %v4645 = vrot.slane %v4461, 2
  %4646 = vrot.lane.b32.xlu0 %v4644, 127
  %v4647 = vpop.permute.xlu0 %4646
  %4648 = vrot.lane.b32.xlu0 %v4645, 127
  %v4649 = vpop.permute.xlu0 %4648
  %v4650 = vsel %vm60, %v4647, %v4649
  %v4653 = vshrl.u32 %v4479, 16
  %v4655 = vrot.slane %v4653, 2
  %v4657 = vshrl.u32 %v4480, 16
  %v4659 = vrot.slane %v4657, 2
  %4660 = vrot.lane.b32.xlu0 %v4655, 127
  %v4661 = vpop.permute.xlu0 %4660
  %4662 = vrot.lane.b32.xlu0 %v4659, 127
  %v4663 = vpop.permute.xlu0 %4662
  %v4664 = vsel %vm60, %v4661, %v4663
  %v4665 = vrot.slane %v4460, 1
  %v4666 = vrot.slane %v4461, 1
  %4667 = vrot.lane.b32.xlu0 %v4665, 126
  %v4668 = vpop.permute.xlu0 %4667
  %4669 = vrot.lane.b32.xlu0 %v4666, 126
  %v4670 = vpop.permute.xlu0 %4669
  %v4671 = vsel %vm85, %v4668, %v4670
  %v4673 = vrot.slane %v4653, 1
  %v4674 = vrot.slane %v4657, 1
  %4675 = vrot.lane.b32.xlu0 %v4673, 126
  %v4676 = vpop.permute.xlu0 %4675
  %4677 = vrot.lane.b32.xlu0 %v4674, 126
  %v4678 = vpop.permute.xlu0 %4677
  %v4679 = vsel %vm85, %v4676, %v4678
  %4680 = vrot.lane.b32.xlu0 %v4460, 125
  %v4681 = vpop.permute.xlu0 %4680
  %4682 = vrot.lane.b32.xlu0 %v4461, 125
  %v4683 = vpop.permute.xlu0 %4682
  %v4684 = vsel %vm101, %v4681, %v4683
  %4686 = vrot.lane.b32.xlu0 %v4653, 125
  %v4687 = vpop.permute.xlu0 %4686
  %4688 = vrot.lane.b32.xlu0 %v4657, 125
  %v4689 = vpop.permute.xlu0 %4688
  %v4690 = vsel %vm101, %v4687, %v4689
  %v4691 = vrot.slane %v4517, 6
  %v4692 = vrot.slane %v4518, 6
  %4693 = vrot.lane.b32.xlu0 %v4691, 119
  %v4694 = vpop.permute.xlu0 %4693
  %4695 = vrot.lane.b32.xlu0 %v4692, 119
  %v4696 = vpop.permute.xlu0 %4695
  %v4697 = vsel %vm175, %v4694, %v4696
  %v4700 = vshrl.u32 %v4536, 16
  %v4702 = vrot.slane %v4700, 4
  %v4704 = vshrl.u32 %v4537, 16
  %v4706 = vrot.slane %v4704, 4
  %4707 = vrot.lane.b32.xlu0 %v4702, 118
  %v4708 = vpop.permute.xlu0 %4707
  %4709 = vrot.lane.b32.xlu0 %v4706, 118
  %v4710 = vpop.permute.xlu0 %4709
  %v4711 = vsel %vm653, %v4708, %v4710
  %v4712 = vrot.slane %v4517, 5
  %v4713 = vrot.slane %v4518, 5
  %4714 = vrot.lane.b32.xlu0 %v4712, 118
  %v4715 = vpop.permute.xlu0 %4714
  %4716 = vrot.lane.b32.xlu0 %v4713, 118
  %v4717 = vpop.permute.xlu0 %4716
  %v4718 = vsel %vm653, %v4715, %v4717
  %v4720 = vrot.slane %v4700, 3
  %v4721 = vrot.slane %v4704, 3
  %4722 = vrot.lane.b32.xlu0 %v4720, 117
  %v4723 = vpop.permute.xlu0 %4722
  %4724 = vrot.lane.b32.xlu0 %v4721, 117
  %v4725 = vpop.permute.xlu0 %4724
  %v4726 = vsel %vm3076, %v4723, %v4725
  %4727 = vrot.lane.b32.xlu0 %v4517, 117
  %v4728 = vpop.permute.xlu0 %4727
  %4729 = vrot.lane.b32.xlu0 %v4518, 117
  %v4730 = vpop.permute.xlu0 %4729
  %v4731 = vsel %vm3076, %v4728, %v4730
  %v4733 = vrot.slane %v4700, 2
  %v4734 = vrot.slane %v4704, 2
  %4735 = vrot.lane.b32.xlu0 %v4733, 116
  %v4736 = vpop.permute.xlu0 %4735
  %4737 = vrot.lane.b32.xlu0 %v4734, 116
  %v4738 = vpop.permute.xlu0 %4737
  %v4739 = vsel %vm3092, %v4736, %v4738
  %v4740 = vrot.slane %v4517, 3
  %v4741 = vrot.slane %v4518, 3
  %4742 = vrot.lane.b32.xlu0 %v4740, 116
  %v4743 = vpop.permute.xlu0 %4742
  %4744 = vrot.lane.b32.xlu0 %v4741, 116
  %v4745 = vpop.permute.xlu0 %4744
  %v4746 = vsel %vm3092, %v4743, %v4745
  %v4748 = vrot.slane %v4653, 4
  %v4749 = vrot.slane %v4657, 4
  %4750 = vrot.lane.b32.xlu0 %v4748, 119
  %v4751 = vpop.permute.xlu0 %4750
  %4752 = vrot.lane.b32.xlu0 %v4749, 119
  %v4753 = vpop.permute.xlu0 %4752
  %v4754 = vsel %vm175, %v4751, %v4753
  %v4755 = vrot.slane %v4460, 3
  %v4756 = vrot.slane %v4461, 3
  %4757 = vrot.lane.b32.xlu0 %v4755, 118
  %v4758 = vpop.permute.xlu0 %4757
  %4759 = vrot.lane.b32.xlu0 %v4756, 118
  %v4760 = vpop.permute.xlu0 %4759
  %v4761 = vsel %vm653, %v4758, %v4760
  %v4763 = vsel %vm187, %v4642, %v4650
  %v4766 = vsel %vm189, %v4763, %v4664
  %v4768 = vsel %vm196, %v4766, %v4671
  %v4771 = vsel %vm198, %v4768, %v4679
  %v4773 = vsel %vm205, %v4771, %v4684
  %v4776 = vsel %vm207, %v4773, %v4690
  %v4778 = vsel %vm214, %v4776, %v4697
  %v4781 = vsel %vm216, %v4778, %v4711
  %v4783 = vsel %vm223, %v4781, %v4718
  %v4786 = vsel %vm225, %v4783, %v4726
  %v4788 = vsel %vm232, %v4786, %v4731
  %v4791 = vsel %vm234, %v4788, %v4739
  %v4793 = vsel %vm241, %v4791, %v4746
  %v4796 = vsel %vm243, %v4793, %v4754
  %v4798 = vsel %vm250, %v4796, %v4761
  %v4800 = vunpack.c.l.b16 %v4798
  %v4801 = vunpack.c.h.b16 %v4798
  %v4802 = vpack.c.b16 %v4800, %v4800
  %v4803 = vpack.c.b16 %v4801, %v4801
  %4806 = vst [vmem:[#allocation2 + $0x1c] sm:$0xf] %v4802
  %4807 = vst [vmem:[#allocation2 + $0x3c] sm:$0xf] %v4803
  %v4808 = vld [vmem:[%s0] sm:$0xc0]
  %v4809 = vld [vmem:[%s0 + $0x8] sm:$0xc0]
  %v4810 = vpack.c.bf16 %v4809, %v4808
  %v4811 = vld [vmem:[%s0] sm:$0x30]
  %v4812 = vld [vmem:[%s0 + $0x8] sm:$0x30]
  %v4813 = vpack.c.bf16 %v4812, %v4811
  %v4814 = vld [vmem:[%s0] sm:$0xc]
  %v4815 = vld [vmem:[%s0 + $0x8] sm:$0xc]
  %v4816 = vpack.c.bf16 %v4815, %v4814
  %v4817 = vld [vmem:[%s0] sm:$0x3]
  %v4818 = vld [vmem:[%s0 + $0x8] sm:$0x3]
  %v4819 = vpack.c.bf16 %v4818, %v4817
  %v4821 = vunpack.c.l.b16 %v4810
  %v4822 = vunpack.c.h.b16 %v4810
  %v4823 = vpack.c.b16 %v4821, %v4821
  %v4824 = vpack.c.b16 %v4822, %v4822
  %v4825 = vrot.slane %v4823, 3
  %v4826 = vrot.slane %v4824, 3
  %v4830 = vunpack.c.l.b16 %v4813
  %v4831 = vunpack.c.h.b16 %v4813
  %v4832 = vpack.c.b16 %v4830, %v4830
  %v4833 = vpack.c.b16 %v4831, %v4831
  %v4835 = vshll.u32 %v4832, 16
  %v4837 = vrot.slane %v4835, 2
  %v4839 = vshll.u32 %v4833, 16
  %v4841 = vrot.slane %v4839, 2
  %4842 = vrot.lane.b32.xlu0 %v4837, 127
  %v4843 = vpop.permute.xlu0 %4842
  %4844 = vrot.lane.b32.xlu0 %v4841, 127
  %v4845 = vpop.permute.xlu0 %4844
  %v4846 = vsel %vm60, %v4843, %v4845
  %v4849 = vrot.slane %v4823, 2
  %v4850 = vrot.slane %v4824, 2
  %4851 = vrot.lane.b32.xlu0 %v4849, 127
  %v4852 = vpop.permute.xlu0 %4851
  %4853 = vrot.lane.b32.xlu0 %v4850, 127
  %v4854 = vpop.permute.xlu0 %4853
  %v4855 = vsel %vm60, %v4852, %v4854
  %v4856 = vrot.slane %v4835, 1
  %v4857 = vrot.slane %v4839, 1
  %4858 = vrot.lane.b32.xlu0 %v4856, 126
  %v4859 = vpop.permute.xlu0 %4858
  %4860 = vrot.lane.b32.xlu0 %v4857, 126
  %v4861 = vpop.permute.xlu0 %4860
  %v4862 = vsel %vm85, %v4859, %v4861
  %v4865 = vrot.slane %v4823, 1
  %v4866 = vrot.slane %v4824, 1
  %4867 = vrot.lane.b32.xlu0 %v4865, 126
  %v4868 = vpop.permute.xlu0 %4867
  %4869 = vrot.lane.b32.xlu0 %v4866, 126
  %v4870 = vpop.permute.xlu0 %4869
  %v4871 = vsel %vm85, %v4868, %v4870
  %v4873 = vunpack.c.l.b16 %v4816
  %v4874 = vunpack.c.h.b16 %v4816
  %v4875 = vpack.c.b16 %v4873, %v4873
  %v4876 = vpack.c.b16 %v4874, %v4874
  %v4878 = vshll.u32 %v4875, 16
  %v4880 = vrot.slane %v4878, 7
  %v4882 = vshll.u32 %v4876, 16
  %v4884 = vrot.slane %v4882, 7
  %4885 = vrot.lane.b32.xlu0 %v4880, 120
  %v4886 = vpop.permute.xlu0 %4885
  %4887 = vrot.lane.b32.xlu0 %v4884, 120
  %v4888 = vpop.permute.xlu0 %4887
  %v4889 = vsel %vm540, %v4886, %v4888
  %v4893 = vunpack.c.l.b16 %v4819
  %v4894 = vunpack.c.h.b16 %v4819
  %v4895 = vpack.c.b16 %v4893, %v4893
  %v4896 = vpack.c.b16 %v4894, %v4894
  %v4897 = vrot.slane %v4895, 5
  %v4898 = vrot.slane %v4896, 5
  %4899 = vrot.lane.b32.xlu0 %v4897, 119
  %v4900 = vpop.permute.xlu0 %4899
  %4901 = vrot.lane.b32.xlu0 %v4898, 119
  %v4902 = vpop.permute.xlu0 %4901
  %v4903 = vsel %vm175, %v4900, %v4902
  %v4904 = vrot.slane %v4878, 6
  %v4905 = vrot.slane %v4882, 6
  %4906 = vrot.lane.b32.xlu0 %v4904, 119
  %v4907 = vpop.permute.xlu0 %4906
  %4908 = vrot.lane.b32.xlu0 %v4905, 119
  %v4909 = vpop.permute.xlu0 %4908
  %v4910 = vsel %vm175, %v4907, %v4909
  %4913 = vrot.lane.b32.xlu0 %v4895, 118
  %v4914 = vpop.permute.xlu0 %4913
  %4915 = vrot.lane.b32.xlu0 %v4896, 118
  %v4916 = vpop.permute.xlu0 %4915
  %v4917 = vsel %vm653, %v4914, %v4916
  %v4918 = vrot.slane %v4878, 5
  %v4919 = vrot.slane %v4882, 5
  %4920 = vrot.lane.b32.xlu0 %v4918, 118
  %v4921 = vpop.permute.xlu0 %4920
  %4922 = vrot.lane.b32.xlu0 %v4919, 118
  %v4923 = vpop.permute.xlu0 %4922
  %v4924 = vsel %vm653, %v4921, %v4923
  %v4927 = vrot.slane %v4895, 3
  %v4928 = vrot.slane %v4896, 3
  %4929 = vrot.lane.b32.xlu0 %v4927, 117
  %v4930 = vpop.permute.xlu0 %4929
  %4931 = vrot.lane.b32.xlu0 %v4928, 117
  %v4932 = vpop.permute.xlu0 %4931
  %v4933 = vsel %vm3076, %v4930, %v4932
  %v4934 = vrot.slane %v4878, 4
  %v4935 = vrot.slane %v4882, 4
  %4936 = vrot.lane.b32.xlu0 %v4934, 117
  %v4937 = vpop.permute.xlu0 %4936
  %4938 = vrot.lane.b32.xlu0 %v4935, 117
  %v4939 = vpop.permute.xlu0 %4938
  %v4940 = vsel %vm3076, %v4937, %v4939
  %v4943 = vrot.slane %v4823, 5
  %v4944 = vrot.slane %v4824, 5
  %4945 = vrot.lane.b32.xlu0 %v4943, 120
  %v4946 = vpop.permute.xlu0 %4945
  %4947 = vrot.lane.b32.xlu0 %v4944, 120
  %v4948 = vpop.permute.xlu0 %4947
  %v4949 = vsel %vm540, %v4946, %v4948
  %v4950 = vrot.slane %v4835, 4
  %v4951 = vrot.slane %v4839, 4
  %4952 = vrot.lane.b32.xlu0 %v4950, 119
  %v4953 = vpop.permute.xlu0 %4952
  %4954 = vrot.lane.b32.xlu0 %v4951, 119
  %v4955 = vpop.permute.xlu0 %4954
  %v4956 = vsel %vm175, %v4953, %v4955
  %4959 = vrot.lane.b32.xlu0 %v4823, 119
  %v4960 = vpop.permute.xlu0 %4959
  %4961 = vrot.lane.b32.xlu0 %v4824, 119
  %v4962 = vpop.permute.xlu0 %4961
  %v4963 = vsel %vm175, %v4960, %v4962
  %v4964 = vrot.slane %v4835, 3
  %v4965 = vrot.slane %v4839, 3
  %4966 = vrot.lane.b32.xlu0 %v4964, 118
  %v4967 = vpop.permute.xlu0 %4966
  %4968 = vrot.lane.b32.xlu0 %v4965, 118
  %v4969 = vpop.permute.xlu0 %4968
  %v4970 = vsel %vm653, %v4967, %v4969
  %v4973 = vsel %vm187, %v4825, %v4846
  %v4974 = vsel %vm187, %v4826, %v4845
  %v4977 = vsel %vm189, %v4973, %v4855
  %v4981 = vsel %vm189, %v4974, %v4854
  %v4983 = vsel %vm196, %v4977, %v4862
  %v4984 = vsel %vm196, %v4981, %v4861
  %v4987 = vsel %vm198, %v4983, %v4871
  %v4991 = vsel %vm198, %v4984, %v4870
  %v4993 = vsel %vm205, %v4987, %v4889
  %v4994 = vsel %vm205, %v4991, %v4888
  %v4997 = vsel %vm207, %v4993, %v4903
  %v5001 = vsel %vm207, %v4994, %v4902
  %v5003 = vsel %vm214, %v4997, %v4910
  %v5004 = vsel %vm214, %v5001, %v4909
  %v5007 = vsel %vm216, %v5003, %v4917
  %v5011 = vsel %vm216, %v5004, %v4916
  %v5013 = vsel %vm223, %v5007, %v4924
  %v5014 = vsel %vm223, %v5011, %v4923
  %v5017 = vsel %vm225, %v5013, %v4933
  %v5021 = vsel %vm225, %v5014, %v4932
  %v5023 = vsel %vm232, %v5017, %v4940
  %v5024 = vsel %vm232, %v5021, %v4939
  %v5027 = vsel %vm234, %v5023, %v4949
  %v5031 = vsel %vm234, %v5024, %v4948
  %v5033 = vsel %vm241, %v5027, %v4956
  %v5034 = vsel %vm241, %v5031, %v4955
  %v5037 = vsel %vm243, %v5033, %v4963
  %v5041 = vsel %vm243, %v5034, %v4962
  %v5043 = vsel %vm250, %v5037, %v4970
  %v5044 = vsel %vm250, %v5041, %v4969
  %v5047 = vunpack.c.l.b16 %v5043
  %v5048 = vunpack.c.l.b16 %v5044
  %v5049 = vunpack.c.h.b16 %v5043
  %v5050 = vunpack.c.h.b16 %v5044
  %v5051 = vpack.c.b16 %v5048, %v5047
  %v5052 = vpack.c.b16 %v5050, %v5049
  %5053 = vrot.lane.b32.xlu0 %v5051, 118
  %v5054 = vpop.permute.xlu0 %5053
  %5055 = vrot.lane.b32.xlu0 %v5052, 118
  %v5056 = vpop.permute.xlu0 %5055
  %v5057 = vrot.slane %v5054, 4
  %v5058 = vrot.slane %v5056, 4
  %v5059 = vsel %vm653, %v5054, %v5057
  %v5060 = vsel %vm653, %v5056, %v5058
  %5063 = vst [vmem:[#allocation2 + $0x58] sm:$0xf] %v5059
  %5064 = vst [vmem:[#allocation2 + $0x78] sm:$0xf] %v5060
  %v5066 = vshrl.u32 %v4823, 16
  %v5068 = vrot.slane %v5066, 3
  %v5070 = vshrl.u32 %v4824, 16
  %v5072 = vrot.slane %v5070, 3
  %v5075 = vrot.slane %v4832, 2
  %v5076 = vrot.slane %v4833, 2
  %5077 = vrot.lane.b32.xlu0 %v5075, 127
  %v5078 = vpop.permute.xlu0 %5077
  %5079 = vrot.lane.b32.xlu0 %v5076, 127
  %v5080 = vpop.permute.xlu0 %5079
  %v5081 = vsel %vm60, %v5078, %v5080
  %v5084 = vrot.slane %v5066, 2
  %v5085 = vrot.slane %v5070, 2
  %5086 = vrot.lane.b32.xlu0 %v5084, 127
  %v5087 = vpop.permute.xlu0 %5086
  %5088 = vrot.lane.b32.xlu0 %v5085, 127
  %v5089 = vpop.permute.xlu0 %5088
  %v5090 = vsel %vm60, %v5087, %v5089
  %v5091 = vrot.slane %v4832, 1
  %v5092 = vrot.slane %v4833, 1
  %5093 = vrot.lane.b32.xlu0 %v5091, 126
  %v5094 = vpop.permute.xlu0 %5093
  %5095 = vrot.lane.b32.xlu0 %v5092, 126
  %v5096 = vpop.permute.xlu0 %5095
  %v5097 = vsel %vm85, %v5094, %v5096
  %v5100 = vrot.slane %v5066, 1
  %v5101 = vrot.slane %v5070, 1
  %5102 = vrot.lane.b32.xlu0 %v5100, 126
  %v5103 = vpop.permute.xlu0 %5102
  %5104 = vrot.lane.b32.xlu0 %v5101, 126
  %v5105 = vpop.permute.xlu0 %5104
  %v5106 = vsel %vm85, %v5103, %v5105
  %v5107 = vrot.slane %v4875, 7
  %v5108 = vrot.slane %v4876, 7
  %5109 = vrot.lane.b32.xlu0 %v5107, 120
  %v5110 = vpop.permute.xlu0 %5109
  %5111 = vrot.lane.b32.xlu0 %v5108, 120
  %v5112 = vpop.permute.xlu0 %5111
  %v5113 = vsel %vm540, %v5110, %v5112
  %v5117 = vshrl.u32 %v4895, 16
  %v5119 = vrot.slane %v5117, 5
  %v5121 = vshrl.u32 %v4896, 16
  %v5123 = vrot.slane %v5121, 5
  %5124 = vrot.lane.b32.xlu0 %v5119, 119
  %v5125 = vpop.permute.xlu0 %5124
  %5126 = vrot.lane.b32.xlu0 %v5123, 119
  %v5127 = vpop.permute.xlu0 %5126
  %v5128 = vsel %vm175, %v5125, %v5127
  %v5129 = vrot.slane %v4875, 6
  %v5130 = vrot.slane %v4876, 6
  %5131 = vrot.lane.b32.xlu0 %v5129, 119
  %v5132 = vpop.permute.xlu0 %5131
  %5133 = vrot.lane.b32.xlu0 %v5130, 119
  %v5134 = vpop.permute.xlu0 %5133
  %v5135 = vsel %vm175, %v5132, %v5134
  %v5138 = vrot.slane %v5117, 4
  %v5139 = vrot.slane %v5121, 4
  %5140 = vrot.lane.b32.xlu0 %v5138, 118
  %v5141 = vpop.permute.xlu0 %5140
  %5142 = vrot.lane.b32.xlu0 %v5139, 118
  %v5143 = vpop.permute.xlu0 %5142
  %v5144 = vsel %vm653, %v5141, %v5143
  %v5145 = vrot.slane %v4875, 5
  %v5146 = vrot.slane %v4876, 5
  %5147 = vrot.lane.b32.xlu0 %v5145, 118
  %v5148 = vpop.permute.xlu0 %5147
  %5149 = vrot.lane.b32.xlu0 %v5146, 118
  %v5150 = vpop.permute.xlu0 %5149
  %v5151 = vsel %vm653, %v5148, %v5150
  %v5154 = vrot.slane %v5117, 3
  %v5155 = vrot.slane %v5121, 3
  %5156 = vrot.lane.b32.xlu0 %v5154, 117
  %v5157 = vpop.permute.xlu0 %5156
  %5158 = vrot.lane.b32.xlu0 %v5155, 117
  %v5159 = vpop.permute.xlu0 %5158
  %v5160 = vsel %vm3076, %v5157, %v5159
  %5161 = vrot.lane.b32.xlu0 %v4875, 117
  %v5162 = vpop.permute.xlu0 %5161
  %5163 = vrot.lane.b32.xlu0 %v4876, 117
  %v5164 = vpop.permute.xlu0 %5163
  %v5165 = vsel %vm3076, %v5162, %v5164
  %v5168 = vrot.slane %v5066, 5
  %v5169 = vrot.slane %v5070, 5
  %5170 = vrot.lane.b32.xlu0 %v5168, 120
  %v5171 = vpop.permute.xlu0 %5170
  %5172 = vrot.lane.b32.xlu0 %v5169, 120
  %v5173 = vpop.permute.xlu0 %5172
  %v5174 = vsel %vm540, %v5171, %v5173
  %5175 = vrot.lane.b32.xlu0 %v4832, 119
  %v5176 = vpop.permute.xlu0 %5175
  %5177 = vrot.lane.b32.xlu0 %v4833, 119
  %v5178 = vpop.permute.xlu0 %5177
  %v5179 = vsel %vm175, %v5176, %v5178
  %v5182 = vrot.slane %v5066, 4
  %v5183 = vrot.slane %v5070, 4
  %5184 = vrot.lane.b32.xlu0 %v5182, 119
  %v5185 = vpop.permute.xlu0 %5184
  %5186 = vrot.lane.b32.xlu0 %v5183, 119
  %v5187 = vpop.permute.xlu0 %5186
  %v5188 = vsel %vm175, %v5185, %v5187
  %v5189 = vrot.slane %v4832, 3
  %v5190 = vrot.slane %v4833, 3
  %5191 = vrot.lane.b32.xlu0 %v5189, 118
  %v5192 = vpop.permute.xlu0 %5191
  %5193 = vrot.lane.b32.xlu0 %v5190, 118
  %v5194 = vpop.permute.xlu0 %5193
  %v5195 = vsel %vm653, %v5192, %v5194
  %v5198 = vsel %vm187, %v5068, %v5081
  %v5199 = vsel %vm187, %v5072, %v5080
  %v5202 = vsel %vm189, %v5198, %v5090
  %v5206 = vsel %vm189, %v5199, %v5089
  %v5208 = vsel %vm196, %v5202, %v5097
  %v5209 = vsel %vm196, %v5206, %v5096
  %v5212 = vsel %vm198, %v5208, %v5106
  %v5216 = vsel %vm198, %v5209, %v5105
  %v5218 = vsel %vm205, %v5212, %v5113
  %v5219 = vsel %vm205, %v5216, %v5112
  %v5222 = vsel %vm207, %v5218, %v5128
  %v5226 = vsel %vm207, %v5219, %v5127
  %v5228 = vsel %vm214, %v5222, %v5135
  %v5229 = vsel %vm214, %v5226, %v5134
  %v5232 = vsel %vm216, %v5228, %v5144
  %v5236 = vsel %vm216, %v5229, %v5143
  %v5238 = vsel %vm223, %v5232, %v5151
  %v5239 = vsel %vm223, %v5236, %v5150
  %v5242 = vsel %vm225, %v5238, %v5160
  %v5246 = vsel %vm225, %v5239, %v5159
  %v5248 = vsel %vm232, %v5242, %v5165
  %v5249 = vsel %vm232, %v5246, %v5164
  %v5252 = vsel %vm234, %v5248, %v5174
  %v5256 = vsel %vm234, %v5249, %v5173
  %v5258 = vsel %vm241, %v5252, %v5179
  %v5259 = vsel %vm241, %v5256, %v5178
  %v5262 = vsel %vm243, %v5258, %v5188
  %v5266 = vsel %vm243, %v5259, %v5187
  %v5268 = vsel %vm250, %v5262, %v5195
  %v5269 = vsel %vm250, %v5266, %v5194
  %v5272 = vunpack.c.l.b16 %v5268
  %v5273 = vunpack.c.l.b16 %v5269
  %v5274 = vunpack.c.h.b16 %v5268
  %v5275 = vunpack.c.h.b16 %v5269
  %v5276 = vpack.c.b16 %v5273, %v5272
  %v5277 = vpack.c.b16 %v5275, %v5274
  %5278 = vrot.lane.b32.xlu0 %v5276, 118
  %v5279 = vpop.permute.xlu0 %5278
  %5280 = vrot.lane.b32.xlu0 %v5277, 118
  %v5281 = vpop.permute.xlu0 %5280
  %v5282 = vrot.slane %v5279, 4
  %v5283 = vrot.slane %v5281, 4
  %v5284 = vsel %vm653, %v5279, %v5282
  %v5285 = vsel %vm653, %v5281, %v5283
  %5288 = vst [vmem:[#allocation2 + $0x5c] sm:$0xf] %v5284
  %5289 = vst [vmem:[#allocation2 + $0x7c] sm:$0xf] %v5285
  %v5290 = vld [vmem:[%s0] sm:$0xc0]
  %v5291 = vld [vmem:[%s0 + $0x8] sm:$0xc0]
  %v5292 = vpack.c.bf16 %v5291, %v5290
  %v5293 = vld [vmem:[%s0] sm:$0x30]
  %v5294 = vld [vmem:[%s0 + $0x8] sm:$0x30]
  %v5295 = vpack.c.bf16 %v5294, %v5293
  %v5296 = vld [vmem:[%s0] sm:$0xc]
  %v5297 = vld [vmem:[%s0 + $0x8] sm:$0xc]
  %v5298 = vpack.c.bf16 %v5297, %v5296
  %v5299 = vld [vmem:[%s0] sm:$0x3]
  %v5300 = vld [vmem:[%s0 + $0x8] sm:$0x3]
  %v5301 = vpack.c.bf16 %v5300, %v5299
  %v5303 = vunpack.c.l.b16 %v5292
  %v5304 = vunpack.c.h.b16 %v5292
  %v5305 = vpack.c.b16 %v5303, %v5303
  %v5306 = vpack.c.b16 %v5304, %v5304
  %v5307 = vrot.slane %v5305, 3
  %v5308 = vrot.slane %v5306, 3
  %v5312 = vunpack.c.l.b16 %v5295
  %v5313 = vunpack.c.h.b16 %v5295
  %v5314 = vpack.c.b16 %v5312, %v5312
  %v5315 = vpack.c.b16 %v5313, %v5313
  %v5317 = vshll.u32 %v5314, 16
  %v5319 = vrot.slane %v5317, 2
  %v5321 = vshll.u32 %v5315, 16
  %v5323 = vrot.slane %v5321, 2
  %5324 = vrot.lane.b32.xlu0 %v5319, 127
  %v5325 = vpop.permute.xlu0 %5324
  %5326 = vrot.lane.b32.xlu0 %v5323, 127
  %v5327 = vpop.permute.xlu0 %5326
  %v5328 = vsel %vm60, %v5325, %v5327
  %v5331 = vrot.slane %v5305, 2
  %v5332 = vrot.slane %v5306, 2
  %5333 = vrot.lane.b32.xlu0 %v5331, 127
  %v5334 = vpop.permute.xlu0 %5333
  %5335 = vrot.lane.b32.xlu0 %v5332, 127
  %v5336 = vpop.permute.xlu0 %5335
  %v5337 = vsel %vm60, %v5334, %v5336
  %v5339 = vunpack.c.l.b16 %v5298
  %v5340 = vunpack.c.h.b16 %v5298
  %v5341 = vpack.c.b16 %v5339, %v5339
  %v5342 = vpack.c.b16 %v5340, %v5340
  %v5344 = vshll.u32 %v5341, 16
  %v5347 = vshll.u32 %v5342, 16
  %5349 = vrot.lane.b32.xlu0 %v5344, 121
  %v5350 = vpop.permute.xlu0 %5349
  %5351 = vrot.lane.b32.xlu0 %v5347, 121
  %v5352 = vpop.permute.xlu0 %5351
  %v5353 = vsel %vm973, %v5350, %v5352
  %v5357 = vunpack.c.l.b16 %v5301
  %v5358 = vunpack.c.h.b16 %v5301
  %v5359 = vpack.c.b16 %v5357, %v5357
  %v5360 = vpack.c.b16 %v5358, %v5358
  %v5361 = vrot.slane %v5359, 6
  %v5362 = vrot.slane %v5360, 6
  %5363 = vrot.lane.b32.xlu0 %v5361, 120
  %v5364 = vpop.permute.xlu0 %5363
  %5365 = vrot.lane.b32.xlu0 %v5362, 120
  %v5366 = vpop.permute.xlu0 %5365
  %v5367 = vsel %vm540, %v5364, %v5366
  %v5368 = vrot.slane %v5344, 7
  %v5369 = vrot.slane %v5347, 7
  %5370 = vrot.lane.b32.xlu0 %v5368, 120
  %v5371 = vpop.permute.xlu0 %5370
  %5372 = vrot.lane.b32.xlu0 %v5369, 120
  %v5373 = vpop.permute.xlu0 %5372
  %v5374 = vsel %vm540, %v5371, %v5373
  %v5377 = vrot.slane %v5359, 5
  %v5378 = vrot.slane %v5360, 5
  %5379 = vrot.lane.b32.xlu0 %v5377, 119
  %v5380 = vpop.permute.xlu0 %5379
  %5381 = vrot.lane.b32.xlu0 %v5378, 119
  %v5382 = vpop.permute.xlu0 %5381
  %v5383 = vsel %vm175, %v5380, %v5382
  %v5384 = vrot.slane %v5344, 6
  %v5385 = vrot.slane %v5347, 6
  %5386 = vrot.lane.b32.xlu0 %v5384, 119
  %v5387 = vpop.permute.xlu0 %5386
  %5388 = vrot.lane.b32.xlu0 %v5385, 119
  %v5389 = vpop.permute.xlu0 %5388
  %v5390 = vsel %vm175, %v5387, %v5389
  %5393 = vrot.lane.b32.xlu0 %v5359, 118
  %v5394 = vpop.permute.xlu0 %5393
  %5395 = vrot.lane.b32.xlu0 %v5360, 118
  %v5396 = vpop.permute.xlu0 %5395
  %v5397 = vsel %vm653, %v5394, %v5396
  %v5398 = vrot.slane %v5344, 5
  %v5399 = vrot.slane %v5347, 5
  %5400 = vrot.lane.b32.xlu0 %v5398, 118
  %v5401 = vpop.permute.xlu0 %5400
  %5402 = vrot.lane.b32.xlu0 %v5399, 118
  %v5403 = vpop.permute.xlu0 %5402
  %v5404 = vsel %vm653, %v5401, %v5403
  %v5407 = vrot.slane %v5305, 6
  %v5408 = vrot.slane %v5306, 6
  %5409 = vrot.lane.b32.xlu0 %v5407, 121
  %v5410 = vpop.permute.xlu0 %5409
  %5411 = vrot.lane.b32.xlu0 %v5408, 121
  %v5412 = vpop.permute.xlu0 %5411
  %v5413 = vsel %vm973, %v5410, %v5412
  %v5414 = vrot.slane %v5317, 5
  %v5415 = vrot.slane %v5321, 5
  %5416 = vrot.lane.b32.xlu0 %v5414, 120
  %v5417 = vpop.permute.xlu0 %5416
  %5418 = vrot.lane.b32.xlu0 %v5415, 120
  %v5419 = vpop.permute.xlu0 %5418
  %v5420 = vsel %vm540, %v5417, %v5419
  %v5423 = vrot.slane %v5305, 5
  %v5424 = vrot.slane %v5306, 5
  %5425 = vrot.lane.b32.xlu0 %v5423, 120
  %v5426 = vpop.permute.xlu0 %5425
  %5427 = vrot.lane.b32.xlu0 %v5424, 120
  %v5428 = vpop.permute.xlu0 %5427
  %v5429 = vsel %vm540, %v5426, %v5428
  %v5430 = vrot.slane %v5317, 4
  %v5431 = vrot.slane %v5321, 4
  %5432 = vrot.lane.b32.xlu0 %v5430, 119
  %v5433 = vpop.permute.xlu0 %5432
  %5434 = vrot.lane.b32.xlu0 %v5431, 119
  %v5435 = vpop.permute.xlu0 %5434
  %v5436 = vsel %vm175, %v5433, %v5435
  %5439 = vrot.lane.b32.xlu0 %v5305, 119
  %v5440 = vpop.permute.xlu0 %5439
  %5441 = vrot.lane.b32.xlu0 %v5306, 119
  %v5442 = vpop.permute.xlu0 %5441
  %v5443 = vsel %vm175, %v5440, %v5442
  %v5444 = vrot.slane %v5317, 3
  %v5445 = vrot.slane %v5321, 3
  %5446 = vrot.lane.b32.xlu0 %v5444, 118
  %v5447 = vpop.permute.xlu0 %5446
  %5448 = vrot.lane.b32.xlu0 %v5445, 118
  %v5449 = vpop.permute.xlu0 %5448
  %v5450 = vsel %vm653, %v5447, %v5449
  %v5453 = vsel %vm187, %v5307, %v5328
  %v5454 = vsel %vm187, %v5308, %v5327
  %v5457 = vsel %vm189, %v5453, %v5337
  %v5461 = vsel %vm189, %v5454, %v5336
  %v5463 = vsel %vm196, %v5457, %v5353
  %v5464 = vsel %vm196, %v5461, %v5352
  %v5467 = vsel %vm198, %v5463, %v5367
  %v5471 = vsel %vm198, %v5464, %v5366
  %v5473 = vsel %vm205, %v5467, %v5374
  %v5474 = vsel %vm205, %v5471, %v5373
  %v5477 = vsel %vm207, %v5473, %v5383
  %v5481 = vsel %vm207, %v5474, %v5382
  %v5483 = vsel %vm214, %v5477, %v5390
  %v5484 = vsel %vm214, %v5481, %v5389
  %v5487 = vsel %vm216, %v5483, %v5397
  %v5491 = vsel %vm216, %v5484, %v5396
  %v5493 = vsel %vm223, %v5487, %v5404
  %v5494 = vsel %vm223, %v5491, %v5403
  %v5497 = vsel %vm225, %v5493, %v5413
  %v5501 = vsel %vm225, %v5494, %v5412
  %v5503 = vsel %vm232, %v5497, %v5420
  %v5504 = vsel %vm232, %v5501, %v5419
  %v5507 = vsel %vm234, %v5503, %v5429
  %v5511 = vsel %vm234, %v5504, %v5428
  %v5513 = vsel %vm241, %v5507, %v5436
  %v5514 = vsel %vm241, %v5511, %v5435
  %v5517 = vsel %vm243, %v5513, %v5443
  %v5521 = vsel %vm243, %v5514, %v5442
  %v5523 = vsel %vm250, %v5517, %v5450
  %v5524 = vsel %vm250, %v5521, %v5449
  %v5527 = vunpack.c.l.b16 %v5523
  %v5528 = vunpack.c.l.b16 %v5524
  %v5529 = vunpack.c.h.b16 %v5523
  %v5530 = vunpack.c.h.b16 %v5524
  %v5531 = vpack.c.b16 %v5528, %v5527
  %v5532 = vpack.c.b16 %v5530, %v5529
  %5533 = vrot.lane.b32.xlu0 %v5531, 108
  %v5534 = vpop.permute.xlu0 %5533
  %5535 = vrot.lane.b32.xlu0 %v5532, 108
  %v5536 = vpop.permute.xlu0 %5535
  %v5537 = vrot.slane %v5534, 4
  %v5538 = vrot.slane %v5536, 4
  %v5539 = vsel %vm1102, %v5534, %v5537
  %v5540 = vsel %vm1102, %v5536, %v5538
  %5543 = vst [vmem:[#allocation2 + $0x98] sm:$0xf] %v5539
  %5544 = vst [vmem:[#allocation2 + $0xb8] sm:$0xf] %v5540
  %v5546 = vshrl.u32 %v5305, 16
  %v5548 = vrot.slane %v5546, 3
  %v5550 = vshrl.u32 %v5306, 16
  %v5552 = vrot.slane %v5550, 3
  %v5555 = vrot.slane %v5314, 2
  %v5556 = vrot.slane %v5315, 2
  %5557 = vrot.lane.b32.xlu0 %v5555, 127
  %v5558 = vpop.permute.xlu0 %5557
  %5559 = vrot.lane.b32.xlu0 %v5556, 127
  %v5560 = vpop.permute.xlu0 %5559
  %v5561 = vsel %vm60, %v5558, %v5560
  %v5564 = vrot.slane %v5546, 2
  %v5565 = vrot.slane %v5550, 2
  %5566 = vrot.lane.b32.xlu0 %v5564, 127
  %v5567 = vpop.permute.xlu0 %5566
  %5568 = vrot.lane.b32.xlu0 %v5565, 127
  %v5569 = vpop.permute.xlu0 %5568
  %v5570 = vsel %vm60, %v5567, %v5569
  %5571 = vrot.lane.b32.xlu0 %v5341, 121
  %v5572 = vpop.permute.xlu0 %5571
  %5573 = vrot.lane.b32.xlu0 %v5342, 121
  %v5574 = vpop.permute.xlu0 %5573
  %v5575 = vsel %vm973, %v5572, %v5574
  %v5579 = vshrl.u32 %v5359, 16
  %v5581 = vrot.slane %v5579, 6
  %v5583 = vshrl.u32 %v5360, 16
  %v5585 = vrot.slane %v5583, 6
  %5586 = vrot.lane.b32.xlu0 %v5581, 120
  %v5587 = vpop.permute.xlu0 %5586
  %5588 = vrot.lane.b32.xlu0 %v5585, 120
  %v5589 = vpop.permute.xlu0 %5588
  %v5590 = vsel %vm540, %v5587, %v5589
  %v5591 = vrot.slane %v5341, 7
  %v5592 = vrot.slane %v5342, 7
  %5593 = vrot.lane.b32.xlu0 %v5591, 120
  %v5594 = vpop.permute.xlu0 %5593
  %5595 = vrot.lane.b32.xlu0 %v5592, 120
  %v5596 = vpop.permute.xlu0 %5595
  %v5597 = vsel %vm540, %v5594, %v5596
  %v5600 = vrot.slane %v5579, 5
  %v5601 = vrot.slane %v5583, 5
  %5602 = vrot.lane.b32.xlu0 %v5600, 119
  %v5603 = vpop.permute.xlu0 %5602
  %5604 = vrot.lane.b32.xlu0 %v5601, 119
  %v5605 = vpop.permute.xlu0 %5604
  %v5606 = vsel %vm175, %v5603, %v5605
  %v5607 = vrot.slane %v5341, 6
  %v5608 = vrot.slane %v5342, 6
  %5609 = vrot.lane.b32.xlu0 %v5607, 119
  %v5610 = vpop.permute.xlu0 %5609
  %5611 = vrot.lane.b32.xlu0 %v5608, 119
  %v5612 = vpop.permute.xlu0 %5611
  %v5613 = vsel %vm175, %v5610, %v5612
  %v5616 = vrot.slane %v5579, 4
  %v5617 = vrot.slane %v5583, 4
  %5618 = vrot.lane.b32.xlu0 %v5616, 118
  %v5619 = vpop.permute.xlu0 %5618
  %5620 = vrot.lane.b32.xlu0 %v5617, 118
  %v5621 = vpop.permute.xlu0 %5620
  %v5622 = vsel %vm653, %v5619, %v5621
  %v5623 = vrot.slane %v5341, 5
  %v5624 = vrot.slane %v5342, 5
  %5625 = vrot.lane.b32.xlu0 %v5623, 118
  %v5626 = vpop.permute.xlu0 %5625
  %5627 = vrot.lane.b32.xlu0 %v5624, 118
  %v5628 = vpop.permute.xlu0 %5627
  %v5629 = vsel %vm653, %v5626, %v5628
  %v5632 = vrot.slane %v5546, 6
  %v5633 = vrot.slane %v5550, 6
  %5634 = vrot.lane.b32.xlu0 %v5632, 121
  %v5635 = vpop.permute.xlu0 %5634
  %5636 = vrot.lane.b32.xlu0 %v5633, 121
  %v5637 = vpop.permute.xlu0 %5636
  %v5638 = vsel %vm973, %v5635, %v5637
  %v5639 = vrot.slane %v5314, 5
  %v5640 = vrot.slane %v5315, 5
  %5641 = vrot.lane.b32.xlu0 %v5639, 120
  %v5642 = vpop.permute.xlu0 %5641
  %5643 = vrot.lane.b32.xlu0 %v5640, 120
  %v5644 = vpop.permute.xlu0 %5643
  %v5645 = vsel %vm540, %v5642, %v5644
  %v5648 = vrot.slane %v5546, 5
  %v5649 = vrot.slane %v5550, 5
  %5650 = vrot.lane.b32.xlu0 %v5648, 120
  %v5651 = vpop.permute.xlu0 %5650
  %5652 = vrot.lane.b32.xlu0 %v5649, 120
  %v5653 = vpop.permute.xlu0 %5652
  %v5654 = vsel %vm540, %v5651, %v5653
  %5655 = vrot.lane.b32.xlu0 %v5314, 119
  %v5656 = vpop.permute.xlu0 %5655
  %5657 = vrot.lane.b32.xlu0 %v5315, 119
  %v5658 = vpop.permute.xlu0 %5657
  %v5659 = vsel %vm175, %v5656, %v5658
  %v5662 = vrot.slane %v5546, 4
  %v5663 = vrot.slane %v5550, 4
  %5664 = vrot.lane.b32.xlu0 %v5662, 119
  %v5665 = vpop.permute.xlu0 %5664
  %5666 = vrot.lane.b32.xlu0 %v5663, 119
  %v5667 = vpop.permute.xlu0 %5666
  %v5668 = vsel %vm175, %v5665, %v5667
  %v5669 = vrot.slane %v5314, 3
  %v5670 = vrot.slane %v5315, 3
  %5671 = vrot.lane.b32.xlu0 %v5669, 118
  %v5672 = vpop.permute.xlu0 %5671
  %5673 = vrot.lane.b32.xlu0 %v5670, 118
  %v5674 = vpop.permute.xlu0 %5673
  %v5675 = vsel %vm653, %v5672, %v5674
  %v5678 = vsel %vm187, %v5548, %v5561
  %v5679 = vsel %vm187, %v5552, %v5560
  %v5682 = vsel %vm189, %v5678, %v5570
  %v5686 = vsel %vm189, %v5679, %v5569
  %v5688 = vsel %vm196, %v5682, %v5575
  %v5689 = vsel %vm196, %v5686, %v5574
  %v5692 = vsel %vm198, %v5688, %v5590
  %v5696 = vsel %vm198, %v5689, %v5589
  %v5698 = vsel %vm205, %v5692, %v5597
  %v5699 = vsel %vm205, %v5696, %v5596
  %v5702 = vsel %vm207, %v5698, %v5606
  %v5706 = vsel %vm207, %v5699, %v5605
  %v5708 = vsel %vm214, %v5702, %v5613
  %v5709 = vsel %vm214, %v5706, %v5612
  %v5712 = vsel %vm216, %v5708, %v5622
  %v5716 = vsel %vm216, %v5709, %v5621
  %v5718 = vsel %vm223, %v5712, %v5629
  %v5719 = vsel %vm223, %v5716, %v5628
  %v5722 = vsel %vm225, %v5718, %v5638
  %v5726 = vsel %vm225, %v5719, %v5637
  %v5728 = vsel %vm232, %v5722, %v5645
  %v5729 = vsel %vm232, %v5726, %v5644
  %v5732 = vsel %vm234, %v5728, %v5654
  %v5736 = vsel %vm234, %v5729, %v5653
  %v5738 = vsel %vm241, %v5732, %v5659
  %v5739 = vsel %vm241, %v5736, %v5658
  %v5742 = vsel %vm243, %v5738, %v5668
  %v5746 = vsel %vm243, %v5739, %v5667
  %v5748 = vsel %vm250, %v5742, %v5675
  %v5749 = vsel %vm250, %v5746, %v5674
  %v5752 = vunpack.c.l.b16 %v5748
  %v5753 = vunpack.c.l.b16 %v5749
  %v5754 = vunpack.c.h.b16 %v5748
  %v5755 = vunpack.c.h.b16 %v5749
  %v5756 = vpack.c.b16 %v5753, %v5752
  %v5757 = vpack.c.b16 %v5755, %v5754
  %5758 = vrot.lane.b32.xlu0 %v5756, 108
  %v5759 = vpop.permute.xlu0 %5758
  %5760 = vrot.lane.b32.xlu0 %v5757, 108
  %v5761 = vpop.permute.xlu0 %5760
  %v5762 = vrot.slane %v5759, 4
  %v5763 = vrot.slane %v5761, 4
  %v5764 = vsel %vm1102, %v5759, %v5762
  %v5765 = vsel %vm1102, %v5761, %v5763
  %5768 = vst [vmem:[#allocation2 + $0x9c] sm:$0xf] %v5764
  %5769 = vst [vmem:[#allocation2 + $0xbc] sm:$0xf] %v5765
  %v5770 = vld [vmem:[%s0] sm:$0xc0]
  %v5771 = vld [vmem:[%s0 + $0x8] sm:$0xc0]
  %v5772 = vpack.c.bf16 %v5771, %v5770
  %v5774 = vunpack.c.l.b16 %v5772
  %v5775 = vunpack.c.h.b16 %v5772
  %v5776 = vpack.c.b16 %v5774, %v5774
  %v5777 = vpack.c.b16 %v5775, %v5775
  %v5778 = vrot.slane %v5776, 3
  %v5779 = vrot.slane %v5777, 3
  %v5782 = vsel %vm187, %v5778, 0
  %v5783 = vsel %vm187, %v5779, 0
  %v5785 = vsel %vm189, %v5782, 0
  %v5788 = vsel %vm189, %v5783, 0
  %v5790 = vsel %vm196, %v5785, 0
  %v5791 = vsel %vm196, %v5788, 0
  %v5793 = vsel %vm198, %v5790, 0
  %v5796 = vsel %vm198, %v5791, 0
  %v5798 = vsel %vm205, %v5793, 0
  %v5799 = vsel %vm205, %v5796, 0
  %v5801 = vsel %vm207, %v5798, 0
  %v5804 = vsel %vm207, %v5799, 0
  %v5806 = vsel %vm214, %v5801, 0
  %v5807 = vsel %vm214, %v5804, 0
  %v5809 = vsel %vm216, %v5806, 0
  %v5812 = vsel %vm216, %v5807, 0
  %v5814 = vsel %vm223, %v5809, 0
  %v5815 = vsel %vm223, %v5812, 0
  %v5817 = vsel %vm225, %v5814, 0
  %v5820 = vsel %vm225, %v5815, 0
  %v5822 = vsel %vm232, %v5817, 0
  %v5823 = vsel %vm232, %v5820, 0
  %v5825 = vsel %vm234, %v5822, 0
  %v5828 = vsel %vm234, %v5823, 0
  %v5830 = vsel %vm241, %v5825, 0
  %v5831 = vsel %vm241, %v5828, 0
  %v5833 = vsel %vm243, %v5830, 0
  %v5836 = vsel %vm243, %v5831, 0
  %v5838 = vsel %vm250, %v5833, 0
  %v5839 = vsel %vm250, %v5836, 0
  %v5842 = vunpack.c.l.b16 %v5838
  %v5843 = vunpack.c.l.b16 %v5839
  %v5844 = vunpack.c.h.b16 %v5838
  %v5845 = vunpack.c.h.b16 %v5839
  %v5846 = vpack.c.b16 %v5843, %v5842
  %v5847 = vpack.c.b16 %v5845, %v5844
  %5848 = vrot.lane.b32.xlu0 %v5846, 98
  %v5849 = vpop.permute.xlu0 %5848
  %5850 = vrot.lane.b32.xlu0 %v5847, 98
  %v5851 = vpop.permute.xlu0 %5850
  %v5852 = vrot.slane %v5849, 4
  %v5853 = vrot.slane %v5851, 4
  %v5854 = vsel %vm1398, %v5849, %v5852
  %v5855 = vsel %vm1398, %v5851, %v5853
  %5858 = vst [vmem:[#allocation2 + $0xd8] sm:$0xf] %v5854
  %5859 = vst [vmem:[#allocation2 + $0xf8] sm:$0xf] %v5855
  %v5861 = vshrl.u32 %v5776, 16
  %v5863 = vrot.slane %v5861, 3
  %v5865 = vshrl.u32 %v5777, 16
  %v5867 = vrot.slane %v5865, 3
  %v5870 = vsel %vm187, %v5863, 0
  %v5871 = vsel %vm187, %v5867, 0
  %v5873 = vsel %vm189, %v5870, 0
  %v5876 = vsel %vm189, %v5871, 0
  %v5878 = vsel %vm196, %v5873, 0
  %v5879 = vsel %vm196, %v5876, 0
  %v5881 = vsel %vm198, %v5878, 0
  %v5884 = vsel %vm198, %v5879, 0
  %v5886 = vsel %vm205, %v5881, 0
  %v5887 = vsel %vm205, %v5884, 0
  %v5889 = vsel %vm207, %v5886, 0
  %v5892 = vsel %vm207, %v5887, 0
  %v5894 = vsel %vm214, %v5889, 0
  %v5895 = vsel %vm214, %v5892, 0
  %v5897 = vsel %vm216, %v5894, 0
  %v5900 = vsel %vm216, %v5895, 0
  %v5902 = vsel %vm223, %v5897, 0
  %v5903 = vsel %vm223, %v5900, 0
  %v5905 = vsel %vm225, %v5902, 0
  %v5908 = vsel %vm225, %v5903, 0
  %v5910 = vsel %vm232, %v5905, 0
  %v5911 = vsel %vm232, %v5908, 0
  %v5913 = vsel %vm234, %v5910, 0
  %v5916 = vsel %vm234, %v5911, 0
  %v5918 = vsel %vm241, %v5913, 0
  %v5919 = vsel %vm241, %v5916, 0
  %v5921 = vsel %vm243, %v5918, 0
  %v5924 = vsel %vm243, %v5919, 0
  %v5926 = vsel %vm250, %v5921, 0
  %v5927 = vsel %vm250, %v5924, 0
  %v5930 = vunpack.c.l.b16 %v5926
  %v5931 = vunpack.c.l.b16 %v5927
  %v5932 = vunpack.c.h.b16 %v5926
  %v5933 = vunpack.c.h.b16 %v5927
  %v5934 = vpack.c.b16 %v5931, %v5930
  %v5935 = vpack.c.b16 %v5933, %v5932
  %5936 = vrot.lane.b32.xlu0 %v5934, 98
  %v5937 = vpop.permute.xlu0 %5936
  %5938 = vrot.lane.b32.xlu0 %v5935, 98
  %v5939 = vpop.permute.xlu0 %5938
  %v5940 = vrot.slane %v5937, 4
  %v5941 = vrot.slane %v5939, 4
  %v5942 = vsel %vm1398, %v5937, %v5940
  %v5943 = vsel %vm1398, %v5939, %v5941
  %5946 = vst [vmem:[#allocation2 + $0xdc] sm:$0xf] %v5942
  %5947 = vst [vmem:[#allocation2 + $0xfc] sm:$0xf] %v5943
  %v5948 = vld [vmem:[%s1] sm:$0xf]
  %v5949 = vld [vmem:[%s1 + $0x4] sm:$0xf]
  %v5950 = vld [vmem:[%s1 + $0x8] sm:$0xf]
  %v5951 = vld [vmem:[%s1 + $0xc] sm:$0xf]
  %v5952 = vld [vmem:[%s1 + $0x10] sm:$0xf]
  %v5953 = vld [vmem:[%s1 + $0x14] sm:$0xf]
  %v5954 = vld [vmem:[%s1 + $0x18] sm:$0xf]
  %v5955 = vld [vmem:[%s1 + $0x1c] sm:$0xf]
  %v5956 = vld [vmem:[#allocation2] sm:$0xf]
  %v5957 = vld [vmem:[#allocation2 + $0x20] sm:$0xf]
  %v5958 = vld [vmem:[#allocation2 + $0x40] sm:$0xf]
  %v5959 = vld [vmem:[#allocation2 + $0x60] sm:$0xf]
  %v5960 = vld [vmem:[#allocation2 + $0x80] sm:$0xf]
  %v5961 = vld [vmem:[#allocation2 + $0xa0] sm:$0xf]
  %v5962 = vld [vmem:[#allocation2 + $0xc0] sm:$0xf]
  %v5963 = vld [vmem:[#allocation2 + $0xe0] sm:$0xf]
  %v5972 = vunpack.c.l.b16 %v5948
  %v5973 = vunpack.c.l.b16 %v5949
  %v5974 = vunpack.c.l.b16 %v5950
  %v5975 = vunpack.c.l.b16 %v5951
  %v5976 = vunpack.c.l.b16 %v5952
  %v5977 = vunpack.c.l.b16 %v5953
  %v5978 = vunpack.c.l.b16 %v5954
  %v5979 = vunpack.c.l.b16 %v5955
  %v5980 = vpack.c.b16 %v5973, %v5972
  %v5981 = vpack.c.b16 %v5975, %v5974
  %v5982 = vpack.c.b16 %v5977, %v5976
  %v5983 = vpack.c.b16 %v5979, %v5978
  %v5992 = vunpack.c.l.b16 %v5956
  %v5993 = vunpack.c.l.b16 %v5957
  %v5994 = vunpack.c.l.b16 %v5958
  %v5995 = vunpack.c.l.b16 %v5959
  %v5996 = vunpack.c.l.b16 %v5960
  %v5997 = vunpack.c.l.b16 %v5961
  %v5998 = vunpack.c.l.b16 %v5962
  %v5999 = vunpack.c.l.b16 %v5963
  %v6000 = vpack.c.b16 %v5993, %v5992
  %v6001 = vpack.c.b16 %v5995, %v5994
  %v6002 = vpack.c.b16 %v5997, %v5996
  %v6003 = vpack.c.b16 %v5999, %v5998
  %vm6008 = vcmask 523264
  %v6010 = vsel %vm6008, %v5980, 0
  %v6013 = vsel %vm6008, %v5981, 0
  %v6016 = vsel %vm6008, %v5982, 0
  %v6019 = vsel %vm6008, %v5983, 0
  %6021 = vmatpush.bf16.msra.mxu0 0
  %6022 = vmatpush.bf16.msra.mxu0 0
  %6023 = vmatpush.bf16.msra.mxu0 0
  %6024 = vmatpush.bf16.msra.mxu0 0
  %6025 = vmatpush.bf16.msra.mxu0 %v6003
  %6026 = vmatpush.bf16.msra.mxu0 %v6002
  %6027 = vmatpush.bf16.msra.mxu0 %v6001
  %6028 = vmatpush.bf16.msra.mxu0 %v6000
  %6029 = vmatmul.bf16.gmra.mxu0 %v6010
  %v6030 = vpop.f32.mrf.mxu0
  %v6031 = vadd.f32 0.0, %v6030
  %v6032 = vpop.f32.mrf.mxu0
  %v6033 = vadd.f32 0.0, %v6032
  %6034 = vmatmul.bf16.gmra.mxu0 %v6013
  %v6035 = vpop.f32.mrf.mxu0
  %v6036 = vadd.f32 0.0, %v6035
  %v6037 = vpop.f32.mrf.mxu0
  %v6038 = vadd.f32 0.0, %v6037
  %6039 = vmatmul.bf16.gmra.mxu0 %v6016
  %v6040 = vpop.f32.mrf.mxu0
  %v6041 = vadd.f32 0.0, %v6040
  %v6042 = vpop.f32.mrf.mxu0
  %v6043 = vadd.f32 0.0, %v6042
  %6044 = vmatmul.bf16.gmra.mxu0 %v6019
  %v6045 = vpop.f32.mrf.mxu0
  %v6046 = vadd.f32 0.0, %v6045
  %v6047 = vpop.f32.mrf.mxu0
  %v6048 = vadd.f32 0.0, %v6047
  %6049 = vdwg.mxu0
  %6050 = vst [vmem:[#allocation3] sm:$0xff] %v6031
  %6051 = vst [vmem:[#allocation3 + $0x40] sm:$0xff] %v6033
  %6052 = vst [vmem:[#allocation3 + $0x80] sm:$0xff] %v6036
  %6053 = vst [vmem:[#allocation3 + $0xc0] sm:$0xff] %v6038
  %6054 = vst [vmem:[#allocation3 + $0x100] sm:$0xff] %v6041
  %6055 = vst [vmem:[#allocation3 + $0x140] sm:$0xff] %v6043
  %6056 = vst [vmem:[#allocation3 + $0x180] sm:$0xff] %v6046
  %6057 = vst [vmem:[#allocation3 + $0x1c0] sm:$0xff] %v6048
  %v6058 = vld [vmem:[%s4] sm:$0x1]
  %v6060 = vperm.slane %v6058, 0
  %v6062 = vmul.f32 %v6031, %v6060
  %v6063 = vmul.f32 %v6033, %v6060
  %v6064 = vmul.f32 %v6036, %v6060
  %v6065 = vmul.f32 %v6038, %v6060
  %v6066 = vmul.f32 %v6041, %v6060
  %v6067 = vmul.f32 %v6043, %v6060
  %v6068 = vmul.f32 %v6046, %v6060
  %v6069 = vmul.f32 %v6048, %v6060
  %6070 = vadd.xlane.f32.xlu0 %v6062
  %v6071 = vpop.xlane.xlu0 %6070
  %6072 = vadd.xlane.f32.xlu0 %v6063
  %v6073 = vpop.xlane.xlu0 %6072
  %6074 = vadd.xlane.f32.xlu0 %v6064
  %v6075 = vpop.xlane.xlu0 %6074
  %6076 = vadd.xlane.f32.xlu0 %v6065
  %v6077 = vpop.xlane.xlu0 %6076
  %6078 = vadd.xlane.f32.xlu0 %v6066
  %v6079 = vpop.xlane.xlu0 %6078
  %6080 = vadd.xlane.f32.xlu0 %v6067
  %v6081 = vpop.xlane.xlu0 %6080
  %6082 = vadd.xlane.f32.xlu0 %v6068
  %v6083 = vpop.xlane.xlu0 %6082
  %6084 = vadd.xlane.f32.xlu0 %v6069
  %v6085 = vpop.xlane.xlu0 %6084
  %v6086 = vadd.f32 %v6071, 0.0
  %v6087 = vadd.f32 %v6073, 0.0
  %v6088 = vadd.f32 %v6075, 0.0
  %v6089 = vadd.f32 %v6077, 0.0
  %v6090 = vadd.f32 %v6079, 0.0
  %v6091 = vadd.f32 %v6081, 0.0
  %v6092 = vadd.f32 %v6083, 0.0
  %v6093 = vadd.f32 %v6085, 0.0
  %v6094 = vmul.f32 %v6031, %v6062
  %v6095 = vmul.f32 %v6033, %v6063
  %v6096 = vmul.f32 %v6036, %v6064
  %v6097 = vmul.f32 %v6038, %v6065
  %v6098 = vmul.f32 %v6041, %v6066
  %v6099 = vmul.f32 %v6043, %v6067
  %v6100 = vmul.f32 %v6046, %v6068
  %v6101 = vmul.f32 %v6048, %v6069
  %6102 = vadd.xlane.f32.xlu0 %v6094
  %v6103 = vpop.xlane.xlu0 %6102
  %6104 = vadd.xlane.f32.xlu0 %v6095
  %v6105 = vpop.xlane.xlu0 %6104
  %6106 = vadd.xlane.f32.xlu0 %v6096
  %v6107 = vpop.xlane.xlu0 %6106
  %6108 = vadd.xlane.f32.xlu0 %v6097
  %v6109 = vpop.xlane.xlu0 %6108
  %6110 = vadd.xlane.f32.xlu0 %v6098
  %v6111 = vpop.xlane.xlu0 %6110
  %6112 = vadd.xlane.f32.xlu0 %v6099
  %v6113 = vpop.xlane.xlu0 %6112
  %6114 = vadd.xlane.f32.xlu0 %v6100
  %v6115 = vpop.xlane.xlu0 %6114
  %6116 = vadd.xlane.f32.xlu0 %v6101
  %v6117 = vpop.xlane.xlu0 %6116
  %v6118 = vadd.f32 %v6103, 0.0
  %v6119 = vadd.f32 %v6105, 0.0
  %v6120 = vadd.f32 %v6107, 0.0
  %v6121 = vadd.f32 %v6109, 0.0
  %v6122 = vadd.f32 %v6111, 0.0
  %v6123 = vadd.f32 %v6113, 0.0
  %v6124 = vadd.f32 %v6115, 0.0
  %v6125 = vadd.f32 %v6117, 0.0
  %v6126 = vld [vmem:[%s1] sm:$0xf]
  %v6127 = vld [vmem:[%s1 + $0x4] sm:$0xf]
  %v6128 = vld [vmem:[%s1 + $0x8] sm:$0xf]
  %v6129 = vld [vmem:[%s1 + $0xc] sm:$0xf]
  %v6130 = vld [vmem:[%s1 + $0x10] sm:$0xf]
  %v6131 = vld [vmem:[%s1 + $0x14] sm:$0xf]
  %v6132 = vld [vmem:[%s1 + $0x18] sm:$0xf]
  %v6133 = vld [vmem:[%s1 + $0x1c] sm:$0xf]
  %v6134 = vld [vmem:[#allocation2 + $0x4] sm:$0xf]
  %v6135 = vld [vmem:[#allocation2 + $0x24] sm:$0xf]
  %v6136 = vld [vmem:[#allocation2 + $0x44] sm:$0xf]
  %v6137 = vld [vmem:[#allocation2 + $0x64] sm:$0xf]
  %v6138 = vld [vmem:[#allocation2 + $0x84] sm:$0xf]
  %v6139 = vld [vmem:[#allocation2 + $0xa4] sm:$0xf]
  %v6140 = vld [vmem:[#allocation2 + $0xc4] sm:$0xf]
  %v6141 = vld [vmem:[#allocation2 + $0xe4] sm:$0xf]
  %v6150 = vunpack.c.l.b16 %v6126
  %v6151 = vunpack.c.l.b16 %v6127
  %v6152 = vunpack.c.l.b16 %v6128
  %v6153 = vunpack.c.l.b16 %v6129
  %v6154 = vunpack.c.l.b16 %v6130
  %v6155 = vunpack.c.l.b16 %v6131
  %v6156 = vunpack.c.l.b16 %v6132
  %v6157 = vunpack.c.l.b16 %v6133
  %v6158 = vpack.c.b16 %v6151, %v6150
  %v6159 = vpack.c.b16 %v6153, %v6152
  %v6160 = vpack.c.b16 %v6155, %v6154
  %v6161 = vpack.c.b16 %v6157, %v6156
  %v6170 = vunpack.c.l.b16 %v6134
  %v6171 = vunpack.c.l.b16 %v6135
  %v6172 = vunpack.c.l.b16 %v6136
  %v6173 = vunpack.c.l.b16 %v6137
  %v6174 = vunpack.c.l.b16 %v6138
  %v6175 = vunpack.c.l.b16 %v6139
  %v6176 = vunpack.c.l.b16 %v6140
  %v6177 = vunpack.c.l.b16 %v6141
  %v6178 = vpack.c.b16 %v6171, %v6170
  %v6179 = vpack.c.b16 %v6173, %v6172
  %v6180 = vpack.c.b16 %v6175, %v6174
  %v6181 = vpack.c.b16 %v6177, %v6176
  %v6187 = vsel %vm6008, %v6158, 0
  %v6190 = vsel %vm6008, %v6159, 0
  %v6193 = vsel %vm6008, %v6160, 0
  %v6196 = vsel %vm6008, %v6161, 0
  %6198 = vmatpush.bf16.msra.mxu0 0
  %6199 = vmatpush.bf16.msra.mxu0 0
  %6200 = vmatpush.bf16.msra.mxu0 0
  %6201 = vmatpush.bf16.msra.mxu0 0
  %6202 = vmatpush.bf16.msra.mxu0 %v6181
  %6203 = vmatpush.bf16.msra.mxu0 %v6180
  %6204 = vmatpush.bf16.msra.mxu0 %v6179
  %6205 = vmatpush.bf16.msra.mxu0 %v6178
  %6206 = vmatmul.bf16.gmra.mxu0 %v6187
  %v6207 = vpop.f32.mrf.mxu0
  %v6208 = vadd.f32 0.0, %v6207
  %v6209 = vpop.f32.mrf.mxu0
  %v6210 = vadd.f32 0.0, %v6209
  %6211 = vmatmul.bf16.gmra.mxu0 %v6190
  %v6212 = vpop.f32.mrf.mxu0
  %v6213 = vadd.f32 0.0, %v6212
  %v6214 = vpop.f32.mrf.mxu0
  %v6215 = vadd.f32 0.0, %v6214
  %6216 = vmatmul.bf16.gmra.mxu0 %v6193
  %v6217 = vpop.f32.mrf.mxu0
  %v6218 = vadd.f32 0.0, %v6217
  %v6219 = vpop.f32.mrf.mxu0
  %v6220 = vadd.f32 0.0, %v6219
  %6221 = vmatmul.bf16.gmra.mxu0 %v6196
  %v6222 = vpop.f32.mrf.mxu0
  %v6223 = vadd.f32 0.0, %v6222
  %v6224 = vpop.f32.mrf.mxu0
  %v6225 = vadd.f32 0.0, %v6224
  %6226 = vdwg.mxu0
  %6227 = vst [vmem:[#allocation3 + $0x8] sm:$0xff] %v6208
  %6228 = vst [vmem:[#allocation3 + $0x48] sm:$0xff] %v6210
  %6229 = vst [vmem:[#allocation3 + $0x88] sm:$0xff] %v6213
  %6230 = vst [vmem:[#allocation3 + $0xc8] sm:$0xff] %v6215
  %6231 = vst [vmem:[#allocation3 + $0x108] sm:$0xff] %v6218
  %6232 = vst [vmem:[#allocation3 + $0x148] sm:$0xff] %v6220
  %6233 = vst [vmem:[#allocation3 + $0x188] sm:$0xff] %v6223
  %6234 = vst [vmem:[#allocation3 + $0x1c8] sm:$0xff] %v6225
  %v6235 = vld [vmem:[%s4 + $0x1] sm:$0x1]
  %v6237 = vperm.slane %v6235, 0
  %v6239 = vmul.f32 %v6208, %v6237
  %v6240 = vmul.f32 %v6210, %v6237
  %v6241 = vmul.f32 %v6213, %v6237
  %v6242 = vmul.f32 %v6215, %v6237
  %v6243 = vmul.f32 %v6218, %v6237
  %v6244 = vmul.f32 %v6220, %v6237
  %v6245 = vmul.f32 %v6223, %v6237
  %v6246 = vmul.f32 %v6225, %v6237
  %6247 = vadd.xlane.f32.xlu0 %v6239
  %v6248 = vpop.xlane.xlu0 %6247
  %6249 = vadd.xlane.f32.xlu0 %v6240
  %v6250 = vpop.xlane.xlu0 %6249
  %6251 = vadd.xlane.f32.xlu0 %v6241
  %v6252 = vpop.xlane.xlu0 %6251
  %6253 = vadd.xlane.f32.xlu0 %v6242
  %v6254 = vpop.xlane.xlu0 %6253
  %6255 = vadd.xlane.f32.xlu0 %v6243
  %v6256 = vpop.xlane.xlu0 %6255
  %6257 = vadd.xlane.f32.xlu0 %v6244
  %v6258 = vpop.xlane.xlu0 %6257
  %6259 = vadd.xlane.f32.xlu0 %v6245
  %v6260 = vpop.xlane.xlu0 %6259
  %6261 = vadd.xlane.f32.xlu0 %v6246
  %v6262 = vpop.xlane.xlu0 %6261
  %v6263 = vadd.f32 %v6086, %v6248
  %v6264 = vadd.f32 %v6087, %v6250
  %v6265 = vadd.f32 %v6088, %v6252
  %v6266 = vadd.f32 %v6089, %v6254
  %v6267 = vadd.f32 %v6090, %v6256
  %v6268 = vadd.f32 %v6091, %v6258
  %v6269 = vadd.f32 %v6092, %v6260
  %v6270 = vadd.f32 %v6093, %v6262
  %v6271 = vmul.f32 %v6208, %v6239
  %v6272 = vmul.f32 %v6210, %v6240
  %v6273 = vmul.f32 %v6213, %v6241
  %v6274 = vmul.f32 %v6215, %v6242
  %v6275 = vmul.f32 %v6218, %v6243
  %v6276 = vmul.f32 %v6220, %v6244
  %v6277 = vmul.f32 %v6223, %v6245
  %v6278 = vmul.f32 %v6225, %v6246
  %6279 = vadd.xlane.f32.xlu0 %v6271
  %v6280 = vpop.xlane.xlu0 %6279
  %6281 = vadd.xlane.f32.xlu0 %v6272
  %v6282 = vpop.xlane.xlu0 %6281
  %6283 = vadd.xlane.f32.xlu0 %v6273
  %v6284 = vpop.xlane.xlu0 %6283
  %6285 = vadd.xlane.f32.xlu0 %v6274
  %v6286 = vpop.xlane.xlu0 %6285
  %6287 = vadd.xlane.f32.xlu0 %v6275
  %v6288 = vpop.xlane.xlu0 %6287
  %6289 = vadd.xlane.f32.xlu0 %v6276
  %v6290 = vpop.xlane.xlu0 %6289
  %6291 = vadd.xlane.f32.xlu0 %v6277
  %v6292 = vpop.xlane.xlu0 %6291
  %6293 = vadd.xlane.f32.xlu0 %v6278
  %v6294 = vpop.xlane.xlu0 %6293
  %v6295 = vadd.f32 %v6118, %v6280
  %v6296 = vadd.f32 %v6119, %v6282
  %v6297 = vadd.f32 %v6120, %v6284
  %v6298 = vadd.f32 %v6121, %v6286
  %v6299 = vadd.f32 %v6122, %v6288
  %v6300 = vadd.f32 %v6123, %v6290
  %v6301 = vadd.f32 %v6124, %v6292
  %v6302 = vadd.f32 %v6125, %v6294
  %v6303 = vld [vmem:[%s1] sm:$0xf]
  %v6304 = vld [vmem:[%s1 + $0x4] sm:$0xf]
  %v6305 = vld [vmem:[%s1 + $0x8] sm:$0xf]
  %v6306 = vld [vmem:[%s1 + $0xc] sm:$0xf]
  %v6307 = vld [vmem:[%s1 + $0x10] sm:$0xf]
  %v6308 = vld [vmem:[%s1 + $0x14] sm:$0xf]
  %v6309 = vld [vmem:[%s1 + $0x18] sm:$0xf]
  %v6310 = vld [vmem:[%s1 + $0x1c] sm:$0xf]
  %v6311 = vld [vmem:[#allocation2 + $0x8] sm:$0xf]
  %v6312 = vld [vmem:[#allocation2 + $0x28] sm:$0xf]
  %v6313 = vld [vmem:[#allocation2 + $0x48] sm:$0xf]
  %v6314 = vld [vmem:[#allocation2 + $0x68] sm:$0xf]
  %v6315 = vld [vmem:[#allocation2 + $0x88] sm:$0xf]
  %v6316 = vld [vmem:[#allocation2 + $0xa8] sm:$0xf]
  %v6317 = vld [vmem:[#allocation2 + $0xc8] sm:$0xf]
  %v6318 = vld [vmem:[#allocation2 + $0xe8] sm:$0xf]
  %v6327 = vunpack.c.l.b16 %v6303
  %v6328 = vunpack.c.l.b16 %v6304
  %v6329 = vunpack.c.l.b16 %v6305
  %v6330 = vunpack.c.l.b16 %v6306
  %v6331 = vunpack.c.l.b16 %v6307
  %v6332 = vunpack.c.l.b16 %v6308
  %v6333 = vunpack.c.l.b16 %v6309
  %v6334 = vunpack.c.l.b16 %v6310
  %v6335 = vpack.c.b16 %v6328, %v6327
  %v6336 = vpack.c.b16 %v6330, %v6329
  %v6337 = vpack.c.b16 %v6332, %v6331
  %v6338 = vpack.c.b16 %v6334, %v6333
  %v6347 = vunpack.c.l.b16 %v6311
  %v6348 = vunpack.c.l.b16 %v6312
  %v6349 = vunpack.c.l.b16 %v6313
  %v6350 = vunpack.c.l.b16 %v6314
  %v6351 = vunpack.c.l.b16 %v6315
  %v6352 = vunpack.c.l.b16 %v6316
  %v6353 = vunpack.c.l.b16 %v6317
  %v6354 = vunpack.c.l.b16 %v6318
  %v6355 = vpack.c.b16 %v6348, %v6347
  %v6356 = vpack.c.b16 %v6350, %v6349
  %v6357 = vpack.c.b16 %v6352, %v6351
  %v6358 = vpack.c.b16 %v6354, %v6353
  %v6364 = vsel %vm6008, %v6335, 0
  %v6367 = vsel %vm6008, %v6336, 0
  %v6370 = vsel %vm6008, %v6337, 0
  %v6373 = vsel %vm6008, %v6338, 0
  %6375 = vmatpush.bf16.msra.mxu0 0
  %6376 = vmatpush.bf16.msra.mxu0 0
  %6377 = vmatpush.bf16.msra.mxu0 0
  %6378 = vmatpush.bf16.msra.mxu0 0
  %6379 = vmatpush.bf16.msra.mxu0 %v6358
  %6380 = vmatpush.bf16.msra.mxu0 %v6357
  %6381 = vmatpush.bf16.msra.mxu0 %v6356
  %6382 = vmatpush.bf16.msra.mxu0 %v6355
  %6383 = vmatmul.bf16.gmra.mxu0 %v6364
  %v6384 = vpop.f32.mrf.mxu0
  %v6385 = vadd.f32 0.0, %v6384
  %v6386 = vpop.f32.mrf.mxu0
  %v6387 = vadd.f32 0.0, %v6386
  %6388 = vmatmul.bf16.gmra.mxu0 %v6367
  %v6389 = vpop.f32.mrf.mxu0
  %v6390 = vadd.f32 0.0, %v6389
  %v6391 = vpop.f32.mrf.mxu0
  %v6392 = vadd.f32 0.0, %v6391
  %6393 = vmatmul.bf16.gmra.mxu0 %v6370
  %v6394 = vpop.f32.mrf.mxu0
  %v6395 = vadd.f32 0.0, %v6394
  %v6396 = vpop.f32.mrf.mxu0
  %v6397 = vadd.f32 0.0, %v6396
  %6398 = vmatmul.bf16.gmra.mxu0 %v6373
  %v6399 = vpop.f32.mrf.mxu0
  %v6400 = vadd.f32 0.0, %v6399
  %v6401 = vpop.f32.mrf.mxu0
  %v6402 = vadd.f32 0.0, %v6401
  %6403 = vdwg.mxu0
  %6404 = vst [vmem:[#allocation3 + $0x10] sm:$0xff] %v6385
  %6405 = vst [vmem:[#allocation3 + $0x50] sm:$0xff] %v6387
  %6406 = vst [vmem:[#allocation3 + $0x90] sm:$0xff] %v6390
  %6407 = vst [vmem:[#allocation3 + $0xd0] sm:$0xff] %v6392
  %6408 = vst [vmem:[#allocation3 + $0x110] sm:$0xff] %v6395
  %6409 = vst [vmem:[#allocation3 + $0x150] sm:$0xff] %v6397
  %6410 = vst [vmem:[#allocation3 + $0x190] sm:$0xff] %v6400
  %6411 = vst [vmem:[#allocation3 + $0x1d0] sm:$0xff] %v6402
  %v6412 = vld [vmem:[%s4 + $0x2] sm:$0x1]
  %v6414 = vperm.slane %v6412, 0
  %v6416 = vmul.f32 %v6385, %v6414
  %v6417 = vmul.f32 %v6387, %v6414
  %v6418 = vmul.f32 %v6390, %v6414
  %v6419 = vmul.f32 %v6392, %v6414
  %v6420 = vmul.f32 %v6395, %v6414
  %v6421 = vmul.f32 %v6397, %v6414
  %v6422 = vmul.f32 %v6400, %v6414
  %v6423 = vmul.f32 %v6402, %v6414
  %6424 = vadd.xlane.f32.xlu0 %v6416
  %v6425 = vpop.xlane.xlu0 %6424
  %6426 = vadd.xlane.f32.xlu0 %v6417
  %v6427 = vpop.xlane.xlu0 %6426
  %6428 = vadd.xlane.f32.xlu0 %v6418
  %v6429 = vpop.xlane.xlu0 %6428
  %6430 = vadd.xlane.f32.xlu0 %v6419
  %v6431 = vpop.xlane.xlu0 %6430
  %6432 = vadd.xlane.f32.xlu0 %v6420
  %v6433 = vpop.xlane.xlu0 %6432
  %6434 = vadd.xlane.f32.xlu0 %v6421
  %v6435 = vpop.xlane.xlu0 %6434
  %6436 = vadd.xlane.f32.xlu0 %v6422
  %v6437 = vpop.xlane.xlu0 %6436
  %6438 = vadd.xlane.f32.xlu0 %v6423
  %v6439 = vpop.xlane.xlu0 %6438
  %v6440 = vadd.f32 %v6263, %v6425
  %v6441 = vadd.f32 %v6264, %v6427
  %v6442 = vadd.f32 %v6265, %v6429
  %v6443 = vadd.f32 %v6266, %v6431
  %v6444 = vadd.f32 %v6267, %v6433
  %v6445 = vadd.f32 %v6268, %v6435
  %v6446 = vadd.f32 %v6269, %v6437
  %v6447 = vadd.f32 %v6270, %v6439
  %v6448 = vmul.f32 %v6385, %v6416
  %v6449 = vmul.f32 %v6387, %v6417
  %v6450 = vmul.f32 %v6390, %v6418
  %v6451 = vmul.f32 %v6392, %v6419
  %v6452 = vmul.f32 %v6395, %v6420
  %v6453 = vmul.f32 %v6397, %v6421
  %v6454 = vmul.f32 %v6400, %v6422
  %v6455 = vmul.f32 %v6402, %v6423
  %6456 = vadd.xlane.f32.xlu0 %v6448
  %v6457 = vpop.xlane.xlu0 %6456
  %6458 = vadd.xlane.f32.xlu0 %v6449
  %v6459 = vpop.xlane.xlu0 %6458
  %6460 = vadd.xlane.f32.xlu0 %v6450
  %v6461 = vpop.xlane.xlu0 %6460
  %6462 = vadd.xlane.f32.xlu0 %v6451
  %v6463 = vpop.xlane.xlu0 %6462
  %6464 = vadd.xlane.f32.xlu0 %v6452
  %v6465 = vpop.xlane.xlu0 %6464
  %6466 = vadd.xlane.f32.xlu0 %v6453
  %v6467 = vpop.xlane.xlu0 %6466
  %6468 = vadd.xlane.f32.xlu0 %v6454
  %v6469 = vpop.xlane.xlu0 %6468
  %6470 = vadd.xlane.f32.xlu0 %v6455
  %v6471 = vpop.xlane.xlu0 %6470
  %v6472 = vadd.f32 %v6295, %v6457
  %v6473 = vadd.f32 %v6296, %v6459
  %v6474 = vadd.f32 %v6297, %v6461
  %v6475 = vadd.f32 %v6298, %v6463
  %v6476 = vadd.f32 %v6299, %v6465
  %v6477 = vadd.f32 %v6300, %v6467
  %v6478 = vadd.f32 %v6301, %v6469
  %v6479 = vadd.f32 %v6302, %v6471
  %v6480 = vld [vmem:[%s1] sm:$0xf]
  %v6481 = vld [vmem:[%s1 + $0x4] sm:$0xf]
  %v6482 = vld [vmem:[%s1 + $0x8] sm:$0xf]
  %v6483 = vld [vmem:[%s1 + $0xc] sm:$0xf]
  %v6484 = vld [vmem:[%s1 + $0x10] sm:$0xf]
  %v6485 = vld [vmem:[%s1 + $0x14] sm:$0xf]
  %v6486 = vld [vmem:[%s1 + $0x18] sm:$0xf]
  %v6487 = vld [vmem:[%s1 + $0x1c] sm:$0xf]
  %v6488 = vld [vmem:[#allocation2 + $0xc] sm:$0xf]
  %v6489 = vld [vmem:[#allocation2 + $0x2c] sm:$0xf]
  %v6490 = vld [vmem:[#allocation2 + $0x4c] sm:$0xf]
  %v6491 = vld [vmem:[#allocation2 + $0x6c] sm:$0xf]
  %v6492 = vld [vmem:[#allocation2 + $0x8c] sm:$0xf]
  %v6493 = vld [vmem:[#allocation2 + $0xac] sm:$0xf]
  %v6494 = vld [vmem:[#allocation2 + $0xcc] sm:$0xf]
  %v6495 = vld [vmem:[#allocation2 + $0xec] sm:$0xf]
  %v6504 = vunpack.c.l.b16 %v6480
  %v6505 = vunpack.c.l.b16 %v6481
  %v6506 = vunpack.c.l.b16 %v6482
  %v6507 = vunpack.c.l.b16 %v6483
  %v6508 = vunpack.c.l.b16 %v6484
  %v6509 = vunpack.c.l.b16 %v6485
  %v6510 = vunpack.c.l.b16 %v6486
  %v6511 = vunpack.c.l.b16 %v6487
  %v6512 = vpack.c.b16 %v6505, %v6504
  %v6513 = vpack.c.b16 %v6507, %v6506
  %v6514 = vpack.c.b16 %v6509, %v6508
  %v6515 = vpack.c.b16 %v6511, %v6510
  %v6524 = vunpack.c.l.b16 %v6488
  %v6525 = vunpack.c.l.b16 %v6489
  %v6526 = vunpack.c.l.b16 %v6490
  %v6527 = vunpack.c.l.b16 %v6491
  %v6528 = vunpack.c.l.b16 %v6492
  %v6529 = vunpack.c.l.b16 %v6493
  %v6530 = vunpack.c.l.b16 %v6494
  %v6531 = vunpack.c.l.b16 %v6495
  %v6532 = vpack.c.b16 %v6525, %v6524
  %v6533 = vpack.c.b16 %v6527, %v6526
  %v6534 = vpack.c.b16 %v6529, %v6528
  %v6535 = vpack.c.b16 %v6531, %v6530
  %v6541 = vsel %vm6008, %v6512, 0
  %v6544 = vsel %vm6008, %v6513, 0
  %v6547 = vsel %vm6008, %v6514, 0
  %v6550 = vsel %vm6008, %v6515, 0
  %6552 = vmatpush.bf16.msra.mxu0 0
  %6553 = vmatpush.bf16.msra.mxu0 0
  %6554 = vmatpush.bf16.msra.mxu0 0
  %6555 = vmatpush.bf16.msra.mxu0 0
  %6556 = vmatpush.bf16.msra.mxu0 %v6535
  %6557 = vmatpush.bf16.msra.mxu0 %v6534
  %6558 = vmatpush.bf16.msra.mxu0 %v6533
  %6559 = vmatpush.bf16.msra.mxu0 %v6532
  %6560 = vmatmul.bf16.gmra.mxu0 %v6541
  %v6561 = vpop.f32.mrf.mxu0
  %v6562 = vadd.f32 0.0, %v6561
  %v6563 = vpop.f32.mrf.mxu0
  %v6564 = vadd.f32 0.0, %v6563
  %6565 = vmatmul.bf16.gmra.mxu0 %v6544
  %v6566 = vpop.f32.mrf.mxu0
  %v6567 = vadd.f32 0.0, %v6566
  %v6568 = vpop.f32.mrf.mxu0
  %v6569 = vadd.f32 0.0, %v6568
  %6570 = vmatmul.bf16.gmra.mxu0 %v6547
  %v6571 = vpop.f32.mrf.mxu0
  %v6572 = vadd.f32 0.0, %v6571
  %v6573 = vpop.f32.mrf.mxu0
  %v6574 = vadd.f32 0.0, %v6573
  %6575 = vmatmul.bf16.gmra.mxu0 %v6550
  %v6576 = vpop.f32.mrf.mxu0
  %v6577 = vadd.f32 0.0, %v6576
  %v6578 = vpop.f32.mrf.mxu0
  %v6579 = vadd.f32 0.0, %v6578
  %6580 = vdwg.mxu0
  %6581 = vst [vmem:[#allocation3 + $0x18] sm:$0xff] %v6562
  %6582 = vst [vmem:[#allocation3 + $0x58] sm:$0xff] %v6564
  %6583 = vst [vmem:[#allocation3 + $0x98] sm:$0xff] %v6567
  %6584 = vst [vmem:[#allocation3 + $0xd8] sm:$0xff] %v6569
  %6585 = vst [vmem:[#allocation3 + $0x118] sm:$0xff] %v6572
  %6586 = vst [vmem:[#allocation3 + $0x158] sm:$0xff] %v6574
  %6587 = vst [vmem:[#allocation3 + $0x198] sm:$0xff] %v6577
  %6588 = vst [vmem:[#allocation3 + $0x1d8] sm:$0xff] %v6579
  %v6589 = vld [vmem:[%s4 + $0x3] sm:$0x1]
  %v6591 = vperm.slane %v6589, 0
  %v6593 = vmul.f32 %v6562, %v6591
  %v6594 = vmul.f32 %v6564, %v6591
  %v6595 = vmul.f32 %v6567, %v6591
  %v6596 = vmul.f32 %v6569, %v6591
  %v6597 = vmul.f32 %v6572, %v6591
  %v6598 = vmul.f32 %v6574, %v6591
  %v6599 = vmul.f32 %v6577, %v6591
  %v6600 = vmul.f32 %v6579, %v6591
  %6601 = vadd.xlane.f32.xlu0 %v6593
  %v6602 = vpop.xlane.xlu0 %6601
  %6603 = vadd.xlane.f32.xlu0 %v6594
  %v6604 = vpop.xlane.xlu0 %6603
  %6605 = vadd.xlane.f32.xlu0 %v6595
  %v6606 = vpop.xlane.xlu0 %6605
  %6607 = vadd.xlane.f32.xlu0 %v6596
  %v6608 = vpop.xlane.xlu0 %6607
  %6609 = vadd.xlane.f32.xlu0 %v6597
  %v6610 = vpop.xlane.xlu0 %6609
  %6611 = vadd.xlane.f32.xlu0 %v6598
  %v6612 = vpop.xlane.xlu0 %6611
  %6613 = vadd.xlane.f32.xlu0 %v6599
  %v6614 = vpop.xlane.xlu0 %6613
  %6615 = vadd.xlane.f32.xlu0 %v6600
  %v6616 = vpop.xlane.xlu0 %6615
  %v6617 = vadd.f32 %v6440, %v6602
  %v6618 = vadd.f32 %v6441, %v6604
  %v6619 = vadd.f32 %v6442, %v6606
  %v6620 = vadd.f32 %v6443, %v6608
  %v6621 = vadd.f32 %v6444, %v6610
  %v6622 = vadd.f32 %v6445, %v6612
  %v6623 = vadd.f32 %v6446, %v6614
  %v6624 = vadd.f32 %v6447, %v6616
  %v6625 = vmul.f32 %v6562, %v6593
  %v6626 = vmul.f32 %v6564, %v6594
  %v6627 = vmul.f32 %v6567, %v6595
  %v6628 = vmul.f32 %v6569, %v6596
  %v6629 = vmul.f32 %v6572, %v6597
  %v6630 = vmul.f32 %v6574, %v6598
  %v6631 = vmul.f32 %v6577, %v6599
  %v6632 = vmul.f32 %v6579, %v6600
  %6633 = vadd.xlane.f32.xlu0 %v6625
  %v6634 = vpop.xlane.xlu0 %6633
  %6635 = vadd.xlane.f32.xlu0 %v6626
  %v6636 = vpop.xlane.xlu0 %6635
  %6637 = vadd.xlane.f32.xlu0 %v6627
  %v6638 = vpop.xlane.xlu0 %6637
  %6639 = vadd.xlane.f32.xlu0 %v6628
  %v6640 = vpop.xlane.xlu0 %6639
  %6641 = vadd.xlane.f32.xlu0 %v6629
  %v6642 = vpop.xlane.xlu0 %6641
  %6643 = vadd.xlane.f32.xlu0 %v6630
  %v6644 = vpop.xlane.xlu0 %6643
  %6645 = vadd.xlane.f32.xlu0 %v6631
  %v6646 = vpop.xlane.xlu0 %6645
  %6647 = vadd.xlane.f32.xlu0 %v6632
  %v6648 = vpop.xlane.xlu0 %6647
  %v6649 = vadd.f32 %v6472, %v6634
  %v6650 = vadd.f32 %v6473, %v6636
  %v6651 = vadd.f32 %v6474, %v6638
  %v6652 = vadd.f32 %v6475, %v6640
  %v6653 = vadd.f32 %v6476, %v6642
  %v6654 = vadd.f32 %v6477, %v6644
  %v6655 = vadd.f32 %v6478, %v6646
  %v6656 = vadd.f32 %v6479, %v6648
  %v6657 = vld [vmem:[%s1] sm:$0xf]
  %v6658 = vld [vmem:[%s1 + $0x4] sm:$0xf]
  %v6659 = vld [vmem:[%s1 + $0x8] sm:$0xf]
  %v6660 = vld [vmem:[%s1 + $0xc] sm:$0xf]
  %v6661 = vld [vmem:[%s1 + $0x10] sm:$0xf]
  %v6662 = vld [vmem:[%s1 + $0x14] sm:$0xf]
  %v6663 = vld [vmem:[%s1 + $0x18] sm:$0xf]
  %v6664 = vld [vmem:[%s1 + $0x1c] sm:$0xf]
  %v6665 = vld [vmem:[#allocation2 + $0x10] sm:$0xf]
  %v6666 = vld [vmem:[#allocation2 + $0x30] sm:$0xf]
  %v6667 = vld [vmem:[#allocation2 + $0x50] sm:$0xf]
  %v6668 = vld [vmem:[#allocation2 + $0x70] sm:$0xf]
  %v6669 = vld [vmem:[#allocation2 + $0x90] sm:$0xf]
  %v6670 = vld [vmem:[#allocation2 + $0xb0] sm:$0xf]
  %v6671 = vld [vmem:[#allocation2 + $0xd0] sm:$0xf]
  %v6672 = vld [vmem:[#allocation2 + $0xf0] sm:$0xf]
  %v6681 = vunpack.c.l.b16 %v6657
  %v6682 = vunpack.c.l.b16 %v6658
  %v6683 = vunpack.c.l.b16 %v6659
  %v6684 = vunpack.c.l.b16 %v6660
  %v6685 = vunpack.c.l.b16 %v6661
  %v6686 = vunpack.c.l.b16 %v6662
  %v6687 = vunpack.c.l.b16 %v6663
  %v6688 = vunpack.c.l.b16 %v6664
  %v6689 = vpack.c.b16 %v6682, %v6681
  %v6690 = vpack.c.b16 %v6684, %v6683
  %v6691 = vpack.c.b16 %v6686, %v6685
  %v6692 = vpack.c.b16 %v6688, %v6687
  %v6701 = vunpack.c.l.b16 %v6665
  %v6702 = vunpack.c.l.b16 %v6666
  %v6703 = vunpack.c.l.b16 %v6667
  %v6704 = vunpack.c.l.b16 %v6668
  %v6705 = vunpack.c.l.b16 %v6669
  %v6706 = vunpack.c.l.b16 %v6670
  %v6707 = vunpack.c.l.b16 %v6671
  %v6708 = vunpack.c.l.b16 %v6672
  %v6709 = vpack.c.b16 %v6702, %v6701
  %v6710 = vpack.c.b16 %v6704, %v6703
  %v6711 = vpack.c.b16 %v6706, %v6705
  %v6712 = vpack.c.b16 %v6708, %v6707
  %v6718 = vsel %vm6008, %v6689, 0
  %v6721 = vsel %vm6008, %v6690, 0
  %v6724 = vsel %vm6008, %v6691, 0
  %v6727 = vsel %vm6008, %v6692, 0
  %6729 = vmatpush.bf16.msra.mxu0 0
  %6730 = vmatpush.bf16.msra.mxu0 0
  %6731 = vmatpush.bf16.msra.mxu0 0
  %6732 = vmatpush.bf16.msra.mxu0 0
  %6733 = vmatpush.bf16.msra.mxu0 %v6712
  %6734 = vmatpush.bf16.msra.mxu0 %v6711
  %6735 = vmatpush.bf16.msra.mxu0 %v6710
  %6736 = vmatpush.bf16.msra.mxu0 %v6709
  %6737 = vmatmul.bf16.gmra.mxu0 %v6718
  %v6738 = vpop.f32.mrf.mxu0
  %v6739 = vadd.f32 0.0, %v6738
  %v6740 = vpop.f32.mrf.mxu0
  %v6741 = vadd.f32 0.0, %v6740
  %6742 = vmatmul.bf16.gmra.mxu0 %v6721
  %v6743 = vpop.f32.mrf.mxu0
  %v6744 = vadd.f32 0.0, %v6743
  %v6745 = vpop.f32.mrf.mxu0
  %v6746 = vadd.f32 0.0, %v6745
  %6747 = vmatmul.bf16.gmra.mxu0 %v6724
  %v6748 = vpop.f32.mrf.mxu0
  %v6749 = vadd.f32 0.0, %v6748
  %v6750 = vpop.f32.mrf.mxu0
  %v6751 = vadd.f32 0.0, %v6750
  %6752 = vmatmul.bf16.gmra.mxu0 %v6727
  %v6753 = vpop.f32.mrf.mxu0
  %v6754 = vadd.f32 0.0, %v6753
  %v6755 = vpop.f32.mrf.mxu0
  %v6756 = vadd.f32 0.0, %v6755
  %6757 = vdwg.mxu0
  %6758 = vst [vmem:[#allocation3 + $0x20] sm:$0xff] %v6739
  %6759 = vst [vmem:[#allocation3 + $0x60] sm:$0xff] %v6741
  %6760 = vst [vmem:[#allocation3 + $0xa0] sm:$0xff] %v6744
  %6761 = vst [vmem:[#allocation3 + $0xe0] sm:$0xff] %v6746
  %6762 = vst [vmem:[#allocation3 + $0x120] sm:$0xff] %v6749
  %6763 = vst [vmem:[#allocation3 + $0x160] sm:$0xff] %v6751
  %6764 = vst [vmem:[#allocation3 + $0x1a0] sm:$0xff] %v6754
  %6765 = vst [vmem:[#allocation3 + $0x1e0] sm:$0xff] %v6756
  %v6766 = vld [vmem:[%s4 + $0x4] sm:$0x1]
  %v6768 = vperm.slane %v6766, 0
  %v6770 = vmul.f32 %v6739, %v6768
  %v6771 = vmul.f32 %v6741, %v6768
  %v6772 = vmul.f32 %v6744, %v6768
  %v6773 = vmul.f32 %v6746, %v6768
  %v6774 = vmul.f32 %v6749, %v6768
  %v6775 = vmul.f32 %v6751, %v6768
  %v6776 = vmul.f32 %v6754, %v6768
  %v6777 = vmul.f32 %v6756, %v6768
  %6778 = vadd.xlane.f32.xlu0 %v6770
  %v6779 = vpop.xlane.xlu0 %6778
  %6780 = vadd.xlane.f32.xlu0 %v6771
  %v6781 = vpop.xlane.xlu0 %6780
  %6782 = vadd.xlane.f32.xlu0 %v6772
  %v6783 = vpop.xlane.xlu0 %6782
  %6784 = vadd.xlane.f32.xlu0 %v6773
  %v6785 = vpop.xlane.xlu0 %6784
  %6786 = vadd.xlane.f32.xlu0 %v6774
  %v6787 = vpop.xlane.xlu0 %6786
  %6788 = vadd.xlane.f32.xlu0 %v6775
  %v6789 = vpop.xlane.xlu0 %6788
  %6790 = vadd.xlane.f32.xlu0 %v6776
  %v6791 = vpop.xlane.xlu0 %6790
  %6792 = vadd.xlane.f32.xlu0 %v6777
  %v6793 = vpop.xlane.xlu0 %6792
  %v6794 = vadd.f32 %v6617, %v6779
  %v6795 = vadd.f32 %v6618, %v6781
  %v6796 = vadd.f32 %v6619, %v6783
  %v6797 = vadd.f32 %v6620, %v6785
  %v6798 = vadd.f32 %v6621, %v6787
  %v6799 = vadd.f32 %v6622, %v6789
  %v6800 = vadd.f32 %v6623, %v6791
  %v6801 = vadd.f32 %v6624, %v6793
  %v6802 = vmul.f32 %v6739, %v6770
  %v6803 = vmul.f32 %v6741, %v6771
  %v6804 = vmul.f32 %v6744, %v6772
  %v6805 = vmul.f32 %v6746, %v6773
  %v6806 = vmul.f32 %v6749, %v6774
  %v6807 = vmul.f32 %v6751, %v6775
  %v6808 = vmul.f32 %v6754, %v6776
  %v6809 = vmul.f32 %v6756, %v6777
  %6810 = vadd.xlane.f32.xlu0 %v6802
  %v6811 = vpop.xlane.xlu0 %6810
  %6812 = vadd.xlane.f32.xlu0 %v6803
  %v6813 = vpop.xlane.xlu0 %6812
  %6814 = vadd.xlane.f32.xlu0 %v6804
  %v6815 = vpop.xlane.xlu0 %6814
  %6816 = vadd.xlane.f32.xlu0 %v6805
  %v6817 = vpop.xlane.xlu0 %6816
  %6818 = vadd.xlane.f32.xlu0 %v6806
  %v6819 = vpop.xlane.xlu0 %6818
  %6820 = vadd.xlane.f32.xlu0 %v6807
  %v6821 = vpop.xlane.xlu0 %6820
  %6822 = vadd.xlane.f32.xlu0 %v6808
  %v6823 = vpop.xlane.xlu0 %6822
  %6824 = vadd.xlane.f32.xlu0 %v6809
  %v6825 = vpop.xlane.xlu0 %6824
  %v6826 = vadd.f32 %v6649, %v6811
  %v6827 = vadd.f32 %v6650, %v6813
  %v6828 = vadd.f32 %v6651, %v6815
  %v6829 = vadd.f32 %v6652, %v6817
  %v6830 = vadd.f32 %v6653, %v6819
  %v6831 = vadd.f32 %v6654, %v6821
  %v6832 = vadd.f32 %v6655, %v6823
  %v6833 = vadd.f32 %v6656, %v6825
  %v6834 = vld [vmem:[%s1] sm:$0xf]
  %v6835 = vld [vmem:[%s1 + $0x4] sm:$0xf]
  %v6836 = vld [vmem:[%s1 + $0x8] sm:$0xf]
  %v6837 = vld [vmem:[%s1 + $0xc] sm:$0xf]
  %v6838 = vld [vmem:[%s1 + $0x10] sm:$0xf]
  %v6839 = vld [vmem:[%s1 + $0x14] sm:$0xf]
  %v6840 = vld [vmem:[%s1 + $0x18] sm:$0xf]
  %v6841 = vld [vmem:[%s1 + $0x1c] sm:$0xf]
  %v6842 = vld [vmem:[#allocation2 + $0x14] sm:$0xf]
  %v6843 = vld [vmem:[#allocation2 + $0x34] sm:$0xf]
  %v6844 = vld [vmem:[#allocation2 + $0x54] sm:$0xf]
  %v6845 = vld [vmem:[#allocation2 + $0x74] sm:$0xf]
  %v6846 = vld [vmem:[#allocation2 + $0x94] sm:$0xf]
  %v6847 = vld [vmem:[#allocation2 + $0xb4] sm:$0xf]
  %v6848 = vld [vmem:[#allocation2 + $0xd4] sm:$0xf]
  %v6849 = vld [vmem:[#allocation2 + $0xf4] sm:$0xf]
  %v6858 = vunpack.c.l.b16 %v6834
  %v6859 = vunpack.c.l.b16 %v6835
  %v6860 = vunpack.c.l.b16 %v6836
  %v6861 = vunpack.c.l.b16 %v6837
  %v6862 = vunpack.c.l.b16 %v6838
  %v6863 = vunpack.c.l.b16 %v6839
  %v6864 = vunpack.c.l.b16 %v6840
  %v6865 = vunpack.c.l.b16 %v6841
  %v6866 = vpack.c.b16 %v6859, %v6858
  %v6867 = vpack.c.b16 %v6861, %v6860
  %v6868 = vpack.c.b16 %v6863, %v6862
  %v6869 = vpack.c.b16 %v6865, %v6864
  %v6878 = vunpack.c.l.b16 %v6842
  %v6879 = vunpack.c.l.b16 %v6843
  %v6880 = vunpack.c.l.b16 %v6844
  %v6881 = vunpack.c.l.b16 %v6845
  %v6882 = vunpack.c.l.b16 %v6846
  %v6883 = vunpack.c.l.b16 %v6847
  %v6884 = vunpack.c.l.b16 %v6848
  %v6885 = vunpack.c.l.b16 %v6849
  %v6886 = vpack.c.b16 %v6879, %v6878
  %v6887 = vpack.c.b16 %v6881, %v6880
  %v6888 = vpack.c.b16 %v6883, %v6882
  %v6889 = vpack.c.b16 %v6885, %v6884
  %v6895 = vsel %vm6008, %v6866, 0
  %v6898 = vsel %vm6008, %v6867, 0
  %v6901 = vsel %vm6008, %v6868, 0
  %v6904 = vsel %vm6008, %v6869, 0
  %6906 = vmatpush.bf16.msra.mxu0 0
  %6907 = vmatpush.bf16.msra.mxu0 0
  %6908 = vmatpush.bf16.msra.mxu0 0
  %6909 = vmatpush.bf16.msra.mxu0 0
  %6910 = vmatpush.bf16.msra.mxu0 %v6889
  %6911 = vmatpush.bf16.msra.mxu0 %v6888
  %6912 = vmatpush.bf16.msra.mxu0 %v6887
  %6913 = vmatpush.bf16.msra.mxu0 %v6886
  %6914 = vmatmul.bf16.gmra.mxu0 %v6895
  %v6915 = vpop.f32.mrf.mxu0
  %v6916 = vadd.f32 0.0, %v6915
  %v6917 = vpop.f32.mrf.mxu0
  %v6918 = vadd.f32 0.0, %v6917
  %6919 = vmatmul.bf16.gmra.mxu0 %v6898
  %v6920 = vpop.f32.mrf.mxu0
  %v6921 = vadd.f32 0.0, %v6920
  %v6922 = vpop.f32.mrf.mxu0
  %v6923 = vadd.f32 0.0, %v6922
  %6924 = vmatmul.bf16.gmra.mxu0 %v6901
  %v6925 = vpop.f32.mrf.mxu0
  %v6926 = vadd.f32 0.0, %v6925
  %v6927 = vpop.f32.mrf.mxu0
  %v6928 = vadd.f32 0.0, %v6927
  %6929 = vmatmul.bf16.gmra.mxu0 %v6904
  %v6930 = vpop.f32.mrf.mxu0
  %v6931 = vadd.f32 0.0, %v6930
  %v6932 = vpop.f32.mrf.mxu0
  %v6933 = vadd.f32 0.0, %v6932
  %6934 = vdwg.mxu0
  %6935 = vst [vmem:[#allocation3 + $0x28] sm:$0xff] %v6916
  %6936 = vst [vmem:[#allocation3 + $0x68] sm:$0xff] %v6918
  %6937 = vst [vmem:[#allocation3 + $0xa8] sm:$0xff] %v6921
  %6938 = vst [vmem:[#allocation3 + $0xe8] sm:$0xff] %v6923
  %6939 = vst [vmem:[#allocation3 + $0x128] sm:$0xff] %v6926
  %6940 = vst [vmem:[#allocation3 + $0x168] sm:$0xff] %v6928
  %6941 = vst [vmem:[#allocation3 + $0x1a8] sm:$0xff] %v6931
  %6942 = vst [vmem:[#allocation3 + $0x1e8] sm:$0xff] %v6933
  %v6943 = vld [vmem:[%s4 + $0x5] sm:$0x1]
  %v6945 = vperm.slane %v6943, 0
  %v6947 = vmul.f32 %v6916, %v6945
  %v6948 = vmul.f32 %v6918, %v6945
  %v6949 = vmul.f32 %v6921, %v6945
  %v6950 = vmul.f32 %v6923, %v6945
  %v6951 = vmul.f32 %v6926, %v6945
  %v6952 = vmul.f32 %v6928, %v6945
  %v6953 = vmul.f32 %v6931, %v6945
  %v6954 = vmul.f32 %v6933, %v6945
  %6955 = vadd.xlane.f32.xlu0 %v6947
  %v6956 = vpop.xlane.xlu0 %6955
  %6957 = vadd.xlane.f32.xlu0 %v6948
  %v6958 = vpop.xlane.xlu0 %6957
  %6959 = vadd.xlane.f32.xlu0 %v6949
  %v6960 = vpop.xlane.xlu0 %6959
  %6961 = vadd.xlane.f32.xlu0 %v6950
  %v6962 = vpop.xlane.xlu0 %6961
  %6963 = vadd.xlane.f32.xlu0 %v6951
  %v6964 = vpop.xlane.xlu0 %6963
  %6965 = vadd.xlane.f32.xlu0 %v6952
  %v6966 = vpop.xlane.xlu0 %6965
  %6967 = vadd.xlane.f32.xlu0 %v6953
  %v6968 = vpop.xlane.xlu0 %6967
  %6969 = vadd.xlane.f32.xlu0 %v6954
  %v6970 = vpop.xlane.xlu0 %6969
  %v6971 = vadd.f32 %v6794, %v6956
  %v6972 = vadd.f32 %v6795, %v6958
  %v6973 = vadd.f32 %v6796, %v6960
  %v6974 = vadd.f32 %v6797, %v6962
  %v6975 = vadd.f32 %v6798, %v6964
  %v6976 = vadd.f32 %v6799, %v6966
  %v6977 = vadd.f32 %v6800, %v6968
  %v6978 = vadd.f32 %v6801, %v6970
  %v6979 = vmul.f32 %v6916, %v6947
  %v6980 = vmul.f32 %v6918, %v6948
  %v6981 = vmul.f32 %v6921, %v6949
  %v6982 = vmul.f32 %v6923, %v6950
  %v6983 = vmul.f32 %v6926, %v6951
  %v6984 = vmul.f32 %v6928, %v6952
  %v6985 = vmul.f32 %v6931, %v6953
  %v6986 = vmul.f32 %v6933, %v6954
  %6987 = vadd.xlane.f32.xlu0 %v6979
  %v6988 = vpop.xlane.xlu0 %6987
  %6989 = vadd.xlane.f32.xlu0 %v6980
  %v6990 = vpop.xlane.xlu0 %6989
  %6991 = vadd.xlane.f32.xlu0 %v6981
  %v6992 = vpop.xlane.xlu0 %6991
  %6993 = vadd.xlane.f32.xlu0 %v6982
  %v6994 = vpop.xlane.xlu0 %6993
  %6995 = vadd.xlane.f32.xlu0 %v6983
  %v6996 = vpop.xlane.xlu0 %6995
  %6997 = vadd.xlane.f32.xlu0 %v6984
  %v6998 = vpop.xlane.xlu0 %6997
  %6999 = vadd.xlane.f32.xlu0 %v6985
  %v7000 = vpop.xlane.xlu0 %6999
  %7001 = vadd.xlane.f32.xlu0 %v6986
  %v7002 = vpop.xlane.xlu0 %7001
  %v7003 = vadd.f32 %v6826, %v6988
  %v7004 = vadd.f32 %v6827, %v6990
  %v7005 = vadd.f32 %v6828, %v6992
  %v7006 = vadd.f32 %v6829, %v6994
  %v7007 = vadd.f32 %v6830, %v6996
  %v7008 = vadd.f32 %v6831, %v6998
  %v7009 = vadd.f32 %v6832, %v7000
  %v7010 = vadd.f32 %v6833, %v7002
  %v7011 = vld [vmem:[%s1] sm:$0xf]
  %v7012 = vld [vmem:[%s1 + $0x4] sm:$0xf]
  %v7013 = vld [vmem:[%s1 + $0x8] sm:$0xf]
  %v7014 = vld [vmem:[%s1 + $0xc] sm:$0xf]
  %v7015 = vld [vmem:[%s1 + $0x10] sm:$0xf]
  %v7016 = vld [vmem:[%s1 + $0x14] sm:$0xf]
  %v7017 = vld [vmem:[%s1 + $0x18] sm:$0xf]
  %v7018 = vld [vmem:[%s1 + $0x1c] sm:$0xf]
  %v7019 = vld [vmem:[#allocation2 + $0x18] sm:$0xf]
  %v7020 = vld [vmem:[#allocation2 + $0x38] sm:$0xf]
  %v7021 = vld [vmem:[#allocation2 + $0x58] sm:$0xf]
  %v7022 = vld [vmem:[#allocation2 + $0x78] sm:$0xf]
  %v7023 = vld [vmem:[#allocation2 + $0x98] sm:$0xf]
  %v7024 = vld [vmem:[#allocation2 + $0xb8] sm:$0xf]
  %v7025 = vld [vmem:[#allocation2 + $0xd8] sm:$0xf]
  %v7026 = vld [vmem:[#allocation2 + $0xf8] sm:$0xf]
  %v7035 = vunpack.c.l.b16 %v7011
  %v7036 = vunpack.c.l.b16 %v7012
  %v7037 = vunpack.c.l.b16 %v7013
  %v7038 = vunpack.c.l.b16 %v7014
  %v7039 = vunpack.c.l.b16 %v7015
  %v7040 = vunpack.c.l.b16 %v7016
  %v7041 = vunpack.c.l.b16 %v7017
  %v7042 = vunpack.c.l.b16 %v7018
  %v7043 = vpack.c.b16 %v7036, %v7035
  %v7044 = vpack.c.b16 %v7038, %v7037
  %v7045 = vpack.c.b16 %v7040, %v7039
  %v7046 = vpack.c.b16 %v7042, %v7041
  %v7055 = vunpack.c.l.b16 %v7019
  %v7056 = vunpack.c.l.b16 %v7020
  %v7057 = vunpack.c.l.b16 %v7021
  %v7058 = vunpack.c.l.b16 %v7022
  %v7059 = vunpack.c.l.b16 %v7023
  %v7060 = vunpack.c.l.b16 %v7024
  %v7061 = vunpack.c.l.b16 %v7025
  %v7062 = vunpack.c.l.b16 %v7026
  %v7063 = vpack.c.b16 %v7056, %v7055
  %v7064 = vpack.c.b16 %v7058, %v7057
  %v7065 = vpack.c.b16 %v7060, %v7059
  %v7066 = vpack.c.b16 %v7062, %v7061
  %v7072 = vsel %vm6008, %v7043, 0
  %v7075 = vsel %vm6008, %v7044, 0
  %v7078 = vsel %vm6008, %v7045, 0
  %v7081 = vsel %vm6008, %v7046, 0
  %7083 = vmatpush.bf16.msra.mxu0 0
  %7084 = vmatpush.bf16.msra.mxu0 0
  %7085 = vmatpush.bf16.msra.mxu0 0
  %7086 = vmatpush.bf16.msra.mxu0 0
  %7087 = vmatpush.bf16.msra.mxu0 %v7066
  %7088 = vmatpush.bf16.msra.mxu0 %v7065
  %7089 = vmatpush.bf16.msra.mxu0 %v7064
  %7090 = vmatpush.bf16.msra.mxu0 %v7063
  %7091 = vmatmul.bf16.gmra.mxu0 %v7072
  %v7092 = vpop.f32.mrf.mxu0
  %v7093 = vadd.f32 0.0, %v7092
  %v7094 = vpop.f32.mrf.mxu0
  %v7095 = vadd.f32 0.0, %v7094
  %7096 = vmatmul.bf16.gmra.mxu0 %v7075
  %v7097 = vpop.f32.mrf.mxu0
  %v7098 = vadd.f32 0.0, %v7097
  %v7099 = vpop.f32.mrf.mxu0
  %v7100 = vadd.f32 0.0, %v7099
  %7101 = vmatmul.bf16.gmra.mxu0 %v7078
  %v7102 = vpop.f32.mrf.mxu0
  %v7103 = vadd.f32 0.0, %v7102
  %v7104 = vpop.f32.mrf.mxu0
  %v7105 = vadd.f32 0.0, %v7104
  %7106 = vmatmul.bf16.gmra.mxu0 %v7081
  %v7107 = vpop.f32.mrf.mxu0
  %v7108 = vadd.f32 0.0, %v7107
  %v7109 = vpop.f32.mrf.mxu0
  %v7110 = vadd.f32 0.0, %v7109
  %7111 = vdwg.mxu0
  %7112 = vst [vmem:[#allocation3 + $0x30] sm:$0xff] %v7093
  %7113 = vst [vmem:[#allocation3 + $0x70] sm:$0xff] %v7095
  %7114 = vst [vmem:[#allocation3 + $0xb0] sm:$0xff] %v7098
  %7115 = vst [vmem:[#allocation3 + $0xf0] sm:$0xff] %v7100
  %7116 = vst [vmem:[#allocation3 + $0x130] sm:$0xff] %v7103
  %7117 = vst [vmem:[#allocation3 + $0x170] sm:$0xff] %v7105
  %7118 = vst [vmem:[#allocation3 + $0x1b0] sm:$0xff] %v7108
  %7119 = vst [vmem:[#allocation3 + $0x1f0] sm:$0xff] %v7110
  %v7120 = vld [vmem:[%s4 + $0x6] sm:$0x1]
  %v7122 = vperm.slane %v7120, 0
  %v7124 = vmul.f32 %v7093, %v7122
  %v7125 = vmul.f32 %v7095, %v7122
  %v7126 = vmul.f32 %v7098, %v7122
  %v7127 = vmul.f32 %v7100, %v7122
  %v7128 = vmul.f32 %v7103, %v7122
  %v7129 = vmul.f32 %v7105, %v7122
  %v7130 = vmul.f32 %v7108, %v7122
  %v7131 = vmul.f32 %v7110, %v7122
  %7132 = vadd.xlane.f32.xlu0 %v7124
  %v7133 = vpop.xlane.xlu0 %7132
  %7134 = vadd.xlane.f32.xlu0 %v7125
  %v7135 = vpop.xlane.xlu0 %7134
  %7136 = vadd.xlane.f32.xlu0 %v7126
  %v7137 = vpop.xlane.xlu0 %7136
  %7138 = vadd.xlane.f32.xlu0 %v7127
  %v7139 = vpop.xlane.xlu0 %7138
  %7140 = vadd.xlane.f32.xlu0 %v7128
  %v7141 = vpop.xlane.xlu0 %7140
  %7142 = vadd.xlane.f32.xlu0 %v7129
  %v7143 = vpop.xlane.xlu0 %7142
  %7144 = vadd.xlane.f32.xlu0 %v7130
  %v7145 = vpop.xlane.xlu0 %7144
  %7146 = vadd.xlane.f32.xlu0 %v7131
  %v7147 = vpop.xlane.xlu0 %7146
  %v7148 = vadd.f32 %v6971, %v7133
  %v7149 = vadd.f32 %v6972, %v7135
  %v7150 = vadd.f32 %v6973, %v7137
  %v7151 = vadd.f32 %v6974, %v7139
  %v7152 = vadd.f32 %v6975, %v7141
  %v7153 = vadd.f32 %v6976, %v7143
  %v7154 = vadd.f32 %v6977, %v7145
  %v7155 = vadd.f32 %v6978, %v7147
  %v7156 = vmul.f32 %v7093, %v7124
  %v7157 = vmul.f32 %v7095, %v7125
  %v7158 = vmul.f32 %v7098, %v7126
  %v7159 = vmul.f32 %v7100, %v7127
  %v7160 = vmul.f32 %v7103, %v7128
  %v7161 = vmul.f32 %v7105, %v7129
  %v7162 = vmul.f32 %v7108, %v7130
  %v7163 = vmul.f32 %v7110, %v7131
  %7164 = vadd.xlane.f32.xlu0 %v7156
  %v7165 = vpop.xlane.xlu0 %7164
  %7166 = vadd.xlane.f32.xlu0 %v7157
  %v7167 = vpop.xlane.xlu0 %7166
  %7168 = vadd.xlane.f32.xlu0 %v7158
  %v7169 = vpop.xlane.xlu0 %7168
  %7170 = vadd.xlane.f32.xlu0 %v7159
  %v7171 = vpop.xlane.xlu0 %7170
  %7172 = vadd.xlane.f32.xlu0 %v7160
  %v7173 = vpop.xlane.xlu0 %7172
  %7174 = vadd.xlane.f32.xlu0 %v7161
  %v7175 = vpop.xlane.xlu0 %7174
  %7176 = vadd.xlane.f32.xlu0 %v7162
  %v7177 = vpop.xlane.xlu0 %7176
  %7178 = vadd.xlane.f32.xlu0 %v7163
  %v7179 = vpop.xlane.xlu0 %7178
  %v7180 = vadd.f32 %v7003, %v7165
  %v7181 = vadd.f32 %v7004, %v7167
  %v7182 = vadd.f32 %v7005, %v7169
  %v7183 = vadd.f32 %v7006, %v7171
  %v7184 = vadd.f32 %v7007, %v7173
  %v7185 = vadd.f32 %v7008, %v7175
  %v7186 = vadd.f32 %v7009, %v7177
  %v7187 = vadd.f32 %v7010, %v7179
  %v7188 = vld [vmem:[%s1] sm:$0xf]
  %v7189 = vld [vmem:[%s1 + $0x4] sm:$0xf]
  %v7190 = vld [vmem:[%s1 + $0x8] sm:$0xf]
  %v7191 = vld [vmem:[%s1 + $0xc] sm:$0xf]
  %v7192 = vld [vmem:[%s1 + $0x10] sm:$0xf]
  %v7193 = vld [vmem:[%s1 + $0x14] sm:$0xf]
  %v7194 = vld [vmem:[%s1 + $0x18] sm:$0xf]
  %v7195 = vld [vmem:[%s1 + $0x1c] sm:$0xf]
  %v7196 = vld [vmem:[#allocation2 + $0x1c] sm:$0xf]
  %v7197 = vld [vmem:[#allocation2 + $0x3c] sm:$0xf]
  %v7198 = vld [vmem:[#allocation2 + $0x5c] sm:$0xf]
  %v7199 = vld [vmem:[#allocation2 + $0x7c] sm:$0xf]
  %v7200 = vld [vmem:[#allocation2 + $0x9c] sm:$0xf]
  %v7201 = vld [vmem:[#allocation2 + $0xbc] sm:$0xf]
  %v7202 = vld [vmem:[#allocation2 + $0xdc] sm:$0xf]
  %v7203 = vld [vmem:[#allocation2 + $0xfc] sm:$0xf]
  %v7212 = vunpack.c.l.b16 %v7188
  %v7213 = vunpack.c.l.b16 %v7189
  %v7214 = vunpack.c.l.b16 %v7190
  %v7215 = vunpack.c.l.b16 %v7191
  %v7216 = vunpack.c.l.b16 %v7192
  %v7217 = vunpack.c.l.b16 %v7193
  %v7218 = vunpack.c.l.b16 %v7194
  %v7219 = vunpack.c.l.b16 %v7195
  %v7220 = vpack.c.b16 %v7213, %v7212
  %v7221 = vpack.c.b16 %v7215, %v7214
  %v7222 = vpack.c.b16 %v7217, %v7216
  %v7223 = vpack.c.b16 %v7219, %v7218
  %v7232 = vunpack.c.l.b16 %v7196
  %v7233 = vunpack.c.l.b16 %v7197
  %v7234 = vunpack.c.l.b16 %v7198
  %v7235 = vunpack.c.l.b16 %v7199
  %v7236 = vunpack.c.l.b16 %v7200
  %v7237 = vunpack.c.l.b16 %v7201
  %v7238 = vunpack.c.l.b16 %v7202
  %v7239 = vunpack.c.l.b16 %v7203
  %v7240 = vpack.c.b16 %v7233, %v7232
  %v7241 = vpack.c.b16 %v7235, %v7234
  %v7242 = vpack.c.b16 %v7237, %v7236
  %v7243 = vpack.c.b16 %v7239, %v7238
  %v7249 = vsel %vm6008, %v7220, 0
  %v7252 = vsel %vm6008, %v7221, 0
  %v7255 = vsel %vm6008, %v7222, 0
  %v7258 = vsel %vm6008, %v7223, 0
  %7260 = vmatpush.bf16.msra.mxu0 0
  %7261 = vmatpush.bf16.msra.mxu0 0
  %7262 = vmatpush.bf16.msra.mxu0 0
  %7263 = vmatpush.bf16.msra.mxu0 0
  %7264 = vmatpush.bf16.msra.mxu0 %v7243
  %7265 = vmatpush.bf16.msra.mxu0 %v7242
  %7266 = vmatpush.bf16.msra.mxu0 %v7241
  %7267 = vmatpush.bf16.msra.mxu0 %v7240
  %7268 = vmatmul.bf16.gmra.mxu0 %v7249
  %v7269 = vpop.f32.mrf.mxu0
  %v7270 = vadd.f32 0.0, %v7269
  %v7271 = vpop.f32.mrf.mxu0
  %v7272 = vadd.f32 0.0, %v7271
  %7273 = vmatmul.bf16.gmra.mxu0 %v7252
  %v7274 = vpop.f32.mrf.mxu0
  %v7275 = vadd.f32 0.0, %v7274
  %v7276 = vpop.f32.mrf.mxu0
  %v7277 = vadd.f32 0.0, %v7276
  %7278 = vmatmul.bf16.gmra.mxu0 %v7255
  %v7279 = vpop.f32.mrf.mxu0
  %v7280 = vadd.f32 0.0, %v7279
  %v7281 = vpop.f32.mrf.mxu0
  %v7282 = vadd.f32 0.0, %v7281
  %7283 = vmatmul.bf16.gmra.mxu0 %v7258
  %v7284 = vpop.f32.mrf.mxu0
  %v7285 = vadd.f32 0.0, %v7284
  %v7286 = vpop.f32.mrf.mxu0
  %v7287 = vadd.f32 0.0, %v7286
  %7288 = vdwg.mxu0
  %7289 = vst [vmem:[#allocation3 + $0x38] sm:$0xff] %v7270
  %7290 = vst [vmem:[#allocation3 + $0x78] sm:$0xff] %v7272
  %7291 = vst [vmem:[#allocation3 + $0xb8] sm:$0xff] %v7275
  %7292 = vst [vmem:[#allocation3 + $0xf8] sm:$0xff] %v7277
  %7293 = vst [vmem:[#allocation3 + $0x138] sm:$0xff] %v7280
  %7294 = vst [vmem:[#allocation3 + $0x178] sm:$0xff] %v7282
  %7295 = vst [vmem:[#allocation3 + $0x1b8] sm:$0xff] %v7285
  %7296 = vst [vmem:[#allocation3 + $0x1f8] sm:$0xff] %v7287
  %v7297 = vld [vmem:[%s4 + $0x7] sm:$0x1]
  %v7299 = vperm.slane %v7297, 0
  %v7301 = vmul.f32 %v7270, %v7299
  %v7302 = vmul.f32 %v7272, %v7299
  %v7303 = vmul.f32 %v7275, %v7299
  %v7304 = vmul.f32 %v7277, %v7299
  %v7305 = vmul.f32 %v7280, %v7299
  %v7306 = vmul.f32 %v7282, %v7299
  %v7307 = vmul.f32 %v7285, %v7299
  %v7308 = vmul.f32 %v7287, %v7299
  %7309 = vadd.xlane.f32.xlu0 %v7301
  %v7310 = vpop.xlane.xlu0 %7309
  %7311 = vadd.xlane.f32.xlu0 %v7302
  %v7312 = vpop.xlane.xlu0 %7311
  %7313 = vadd.xlane.f32.xlu0 %v7303
  %v7314 = vpop.xlane.xlu0 %7313
  %7315 = vadd.xlane.f32.xlu0 %v7304
  %v7316 = vpop.xlane.xlu0 %7315
  %7317 = vadd.xlane.f32.xlu0 %v7305
  %v7318 = vpop.xlane.xlu0 %7317
  %7319 = vadd.xlane.f32.xlu0 %v7306
  %v7320 = vpop.xlane.xlu0 %7319
  %7321 = vadd.xlane.f32.xlu0 %v7307
  %v7322 = vpop.xlane.xlu0 %7321
  %7323 = vadd.xlane.f32.xlu0 %v7308
  %v7324 = vpop.xlane.xlu0 %7323
  %v7325 = vadd.f32 %v7148, %v7310
  %v7326 = vadd.f32 %v7149, %v7312
  %v7327 = vadd.f32 %v7150, %v7314
  %v7328 = vadd.f32 %v7151, %v7316
  %v7329 = vadd.f32 %v7152, %v7318
  %v7330 = vadd.f32 %v7153, %v7320
  %v7331 = vadd.f32 %v7154, %v7322
  %v7332 = vadd.f32 %v7155, %v7324
  %v7333 = vmul.f32 %v7270, %v7301
  %v7334 = vmul.f32 %v7272, %v7302
  %v7335 = vmul.f32 %v7275, %v7303
  %v7336 = vmul.f32 %v7277, %v7304
  %v7337 = vmul.f32 %v7280, %v7305
  %v7338 = vmul.f32 %v7282, %v7306
  %v7339 = vmul.f32 %v7285, %v7307
  %v7340 = vmul.f32 %v7287, %v7308
  %7341 = vadd.xlane.f32.xlu0 %v7333
  %v7342 = vpop.xlane.xlu0 %7341
  %7343 = vadd.xlane.f32.xlu0 %v7334
  %v7344 = vpop.xlane.xlu0 %7343
  %7345 = vadd.xlane.f32.xlu0 %v7335
  %v7346 = vpop.xlane.xlu0 %7345
  %7347 = vadd.xlane.f32.xlu0 %v7336
  %v7348 = vpop.xlane.xlu0 %7347
  %7349 = vadd.xlane.f32.xlu0 %v7337
  %v7350 = vpop.xlane.xlu0 %7349
  %7351 = vadd.xlane.f32.xlu0 %v7338
  %v7352 = vpop.xlane.xlu0 %7351
  %7353 = vadd.xlane.f32.xlu0 %v7339
  %v7354 = vpop.xlane.xlu0 %7353
  %7355 = vadd.xlane.f32.xlu0 %v7340
  %v7356 = vpop.xlane.xlu0 %7355
  %v7357 = vadd.f32 %v7180, %v7342
  %v7358 = vadd.f32 %v7181, %v7344
  %v7359 = vadd.f32 %v7182, %v7346
  %v7360 = vadd.f32 %v7183, %v7348
  %v7361 = vadd.f32 %v7184, %v7350
  %v7362 = vadd.f32 %v7185, %v7352
  %v7363 = vadd.f32 %v7186, %v7354
  %v7364 = vadd.f32 %v7187, %v7356
  %v7365 = vmul.f32 %v7325, 0.0034722222
  %v7366 = vmul.f32 %v7326, 0.0034722222
  %v7367 = vmul.f32 %v7327, 0.0034722222
  %v7368 = vmul.f32 %v7328, 0.0034722222
  %v7369 = vmul.f32 %v7329, 0.0034722222
  %v7370 = vmul.f32 %v7330, 0.0034722222
  %v7371 = vmul.f32 %v7331, 0.0034722222
  %v7372 = vmul.f32 %v7332, 0.0034722222
  %v7373 = vmul.f32 %v7357, 0.0034722222
  %v7374 = vmul.f32 %v7358, 0.0034722222
  %v7375 = vmul.f32 %v7359, 0.0034722222
  %v7376 = vmul.f32 %v7360, 0.0034722222
  %v7377 = vmul.f32 %v7361, 0.0034722222
  %v7378 = vmul.f32 %v7362, 0.0034722222
  %v7379 = vmul.f32 %v7363, 0.0034722222
  %v7380 = vmul.f32 %v7364, 0.0034722222
  %v7381 = vmul.f32 %v7365, %v7365
  %v7382 = vmul.f32 %v7366, %v7366
  %v7383 = vmul.f32 %v7367, %v7367
  %v7384 = vmul.f32 %v7368, %v7368
  %v7385 = vmul.f32 %v7369, %v7369
  %v7386 = vmul.f32 %v7370, %v7370
  %v7387 = vmul.f32 %v7371, %v7371
  %v7388 = vmul.f32 %v7372, %v7372
  %v7389 = vsub.f32 %v7373, %v7381
  %v7390 = vsub.f32 %v7374, %v7382
  %v7391 = vsub.f32 %v7375, %v7383
  %v7392 = vsub.f32 %v7376, %v7384
  %v7393 = vsub.f32 %v7377, %v7385
  %v7394 = vsub.f32 %v7378, %v7386
  %v7395 = vsub.f32 %v7379, %v7387
  %v7396 = vsub.f32 %v7380, %v7388
  %v7397 = vadd.f32 %v7389, 1e-05
  %v7398 = vadd.f32 %v7390, 1e-05
  %v7399 = vadd.f32 %v7391, 1e-05
  %v7400 = vadd.f32 %v7392, 1e-05
  %v7401 = vadd.f32 %v7393, 1e-05
  %v7402 = vadd.f32 %v7394, 1e-05
  %v7403 = vadd.f32 %v7395, 1e-05
  %v7404 = vadd.f32 %v7396, 1e-05
  %v7405 = vrsqrt.pop %v7397
  %v7406 = vmul.f32 %v7405, %v7397
  %v7407 = vmul.f32 %v7406, %v7405
  %v7408 = vmul.f32 0.5, %v7407
  %v7409 = vsub.f32 1.5, %v7408
  %v7410 = vmul.f32 %v7405, %v7409
  %vm7411 = vweird.f32 %v7397
  %vm7412 = vweird.f32 %v7405
  %vm7413 = vmor %vm7411, %vm7412
  %v7414 = vsel %vm7413, %v7405, %v7410
  %v7415 = vrsqrt.pop %v7398
  %v7416 = vmul.f32 %v7415, %v7398
  %v7417 = vmul.f32 %v7416, %v7415
  %v7418 = vmul.f32 0.5, %v7417
  %v7419 = vsub.f32 1.5, %v7418
  %v7420 = vmul.f32 %v7415, %v7419
  %vm7421 = vweird.f32 %v7398
  %vm7422 = vweird.f32 %v7415
  %vm7423 = vmor %vm7421, %vm7422
  %v7424 = vsel %vm7423, %v7415, %v7420
  %v7425 = vrsqrt.pop %v7399
  %v7426 = vmul.f32 %v7425, %v7399
  %v7427 = vmul.f32 %v7426, %v7425
  %v7428 = vmul.f32 0.5, %v7427
  %v7429 = vsub.f32 1.5, %v7428
  %v7430 = vmul.f32 %v7425, %v7429
  %vm7431 = vweird.f32 %v7399
  %vm7432 = vweird.f32 %v7425
  %vm7433 = vmor %vm7431, %vm7432
  %v7434 = vsel %vm7433, %v7425, %v7430
  %v7435 = vrsqrt.pop %v7400
  %v7436 = vmul.f32 %v7435, %v7400
  %v7437 = vmul.f32 %v7436, %v7435
  %v7438 = vmul.f32 0.5, %v7437
  %v7439 = vsub.f32 1.5, %v7438
  %v7440 = vmul.f32 %v7435, %v7439
  %vm7441 = vweird.f32 %v7400
  %vm7442 = vweird.f32 %v7435
  %vm7443 = vmor %vm7441, %vm7442
  %v7444 = vsel %vm7443, %v7435, %v7440
  %v7445 = vrsqrt.pop %v7401
  %v7446 = vmul.f32 %v7445, %v7401
  %v7447 = vmul.f32 %v7446, %v7445
  %v7448 = vmul.f32 0.5, %v7447
  %v7449 = vsub.f32 1.5, %v7448
  %v7450 = vmul.f32 %v7445, %v7449
  %vm7451 = vweird.f32 %v7401
  %vm7452 = vweird.f32 %v7445
  %vm7453 = vmor %vm7451, %vm7452
  %v7454 = vsel %vm7453, %v7445, %v7450
  %v7455 = vrsqrt.pop %v7402
  %v7456 = vmul.f32 %v7455, %v7402
  %v7457 = vmul.f32 %v7456, %v7455
  %v7458 = vmul.f32 0.5, %v7457
  %v7459 = vsub.f32 1.5, %v7458
  %v7460 = vmul.f32 %v7455, %v7459
  %vm7461 = vweird.f32 %v7402
  %vm7462 = vweird.f32 %v7455
  %vm7463 = vmor %vm7461, %vm7462
  %v7464 = vsel %vm7463, %v7455, %v7460
  %v7465 = vrsqrt.pop %v7403
  %v7466 = vmul.f32 %v7465, %v7403
  %v7467 = vmul.f32 %v7466, %v7465
  %v7468 = vmul.f32 0.5, %v7467
  %v7469 = vsub.f32 1.5, %v7468
  %v7470 = vmul.f32 %v7465, %v7469
  %vm7471 = vweird.f32 %v7403
  %vm7472 = vweird.f32 %v7465
  %vm7473 = vmor %vm7471, %vm7472
  %v7474 = vsel %vm7473, %v7465, %v7470
  %v7475 = vrsqrt.pop %v7404
  %v7476 = vmul.f32 %v7475, %v7404
  %v7477 = vmul.f32 %v7476, %v7475
  %v7478 = vmul.f32 0.5, %v7477
  %v7479 = vsub.f32 1.5, %v7478
  %v7480 = vmul.f32 %v7475, %v7479
  %vm7481 = vweird.f32 %v7404
  %vm7482 = vweird.f32 %v7475
  %vm7483 = vmor %vm7481, %vm7482
  %v7484 = vsel %vm7483, %v7475, %v7480
  %v7485 = vld [vmem:[%s2] sm:$0xff]
  %v7486 = vld [vmem:[%s2 + $0x8] sm:$0xff]
  %v7487 = vld [vmem:[%s2 + $0x10] sm:$0xff]
  %v7488 = vld [vmem:[%s2 + $0x18] sm:$0xff]
  %v7489 = vld [vmem:[%s2 + $0x20] sm:$0xff]
  %v7490 = vld [vmem:[%s2 + $0x28] sm:$0xff]
  %v7491 = vld [vmem:[%s2 + $0x30] sm:$0xff]
  %v7492 = vld [vmem:[%s2 + $0x38] sm:$0xff]
  %v7493 = vmul.f32 %v7485, %v7414
  %v7494 = vmul.f32 %v7486, %v7424
  %v7495 = vmul.f32 %v7487, %v7434
  %v7496 = vmul.f32 %v7488, %v7444
  %v7497 = vmul.f32 %v7489, %v7454
  %v7498 = vmul.f32 %v7490, %v7464
  %v7499 = vmul.f32 %v7491, %v7474
  %v7500 = vmul.f32 %v7492, %v7484
  %7502 = vset.pattern.permute.xlu0 0
  %7503 = vperm.xlu0 %7502, %v7493
  %v7504 = vpop.permute.xlu0 %7503
  %7507 = vset.pattern.permute.xlu0 0
  %7508 = vperm.xlu0 %7507, %v7494
  %v7509 = vpop.permute.xlu0 %7508
  %7512 = vset.pattern.permute.xlu0 0
  %7513 = vperm.xlu0 %7512, %v7495
  %v7514 = vpop.permute.xlu0 %7513
  %7517 = vset.pattern.permute.xlu0 0
  %7518 = vperm.xlu0 %7517, %v7496
  %v7519 = vpop.permute.xlu0 %7518
  %7522 = vset.pattern.permute.xlu0 0
  %7523 = vperm.xlu0 %7522, %v7497
  %v7524 = vpop.permute.xlu0 %7523
  %7527 = vset.pattern.permute.xlu0 0
  %7528 = vperm.xlu0 %7527, %v7498
  %v7529 = vpop.permute.xlu0 %7528
  %7532 = vset.pattern.permute.xlu0 0
  %7533 = vperm.xlu0 %7532, %v7499
  %v7534 = vpop.permute.xlu0 %7533
  %7537 = vset.pattern.permute.xlu0 0
  %7538 = vperm.xlu0 %7537, %v7500
  %v7539 = vpop.permute.xlu0 %7538
  %v7541 = vld [vmem:[%s3] sm:$0xff]
  %v7542 = vld [vmem:[%s3 + $0x8] sm:$0xff]
  %v7543 = vld [vmem:[%s3 + $0x10] sm:$0xff]
  %v7544 = vld [vmem:[%s3 + $0x18] sm:$0xff]
  %v7545 = vld [vmem:[%s3 + $0x20] sm:$0xff]
  %v7546 = vld [vmem:[%s3 + $0x28] sm:$0xff]
  %v7547 = vld [vmem:[%s3 + $0x30] sm:$0xff]
  %v7548 = vld [vmem:[%s3 + $0x38] sm:$0xff]
  %v7549 = vmul.f32 %v7365, %v7493
  %v7550 = vmul.f32 %v7366, %v7494
  %v7551 = vmul.f32 %v7367, %v7495
  %v7552 = vmul.f32 %v7368, %v7496
  %v7553 = vmul.f32 %v7369, %v7497
  %v7554 = vmul.f32 %v7370, %v7498
  %v7555 = vmul.f32 %v7371, %v7499
  %v7556 = vmul.f32 %v7372, %v7500
  %v7557 = vsub.f32 %v7541, %v7549
  %v7558 = vsub.f32 %v7542, %v7550
  %v7559 = vsub.f32 %v7543, %v7551
  %v7560 = vsub.f32 %v7544, %v7552
  %v7561 = vsub.f32 %v7545, %v7553
  %v7562 = vsub.f32 %v7546, %v7554
  %v7563 = vsub.f32 %v7547, %v7555
  %v7564 = vsub.f32 %v7548, %v7556
  %7566 = vset.pattern.permute.xlu0 0
  %7567 = vperm.xlu0 %7566, %v7557
  %v7568 = vpop.permute.xlu0 %7567
  %7571 = vset.pattern.permute.xlu0 0
  %7572 = vperm.xlu0 %7571, %v7558
  %v7573 = vpop.permute.xlu0 %7572
  %7576 = vset.pattern.permute.xlu0 0
  %7577 = vperm.xlu0 %7576, %v7559
  %v7578 = vpop.permute.xlu0 %7577
  %7581 = vset.pattern.permute.xlu0 0
  %7582 = vperm.xlu0 %7581, %v7560
  %v7583 = vpop.permute.xlu0 %7582
  %7586 = vset.pattern.permute.xlu0 0
  %7587 = vperm.xlu0 %7586, %v7561
  %v7588 = vpop.permute.xlu0 %7587
  %7591 = vset.pattern.permute.xlu0 0
  %7592 = vperm.xlu0 %7591, %v7562
  %v7593 = vpop.permute.xlu0 %7592
  %7596 = vset.pattern.permute.xlu0 0
  %7597 = vperm.xlu0 %7596, %v7563
  %v7598 = vpop.permute.xlu0 %7597
  %7601 = vset.pattern.permute.xlu0 0
  %7602 = vperm.xlu0 %7601, %v7564
  %v7603 = vpop.permute.xlu0 %7602
  %v7605 = vld [vmem:[#allocation3] sm:$0xff]
  %v7606 = vld [vmem:[#allocation3 + $0x40] sm:$0xff]
  %v7607 = vld [vmem:[#allocation3 + $0x80] sm:$0xff]
  %v7608 = vld [vmem:[#allocation3 + $0xc0] sm:$0xff]
  %v7609 = vld [vmem:[#allocation3 + $0x100] sm:$0xff]
  %v7610 = vld [vmem:[#allocation3 + $0x140] sm:$0xff]
  %v7611 = vld [vmem:[#allocation3 + $0x180] sm:$0xff]
  %v7612 = vld [vmem:[#allocation3 + $0x1c0] sm:$0xff]
  %v7613 = vmul.f32 %v7605, %v7504
  %v7614 = vmul.f32 %v7606, %v7509
  %v7615 = vmul.f32 %v7607, %v7514
  %v7616 = vmul.f32 %v7608, %v7519
  %v7617 = vmul.f32 %v7609, %v7524
  %v7618 = vmul.f32 %v7610, %v7529
  %v7619 = vmul.f32 %v7611, %v7534
  %v7620 = vmul.f32 %v7612, %v7539
  %v7621 = vadd.f32 %v7613, %v7568
  %v7622 = vadd.f32 %v7614, %v7573
  %v7623 = vadd.f32 %v7615, %v7578
  %v7624 = vadd.f32 %v7616, %v7583
  %v7625 = vadd.f32 %v7617, %v7588
  %v7626 = vadd.f32 %v7618, %v7593
  %v7627 = vadd.f32 %v7619, %v7598
  %v7628 = vadd.f32 %v7620, %v7603
  %vm7629 = vcmp.gt.f32.partialorder %v7621, 0.0
  %vm7630 = vcmp.gt.f32.partialorder %v7622, 0.0
  %vm7631 = vcmp.gt.f32.partialorder %v7623, 0.0
  %vm7632 = vcmp.gt.f32.partialorder %v7624, 0.0
  %vm7633 = vcmp.gt.f32.partialorder %v7625, 0.0
  %vm7634 = vcmp.gt.f32.partialorder %v7626, 0.0
  %vm7635 = vcmp.gt.f32.partialorder %v7627, 0.0
  %vm7636 = vcmp.gt.f32.partialorder %v7628, 0.0
  %v7637 = vmul.f32 %v7621, 0.2
  %v7638 = vmul.f32 %v7622, 0.2
  %v7639 = vmul.f32 %v7623, 0.2
  %v7640 = vmul.f32 %v7624, 0.2
  %v7641 = vmul.f32 %v7625, 0.2
  %v7642 = vmul.f32 %v7626, 0.2
  %v7643 = vmul.f32 %v7627, 0.2
  %v7644 = vmul.f32 %v7628, 0.2
  %v7645 = vsel %vm7629, %v7621, %v7637
  %v7646 = vsel %vm7630, %v7622, %v7638
  %v7647 = vsel %vm7631, %v7623, %v7639
  %v7648 = vsel %vm7632, %v7624, %v7640
  %v7649 = vsel %vm7633, %v7625, %v7641
  %v7650 = vsel %vm7634, %v7626, %v7642
  %v7651 = vsel %vm7635, %v7627, %v7643
  %v7652 = vsel %vm7636, %v7628, %v7644
  %v7653 = vld [vmem:[#allocation3 + $0x10] sm:$0xff]
  %v7654 = vld [vmem:[#allocation3 + $0x50] sm:$0xff]
  %v7655 = vld [vmem:[#allocation3 + $0x90] sm:$0xff]
  %v7656 = vld [vmem:[#allocation3 + $0xd0] sm:$0xff]
  %v7657 = vld [vmem:[#allocation3 + $0x110] sm:$0xff]
  %v7658 = vld [vmem:[#allocation3 + $0x150] sm:$0xff]
  %v7659 = vld [vmem:[#allocation3 + $0x190] sm:$0xff]
  %v7660 = vld [vmem:[#allocation3 + $0x1d0] sm:$0xff]
  %v7661 = vmul.f32 %v7653, %v7504
  %v7662 = vmul.f32 %v7654, %v7509
  %v7663 = vmul.f32 %v7655, %v7514
  %v7664 = vmul.f32 %v7656, %v7519
  %v7665 = vmul.f32 %v7657, %v7524
  %v7666 = vmul.f32 %v7658, %v7529
  %v7667 = vmul.f32 %v7659, %v7534
  %v7668 = vmul.f32 %v7660, %v7539
  %v7669 = vadd.f32 %v7661, %v7568
  %v7670 = vadd.f32 %v7662, %v7573
  %v7671 = vadd.f32 %v7663, %v7578
  %v7672 = vadd.f32 %v7664, %v7583
  %v7673 = vadd.f32 %v7665, %v7588
  %v7674 = vadd.f32 %v7666, %v7593
  %v7675 = vadd.f32 %v7667, %v7598
  %v7676 = vadd.f32 %v7668, %v7603
  %vm7677 = vcmp.gt.f32.partialorder %v7669, 0.0
  %vm7678 = vcmp.gt.f32.partialorder %v7670, 0.0
  %vm7679 = vcmp.gt.f32.partialorder %v7671, 0.0
  %vm7680 = vcmp.gt.f32.partialorder %v7672, 0.0
  %vm7681 = vcmp.gt.f32.partialorder %v7673, 0.0
  %vm7682 = vcmp.gt.f32.partialorder %v7674, 0.0
  %vm7683 = vcmp.gt.f32.partialorder %v7675, 0.0
  %vm7684 = vcmp.gt.f32.partialorder %v7676, 0.0
  %v7685 = vmul.f32 %v7669, 0.2
  %v7686 = vmul.f32 %v7670, 0.2
  %v7687 = vmul.f32 %v7671, 0.2
  %v7688 = vmul.f32 %v7672, 0.2
  %v7689 = vmul.f32 %v7673, 0.2
  %v7690 = vmul.f32 %v7674, 0.2
  %v7691 = vmul.f32 %v7675, 0.2
  %v7692 = vmul.f32 %v7676, 0.2
  %v7693 = vsel %vm7677, %v7669, %v7685
  %v7694 = vsel %vm7678, %v7670, %v7686
  %v7695 = vsel %vm7679, %v7671, %v7687
  %v7696 = vsel %vm7680, %v7672, %v7688
  %v7697 = vsel %vm7681, %v7673, %v7689
  %v7698 = vsel %vm7682, %v7674, %v7690
  %v7699 = vsel %vm7683, %v7675, %v7691
  %v7700 = vsel %vm7684, %v7676, %v7692
  %v7701 = vld [vmem:[#allocation3 + $0x20] sm:$0xff]
  %v7702 = vld [vmem:[#allocation3 + $0x60] sm:$0xff]
  %v7703 = vld [vmem:[#allocation3 + $0xa0] sm:$0xff]
  %v7704 = vld [vmem:[#allocation3 + $0xe0] sm:$0xff]
  %v7705 = vld [vmem:[#allocation3 + $0x120] sm:$0xff]
  %v7706 = vld [vmem:[#allocation3 + $0x160] sm:$0xff]
  %v7707 = vld [vmem:[#allocation3 + $0x1a0] sm:$0xff]
  %v7708 = vld [vmem:[#allocation3 + $0x1e0] sm:$0xff]
  %v7709 = vmul.f32 %v7701, %v7504
  %v7710 = vmul.f32 %v7702, %v7509
  %v7711 = vmul.f32 %v7703, %v7514
  %v7712 = vmul.f32 %v7704, %v7519
  %v7713 = vmul.f32 %v7705, %v7524
  %v7714 = vmul.f32 %v7706, %v7529
  %v7715 = vmul.f32 %v7707, %v7534
  %v7716 = vmul.f32 %v7708, %v7539
  %v7717 = vadd.f32 %v7709, %v7568
  %v7718 = vadd.f32 %v7710, %v7573
  %v7719 = vadd.f32 %v7711, %v7578
  %v7720 = vadd.f32 %v7712, %v7583
  %v7721 = vadd.f32 %v7713, %v7588
  %v7722 = vadd.f32 %v7714, %v7593
  %v7723 = vadd.f32 %v7715, %v7598
  %v7724 = vadd.f32 %v7716, %v7603
  %vm7725 = vcmp.gt.f32.partialorder %v7717, 0.0
  %vm7726 = vcmp.gt.f32.partialorder %v7718, 0.0
  %vm7727 = vcmp.gt.f32.partialorder %v7719, 0.0
  %vm7728 = vcmp.gt.f32.partialorder %v7720, 0.0
  %vm7729 = vcmp.gt.f32.partialorder %v7721, 0.0
  %vm7730 = vcmp.gt.f32.partialorder %v7722, 0.0
  %vm7731 = vcmp.gt.f32.partialorder %v7723, 0.0
  %vm7732 = vcmp.gt.f32.partialorder %v7724, 0.0
  %v7733 = vmul.f32 %v7717, 0.2
  %v7734 = vmul.f32 %v7718, 0.2
  %v7735 = vmul.f32 %v7719, 0.2
  %v7736 = vmul.f32 %v7720, 0.2
  %v7737 = vmul.f32 %v7721, 0.2
  %v7738 = vmul.f32 %v7722, 0.2
  %v7739 = vmul.f32 %v7723, 0.2
  %v7740 = vmul.f32 %v7724, 0.2
  %v7741 = vsel %vm7725, %v7717, %v7733
  %v7742 = vsel %vm7726, %v7718, %v7734
  %v7743 = vsel %vm7727, %v7719, %v7735
  %v7744 = vsel %vm7728, %v7720, %v7736
  %v7745 = vsel %vm7729, %v7721, %v7737
  %v7746 = vsel %vm7730, %v7722, %v7738
  %v7747 = vsel %vm7731, %v7723, %v7739
  %v7748 = vsel %vm7732, %v7724, %v7740
  %v7749 = vld [vmem:[#allocation3 + $0x30] sm:$0xff]
  %v7750 = vld [vmem:[#allocation3 + $0x70] sm:$0xff]
  %v7751 = vld [vmem:[#allocation3 + $0xb0] sm:$0xff]
  %v7752 = vld [vmem:[#allocation3 + $0xf0] sm:$0xff]
  %v7753 = vld [vmem:[#allocation3 + $0x130] sm:$0xff]
  %v7754 = vld [vmem:[#allocation3 + $0x170] sm:$0xff]
  %v7755 = vld [vmem:[#allocation3 + $0x1b0] sm:$0xff]
  %v7756 = vld [vmem:[#allocation3 + $0x1f0] sm:$0xff]
  %v7757 = vmul.f32 %v7749, %v7504
  %v7758 = vmul.f32 %v7750, %v7509
  %v7759 = vmul.f32 %v7751, %v7514
  %v7760 = vmul.f32 %v7752, %v7519
  %v7761 = vmul.f32 %v7753, %v7524
  %v7762 = vmul.f32 %v7754, %v7529
  %v7763 = vmul.f32 %v7755, %v7534
  %v7764 = vmul.f32 %v7756, %v7539
  %v7765 = vadd.f32 %v7757, %v7568
  %v7766 = vadd.f32 %v7758, %v7573
  %v7767 = vadd.f32 %v7759, %v7578
  %v7768 = vadd.f32 %v7760, %v7583
  %v7769 = vadd.f32 %v7761, %v7588
  %v7770 = vadd.f32 %v7762, %v7593
  %v7771 = vadd.f32 %v7763, %v7598
  %v7772 = vadd.f32 %v7764, %v7603
  %vm7773 = vcmp.gt.f32.partialorder %v7765, 0.0
  %vm7774 = vcmp.gt.f32.partialorder %v7766, 0.0
  %vm7775 = vcmp.gt.f32.partialorder %v7767, 0.0
  %vm7776 = vcmp.gt.f32.partialorder %v7768, 0.0
  %vm7777 = vcmp.gt.f32.partialorder %v7769, 0.0
  %vm7778 = vcmp.gt.f32.partialorder %v7770, 0.0
  %vm7779 = vcmp.gt.f32.partialorder %v7771, 0.0
  %vm7780 = vcmp.gt.f32.partialorder %v7772, 0.0
  %v7781 = vmul.f32 %v7765, 0.2
  %v7782 = vmul.f32 %v7766, 0.2
  %v7783 = vmul.f32 %v7767, 0.2
  %v7784 = vmul.f32 %v7768, 0.2
  %v7785 = vmul.f32 %v7769, 0.2
  %v7786 = vmul.f32 %v7770, 0.2
  %v7787 = vmul.f32 %v7771, 0.2
  %v7788 = vmul.f32 %v7772, 0.2
  %v7789 = vsel %vm7773, %v7765, %v7781
  %v7790 = vsel %vm7774, %v7766, %v7782
  %v7791 = vsel %vm7775, %v7767, %v7783
  %v7792 = vsel %vm7776, %v7768, %v7784
  %v7793 = vsel %vm7777, %v7769, %v7785
  %v7794 = vsel %vm7778, %v7770, %v7786
  %v7795 = vsel %vm7779, %v7771, %v7787
  %v7796 = vsel %vm7780, %v7772, %v7788
  %v7797 = vmax.f32 %v7645, %v7693
  %v7798 = vmax.f32 %v7646, %v7694
  %v7799 = vmax.f32 %v7647, %v7695
  %v7800 = vmax.f32 %v7648, %v7696
  %v7801 = vmax.f32 %v7649, %v7697
  %v7802 = vmax.f32 %v7650, %v7698
  %v7803 = vmax.f32 %v7651, %v7699
  %v7804 = vmax.f32 %v7652, %v7700
  %v7805 = vmax.f32 %v7741, %v7789
  %v7806 = vmax.f32 %v7742, %v7790
  %v7807 = vmax.f32 %v7743, %v7791
  %v7808 = vmax.f32 %v7744, %v7792
  %v7809 = vmax.f32 %v7745, %v7793
  %v7810 = vmax.f32 %v7746, %v7794
  %v7811 = vmax.f32 %v7747, %v7795
  %v7812 = vmax.f32 %v7748, %v7796
  %v7813 = vmax.f32 %v7797, %v7805
  %v7814 = vmax.f32 %v7798, %v7806
  %v7815 = vmax.f32 %v7799, %v7807
  %v7816 = vmax.f32 %v7800, %v7808
  %v7817 = vmax.f32 %v7801, %v7809
  %v7818 = vmax.f32 %v7802, %v7810
  %v7819 = vmax.f32 %v7803, %v7811
  %v7820 = vmax.f32 %v7804, %v7812
  %7821 = vst [vmem:[%s5] sm:$0xff] %v7813
  %7822 = vst [vmem:[%s5 + $0x10] sm:$0xff] %v7814
  %7823 = vst [vmem:[%s5 + $0x20] sm:$0xff] %v7815
  %7824 = vst [vmem:[%s5 + $0x30] sm:$0xff] %v7816
  %7825 = vst [vmem:[%s5 + $0x40] sm:$0xff] %v7817
  %7826 = vst [vmem:[%s5 + $0x50] sm:$0xff] %v7818
  %7827 = vst [vmem:[%s5 + $0x60] sm:$0xff] %v7819
  %7828 = vst [vmem:[%s5 + $0x70] sm:$0xff] %v7820
  %v7829 = vld [vmem:[#allocation3 + $0x8] sm:$0xff]
  %v7830 = vld [vmem:[#allocation3 + $0x48] sm:$0xff]
  %v7831 = vld [vmem:[#allocation3 + $0x88] sm:$0xff]
  %v7832 = vld [vmem:[#allocation3 + $0xc8] sm:$0xff]
  %v7833 = vld [vmem:[#allocation3 + $0x108] sm:$0xff]
  %v7834 = vld [vmem:[#allocation3 + $0x148] sm:$0xff]
  %v7835 = vld [vmem:[#allocation3 + $0x188] sm:$0xff]
  %v7836 = vld [vmem:[#allocation3 + $0x1c8] sm:$0xff]
  %v7837 = vmul.f32 %v7829, %v7504
  %v7838 = vmul.f32 %v7830, %v7509
  %v7839 = vmul.f32 %v7831, %v7514
  %v7840 = vmul.f32 %v7832, %v7519
  %v7841 = vmul.f32 %v7833, %v7524
  %v7842 = vmul.f32 %v7834, %v7529
  %v7843 = vmul.f32 %v7835, %v7534
  %v7844 = vmul.f32 %v7836, %v7539
  %v7845 = vadd.f32 %v7837, %v7568
  %v7846 = vadd.f32 %v7838, %v7573
  %v7847 = vadd.f32 %v7839, %v7578
  %v7848 = vadd.f32 %v7840, %v7583
  %v7849 = vadd.f32 %v7841, %v7588
  %v7850 = vadd.f32 %v7842, %v7593
  %v7851 = vadd.f32 %v7843, %v7598
  %v7852 = vadd.f32 %v7844, %v7603
  %vm7853 = vcmp.gt.f32.partialorder %v7845, 0.0
  %vm7854 = vcmp.gt.f32.partialorder %v7846, 0.0
  %vm7855 = vcmp.gt.f32.partialorder %v7847, 0.0
  %vm7856 = vcmp.gt.f32.partialorder %v7848, 0.0
  %vm7857 = vcmp.gt.f32.partialorder %v7849, 0.0
  %vm7858 = vcmp.gt.f32.partialorder %v7850, 0.0
  %vm7859 = vcmp.gt.f32.partialorder %v7851, 0.0
  %vm7860 = vcmp.gt.f32.partialorder %v7852, 0.0
  %v7861 = vmul.f32 %v7845, 0.2
  %v7862 = vmul.f32 %v7846, 0.2
  %v7863 = vmul.f32 %v7847, 0.2
  %v7864 = vmul.f32 %v7848, 0.2
  %v7865 = vmul.f32 %v7849, 0.2
  %v7866 = vmul.f32 %v7850, 0.2
  %v7867 = vmul.f32 %v7851, 0.2
  %v7868 = vmul.f32 %v7852, 0.2
  %v7869 = vsel %vm7853, %v7845, %v7861
  %v7870 = vsel %vm7854, %v7846, %v7862
  %v7871 = vsel %vm7855, %v7847, %v7863
  %v7872 = vsel %vm7856, %v7848, %v7864
  %v7873 = vsel %vm7857, %v7849, %v7865
  %v7874 = vsel %vm7858, %v7850, %v7866
  %v7875 = vsel %vm7859, %v7851, %v7867
  %v7876 = vsel %vm7860, %v7852, %v7868
  %v7877 = vld [vmem:[#allocation3 + $0x18] sm:$0xff]
  %v7878 = vld [vmem:[#allocation3 + $0x58] sm:$0xff]
  %v7879 = vld [vmem:[#allocation3 + $0x98] sm:$0xff]
  %v7880 = vld [vmem:[#allocation3 + $0xd8] sm:$0xff]
  %v7881 = vld [vmem:[#allocation3 + $0x118] sm:$0xff]
  %v7882 = vld [vmem:[#allocation3 + $0x158] sm:$0xff]
  %v7883 = vld [vmem:[#allocation3 + $0x198] sm:$0xff]
  %v7884 = vld [vmem:[#allocation3 + $0x1d8] sm:$0xff]
  %v7885 = vmul.f32 %v7877, %v7504
  %v7886 = vmul.f32 %v7878, %v7509
  %v7887 = vmul.f32 %v7879, %v7514
  %v7888 = vmul.f32 %v7880, %v7519
  %v7889 = vmul.f32 %v7881, %v7524
  %v7890 = vmul.f32 %v7882, %v7529
  %v7891 = vmul.f32 %v7883, %v7534
  %v7892 = vmul.f32 %v7884, %v7539
  %v7893 = vadd.f32 %v7885, %v7568
  %v7894 = vadd.f32 %v7886, %v7573
  %v7895 = vadd.f32 %v7887, %v7578
  %v7896 = vadd.f32 %v7888, %v7583
  %v7897 = vadd.f32 %v7889, %v7588
  %v7898 = vadd.f32 %v7890, %v7593
  %v7899 = vadd.f32 %v7891, %v7598
  %v7900 = vadd.f32 %v7892, %v7603
  %vm7901 = vcmp.gt.f32.partialorder %v7893, 0.0
  %vm7902 = vcmp.gt.f32.partialorder %v7894, 0.0
  %vm7903 = vcmp.gt.f32.partialorder %v7895, 0.0
  %vm7904 = vcmp.gt.f32.partialorder %v7896, 0.0
  %vm7905 = vcmp.gt.f32.partialorder %v7897, 0.0
  %vm7906 = vcmp.gt.f32.partialorder %v7898, 0.0
  %vm7907 = vcmp.gt.f32.partialorder %v7899, 0.0
  %vm7908 = vcmp.gt.f32.partialorder %v7900, 0.0
  %v7909 = vmul.f32 %v7893, 0.2
  %v7910 = vmul.f32 %v7894, 0.2
  %v7911 = vmul.f32 %v7895, 0.2
  %v7912 = vmul.f32 %v7896, 0.2
  %v7913 = vmul.f32 %v7897, 0.2
  %v7914 = vmul.f32 %v7898, 0.2
  %v7915 = vmul.f32 %v7899, 0.2
  %v7916 = vmul.f32 %v7900, 0.2
  %v7917 = vsel %vm7901, %v7893, %v7909
  %v7918 = vsel %vm7902, %v7894, %v7910
  %v7919 = vsel %vm7903, %v7895, %v7911
  %v7920 = vsel %vm7904, %v7896, %v7912
  %v7921 = vsel %vm7905, %v7897, %v7913
  %v7922 = vsel %vm7906, %v7898, %v7914
  %v7923 = vsel %vm7907, %v7899, %v7915
  %v7924 = vsel %vm7908, %v7900, %v7916
  %v7925 = vld [vmem:[#allocation3 + $0x28] sm:$0xff]
  %v7926 = vld [vmem:[#allocation3 + $0x68] sm:$0xff]
  %v7927 = vld [vmem:[#allocation3 + $0xa8] sm:$0xff]
  %v7928 = vld [vmem:[#allocation3 + $0xe8] sm:$0xff]
  %v7929 = vld [vmem:[#allocation3 + $0x128] sm:$0xff]
  %v7930 = vld [vmem:[#allocation3 + $0x168] sm:$0xff]
  %v7931 = vld [vmem:[#allocation3 + $0x1a8] sm:$0xff]
  %v7932 = vld [vmem:[#allocation3 + $0x1e8] sm:$0xff]
  %v7933 = vmul.f32 %v7925, %v7504
  %v7934 = vmul.f32 %v7926, %v7509
  %v7935 = vmul.f32 %v7927, %v7514
  %v7936 = vmul.f32 %v7928, %v7519
  %v7937 = vmul.f32 %v7929, %v7524
  %v7938 = vmul.f32 %v7930, %v7529
  %v7939 = vmul.f32 %v7931, %v7534
  %v7940 = vmul.f32 %v7932, %v7539
  %v7941 = vadd.f32 %v7933, %v7568
  %v7942 = vadd.f32 %v7934, %v7573
  %v7943 = vadd.f32 %v7935, %v7578
  %v7944 = vadd.f32 %v7936, %v7583
  %v7945 = vadd.f32 %v7937, %v7588
  %v7946 = vadd.f32 %v7938, %v7593
  %v7947 = vadd.f32 %v7939, %v7598
  %v7948 = vadd.f32 %v7940, %v7603
  %vm7949 = vcmp.gt.f32.partialorder %v7941, 0.0
  %vm7950 = vcmp.gt.f32.partialorder %v7942, 0.0
  %vm7951 = vcmp.gt.f32.partialorder %v7943, 0.0
  %vm7952 = vcmp.gt.f32.partialorder %v7944, 0.0
  %vm7953 = vcmp.gt.f32.partialorder %v7945, 0.0
  %vm7954 = vcmp.gt.f32.partialorder %v7946, 0.0
  %vm7955 = vcmp.gt.f32.partialorder %v7947, 0.0
  %vm7956 = vcmp.gt.f32.partialorder %v7948, 0.0
  %v7957 = vmul.f32 %v7941, 0.2
  %v7958 = vmul.f32 %v7942, 0.2
  %v7959 = vmul.f32 %v7943, 0.2
  %v7960 = vmul.f32 %v7944, 0.2
  %v7961 = vmul.f32 %v7945, 0.2
  %v7962 = vmul.f32 %v7946, 0.2
  %v7963 = vmul.f32 %v7947, 0.2
  %v7964 = vmul.f32 %v7948, 0.2
  %v7965 = vsel %vm7949, %v7941, %v7957
  %v7966 = vsel %vm7950, %v7942, %v7958
  %v7967 = vsel %vm7951, %v7943, %v7959
  %v7968 = vsel %vm7952, %v7944, %v7960
  %v7969 = vsel %vm7953, %v7945, %v7961
  %v7970 = vsel %vm7954, %v7946, %v7962
  %v7971 = vsel %vm7955, %v7947, %v7963
  %v7972 = vsel %vm7956, %v7948, %v7964
  %v7973 = vld [vmem:[#allocation3 + $0x38] sm:$0xff]
  %v7974 = vld [vmem:[#allocation3 + $0x78] sm:$0xff]
  %v7975 = vld [vmem:[#allocation3 + $0xb8] sm:$0xff]
  %v7976 = vld [vmem:[#allocation3 + $0xf8] sm:$0xff]
  %v7977 = vld [vmem:[#allocation3 + $0x138] sm:$0xff]
  %v7978 = vld [vmem:[#allocation3 + $0x178] sm:$0xff]
  %v7979 = vld [vmem:[#allocation3 + $0x1b8] sm:$0xff]
  %v7980 = vld [vmem:[#allocation3 + $0x1f8] sm:$0xff]
  %v7981 = vmul.f32 %v7973, %v7504
  %v7982 = vmul.f32 %v7974, %v7509
  %v7983 = vmul.f32 %v7975, %v7514
  %v7984 = vmul.f32 %v7976, %v7519
  %v7985 = vmul.f32 %v7977, %v7524
  %v7986 = vmul.f32 %v7978, %v7529
  %v7987 = vmul.f32 %v7979, %v7534
  %v7988 = vmul.f32 %v7980, %v7539
  %v7989 = vadd.f32 %v7981, %v7568
  %v7990 = vadd.f32 %v7982, %v7573
  %v7991 = vadd.f32 %v7983, %v7578
  %v7992 = vadd.f32 %v7984, %v7583
  %v7993 = vadd.f32 %v7985, %v7588
  %v7994 = vadd.f32 %v7986, %v7593
  %v7995 = vadd.f32 %v7987, %v7598
  %v7996 = vadd.f32 %v7988, %v7603
  %vm7997 = vcmp.gt.f32.partialorder %v7989, 0.0
  %vm7998 = vcmp.gt.f32.partialorder %v7990, 0.0
  %vm7999 = vcmp.gt.f32.partialorder %v7991, 0.0
  %vm8000 = vcmp.gt.f32.partialorder %v7992, 0.0
  %vm8001 = vcmp.gt.f32.partialorder %v7993, 0.0
  %vm8002 = vcmp.gt.f32.partialorder %v7994, 0.0
  %vm8003 = vcmp.gt.f32.partialorder %v7995, 0.0
  %vm8004 = vcmp.gt.f32.partialorder %v7996, 0.0
  %v8005 = vmul.f32 %v7989, 0.2
  %v8006 = vmul.f32 %v7990, 0.2
  %v8007 = vmul.f32 %v7991, 0.2
  %v8008 = vmul.f32 %v7992, 0.2
  %v8009 = vmul.f32 %v7993, 0.2
  %v8010 = vmul.f32 %v7994, 0.2
  %v8011 = vmul.f32 %v7995, 0.2
  %v8012 = vmul.f32 %v7996, 0.2
  %v8013 = vsel %vm7997, %v7989, %v8005
  %v8014 = vsel %vm7998, %v7990, %v8006
  %v8015 = vsel %vm7999, %v7991, %v8007
  %v8016 = vsel %vm8000, %v7992, %v8008
  %v8017 = vsel %vm8001, %v7993, %v8009
  %v8018 = vsel %vm8002, %v7994, %v8010
  %v8019 = vsel %vm8003, %v7995, %v8011
  %v8020 = vsel %vm8004, %v7996, %v8012
  %v8021 = vmax.f32 %v7869, %v7917
  %v8022 = vmax.f32 %v7870, %v7918
  %v8023 = vmax.f32 %v7871, %v7919
  %v8024 = vmax.f32 %v7872, %v7920
  %v8025 = vmax.f32 %v7873, %v7921
  %v8026 = vmax.f32 %v7874, %v7922
  %v8027 = vmax.f32 %v7875, %v7923
  %v8028 = vmax.f32 %v7876, %v7924
  %v8029 = vmax.f32 %v7965, %v8013
  %v8030 = vmax.f32 %v7966, %v8014
  %v8031 = vmax.f32 %v7967, %v8015
  %v8032 = vmax.f32 %v7968, %v8016
  %v8033 = vmax.f32 %v7969, %v8017
  %v8034 = vmax.f32 %v7970, %v8018
  %v8035 = vmax.f32 %v7971, %v8019
  %v8036 = vmax.f32 %v7972, %v8020
  %v8037 = vmax.f32 %v8021, %v8029
  %v8038 = vmax.f32 %v8022, %v8030
  %v8039 = vmax.f32 %v8023, %v8031
  %v8040 = vmax.f32 %v8024, %v8032
  %v8041 = vmax.f32 %v8025, %v8033
  %v8042 = vmax.f32 %v8026, %v8034
  %v8043 = vmax.f32 %v8027, %v8035
  %v8044 = vmax.f32 %v8028, %v8036
  %8045 = vst [vmem:[%s5 + $0x8] sm:$0xff] %v8037
  %8046 = vst [vmem:[%s5 + $0x18] sm:$0xff] %v8038
  %8047 = vst [vmem:[%s5 + $0x28] sm:$0xff] %v8039
  %8048 = vst [vmem:[%s5 + $0x38] sm:$0xff] %v8040
  %8049 = vst [vmem:[%s5 + $0x48] sm:$0xff] %v8041
  %8050 = vst [vmem:[%s5 + $0x58] sm:$0xff] %v8042
  %8051 = vst [vmem:[%s5 + $0x68] sm:$0xff] %v8043
  %8052 = vst [vmem:[%s5 + $0x78] sm:$0xff] %v8044
  // Predicated region
  $region22: #{my_model_forward.1} parent=0 // pred_check
    _
  $region23: #{my_model_forward.1} parent=0 // pred_check_branch
    %8054 = sbr.rel (0) target = $region25
  $region24: #{my_model_forward.1} parent=0 // pred_region
    _
  $region25: #{my_model_forward.1} parent=0 // pred_fallthru
    _
  // Predicated region
  $region26: #{my_model_forward.1} parent=0 // pred_check
    _
  $region27: #{my_model_forward.1} parent=0 // pred_check_branch
    %8056 = sbr.rel (0) target = $region29
  $region28: #{my_model_forward.1} parent=0 // pred_region
    _
  $region29: #{my_model_forward.1} parent=0 // pred_fallthru
    _

</llo_original>
